<compile_context>
chip_gen: v7x
topology: tpu7x:2x2x1
jax: 0.10.0
libtpu: 0.0.40
codegen_flags: <defaults>
</compile_context>

<pallas_src>
import functools

import jax
import jax.numpy as jnp
from jax.experimental import pallas as pl
from jax.experimental.pallas import tpu as pltpu


# ----------------------------------------------------------------------------
# one-time weight preparation (plain XLA outside the kernel; all tiny)
# ----------------------------------------------------------------------------
def _band_conv_w(w, W):
    """(3,3,3,Cin,Cout) DHWIO conv weight -> (3,3, W*Cin, W*Cout).

    Folds the kw tap (and SAME padding along W) into the MXU contraction:
      out[kd, kh, v*Cin+ci, wo*Cout+co] = sum_kw [v == wo+kw-1] * w[kd,kh,kw,ci,co]
    """
    kD, kH, kW, Cin, Cout = w.shape
    v = jnp.arange(W)
    wo = jnp.arange(W)
    kw = jnp.arange(kW)
    sel = (v[None, :, None] == wo[None, None, :] + kw[:, None, None] - 1).astype(w.dtype)
    out = jnp.einsum("kvw,dekio->deviwo", sel, w)          # (3,3,W,Cin,W,Cout)
    return out.reshape(kD, kH, W * Cin, W * Cout)


def _blockdiag_w(wsc, W):
    """(Cin, Cout) 1x1-conv weight -> block-diagonal (W*Cin, W*Cout)."""
    Cin, Cout = wsc.shape
    eye = jnp.eye(W, dtype=wsc.dtype)
    return jnp.einsum("vw,io->viwo", eye, wsc).reshape(W * Cin, W * Cout)


def _group_fold(C, W, groups, cnt):
    """Fused GroupNorm fold matrix: M[a,b] = [group(a)==group(b)] / cnt, (W*C, W*C)."""
    ch = jnp.arange(W * C) % C
    grp = ch // (C // groups)
    same = (grp[:, None] == grp[None, :]).astype(jnp.float32)
    return same * (1.0 / cnt)


def _lane_tile(v, W):
    """(1, C) -> (1, W*C): per-channel values repeated across the W lane blocks."""
    return jnp.tile(v.reshape(1, -1).astype(jnp.float32), (1, W))


# ----------------------------------------------------------------------------
# in-kernel helpers (traced inside the Pallas kernel)
# ----------------------------------------------------------------------------
def _gn_silu(x2, gamma_wc, beta_wc, mfold_ref, eps):
    """Two-pass GroupNorm + SiLU in f32.  x2: (D*H, W*C), lane index = w*C + c."""
    ch_sum = jnp.sum(x2, axis=0, keepdims=True)                        # (1, W*C)
    mean = jnp.dot(ch_sum, mfold_ref, preferred_element_type=jnp.float32)
    xc = x2 - mean
    sq = jnp.sum(xc * xc, axis=0, keepdims=True)
    var = jnp.dot(sq, mfold_ref, preferred_element_type=jnp.float32)
    y = xc * jax.lax.rsqrt(var + eps) * gamma_wc + beta_wc
    return y * jax.nn.sigmoid(y)


def _zero_dh_border(pad_ref, D, H):
    """Zero only the D/H border strips of the pad slab (interior is overwritten)."""
    wc = pad_ref.shape[-1]
    zh = jnp.zeros((1, H + 2, wc), pad_ref.dtype)
    zd = jnp.zeros((D + 2, 1, wc), pad_ref.dtype)
    pad_ref[0:1, :, :] = zh
    pad_ref[D + 1:D + 2, :, :] = zh
    pad_ref[:, 0:1, :] = zd
    pad_ref[:, H + 1:H + 2, :] = zd


def _conv3x3x3(pad_ref, wband_ref, init, *, D, H):
    """3x3x3 SAME conv, 9 MXU matmuls with bf16 operands and f32 accumulation.

    pad_ref:   (D+2, H+2, W*Cin) f32 zero-bordered slab (interior = activation).
    wband_ref: (3, 3, W*Cin, W*Cout) bf16 banded weight (kw + W padding folded in K).
    init:      accumulator seed, (1, W*Cout) or (D*H, W*Cout) f32.
    Returns (D*H, W*Cout) f32.
    """
    WCin = pad_ref.shape[-1]
    acc = init
    for kd in range(3):
        for kh in range(3):
            tap = pad_ref[kd:kd + D, kh:kh + H, :].reshape(D * H, WCin)
            acc = acc + jnp.dot(tap.astype(wband_ref.dtype), wband_ref[kd, kh],
                                preferred_element_type=jnp.float32)
    return acc


# ----------------------------------------------------------------------------
# fused kernel: GN1 + SiLU + conv1 + temb + GN2 + SiLU + conv2 + shortcut + scale
# ----------------------------------------------------------------------------
def _resnet_block_kernel(x_ref, te_ref,
                         g1_ref, b1_ref, m1_ref, w1_ref, cb1_ref,
                         g2_ref, b2_ref, m2_ref, w2_ref, cb2_ref,
                         wsc_ref, bsc_ref,
                         o_ref,
                         pad1_ref, pad2_ref,
                         *, D, H, W, Cin, Cmid, Cout, eps, inv_scale):
    WCi, WCm = W * Cin, W * Cmid

    # D/H SAME padding: zero only the border strips (cheap, megacore-safe).
    _zero_dh_border(pad1_ref, D, H)
    _zero_dh_border(pad2_ref, D, H)

    x2 = x_ref[0]                                                      # (D*H, W*Cin) f32

    # --- GroupNorm1 + SiLU (f32 elementwise) ---
    y1 = _gn_silu(x2, g1_ref[...], b1_ref[...], m1_ref[...], eps)

    # --- conv1 (3x3x3 SAME); accumulator seeded with conv bias + temb projection ---
    pad1_ref[1:D + 1, 1:H + 1, :] = y1.reshape(D, H, WCi)
    h = _conv3x3x3(pad1_ref, w1_ref, cb1_ref[...] + te_ref[0], D=D, H=H)

    # --- GroupNorm2 + SiLU (dropout p=0.0 -> identity) ---
    y2 = _gn_silu(h, g2_ref[...], b2_ref[...], m2_ref[...], eps)

    # --- conv2 seeded with (1x1 shortcut + conv2 bias); residual + output scale ---
    pad2_ref[1:D + 1, 1:H + 1, :] = y2.reshape(D, H, WCm)
    sc = jnp.dot(x2.astype(wsc_ref.dtype), wsc_ref[...],
                 preferred_element_type=jnp.float32) + bsc_ref[...] + cb2_ref[...]
    out = _conv3x3x3(pad2_ref, w2_ref, sc, D=D, H=H)
    o_ref[0] = out * inv_scale


# ----------------------------------------------------------------------------
# full ResnetBlock3D forward (Pallas)
# ----------------------------------------------------------------------------
def resnet_block_3d_forward(x_ncdhw, temb, params, *, groups, eps, output_scale_factor):
    x = jnp.transpose(x_ncdhw, (0, 2, 3, 4, 1)).astype(jnp.float32)    # NCDHW -> NDHWC
    N, D, H, W, Cin = x.shape
    Cmid = params["w1"].shape[-1]
    Cout = params["w2"].shape[-1]
    S2 = D * H
    WCi, WCm, WCo = W * Cin, W * Cmid, W * Cout

    # lane-dense presentation (free row-major reshape): (N, D*H, W*C)
    x2 = x.reshape(N, S2, WCi)

    # --- one-time weight prep (all tiny, stays in XLA) ---
    wt1 = _band_conv_w(params["w1"].astype(jnp.float32), W).astype(jnp.bfloat16)
    wt2 = _band_conv_w(params["w2"].astype(jnp.float32), W).astype(jnp.bfloat16)
    wsc = _blockdiag_w(params["wsc"].astype(jnp.float32), W).astype(jnp.bfloat16)
    m1 = _group_fold(Cin, W, groups, float(D * H * W * (Cin // groups)))
    m2 = _group_fold(Cmid, W, groups, float(D * H * W * (Cmid // groups)))
    g1 = _lane_tile(params["gn1_gamma"], W)
    b1 = _lane_tile(params["gn1_beta"], W)
    g2 = _lane_tile(params["gn2_gamma"], W)
    b2 = _lane_tile(params["gn2_beta"], W)
    cb1 = _lane_tile(params["b1"], W)
    cb2 = _lane_tile(params["b2"], W)
    bsc = _lane_tile(params["bsc"], W)

    # time-embedding branch hoisted to XLA (only (N, Cmid) values), lane-tiled
    t = temb.astype(jnp.float32)
    te = (t * jax.nn.sigmoid(t)) @ params["wt"].astype(jnp.float32) \
        + params["bt"].astype(jnp.float32).reshape(1, -1)
    te = jnp.tile(te, (1, W)).reshape(N, 1, WCm)

    # --- per-step VMEM footprint -> sized vmem limit (v7x has only 64 MiB / core) ---
    def _bytes(a):
        return int(a.size) * a.dtype.itemsize
    invariant_b = sum(_bytes(a) for a in
                      (g1, b1, m1, wt1, cb1, g2, b2, m2, wt2, cb2, wsc, bsc))
    per_batch_b = _bytes(x2) // N + _bytes(te) // N + S2 * WCo * 4
    scratch_b = 4 * (D + 2) * (H + 2) * (WCi + WCm)
    vmem_limit = int(1.25 * (2 * (invariant_b + per_batch_b) + scratch_b)) + (8 << 20)
    vmem_limit = min(vmem_limit, 48 << 20)

    kernel = functools.partial(
        _resnet_block_kernel, D=D, H=H, W=W, Cin=Cin, Cmid=Cmid, Cout=Cout,
        eps=eps, inv_scale=1.0 / output_scale_factor)

    out = pl.pallas_call(
        kernel,
        out_shape=jax.ShapeDtypeStruct((N, S2, WCo), jnp.float32),
        grid=(N,),
        in_specs=[
            pl.BlockSpec((1, S2, WCi), lambda n: (n, 0, 0)),          # x (per batch)
            pl.BlockSpec((1, 1, WCm), lambda n: (n, 0, 0)),           # temb bias (per batch)
            # grid-invariant operands
            # TODO(synk): at larger shapes, use pipeline_mode=pl.Buffered(1) on these.
            pl.BlockSpec((1, WCi), lambda n: (0, 0)),                 # gn1 gamma
            pl.BlockSpec((1, WCi), lambda n: (0, 0)),                 # gn1 beta
            pl.BlockSpec((WCi, WCi), lambda n: (0, 0)),               # gn1 fold matrix
            pl.BlockSpec((3, 3, WCi, WCm), lambda n: (0, 0, 0, 0)),   # conv1 banded w (bf16)
            pl.BlockSpec((1, WCm), lambda n: (0, 0)),                 # conv1 bias
            pl.BlockSpec((1, WCm), lambda n: (0, 0)),                 # gn2 gamma
            pl.BlockSpec((1, WCm), lambda n: (0, 0)),                 # gn2 beta
            pl.BlockSpec((WCm, WCm), lambda n: (0, 0)),               # gn2 fold matrix
            pl.BlockSpec((3, 3, WCm, WCo), lambda n: (0, 0, 0, 0)),   # conv2 banded w (bf16)
            pl.BlockSpec((1, WCo), lambda n: (0, 0)),                 # conv2 bias
            pl.BlockSpec((WCi, WCo), lambda n: (0, 0)),               # shortcut w (bf16)
            pl.BlockSpec((1, WCo), lambda n: (0, 0)),                 # shortcut bias
        ],
        out_specs=pl.BlockSpec((1, S2, WCo), lambda n: (n, 0, 0)),
        scratch_shapes=[pltpu.VMEM((D + 2, H + 2, WCi), jnp.float32),
                        pltpu.VMEM((D + 2, H + 2, WCm), jnp.float32)],
        compiler_params=pltpu.CompilerParams(
            dimension_semantics=("parallel",),
            vmem_limit_bytes=vmem_limit),
    )(x2, te, g1, b1, m1, wt1, cb1, g2, b2, m2, wt2, cb2, wsc, bsc)

    out = out.reshape(N, D, H, W, Cout)
    return jnp.transpose(out, (0, 4, 1, 2, 3))                         # back to NCDHW


# ----------------------------------------------------------------------------
# pure-JAX f32 reference for verification
# ----------------------------------------------------------------------------
def ref_forward(x_ncdhw, temb, params, *, groups, eps, output_scale_factor):
    x = jnp.transpose(x_ncdhw, (0, 2, 3, 4, 1)).astype(jnp.float32)

    def gn(h, gamma, beta):
        N, D, H, W, C = h.shape
        hg = h.reshape(N, -1, groups, C // groups)
        mean = hg.mean(axis=(1, 3), keepdims=True)
        var = hg.var(axis=(1, 3), keepdims=True)
        hg = (hg - mean) * jax.lax.rsqrt(var + eps)
        return hg.reshape(N, D, H, W, C) * gamma.reshape(1, 1, 1, 1, C) \
            + beta.reshape(1, 1, 1, 1, C)

    def silu(v):
        return v * jax.nn.sigmoid(v)

    def conv3(h, w, b):
        out = jax.lax.conv_general_dilated(
            h, w, (1, 1, 1), "SAME",
            dimension_numbers=("NDHWC", "DHWIO", "NDHWC"))
        return out + b.reshape(1, 1, 1, 1, -1)

    h = silu(gn(x, params["gn1_gamma"], params["gn1_beta"]))
    h = conv3(h, params["w1"], params["b1"])
    te = silu(temb) @ params["wt"] + params["bt"]
    h = h + te[:, None, None, None, :]
    h = silu(gn(h, params["gn2_gamma"], params["gn2_beta"]))
    h = conv3(h, params["w2"], params["b2"])
    sc = jnp.einsum("ndhwc,co->ndhwo", x, params["wsc"]) + params["bsc"].reshape(1, 1, 1, 1, -1)
    out = (sc + h) / output_scale_factor
    return jnp.transpose(out, (0, 4, 1, 2, 3))


# ----------------------------------------------------------------------------
# main
# ----------------------------------------------------------------------------
if __name__ == "__main__":
    N, Cin, Cout, D, H, W = 2, 16, 32, 8, 8, 8
    Tc = 32                 # temb_channels
    groups = 4
    eps = 1e-6
    output_scale_factor = 1.0

    key = jax.random.PRNGKey(0)
    ks = jax.random.split(key, 14)

    params = {
        "gn1_gamma": 1.0 + 0.1 * jax.random.normal(ks[0], (1, Cin), jnp.float32),
        "gn1_beta": 0.1 * jax.random.normal(ks[1], (1, Cin), jnp.float32),
        "w1": 0.1 * jax.random.normal(ks[2], (3, 3, 3, Cin, Cout), jnp.float32),
        "b1": 0.05 * jax.random.normal(ks[3], (1, Cout), jnp.float32),
        "wt": 0.1 * jax.random.normal(ks[4], (Tc, Cout), jnp.float32),
        "bt": 0.05 * jax.random.normal(ks[5], (1, Cout), jnp.float32),
        "gn2_gamma": 1.0 + 0.1 * jax.random.normal(ks[6], (1, Cout), jnp.float32),
        "gn2_beta": 0.1 * jax.random.normal(ks[7], (1, Cout), jnp.float32),
        "w2": 0.1 * jax.random.normal(ks[8], (3, 3, 3, Cout, Cout), jnp.float32),
        "b2": 0.05 * jax.random.normal(ks[9], (1, Cout), jnp.float32),
        "wsc": 0.1 * jax.random.normal(ks[10], (Cin, Cout), jnp.float32),
        "bsc": 0.05 * jax.random.normal(ks[11], (1, Cout), jnp.float32),
    }

    x = jax.random.normal(ks[12], (N, Cin, D, H, W), jnp.float32)       # NCDHW like PyTorch
    temb = jax.random.normal(ks[13], (N, Tc), jnp.float32)

    fwd = jax.jit(functools.partial(resnet_block_3d_forward, groups=groups, eps=eps,
                                    output_scale_factor=output_scale_factor))
    out = fwd(x, temb, params)
    out = jax.block_until_ready(out)

    ref = ref_forward(x, temb, params, groups=groups, eps=eps,
                      output_scale_factor=output_scale_factor)
    assert out.shape == (N, Cout, D, H, W), out.shape
    # bf16 MXU operands (f32 accumulation): verify with a relative-RMS bound plus a
    # slightly loosened elementwise tolerance (pure f32 ref, two chained 3x3x3 convs).
    rel_rms = float(jnp.linalg.norm(out - ref) / jnp.linalg.norm(ref))
    max_err = float(jnp.max(jnp.abs(out - ref)))
    assert rel_rms < 2e-2, (rel_rms, max_err)
    assert jnp.allclose(out, ref, rtol=5e-2, atol=8e-2), (rel_rms, max_err)

    print("KERNEL_OK")
</pallas_src>

<mosaic_0001>
module attributes {stable_mosaic.version = 11 : i64} {
  func.func @_resnet_block_kernel(%arg0: i32, %arg1: memref<1x64x128xf32, #tpu.memory_space<vmem>>, %arg2: memref<1x1x256xf32, #tpu.memory_space<vmem>>, %arg3: memref<1x128xf32, #tpu.memory_space<vmem>>, %arg4: memref<1x128xf32, #tpu.memory_space<vmem>>, %arg5: memref<128x128xf32, #tpu.memory_space<vmem>>, %arg6: memref<3x3x128x256xbf16, #tpu.memory_space<vmem>>, %arg7: memref<1x256xf32, #tpu.memory_space<vmem>>, %arg8: memref<1x256xf32, #tpu.memory_space<vmem>>, %arg9: memref<1x256xf32, #tpu.memory_space<vmem>>, %arg10: memref<256x256xf32, #tpu.memory_space<vmem>>, %arg11: memref<3x3x256x256xbf16, #tpu.memory_space<vmem>>, %arg12: memref<1x256xf32, #tpu.memory_space<vmem>>, %arg13: memref<128x256xbf16, #tpu.memory_space<vmem>>, %arg14: memref<1x256xf32, #tpu.memory_space<vmem>>, %arg15: memref<1x64x256xf32, #tpu.memory_space<vmem>>, %arg16: memref<10x10x128xf32, #tpu.memory_space<vmem>>, %arg17: memref<10x10x256xf32, #tpu.memory_space<vmem>>) attributes {dimension_semantics = [#tpu.dimension_semantics<parallel>], iteration_bounds = array<i64: 2>, scalar_prefetch = 0 : i64, scratch_operands = 2 : i64, tpu.core_type = #tpu.core_type<tc>, window_params = [{transform_indices = @transform_0, window_bounds = array<i64: 1, 64, 128>}, {transform_indices = @transform_1, window_bounds = array<i64: 1, 1, 256>}, {pipeline_mode = #tpu.pipeline_mode<synchronous>, transform_indices = @transform_2, window_bounds = array<i64: 1, 128>}, {pipeline_mode = #tpu.pipeline_mode<synchronous>, transform_indices = @transform_3, window_bounds = array<i64: 1, 128>}, {pipeline_mode = #tpu.pipeline_mode<synchronous>, transform_indices = @transform_4, window_bounds = array<i64: 128, 128>}, {pipeline_mode = #tpu.pipeline_mode<synchronous>, transform_indices = @transform_5, window_bounds = array<i64: 3, 3, 128, 256>}, {pipeline_mode = #tpu.pipeline_mode<synchronous>, transform_indices = @transform_6, window_bounds = array<i64: 1, 256>}, {pipeline_mode = #tpu.pipeline_mode<synchronous>, transform_indices = @transform_7, window_bounds = array<i64: 1, 256>}, {pipeline_mode = #tpu.pipeline_mode<synchronous>, transform_indices = @transform_8, window_bounds = array<i64: 1, 256>}, {pipeline_mode = #tpu.pipeline_mode<synchronous>, transform_indices = @transform_9, window_bounds = array<i64: 256, 256>}, {pipeline_mode = #tpu.pipeline_mode<synchronous>, transform_indices = @transform_10, window_bounds = array<i64: 3, 3, 256, 256>}, {pipeline_mode = #tpu.pipeline_mode<synchronous>, transform_indices = @transform_11, window_bounds = array<i64: 1, 256>}, {pipeline_mode = #tpu.pipeline_mode<synchronous>, transform_indices = @transform_12, window_bounds = array<i64: 128, 256>}, {pipeline_mode = #tpu.pipeline_mode<synchronous>, transform_indices = @transform_13, window_bounds = array<i64: 1, 256>}, {transform_indices = @transform_14, window_bounds = array<i64: 1, 64, 256>}]} {
    %cst = arith.constant 0.000000e+00 : f32
    %0 = vector.broadcast %cst : f32 to vector<1x10x128xf32>
    %cst_0 = arith.constant 0.000000e+00 : f32
    %1 = vector.broadcast %cst_0 : f32 to vector<10x1x128xf32>
    %c0 = arith.constant 0 : index
    %c0_1 = arith.constant 0 : index
    %c0_2 = arith.constant 0 : index
    %2 = vector.load %arg16[%c0, %c0_1, %c0_2] : memref<10x10x128xf32, #tpu.memory_space<vmem>>, vector<1x10x128xf32>
    tpu.vector_store %arg16[%c0, %c0_1, %c0_2], %0 {strides = array<i32>} : memref<10x10x128xf32, #tpu.memory_space<vmem>>, vector<1x10x128xf32>,
    %c9 = arith.constant 9 : index
    %c0_3 = arith.constant 0 : index
    %c0_4 = arith.constant 0 : index
    %3 = vector.load %arg16[%c9, %c0_3, %c0_4] : memref<10x10x128xf32, #tpu.memory_space<vmem>>, vector<1x10x128xf32>
    tpu.vector_store %arg16[%c9, %c0_3, %c0_4], %0 {strides = array<i32>} : memref<10x10x128xf32, #tpu.memory_space<vmem>>, vector<1x10x128xf32>,
    %c0_5 = arith.constant 0 : index
    %c0_6 = arith.constant 0 : index
    %c0_7 = arith.constant 0 : index
    %4 = vector.load %arg16[%c0_5, %c0_6, %c0_7] : memref<10x10x128xf32, #tpu.memory_space<vmem>>, vector<10x1x128xf32>
    tpu.vector_store %arg16[%c0_5, %c0_6, %c0_7], %1 {strides = array<i32>} : memref<10x10x128xf32, #tpu.memory_space<vmem>>, vector<10x1x128xf32>,
    %c0_8 = arith.constant 0 : index
    %c9_9 = arith.constant 9 : index
    %c0_10 = arith.constant 0 : index
    %5 = vector.load %arg16[%c0_8, %c9_9, %c0_10] : memref<10x10x128xf32, #tpu.memory_space<vmem>>, vector<10x1x128xf32>
    tpu.vector_store %arg16[%c0_8, %c9_9, %c0_10], %1 {strides = array<i32>} : memref<10x10x128xf32, #tpu.memory_space<vmem>>, vector<10x1x128xf32>,
    %cst_11 = arith.constant 0.000000e+00 : f32
    %6 = vector.broadcast %cst_11 : f32 to vector<1x10x256xf32>
    %cst_12 = arith.constant 0.000000e+00 : f32
    %7 = vector.broadcast %cst_12 : f32 to vector<10x1x256xf32>
    %c0_13 = arith.constant 0 : index
    %c0_14 = arith.constant 0 : index
    %c0_15 = arith.constant 0 : index
    %8 = vector.load %arg17[%c0_13, %c0_14, %c0_15] : memref<10x10x256xf32, #tpu.memory_space<vmem>>, vector<1x10x256xf32>
    tpu.vector_store %arg17[%c0_13, %c0_14, %c0_15], %6 {strides = array<i32>} : memref<10x10x256xf32, #tpu.memory_space<vmem>>, vector<1x10x256xf32>,
    %c9_16 = arith.constant 9 : index
    %c0_17 = arith.constant 0 : index
    %c0_18 = arith.constant 0 : index
    %9 = vector.load %arg17[%c9_16, %c0_17, %c0_18] : memref<10x10x256xf32, #tpu.memory_space<vmem>>, vector<1x10x256xf32>
    tpu.vector_store %arg17[%c9_16, %c0_17, %c0_18], %6 {strides = array<i32>} : memref<10x10x256xf32, #tpu.memory_space<vmem>>, vector<1x10x256xf32>,
    %c0_19 = arith.constant 0 : index
    %c0_20 = arith.constant 0 : index
    %c0_21 = arith.constant 0 : index
    %10 = vector.load %arg17[%c0_19, %c0_20, %c0_21] : memref<10x10x256xf32, #tpu.memory_space<vmem>>, vector<10x1x256xf32>
    tpu.vector_store %arg17[%c0_19, %c0_20, %c0_21], %7 {strides = array<i32>} : memref<10x10x256xf32, #tpu.memory_space<vmem>>, vector<10x1x256xf32>,
    %c0_22 = arith.constant 0 : index
    %c9_23 = arith.constant 9 : index
    %c0_24 = arith.constant 0 : index
    %11 = vector.load %arg17[%c0_22, %c9_23, %c0_24] : memref<10x10x256xf32, #tpu.memory_space<vmem>>, vector<10x1x256xf32>
    tpu.vector_store %arg17[%c0_22, %c9_23, %c0_24], %7 {strides = array<i32>} : memref<10x10x256xf32, #tpu.memory_space<vmem>>, vector<10x1x256xf32>,
    %c0_25 = arith.constant 0 : index
    %c0_26 = arith.constant 0 : index
    %c0_27 = arith.constant 0 : index
    %12 = vector.load %arg1[%c0_25, %c0_26, %c0_27] : memref<1x64x128xf32, #tpu.memory_space<vmem>>, vector<1x64x128xf32>
    %13 = vector.shape_cast %12 : vector<1x64x128xf32> to vector<64x128xf32>
    %c0_28 = arith.constant 0 : index
    %c0_29 = arith.constant 0 : index
    %14 = vector.load %arg3[%c0_28, %c0_29] : memref<1x128xf32, #tpu.memory_space<vmem>>, vector<1x128xf32>
    %c0_30 = arith.constant 0 : index
    %c0_31 = arith.constant 0 : index
    %15 = vector.load %arg4[%c0_30, %c0_31] : memref<1x128xf32, #tpu.memory_space<vmem>>, vector<1x128xf32>
    %c0_32 = arith.constant 0 : index
    %c0_33 = arith.constant 0 : index
    %16 = vector.load %arg5[%c0_32, %c0_33] : memref<128x128xf32, #tpu.memory_space<vmem>>, vector<128x128xf32>
    %cst_34 = arith.constant dense<0.000000e+00> : vector<128xf32>
    %17 = vector.multi_reduction <add>, %13, %cst_34 [0] : vector<64x128xf32> to vector<128xf32>
    %18 = vector.shape_cast %17 : vector<128xf32> to vector<1x128xf32>
    %cst_35 = arith.constant dense<0.000000e+00> : vector<1x128xf32>
    %19 = tpu.matmul %18, %16, %cst_35 {dimension_numbers = #tpu.dot_dimension_numbers<[1], [0], [0], [1], [0, 0, 1, 1], [], []>} : vector<1x128xf32>, vector<128x128xf32>, vector<1x128xf32> -> vector<1x128xf32>
    %20 = vector.broadcast %19 : vector<1x128xf32> to vector<64x128xf32>
    %21 = arith.subf %13, %20 : vector<64x128xf32>
    %22 = arith.mulf %21, %21 : vector<64x128xf32>
    %cst_36 = arith.constant dense<0.000000e+00> : vector<128xf32>
    %23 = vector.multi_reduction <add>, %22, %cst_36 [0] : vector<64x128xf32> to vector<128xf32>
    %24 = vector.shape_cast %23 : vector<128xf32> to vector<1x128xf32>
    %cst_37 = arith.constant dense<0.000000e+00> : vector<1x128xf32>
    %25 = tpu.matmul %24, %16, %cst_37 {dimension_numbers = #tpu.dot_dimension_numbers<[1], [0], [0], [1], [0, 0, 1, 1], [], []>} : vector<1x128xf32>, vector<128x128xf32>, vector<1x128xf32> -> vector<1x128xf32>
    %cst_38 = arith.constant 9.99999997E-7 : f32
    %26 = vector.broadcast %cst_38 : f32 to vector<1x128xf32>
    %27 = arith.addf %25, %26 : vector<1x128xf32>
    %28 = math.rsqrt %27 : vector<1x128xf32>
    %29 = vector.broadcast %28 : vector<1x128xf32> to vector<64x128xf32>
    %30 = arith.mulf %21, %29 : vector<64x128xf32>
    %31 = vector.broadcast %14 : vector<1x128xf32> to vector<64x128xf32>
    %32 = arith.mulf %30, %31 : vector<64x128xf32>
    %33 = vector.broadcast %15 : vector<1x128xf32> to vector<64x128xf32>
    %34 = arith.addf %32, %33 : vector<64x128xf32>
    %35 = arith.negf %34 : vector<64x128xf32>
    %36 = math.exp %35 : vector<64x128xf32>
    %cst_39 = arith.constant 1.000000e+00 : f32
    %37 = vector.broadcast %cst_39 : f32 to vector<64x128xf32>
    %38 = arith.addf %37, %36 : vector<64x128xf32>
    %39 = arith.divf %37, %38 : vector<64x128xf32>
    %40 = arith.mulf %34, %39 : vector<64x128xf32>
    %41 = vector.shape_cast %40 : vector<64x128xf32> to vector<8x8x128xf32>
    %c1 = arith.constant 1 : index
    %c1_40 = arith.constant 1 : index
    %c0_41 = arith.constant 0 : index
    %42 = vector.load %arg16[%c1, %c1_40, %c0_41] : memref<10x10x128xf32, #tpu.memory_space<vmem>>, vector<8x8x128xf32>
    tpu.vector_store %arg16[%c1, %c1_40, %c0_41], %41 {strides = array<i32>} : memref<10x10x128xf32, #tpu.memory_space<vmem>>, vector<8x8x128xf32>,
    %c0_42 = arith.constant 0 : index
    %c0_43 = arith.constant 0 : index
    %43 = vector.load %arg7[%c0_42, %c0_43] : memref<1x256xf32, #tpu.memory_space<vmem>>, vector<1x256xf32>
    %c0_44 = arith.constant 0 : index
    %c0_45 = arith.constant 0 : index
    %c0_46 = arith.constant 0 : index
    %44 = vector.load %arg2[%c0_44, %c0_45, %c0_46] : memref<1x1x256xf32, #tpu.memory_space<vmem>>, vector<1x1x256xf32>
    %45 = vector.shape_cast %44 : vector<1x1x256xf32> to vector<1x256xf32>
    %46 = arith.addf %43, %45 : vector<1x256xf32>
    %c0_47 = arith.constant 0 : index
    %c0_48 = arith.constant 0 : index
    %c0_49 = arith.constant 0 : index
    %47 = vector.load %arg16[%c0_47, %c0_48, %c0_49] : memref<10x10x128xf32, #tpu.memory_space<vmem>>, vector<8x8x128xf32>
    %48 = vector.shape_cast %47 : vector<8x8x128xf32> to vector<64x128xf32>
    %49 = arith.truncf %48 : vector<64x128xf32> to vector<64x128xbf16>
    %c0_50 = arith.constant 0 : index
    %c0_51 = arith.constant 0 : index
    %c0_52 = arith.constant 0 : index
    %c0_53 = arith.constant 0 : index
    %50 = vector.load %arg6[%c0_50, %c0_51, %c0_52, %c0_53] : memref<3x3x128x256xbf16, #tpu.memory_space<vmem>>, vector<1x1x128x256xbf16>
    %51 = vector.shape_cast %50 : vector<1x1x128x256xbf16> to vector<128x256xbf16>
    %cst_54 = arith.constant dense<0.000000e+00> : vector<64x256xf32>
    %52 = tpu.matmul %49, %51, %cst_54 {dimension_numbers = #tpu.dot_dimension_numbers<[1], [0], [0], [1], [0, 0, 1, 1], [], []>} : vector<64x128xbf16>, vector<128x256xbf16>, vector<64x256xf32> -> vector<64x256xf32>
    %53 = vector.broadcast %46 : vector<1x256xf32> to vector<64x256xf32>
    %54 = arith.addf %53, %52 : vector<64x256xf32>
    %c0_55 = arith.constant 0 : index
    %c1_56 = arith.constant 1 : index
    %c0_57 = arith.constant 0 : index
    %55 = vector.load %arg16[%c0_55, %c1_56, %c0_57] : memref<10x10x128xf32, #tpu.memory_space<vmem>>, vector<8x8x128xf32>
    %56 = vector.shape_cast %55 : vector<8x8x128xf32> to vector<64x128xf32>
    %57 = arith.truncf %56 : vector<64x128xf32> to vector<64x128xbf16>
    %c0_58 = arith.constant 0 : index
    %c1_59 = arith.constant 1 : index
    %c0_60 = arith.constant 0 : index
    %c0_61 = arith.constant 0 : index
    %58 = vector.load %arg6[%c0_58, %c1_59, %c0_60, %c0_61] : memref<3x3x128x256xbf16, #tpu.memory_space<vmem>>, vector<1x1x128x256xbf16>
    %59 = vector.shape_cast %58 : vector<1x1x128x256xbf16> to vector<128x256xbf16>
    %cst_62 = arith.constant dense<0.000000e+00> : vector<64x256xf32>
    %60 = tpu.matmul %57, %59, %cst_62 {dimension_numbers = #tpu.dot_dimension_numbers<[1], [0], [0], [1], [0, 0, 1, 1], [], []>} : vector<64x128xbf16>, vector<128x256xbf16>, vector<64x256xf32> -> vector<64x256xf32>
    %61 = arith.addf %54, %60 : vector<64x256xf32>
    %c0_63 = arith.constant 0 : index
    %c2 = arith.constant 2 : index
    %c0_64 = arith.constant 0 : index
    %62 = vector.load %arg16[%c0_63, %c2, %c0_64] : memref<10x10x128xf32, #tpu.memory_space<vmem>>, vector<8x8x128xf32>
    %63 = vector.shape_cast %62 : vector<8x8x128xf32> to vector<64x128xf32>
    %64 = arith.truncf %63 : vector<64x128xf32> to vector<64x128xbf16>
    %c0_65 = arith.constant 0 : index
    %c2_66 = arith.constant 2 : index
    %c0_67 = arith.constant 0 : index
    %c0_68 = arith.constant 0 : index
    %65 = vector.load %arg6[%c0_65, %c2_66, %c0_67, %c0_68] : memref<3x3x128x256xbf16, #tpu.memory_space<vmem>>, vector<1x1x128x256xbf16>
    %66 = vector.shape_cast %65 : vector<1x1x128x256xbf16> to vector<128x256xbf16>
    %cst_69 = arith.constant dense<0.000000e+00> : vector<64x256xf32>
    %67 = tpu.matmul %64, %66, %cst_69 {dimension_numbers = #tpu.dot_dimension_numbers<[1], [0], [0], [1], [0, 0, 1, 1], [], []>} : vector<64x128xbf16>, vector<128x256xbf16>, vector<64x256xf32> -> vector<64x256xf32>
    %68 = arith.addf %61, %67 : vector<64x256xf32>
    %c1_70 = arith.constant 1 : index
    %c0_71 = arith.constant 0 : index
    %c0_72 = arith.constant 0 : index
    %69 = vector.load %arg16[%c1_70, %c0_71, %c0_72] : memref<10x10x128xf32, #tpu.memory_space<vmem>>, vector<8x8x128xf32>
    %70 = vector.shape_cast %69 : vector<8x8x128xf32> to vector<64x128xf32>
    %71 = arith.truncf %70 : vector<64x128xf32> to vector<64x128xbf16>
    %c1_73 = arith.constant 1 : index
    %c0_74 = arith.constant 0 : index
    %c0_75 = arith.constant 0 : index
    %c0_76 = arith.constant 0 : index
    %72 = vector.load %arg6[%c1_73, %c0_74, %c0_75, %c0_76] : memref<3x3x128x256xbf16, #tpu.memory_space<vmem>>, vector<1x1x128x256xbf16>
    %73 = vector.shape_cast %72 : vector<1x1x128x256xbf16> to vector<128x256xbf16>
    %cst_77 = arith.constant dense<0.000000e+00> : vector<64x256xf32>
    %74 = tpu.matmul %71, %73, %cst_77 {dimension_numbers = #tpu.dot_dimension_numbers<[1], [0], [0], [1], [0, 0, 1, 1], [], []>} : vector<64x128xbf16>, vector<128x256xbf16>, vector<64x256xf32> -> vector<64x256xf32>
    %75 = arith.addf %68, %74 : vector<64x256xf32>
    %c1_78 = arith.constant 1 : index
    %c1_79 = arith.constant 1 : index
    %c0_80 = arith.constant 0 : index
    %76 = vector.load %arg16[%c1_78, %c1_79, %c0_80] : memref<10x10x128xf32, #tpu.memory_space<vmem>>, vector<8x8x128xf32>
    %77 = vector.shape_cast %76 : vector<8x8x128xf32> to vector<64x128xf32>
    %78 = arith.truncf %77 : vector<64x128xf32> to vector<64x128xbf16>
    %c1_81 = arith.constant 1 : index
    %c1_82 = arith.constant 1 : index
    %c0_83 = arith.constant 0 : index
    %c0_84 = arith.constant 0 : index
    %79 = vector.load %arg6[%c1_81, %c1_82, %c0_83, %c0_84] : memref<3x3x128x256xbf16, #tpu.memory_space<vmem>>, vector<1x1x128x256xbf16>
    %80 = vector.shape_cast %79 : vector<1x1x128x256xbf16> to vector<128x256xbf16>
    %cst_85 = arith.constant dense<0.000000e+00> : vector<64x256xf32>
    %81 = tpu.matmul %78, %80, %cst_85 {dimension_numbers = #tpu.dot_dimension_numbers<[1], [0], [0], [1], [0, 0, 1, 1], [], []>} : vector<64x128xbf16>, vector<128x256xbf16>, vector<64x256xf32> -> vector<64x256xf32>
    %82 = arith.addf %75, %81 : vector<64x256xf32>
    %c1_86 = arith.constant 1 : index
    %c2_87 = arith.constant 2 : index
    %c0_88 = arith.constant 0 : index
    %83 = vector.load %arg16[%c1_86, %c2_87, %c0_88] : memref<10x10x128xf32, #tpu.memory_space<vmem>>, vector<8x8x128xf32>
    %84 = vector.shape_cast %83 : vector<8x8x128xf32> to vector<64x128xf32>
    %85 = arith.truncf %84 : vector<64x128xf32> to vector<64x128xbf16>
    %c1_89 = arith.constant 1 : index
    %c2_90 = arith.constant 2 : index
    %c0_91 = arith.constant 0 : index
    %c0_92 = arith.constant 0 : index
    %86 = vector.load %arg6[%c1_89, %c2_90, %c0_91, %c0_92] : memref<3x3x128x256xbf16, #tpu.memory_space<vmem>>, vector<1x1x128x256xbf16>
    %87 = vector.shape_cast %86 : vector<1x1x128x256xbf16> to vector<128x256xbf16>
    %cst_93 = arith.constant dense<0.000000e+00> : vector<64x256xf32>
    %88 = tpu.matmul %85, %87, %cst_93 {dimension_numbers = #tpu.dot_dimension_numbers<[1], [0], [0], [1], [0, 0, 1, 1], [], []>} : vector<64x128xbf16>, vector<128x256xbf16>, vector<64x256xf32> -> vector<64x256xf32>
    %89 = arith.addf %82, %88 : vector<64x256xf32>
    %c2_94 = arith.constant 2 : index
    %c0_95 = arith.constant 0 : index
    %c0_96 = arith.constant 0 : index
    %90 = vector.load %arg16[%c2_94, %c0_95, %c0_96] : memref<10x10x128xf32, #tpu.memory_space<vmem>>, vector<8x8x128xf32>
    %91 = vector.shape_cast %90 : vector<8x8x128xf32> to vector<64x128xf32>
    %92 = arith.truncf %91 : vector<64x128xf32> to vector<64x128xbf16>
    %c2_97 = arith.constant 2 : index
    %c0_98 = arith.constant 0 : index
    %c0_99 = arith.constant 0 : index
    %c0_100 = arith.constant 0 : index
    %93 = vector.load %arg6[%c2_97, %c0_98, %c0_99, %c0_100] : memref<3x3x128x256xbf16, #tpu.memory_space<vmem>>, vector<1x1x128x256xbf16>
    %94 = vector.shape_cast %93 : vector<1x1x128x256xbf16> to vector<128x256xbf16>
    %cst_101 = arith.constant dense<0.000000e+00> : vector<64x256xf32>
    %95 = tpu.matmul %92, %94, %cst_101 {dimension_numbers = #tpu.dot_dimension_numbers<[1], [0], [0], [1], [0, 0, 1, 1], [], []>} : vector<64x128xbf16>, vector<128x256xbf16>, vector<64x256xf32> -> vector<64x256xf32>
    %96 = arith.addf %89, %95 : vector<64x256xf32>
    %c2_102 = arith.constant 2 : index
    %c1_103 = arith.constant 1 : index
    %c0_104 = arith.constant 0 : index
    %97 = vector.load %arg16[%c2_102, %c1_103, %c0_104] : memref<10x10x128xf32, #tpu.memory_space<vmem>>, vector<8x8x128xf32>
    %98 = vector.shape_cast %97 : vector<8x8x128xf32> to vector<64x128xf32>
    %99 = arith.truncf %98 : vector<64x128xf32> to vector<64x128xbf16>
    %c2_105 = arith.constant 2 : index
    %c1_106 = arith.constant 1 : index
    %c0_107 = arith.constant 0 : index
    %c0_108 = arith.constant 0 : index
    %100 = vector.load %arg6[%c2_105, %c1_106, %c0_107, %c0_108] : memref<3x3x128x256xbf16, #tpu.memory_space<vmem>>, vector<1x1x128x256xbf16>
    %101 = vector.shape_cast %100 : vector<1x1x128x256xbf16> to vector<128x256xbf16>
    %cst_109 = arith.constant dense<0.000000e+00> : vector<64x256xf32>
    %102 = tpu.matmul %99, %101, %cst_109 {dimension_numbers = #tpu.dot_dimension_numbers<[1], [0], [0], [1], [0, 0, 1, 1], [], []>} : vector<64x128xbf16>, vector<128x256xbf16>, vector<64x256xf32> -> vector<64x256xf32>
    %103 = arith.addf %96, %102 : vector<64x256xf32>
    %c2_110 = arith.constant 2 : index
    %c2_111 = arith.constant 2 : index
    %c0_112 = arith.constant 0 : index
    %104 = vector.load %arg16[%c2_110, %c2_111, %c0_112] : memref<10x10x128xf32, #tpu.memory_space<vmem>>, vector<8x8x128xf32>
    %105 = vector.shape_cast %104 : vector<8x8x128xf32> to vector<64x128xf32>
    %106 = arith.truncf %105 : vector<64x128xf32> to vector<64x128xbf16>
    %c2_113 = arith.constant 2 : index
    %c2_114 = arith.constant 2 : index
    %c0_115 = arith.constant 0 : index
    %c0_116 = arith.constant 0 : index
    %107 = vector.load %arg6[%c2_113, %c2_114, %c0_115, %c0_116] : memref<3x3x128x256xbf16, #tpu.memory_space<vmem>>, vector<1x1x128x256xbf16>
    %108 = vector.shape_cast %107 : vector<1x1x128x256xbf16> to vector<128x256xbf16>
    %cst_117 = arith.constant dense<0.000000e+00> : vector<64x256xf32>
    %109 = tpu.matmul %106, %108, %cst_117 {dimension_numbers = #tpu.dot_dimension_numbers<[1], [0], [0], [1], [0, 0, 1, 1], [], []>} : vector<64x128xbf16>, vector<128x256xbf16>, vector<64x256xf32> -> vector<64x256xf32>
    %110 = arith.addf %103, %109 : vector<64x256xf32>
    %c0_118 = arith.constant 0 : index
    %c0_119 = arith.constant 0 : index
    %111 = vector.load %arg8[%c0_118, %c0_119] : memref<1x256xf32, #tpu.memory_space<vmem>>, vector<1x256xf32>
    %c0_120 = arith.constant 0 : index
    %c0_121 = arith.constant 0 : index
    %112 = vector.load %arg9[%c0_120, %c0_121] : memref<1x256xf32, #tpu.memory_space<vmem>>, vector<1x256xf32>
    %c0_122 = arith.constant 0 : index
    %c0_123 = arith.constant 0 : index
    %113 = vector.load %arg10[%c0_122, %c0_123] : memref<256x256xf32, #tpu.memory_space<vmem>>, vector<256x256xf32>
    %cst_124 = arith.constant dense<0.000000e+00> : vector<256xf32>
    %114 = vector.multi_reduction <add>, %110, %cst_124 [0] : vector<64x256xf32> to vector<256xf32>
    %115 = vector.shape_cast %114 : vector<256xf32> to vector<1x256xf32>
    %cst_125 = arith.constant dense<0.000000e+00> : vector<1x256xf32>
    %116 = tpu.matmul %115, %113, %cst_125 {dimension_numbers = #tpu.dot_dimension_numbers<[1], [0], [0], [1], [0, 0, 1, 1], [], []>} : vector<1x256xf32>, vector<256x256xf32>, vector<1x256xf32> -> vector<1x256xf32>
    %117 = vector.broadcast %116 : vector<1x256xf32> to vector<64x256xf32>
    %118 = arith.subf %110, %117 : vector<64x256xf32>
    %119 = arith.mulf %118, %118 : vector<64x256xf32>
    %cst_126 = arith.constant dense<0.000000e+00> : vector<256xf32>
    %120 = vector.multi_reduction <add>, %119, %cst_126 [0] : vector<64x256xf32> to vector<256xf32>
    %121 = vector.shape_cast %120 : vector<256xf32> to vector<1x256xf32>
    %cst_127 = arith.constant dense<0.000000e+00> : vector<1x256xf32>
    %122 = tpu.matmul %121, %113, %cst_127 {dimension_numbers = #tpu.dot_dimension_numbers<[1], [0], [0], [1], [0, 0, 1, 1], [], []>} : vector<1x256xf32>, vector<256x256xf32>, vector<1x256xf32> -> vector<1x256xf32>
    %cst_128 = arith.constant 9.99999997E-7 : f32
    %123 = vector.broadcast %cst_128 : f32 to vector<1x256xf32>
    %124 = arith.addf %122, %123 : vector<1x256xf32>
    %125 = math.rsqrt %124 : vector<1x256xf32>
    %126 = vector.broadcast %125 : vector<1x256xf32> to vector<64x256xf32>
    %127 = arith.mulf %118, %126 : vector<64x256xf32>
    %128 = vector.broadcast %111 : vector<1x256xf32> to vector<64x256xf32>
    %129 = arith.mulf %127, %128 : vector<64x256xf32>
    %130 = vector.broadcast %112 : vector<1x256xf32> to vector<64x256xf32>
    %131 = arith.addf %129, %130 : vector<64x256xf32>
    %132 = arith.negf %131 : vector<64x256xf32>
    %133 = math.exp %132 : vector<64x256xf32>
    %cst_129 = arith.constant 1.000000e+00 : f32
    %134 = vector.broadcast %cst_129 : f32 to vector<64x256xf32>
    %135 = arith.addf %134, %133 : vector<64x256xf32>
    %136 = arith.divf %134, %135 : vector<64x256xf32>
    %137 = arith.mulf %131, %136 : vector<64x256xf32>
    %138 = vector.shape_cast %137 : vector<64x256xf32> to vector<8x8x256xf32>
    %c1_130 = arith.constant 1 : index
    %c1_131 = arith.constant 1 : index
    %c0_132 = arith.constant 0 : index
    %139 = vector.load %arg17[%c1_130, %c1_131, %c0_132] : memref<10x10x256xf32, #tpu.memory_space<vmem>>, vector<8x8x256xf32>
    tpu.vector_store %arg17[%c1_130, %c1_131, %c0_132], %138 {strides = array<i32>} : memref<10x10x256xf32, #tpu.memory_space<vmem>>, vector<8x8x256xf32>,
    %140 = arith.truncf %13 : vector<64x128xf32> to vector<64x128xbf16>
    %c0_133 = arith.constant 0 : index
    %c0_134 = arith.constant 0 : index
    %141 = vector.load %arg13[%c0_133, %c0_134] : memref<128x256xbf16, #tpu.memory_space<vmem>>, vector<128x256xbf16>
    %cst_135 = arith.constant dense<0.000000e+00> : vector<64x256xf32>
    %142 = tpu.matmul %140, %141, %cst_135 {dimension_numbers = #tpu.dot_dimension_numbers<[1], [0], [0], [1], [0, 0, 1, 1], [], []>} : vector<64x128xbf16>, vector<128x256xbf16>, vector<64x256xf32> -> vector<64x256xf32>
    %c0_136 = arith.constant 0 : index
    %c0_137 = arith.constant 0 : index
    %143 = vector.load %arg14[%c0_136, %c0_137] : memref<1x256xf32, #tpu.memory_space<vmem>>, vector<1x256xf32>
    %144 = vector.broadcast %143 : vector<1x256xf32> to vector<64x256xf32>
    %145 = arith.addf %142, %144 : vector<64x256xf32>
    %c0_138 = arith.constant 0 : index
    %c0_139 = arith.constant 0 : index
    %146 = vector.load %arg12[%c0_138, %c0_139] : memref<1x256xf32, #tpu.memory_space<vmem>>, vector<1x256xf32>
    %147 = vector.broadcast %146 : vector<1x256xf32> to vector<64x256xf32>
    %148 = arith.addf %145, %147 : vector<64x256xf32>
    %c0_140 = arith.constant 0 : index
    %c0_141 = arith.constant 0 : index
    %c0_142 = arith.constant 0 : index
    %149 = vector.load %arg17[%c0_140, %c0_141, %c0_142] : memref<10x10x256xf32, #tpu.memory_space<vmem>>, vector<8x8x256xf32>
    %150 = vector.shape_cast %149 : vector<8x8x256xf32> to vector<64x256xf32>
    %151 = arith.truncf %150 : vector<64x256xf32> to vector<64x256xbf16>
    %c0_143 = arith.constant 0 : index
    %c0_144 = arith.constant 0 : index
    %c0_145 = arith.constant 0 : index
    %c0_146 = arith.constant 0 : index
    %152 = vector.load %arg11[%c0_143, %c0_144, %c0_145, %c0_146] : memref<3x3x256x256xbf16, #tpu.memory_space<vmem>>, vector<1x1x256x256xbf16>
    %153 = vector.shape_cast %152 : vector<1x1x256x256xbf16> to vector<256x256xbf16>
    %cst_147 = arith.constant dense<0.000000e+00> : vector<64x256xf32>
    %154 = tpu.matmul %151, %153, %cst_147 {dimension_numbers = #tpu.dot_dimension_numbers<[1], [0], [0], [1], [0, 0, 1, 1], [], []>} : vector<64x256xbf16>, vector<256x256xbf16>, vector<64x256xf32> -> vector<64x256xf32>
    %155 = arith.addf %148, %154 : vector<64x256xf32>
    %c0_148 = arith.constant 0 : index
    %c1_149 = arith.constant 1 : index
    %c0_150 = arith.constant 0 : index
    %156 = vector.load %arg17[%c0_148, %c1_149, %c0_150] : memref<10x10x256xf32, #tpu.memory_space<vmem>>, vector<8x8x256xf32>
    %157 = vector.shape_cast %156 : vector<8x8x256xf32> to vector<64x256xf32>
    %158 = arith.truncf %157 : vector<64x256xf32> to vector<64x256xbf16>
    %c0_151 = arith.constant 0 : index
    %c1_152 = arith.constant 1 : index
    %c0_153 = arith.constant 0 : index
    %c0_154 = arith.constant 0 : index
    %159 = vector.load %arg11[%c0_151, %c1_152, %c0_153, %c0_154] : memref<3x3x256x256xbf16, #tpu.memory_space<vmem>>, vector<1x1x256x256xbf16>
    %160 = vector.shape_cast %159 : vector<1x1x256x256xbf16> to vector<256x256xbf16>
    %cst_155 = arith.constant dense<0.000000e+00> : vector<64x256xf32>
    %161 = tpu.matmul %158, %160, %cst_155 {dimension_numbers = #tpu.dot_dimension_numbers<[1], [0], [0], [1], [0, 0, 1, 1], [], []>} : vector<64x256xbf16>, vector<256x256xbf16>, vector<64x256xf32> -> vector<64x256xf32>
    %162 = arith.addf %155, %161 : vector<64x256xf32>
    %c0_156 = arith.constant 0 : index
    %c2_157 = arith.constant 2 : index
    %c0_158 = arith.constant 0 : index
    %163 = vector.load %arg17[%c0_156, %c2_157, %c0_158] : memref<10x10x256xf32, #tpu.memory_space<vmem>>, vector<8x8x256xf32>
    %164 = vector.shape_cast %163 : vector<8x8x256xf32> to vector<64x256xf32>
    %165 = arith.truncf %164 : vector<64x256xf32> to vector<64x256xbf16>
    %c0_159 = arith.constant 0 : index
    %c2_160 = arith.constant 2 : index
    %c0_161 = arith.constant 0 : index
    %c0_162 = arith.constant 0 : index
    %166 = vector.load %arg11[%c0_159, %c2_160, %c0_161, %c0_162] : memref<3x3x256x256xbf16, #tpu.memory_space<vmem>>, vector<1x1x256x256xbf16>
    %167 = vector.shape_cast %166 : vector<1x1x256x256xbf16> to vector<256x256xbf16>
    %cst_163 = arith.constant dense<0.000000e+00> : vector<64x256xf32>
    %168 = tpu.matmul %165, %167, %cst_163 {dimension_numbers = #tpu.dot_dimension_numbers<[1], [0], [0], [1], [0, 0, 1, 1], [], []>} : vector<64x256xbf16>, vector<256x256xbf16>, vector<64x256xf32> -> vector<64x256xf32>
    %169 = arith.addf %162, %168 : vector<64x256xf32>
    %c1_164 = arith.constant 1 : index
    %c0_165 = arith.constant 0 : index
    %c0_166 = arith.constant 0 : index
    %170 = vector.load %arg17[%c1_164, %c0_165, %c0_166] : memref<10x10x256xf32, #tpu.memory_space<vmem>>, vector<8x8x256xf32>
    %171 = vector.shape_cast %170 : vector<8x8x256xf32> to vector<64x256xf32>
    %172 = arith.truncf %171 : vector<64x256xf32> to vector<64x256xbf16>
    %c1_167 = arith.constant 1 : index
    %c0_168 = arith.constant 0 : index
    %c0_169 = arith.constant 0 : index
    %c0_170 = arith.constant 0 : index
    %173 = vector.load %arg11[%c1_167, %c0_168, %c0_169, %c0_170] : memref<3x3x256x256xbf16, #tpu.memory_space<vmem>>, vector<1x1x256x256xbf16>
    %174 = vector.shape_cast %173 : vector<1x1x256x256xbf16> to vector<256x256xbf16>
    %cst_171 = arith.constant dense<0.000000e+00> : vector<64x256xf32>
    %175 = tpu.matmul %172, %174, %cst_171 {dimension_numbers = #tpu.dot_dimension_numbers<[1], [0], [0], [1], [0, 0, 1, 1], [], []>} : vector<64x256xbf16>, vector<256x256xbf16>, vector<64x256xf32> -> vector<64x256xf32>
    %176 = arith.addf %169, %175 : vector<64x256xf32>
    %c1_172 = arith.constant 1 : index
    %c1_173 = arith.constant 1 : index
    %c0_174 = arith.constant 0 : index
    %177 = vector.load %arg17[%c1_172, %c1_173, %c0_174] : memref<10x10x256xf32, #tpu.memory_space<vmem>>, vector<8x8x256xf32>
    %178 = vector.shape_cast %177 : vector<8x8x256xf32> to vector<64x256xf32>
    %179 = arith.truncf %178 : vector<64x256xf32> to vector<64x256xbf16>
    %c1_175 = arith.constant 1 : index
    %c1_176 = arith.constant 1 : index
    %c0_177 = arith.constant 0 : index
    %c0_178 = arith.constant 0 : index
    %180 = vector.load %arg11[%c1_175, %c1_176, %c0_177, %c0_178] : memref<3x3x256x256xbf16, #tpu.memory_space<vmem>>, vector<1x1x256x256xbf16>
    %181 = vector.shape_cast %180 : vector<1x1x256x256xbf16> to vector<256x256xbf16>
    %cst_179 = arith.constant dense<0.000000e+00> : vector<64x256xf32>
    %182 = tpu.matmul %179, %181, %cst_179 {dimension_numbers = #tpu.dot_dimension_numbers<[1], [0], [0], [1], [0, 0, 1, 1], [], []>} : vector<64x256xbf16>, vector<256x256xbf16>, vector<64x256xf32> -> vector<64x256xf32>
    %183 = arith.addf %176, %182 : vector<64x256xf32>
    %c1_180 = arith.constant 1 : index
    %c2_181 = arith.constant 2 : index
    %c0_182 = arith.constant 0 : index
    %184 = vector.load %arg17[%c1_180, %c2_181, %c0_182] : memref<10x10x256xf32, #tpu.memory_space<vmem>>, vector<8x8x256xf32>
    %185 = vector.shape_cast %184 : vector<8x8x256xf32> to vector<64x256xf32>
    %186 = arith.truncf %185 : vector<64x256xf32> to vector<64x256xbf16>
    %c1_183 = arith.constant 1 : index
    %c2_184 = arith.constant 2 : index
    %c0_185 = arith.constant 0 : index
    %c0_186 = arith.constant 0 : index
    %187 = vector.load %arg11[%c1_183, %c2_184, %c0_185, %c0_186] : memref<3x3x256x256xbf16, #tpu.memory_space<vmem>>, vector<1x1x256x256xbf16>
    %188 = vector.shape_cast %187 : vector<1x1x256x256xbf16> to vector<256x256xbf16>
    %cst_187 = arith.constant dense<0.000000e+00> : vector<64x256xf32>
    %189 = tpu.matmul %186, %188, %cst_187 {dimension_numbers = #tpu.dot_dimension_numbers<[1], [0], [0], [1], [0, 0, 1, 1], [], []>} : vector<64x256xbf16>, vector<256x256xbf16>, vector<64x256xf32> -> vector<64x256xf32>
    %190 = arith.addf %183, %189 : vector<64x256xf32>
    %c2_188 = arith.constant 2 : index
    %c0_189 = arith.constant 0 : index
    %c0_190 = arith.constant 0 : index
    %191 = vector.load %arg17[%c2_188, %c0_189, %c0_190] : memref<10x10x256xf32, #tpu.memory_space<vmem>>, vector<8x8x256xf32>
    %192 = vector.shape_cast %191 : vector<8x8x256xf32> to vector<64x256xf32>
    %193 = arith.truncf %192 : vector<64x256xf32> to vector<64x256xbf16>
    %c2_191 = arith.constant 2 : index
    %c0_192 = arith.constant 0 : index
    %c0_193 = arith.constant 0 : index
    %c0_194 = arith.constant 0 : index
    %194 = vector.load %arg11[%c2_191, %c0_192, %c0_193, %c0_194] : memref<3x3x256x256xbf16, #tpu.memory_space<vmem>>, vector<1x1x256x256xbf16>
    %195 = vector.shape_cast %194 : vector<1x1x256x256xbf16> to vector<256x256xbf16>
    %cst_195 = arith.constant dense<0.000000e+00> : vector<64x256xf32>
    %196 = tpu.matmul %193, %195, %cst_195 {dimension_numbers = #tpu.dot_dimension_numbers<[1], [0], [0], [1], [0, 0, 1, 1], [], []>} : vector<64x256xbf16>, vector<256x256xbf16>, vector<64x256xf32> -> vector<64x256xf32>
    %197 = arith.addf %190, %196 : vector<64x256xf32>
    %c2_196 = arith.constant 2 : index
    %c1_197 = arith.constant 1 : index
    %c0_198 = arith.constant 0 : index
    %198 = vector.load %arg17[%c2_196, %c1_197, %c0_198] : memref<10x10x256xf32, #tpu.memory_space<vmem>>, vector<8x8x256xf32>
    %199 = vector.shape_cast %198 : vector<8x8x256xf32> to vector<64x256xf32>
    %200 = arith.truncf %199 : vector<64x256xf32> to vector<64x256xbf16>
    %c2_199 = arith.constant 2 : index
    %c1_200 = arith.constant 1 : index
    %c0_201 = arith.constant 0 : index
    %c0_202 = arith.constant 0 : index
    %201 = vector.load %arg11[%c2_199, %c1_200, %c0_201, %c0_202] : memref<3x3x256x256xbf16, #tpu.memory_space<vmem>>, vector<1x1x256x256xbf16>
    %202 = vector.shape_cast %201 : vector<1x1x256x256xbf16> to vector<256x256xbf16>
    %cst_203 = arith.constant dense<0.000000e+00> : vector<64x256xf32>
    %203 = tpu.matmul %200, %202, %cst_203 {dimension_numbers = #tpu.dot_dimension_numbers<[1], [0], [0], [1], [0, 0, 1, 1], [], []>} : vector<64x256xbf16>, vector<256x256xbf16>, vector<64x256xf32> -> vector<64x256xf32>
    %204 = arith.addf %197, %203 : vector<64x256xf32>
    %c2_204 = arith.constant 2 : index
    %c2_205 = arith.constant 2 : index
    %c0_206 = arith.constant 0 : index
    %205 = vector.load %arg17[%c2_204, %c2_205, %c0_206] : memref<10x10x256xf32, #tpu.memory_space<vmem>>, vector<8x8x256xf32>
    %206 = vector.shape_cast %205 : vector<8x8x256xf32> to vector<64x256xf32>
    %207 = arith.truncf %206 : vector<64x256xf32> to vector<64x256xbf16>
    %c2_207 = arith.constant 2 : index
    %c2_208 = arith.constant 2 : index
    %c0_209 = arith.constant 0 : index
    %c0_210 = arith.constant 0 : index
    %208 = vector.load %arg11[%c2_207, %c2_208, %c0_209, %c0_210] : memref<3x3x256x256xbf16, #tpu.memory_space<vmem>>, vector<1x1x256x256xbf16>
    %209 = vector.shape_cast %208 : vector<1x1x256x256xbf16> to vector<256x256xbf16>
    %cst_211 = arith.constant dense<0.000000e+00> : vector<64x256xf32>
    %210 = tpu.matmul %207, %209, %cst_211 {dimension_numbers = #tpu.dot_dimension_numbers<[1], [0], [0], [1], [0, 0, 1, 1], [], []>} : vector<64x256xbf16>, vector<256x256xbf16>, vector<64x256xf32> -> vector<64x256xf32>
    %211 = arith.addf %204, %210 : vector<64x256xf32>
    %cst_212 = arith.constant 1.000000e+00 : f32
    %212 = vector.broadcast %cst_212 : f32 to vector<64x256xf32>
    %213 = arith.mulf %211, %212 : vector<64x256xf32>
    %c0_213 = arith.constant 0 : index
    %c0_214 = arith.constant 0 : index
    %c0_215 = arith.constant 0 : index
    %214 = vector.load %arg15[%c0_213, %c0_214, %c0_215] : memref<1x64x256xf32, #tpu.memory_space<vmem>>, vector<1x64x256xf32>
    %215 = vector.shape_cast %214 : vector<1x64x256xf32> to vector<64x256xf32>
    %216 = vector.shape_cast %213 : vector<64x256xf32> to vector<1x64x256xf32>
    tpu.vector_store %arg15[%c0_213, %c0_214, %c0_215], %216 {strides = array<i32>} : memref<1x64x256xf32, #tpu.memory_space<vmem>>, vector<1x64x256xf32>,
    return
  }
  func.func @transform_0(%arg0: i32) -> (i32, i32, i32) {
    %c0_i32 = arith.constant 0 : i32
    %c0_i32_0 = arith.constant 0 : i32
    %c0_i32_1 = arith.constant 0 : i32
    return %arg0, %c0_i32, %c0_i32_0 : i32, i32, i32
  }
  func.func @transform_1(%arg0: i32) -> (i32, i32, i32) {
    %c0_i32 = arith.constant 0 : i32
    %c0_i32_0 = arith.constant 0 : i32
    %c0_i32_1 = arith.constant 0 : i32
    return %arg0, %c0_i32, %c0_i32_0 : i32, i32, i32
  }
  func.func @transform_2(%arg0: i32) -> (i32, i32) {
    %c0_i32 = arith.constant 0 : i32
    %c0_i32_0 = arith.constant 0 : i32
    %c0_i32_1 = arith.constant 0 : i32
    return %c0_i32, %c0_i32_0 : i32, i32
  }
  func.func @transform_3(%arg0: i32) -> (i32, i32) {
    %c0_i32 = arith.constant 0 : i32
    %c0_i32_0 = arith.constant 0 : i32
    %c0_i32_1 = arith.constant 0 : i32
    return %c0_i32, %c0_i32_0 : i32, i32
  }
  func.func @transform_4(%arg0: i32) -> (i32, i32) {
    %c0_i32 = arith.constant 0 : i32
    %c0_i32_0 = arith.constant 0 : i32
    %c0_i32_1 = arith.constant 0 : i32
    return %c0_i32, %c0_i32_0 : i32, i32
  }
  func.func @transform_5(%arg0: i32) -> (i32, i32, i32, i32) {
    %c0_i32 = arith.constant 0 : i32
    %c0_i32_0 = arith.constant 0 : i32
    %c0_i32_1 = arith.constant 0 : i32
    %c0_i32_2 = arith.constant 0 : i32
    %c0_i32_3 = arith.constant 0 : i32
    return %c0_i32, %c0_i32_0, %c0_i32_1, %c0_i32_2 : i32, i32, i32, i32
  }
  func.func @transform_6(%arg0: i32) -> (i32, i32) {
    %c0_i32 = arith.constant 0 : i32
    %c0_i32_0 = arith.constant 0 : i32
    %c0_i32_1 = arith.constant 0 : i32
    return %c0_i32, %c0_i32_0 : i32, i32
  }
  func.func @transform_7(%arg0: i32) -> (i32, i32) {
    %c0_i32 = arith.constant 0 : i32
    %c0_i32_0 = arith.constant 0 : i32
    %c0_i32_1 = arith.constant 0 : i32
    return %c0_i32, %c0_i32_0 : i32, i32
  }
  func.func @transform_8(%arg0: i32) -> (i32, i32) {
    %c0_i32 = arith.constant 0 : i32
    %c0_i32_0 = arith.constant 0 : i32
    %c0_i32_1 = arith.constant 0 : i32
    return %c0_i32, %c0_i32_0 : i32, i32
  }
  func.func @transform_9(%arg0: i32) -> (i32, i32) {
    %c0_i32 = arith.constant 0 : i32
    %c0_i32_0 = arith.constant 0 : i32
    %c0_i32_1 = arith.constant 0 : i32
    return %c0_i32, %c0_i32_0 : i32, i32
  }
  func.func @transform_10(%arg0: i32) -> (i32, i32, i32, i32) {
    %c0_i32 = arith.constant 0 : i32
    %c0_i32_0 = arith.constant 0 : i32
    %c0_i32_1 = arith.constant 0 : i32
    %c0_i32_2 = arith.constant 0 : i32
    %c0_i32_3 = arith.constant 0 : i32
    return %c0_i32, %c0_i32_0, %c0_i32_1, %c0_i32_2 : i32, i32, i32, i32
  }
  func.func @transform_11(%arg0: i32) -> (i32, i32) {
    %c0_i32 = arith.constant 0 : i32
    %c0_i32_0 = arith.constant 0 : i32
    %c0_i32_1 = arith.constant 0 : i32
    return %c0_i32, %c0_i32_0 : i32, i32
  }
  func.func @transform_12(%arg0: i32) -> (i32, i32) {
    %c0_i32 = arith.constant 0 : i32
    %c0_i32_0 = arith.constant 0 : i32
    %c0_i32_1 = arith.constant 0 : i32
    return %c0_i32, %c0_i32_0 : i32, i32
  }
  func.func @transform_13(%arg0: i32) -> (i32, i32) {
    %c0_i32 = arith.constant 0 : i32
    %c0_i32_0 = arith.constant 0 : i32
    %c0_i32_1 = arith.constant 0 : i32
    return %c0_i32, %c0_i32_0 : i32, i32
  }
  func.func @transform_14(%arg0: i32) -> (i32, i32, i32) {
    %c0_i32 = arith.constant 0 : i32
    %c0_i32_0 = arith.constant 0 : i32
    %c0_i32_1 = arith.constant 0 : i32
    return %arg0, %c0_i32, %c0_i32_0 : i32, i32, i32
  }
}

</mosaic_0001>

<llo_original>
// kernel: resnet_block_3d_forward.1
$region0: #{resnet_block_3d_forward.1}
  #allocation0 [shape = 'u32[]', space=smem, size = 0x4, offset = 0x4, fixed_abs, tag = 'smem constant byte address 0x4 - core index']
  #allocation1 [shape = 'u32[144,128]{1,0:T(1,128)}', space=vmem, size = 0x12000, scoped, tag = 'internal scratch']
  #allocation2 [shape = 'f32[10,10,128]{2,1,0:T(8,128)}', space=vmem, size = 0x14000, scoped, tag = 'scratch operand']
  #allocation3 [shape = 'f32[10,10,256]{2,1,0:T(8,128)}', space=vmem, size = 0x28000, scoped, tag = 'scratch operand']
  %s0 = inlined_call_operand.vmem [shape: f32[2,64,128], index: 0, kind: input, shape index: {}]
  %s1 = inlined_call_operand.vmem [shape: f32[2,1,256], index: 1, kind: input, shape index: {}]
  %s2 = inlined_call_operand.vmem [shape: f32[1,128], index: 2, kind: input, shape index: {}]
  %s3 = inlined_call_operand.vmem [shape: f32[1,128], index: 3, kind: input, shape index: {}]
  %s4 = inlined_call_operand.vmem [shape: f32[128,128], index: 4, kind: input, shape index: {}]
  %s5 = inlined_call_operand.vmem [shape: bf16[3,3,128,256], index: 5, kind: input, shape index: {}]
  %s6 = inlined_call_operand.vmem [shape: f32[1,256], index: 6, kind: input, shape index: {}]
  %s7 = inlined_call_operand.vmem [shape: f32[1,256], index: 7, kind: input, shape index: {}]
  %s8 = inlined_call_operand.vmem [shape: f32[1,256], index: 8, kind: input, shape index: {}]
  %s9 = inlined_call_operand.vmem [shape: f32[256,256], index: 9, kind: input, shape index: {}]
  %s10 = inlined_call_operand.vmem [shape: bf16[3,3,256,256], index: 10, kind: input, shape index: {}]
  %s11 = inlined_call_operand.vmem [shape: f32[1,256], index: 11, kind: input, shape index: {}]
  %s12 = inlined_call_operand.vmem [shape: bf16[128,256], index: 12, kind: input, shape index: {}]
  %s13 = inlined_call_operand.vmem [shape: f32[1,256], index: 13, kind: input, shape index: {}]
  %s14 = inlined_call_operand.vmem [shape: f32[2,64,256], index: 14, kind: output, shape index: {}]
  %s15 = sld [smem:[#allocation0]]
  $region89: #{resnet_block_3d_forward.1} parent=0
    _
  %s17 = ssub.s32 1, %s15
  %s18 = scalar_select 0, %s17, %s15
  loop: start=0, step=1, limit=4
  $region2: #{resnet_block_3d_forward.1} parent=0 // loop_pre_header
    _
  $region3: #{resnet_block_3d_forward.1} parent=0 // loop_header
    %s20 = sphi 0, %s24
    %p21 = scmp.ge.s32.totalorder %s20, 4
    %s30 = sphi 0, %s32
    %s33 = sphi 0, %s30
    %s34 = sphi 0, %s33
    %s50 = sphi 0, %s34
    %s56 = sphi 0, %s58
    %s59 = sphi 0, %s56
    %s60 = sphi 0, %s59
    %s76 = sphi 0, %s60
    %s80 = sphi 0, %s80
    %s82 = sphi 0, %s80
    %s83 = sphi 0, %s82
    %s97 = sphi 0, %s83
    %s101 = sphi 0, %s101
    %s103 = sphi 0, %s101
    %s104 = sphi 0, %s103
    %s118 = sphi 0, %s104
    %s122 = sphi 0, %s122
    %s124 = sphi 0, %s122
    %s125 = sphi 0, %s124
    %s139 = sphi 0, %s125
    %s143 = sphi 0, %s143
    %s145 = sphi 0, %s143
    %s146 = sphi 0, %s145
    %s160 = sphi 0, %s146
    %s164 = sphi 0, %s164
    %s166 = sphi 0, %s164
    %s167 = sphi 0, %s166
    %s181 = sphi 0, %s167
    %s185 = sphi 0, %s185
    %s187 = sphi 0, %s185
    %s188 = sphi 0, %s187
    %s202 = sphi 0, %s188
    %s206 = sphi 0, %s206
    %s208 = sphi 0, %s206
    %s209 = sphi 0, %s208
    %s223 = sphi 0, %s209
    %s227 = sphi 0, %s227
    %s229 = sphi 0, %s227
    %s230 = sphi 0, %s229
    %s244 = sphi 0, %s230
    %s248 = sphi 0, %s248
    %s250 = sphi 0, %s248
    %s251 = sphi 0, %s250
    %s265 = sphi 0, %s251
    %s269 = sphi 0, %s269
    %s271 = sphi 0, %s269
    %s272 = sphi 0, %s271
    %s286 = sphi 0, %s272
    %s290 = sphi 0, %s290
    %s292 = sphi 0, %s290
    %s293 = sphi 0, %s292
    %s307 = sphi 0, %s293
    %s311 = sphi 0, %s311
    %s313 = sphi 0, %s311
    %s314 = sphi 0, %s313
    %s328 = sphi 0, %s314
    %s334 = sphi 0, %s336
    %s337 = sphi 0, %s334
    %s338 = sphi 0, %s337
    %s354 = sphi 0, %s338
  $region4: #{resnet_block_3d_forward.1} parent=0 // loop_header_branch
    %23 = sbr.rel (%p21) target = $region8
  $region5: #{resnet_block_3d_forward.1} parent=0 // loop_body
    %s25 = ssub.s32 %s20, 1
    %s26 = ssub.s32 %s20, 2
    %s27 = sadd.s32 %s20, 1
    %s28 = ssub.s32 %s20, %s27
    %p29 = scmp.eq.s32.totalorder %s28, 0
    %s31 = sadd.s32 %s30, 1
    %s32 = scalar_select %p29, %s30, %s31
    %p35 = pneg %p29
    %p36 = scmp.eq.s32.totalorder %s20, 1
    %p37 = por %p35, %p36
    %p38 = scmp.ne.s32.totalorder %s30, %s33
    %p39 = scmp.eq.s32.totalorder %s20, 0
    %p40 = por %p38, %p39
    %p41 = scmp.ne.s32.totalorder %s30, %s33
    %p42 = scmp.eq.s32.totalorder %s25, 1
    %p43 = por %p41, %p42
    %p44 = scmp.ne.s32.totalorder %s33, %s34
    %p45 = scmp.eq.s32.totalorder %s25, 0
    %p46 = por %p44, %p45
    %p47 = scmp.ne.s32.totalorder %s33, %s34
    %p48 = scmp.eq.s32.totalorder %s26, 1
    %p49 = por %p47, %p48
    %p51 = scmp.ne.s32.totalorder %s34, %s50
    %p52 = scmp.eq.s32.totalorder %s26, 0
    %p53 = por %p51, %p52
    %s54 = ssub.s32 %s20, %s27
    %p55 = scmp.eq.s32.totalorder %s54, 0
    %s57 = sadd.s32 %s56, 1
    %s58 = scalar_select %p55, %s56, %s57
    %p61 = pneg %p55
    %p62 = scmp.eq.s32.totalorder %s20, 1
    %p63 = por %p61, %p62
    %p64 = scmp.ne.s32.totalorder %s56, %s59
    %p65 = scmp.eq.s32.totalorder %s20, 0
    %p66 = por %p64, %p65
    %p67 = scmp.ne.s32.totalorder %s56, %s59
    %p68 = scmp.eq.s32.totalorder %s25, 1
    %p69 = por %p67, %p68
    %p70 = scmp.ne.s32.totalorder %s59, %s60
    %p71 = scmp.eq.s32.totalorder %s25, 0
    %p72 = por %p70, %p71
    %p73 = scmp.ne.s32.totalorder %s59, %s60
    %p74 = scmp.eq.s32.totalorder %s26, 1
    %p75 = por %p73, %p74
    %p77 = scmp.ne.s32.totalorder %s60, %s76
    %p78 = scmp.eq.s32.totalorder %s26, 0
    %p79 = por %p77, %p78
    %s81 = sadd.s32 %s80, 1
    %p84 = scmp.eq.s32.totalorder %s20, 1
    %p85 = scmp.ne.s32.totalorder %s80, %s82
    %p86 = scmp.eq.s32.totalorder %s20, 0
    %p87 = por %p85, %p86
    %p88 = scmp.ne.s32.totalorder %s80, %s82
    %p89 = scmp.eq.s32.totalorder %s25, 1
    %p90 = por %p88, %p89
    %p91 = scmp.ne.s32.totalorder %s82, %s83
    %p92 = scmp.eq.s32.totalorder %s25, 0
    %p93 = por %p91, %p92
    %p94 = scmp.ne.s32.totalorder %s82, %s83
    %p95 = scmp.eq.s32.totalorder %s26, 1
    %p96 = por %p94, %p95
    %p98 = scmp.ne.s32.totalorder %s83, %s97
    %p99 = scmp.eq.s32.totalorder %s26, 0
    %p100 = por %p98, %p99
    %s102 = sadd.s32 %s101, 1
    %p105 = scmp.eq.s32.totalorder %s20, 1
    %p106 = scmp.ne.s32.totalorder %s101, %s103
    %p107 = scmp.eq.s32.totalorder %s20, 0
    %p108 = por %p106, %p107
    %p109 = scmp.ne.s32.totalorder %s101, %s103
    %p110 = scmp.eq.s32.totalorder %s25, 1
    %p111 = por %p109, %p110
    %p112 = scmp.ne.s32.totalorder %s103, %s104
    %p113 = scmp.eq.s32.totalorder %s25, 0
    %p114 = por %p112, %p113
    %p115 = scmp.ne.s32.totalorder %s103, %s104
    %p116 = scmp.eq.s32.totalorder %s26, 1
    %p117 = por %p115, %p116
    %p119 = scmp.ne.s32.totalorder %s104, %s118
    %p120 = scmp.eq.s32.totalorder %s26, 0
    %p121 = por %p119, %p120
    %s123 = sadd.s32 %s122, 1
    %p126 = scmp.eq.s32.totalorder %s20, 1
    %p127 = scmp.ne.s32.totalorder %s122, %s124
    %p128 = scmp.eq.s32.totalorder %s20, 0
    %p129 = por %p127, %p128
    %p130 = scmp.ne.s32.totalorder %s122, %s124
    %p131 = scmp.eq.s32.totalorder %s25, 1
    %p132 = por %p130, %p131
    %p133 = scmp.ne.s32.totalorder %s124, %s125
    %p134 = scmp.eq.s32.totalorder %s25, 0
    %p135 = por %p133, %p134
    %p136 = scmp.ne.s32.totalorder %s124, %s125
    %p137 = scmp.eq.s32.totalorder %s26, 1
    %p138 = por %p136, %p137
    %p140 = scmp.ne.s32.totalorder %s125, %s139
    %p141 = scmp.eq.s32.totalorder %s26, 0
    %p142 = por %p140, %p141
    %s144 = sadd.s32 %s143, 1
    %p147 = scmp.eq.s32.totalorder %s20, 1
    %p148 = scmp.ne.s32.totalorder %s143, %s145
    %p149 = scmp.eq.s32.totalorder %s20, 0
    %p150 = por %p148, %p149
    %p151 = scmp.ne.s32.totalorder %s143, %s145
    %p152 = scmp.eq.s32.totalorder %s25, 1
    %p153 = por %p151, %p152
    %p154 = scmp.ne.s32.totalorder %s145, %s146
    %p155 = scmp.eq.s32.totalorder %s25, 0
    %p156 = por %p154, %p155
    %p157 = scmp.ne.s32.totalorder %s145, %s146
    %p158 = scmp.eq.s32.totalorder %s26, 1
    %p159 = por %p157, %p158
    %p161 = scmp.ne.s32.totalorder %s146, %s160
    %p162 = scmp.eq.s32.totalorder %s26, 0
    %p163 = por %p161, %p162
    %s165 = sadd.s32 %s164, 1
    %p168 = scmp.eq.s32.totalorder %s20, 1
    %p169 = scmp.ne.s32.totalorder %s164, %s166
    %p170 = scmp.eq.s32.totalorder %s20, 0
    %p171 = por %p169, %p170
    %p172 = scmp.ne.s32.totalorder %s164, %s166
    %p173 = scmp.eq.s32.totalorder %s25, 1
    %p174 = por %p172, %p173
    %p175 = scmp.ne.s32.totalorder %s166, %s167
    %p176 = scmp.eq.s32.totalorder %s25, 0
    %p177 = por %p175, %p176
    %p178 = scmp.ne.s32.totalorder %s166, %s167
    %p179 = scmp.eq.s32.totalorder %s26, 1
    %p180 = por %p178, %p179
    %p182 = scmp.ne.s32.totalorder %s167, %s181
    %p183 = scmp.eq.s32.totalorder %s26, 0
    %p184 = por %p182, %p183
    %s186 = sadd.s32 %s185, 1
    %p189 = scmp.eq.s32.totalorder %s20, 1
    %p190 = scmp.ne.s32.totalorder %s185, %s187
    %p191 = scmp.eq.s32.totalorder %s20, 0
    %p192 = por %p190, %p191
    %p193 = scmp.ne.s32.totalorder %s185, %s187
    %p194 = scmp.eq.s32.totalorder %s25, 1
    %p195 = por %p193, %p194
    %p196 = scmp.ne.s32.totalorder %s187, %s188
    %p197 = scmp.eq.s32.totalorder %s25, 0
    %p198 = por %p196, %p197
    %p199 = scmp.ne.s32.totalorder %s187, %s188
    %p200 = scmp.eq.s32.totalorder %s26, 1
    %p201 = por %p199, %p200
    %p203 = scmp.ne.s32.totalorder %s188, %s202
    %p204 = scmp.eq.s32.totalorder %s26, 0
    %p205 = por %p203, %p204
    %s207 = sadd.s32 %s206, 1
    %p210 = scmp.eq.s32.totalorder %s20, 1
    %p211 = scmp.ne.s32.totalorder %s206, %s208
    %p212 = scmp.eq.s32.totalorder %s20, 0
    %p213 = por %p211, %p212
    %p214 = scmp.ne.s32.totalorder %s206, %s208
    %p215 = scmp.eq.s32.totalorder %s25, 1
    %p216 = por %p214, %p215
    %p217 = scmp.ne.s32.totalorder %s208, %s209
    %p218 = scmp.eq.s32.totalorder %s25, 0
    %p219 = por %p217, %p218
    %p220 = scmp.ne.s32.totalorder %s208, %s209
    %p221 = scmp.eq.s32.totalorder %s26, 1
    %p222 = por %p220, %p221
    %p224 = scmp.ne.s32.totalorder %s209, %s223
    %p225 = scmp.eq.s32.totalorder %s26, 0
    %p226 = por %p224, %p225
    %s228 = sadd.s32 %s227, 1
    %p231 = scmp.eq.s32.totalorder %s20, 1
    %p232 = scmp.ne.s32.totalorder %s227, %s229
    %p233 = scmp.eq.s32.totalorder %s20, 0
    %p234 = por %p232, %p233
    %p235 = scmp.ne.s32.totalorder %s227, %s229
    %p236 = scmp.eq.s32.totalorder %s25, 1
    %p237 = por %p235, %p236
    %p238 = scmp.ne.s32.totalorder %s229, %s230
    %p239 = scmp.eq.s32.totalorder %s25, 0
    %p240 = por %p238, %p239
    %p241 = scmp.ne.s32.totalorder %s229, %s230
    %p242 = scmp.eq.s32.totalorder %s26, 1
    %p243 = por %p241, %p242
    %p245 = scmp.ne.s32.totalorder %s230, %s244
    %p246 = scmp.eq.s32.totalorder %s26, 0
    %p247 = por %p245, %p246
    %s249 = sadd.s32 %s248, 1
    %p252 = scmp.eq.s32.totalorder %s20, 1
    %p253 = scmp.ne.s32.totalorder %s248, %s250
    %p254 = scmp.eq.s32.totalorder %s20, 0
    %p255 = por %p253, %p254
    %p256 = scmp.ne.s32.totalorder %s248, %s250
    %p257 = scmp.eq.s32.totalorder %s25, 1
    %p258 = por %p256, %p257
    %p259 = scmp.ne.s32.totalorder %s250, %s251
    %p260 = scmp.eq.s32.totalorder %s25, 0
    %p261 = por %p259, %p260
    %p262 = scmp.ne.s32.totalorder %s250, %s251
    %p263 = scmp.eq.s32.totalorder %s26, 1
    %p264 = por %p262, %p263
    %p266 = scmp.ne.s32.totalorder %s251, %s265
    %p267 = scmp.eq.s32.totalorder %s26, 0
    %p268 = por %p266, %p267
    %s270 = sadd.s32 %s269, 1
    %p273 = scmp.eq.s32.totalorder %s20, 1
    %p274 = scmp.ne.s32.totalorder %s269, %s271
    %p275 = scmp.eq.s32.totalorder %s20, 0
    %p276 = por %p274, %p275
    %p277 = scmp.ne.s32.totalorder %s269, %s271
    %p278 = scmp.eq.s32.totalorder %s25, 1
    %p279 = por %p277, %p278
    %p280 = scmp.ne.s32.totalorder %s271, %s272
    %p281 = scmp.eq.s32.totalorder %s25, 0
    %p282 = por %p280, %p281
    %p283 = scmp.ne.s32.totalorder %s271, %s272
    %p284 = scmp.eq.s32.totalorder %s26, 1
    %p285 = por %p283, %p284
    %p287 = scmp.ne.s32.totalorder %s272, %s286
    %p288 = scmp.eq.s32.totalorder %s26, 0
    %p289 = por %p287, %p288
    %s291 = sadd.s32 %s290, 1
    %p294 = scmp.eq.s32.totalorder %s20, 1
    %p295 = scmp.ne.s32.totalorder %s290, %s292
    %p296 = scmp.eq.s32.totalorder %s20, 0
    %p297 = por %p295, %p296
    %p298 = scmp.ne.s32.totalorder %s290, %s292
    %p299 = scmp.eq.s32.totalorder %s25, 1
    %p300 = por %p298, %p299
    %p301 = scmp.ne.s32.totalorder %s292, %s293
    %p302 = scmp.eq.s32.totalorder %s25, 0
    %p303 = por %p301, %p302
    %p304 = scmp.ne.s32.totalorder %s292, %s293
    %p305 = scmp.eq.s32.totalorder %s26, 1
    %p306 = por %p304, %p305
    %p308 = scmp.ne.s32.totalorder %s293, %s307
    %p309 = scmp.eq.s32.totalorder %s26, 0
    %p310 = por %p308, %p309
    %s312 = sadd.s32 %s311, 1
    %p315 = scmp.eq.s32.totalorder %s20, 1
    %p316 = scmp.ne.s32.totalorder %s311, %s313
    %p317 = scmp.eq.s32.totalorder %s20, 0
    %p318 = por %p316, %p317
    %p319 = scmp.ne.s32.totalorder %s311, %s313
    %p320 = scmp.eq.s32.totalorder %s25, 1
    %p321 = por %p319, %p320
    %p322 = scmp.ne.s32.totalorder %s313, %s314
    %p323 = scmp.eq.s32.totalorder %s25, 0
    %p324 = por %p322, %p323
    %p325 = scmp.ne.s32.totalorder %s313, %s314
    %p326 = scmp.eq.s32.totalorder %s26, 1
    %p327 = por %p325, %p326
    %p329 = scmp.ne.s32.totalorder %s314, %s328
    %p330 = scmp.eq.s32.totalorder %s26, 0
    %p331 = por %p329, %p330
    %s332 = ssub.s32 %s20, %s27
    %p333 = scmp.eq.s32.totalorder %s332, 0
    %s335 = sadd.s32 %s334, 1
    %s336 = scalar_select %p333, %s334, %s335
    %p339 = pneg %p333
    %p340 = scmp.eq.s32.totalorder %s20, 1
    %p341 = por %p339, %p340
    %p342 = scmp.ne.s32.totalorder %s334, %s337
    %p343 = scmp.eq.s32.totalorder %s20, 0
    %p344 = por %p342, %p343
    %p345 = scmp.ne.s32.totalorder %s334, %s337
    %p346 = scmp.eq.s32.totalorder %s25, 1
    %p347 = por %p345, %p346
    %p348 = scmp.ne.s32.totalorder %s337, %s338
    %p349 = scmp.eq.s32.totalorder %s25, 0
    %p350 = por %p348, %p349
    %p351 = scmp.ne.s32.totalorder %s337, %s338
    %p352 = scmp.eq.s32.totalorder %s26, 1
    %p353 = por %p351, %p352
    %p355 = scmp.ne.s32.totalorder %s338, %s354
    %p356 = scmp.eq.s32.totalorder %s26, 0
    %p357 = por %p355, %p356
    %p358 = scmp.le.s32.totalorder 1, %s20
    %p359 = scmp.lt.s32.totalorder %s20, 3
    %p360 = pnand %p358, %p359
    %p361 = pneg %p360
    // Predicated region
    $region9: #{resnet_block_3d_forward.1} parent=5 // pred_check
      _
    $region10: #{resnet_block_3d_forward.1} parent=5 // pred_check_branch
      %363 = sbr.rel (%p360) target = $region12
    $region11: #{resnet_block_3d_forward.1} parent=5 // pred_region
      %s364 = ssub.s32 %s20, 1
      // Predicated region
      $region13: #{resnet_block_3d_forward.1} parent=11 // pred_check
        %p365 = pneg %p93
      $region14: #{resnet_block_3d_forward.1} parent=11 // pred_check_branch
        %367 = sbr.rel (%p365) target = $region16
      $region15: #{resnet_block_3d_forward.1} parent=11 // pred_region
        _
      $region16: #{resnet_block_3d_forward.1} parent=11 // pred_fallthru
        _
      // Predicated region
      $region17: #{resnet_block_3d_forward.1} parent=11 // pred_check
        %p368 = pneg %p114
      $region18: #{resnet_block_3d_forward.1} parent=11 // pred_check_branch
        %370 = sbr.rel (%p368) target = $region20
      $region19: #{resnet_block_3d_forward.1} parent=11 // pred_region
        _
      $region20: #{resnet_block_3d_forward.1} parent=11 // pred_fallthru
        _
      // Predicated region
      $region21: #{resnet_block_3d_forward.1} parent=11 // pred_check
        %p371 = pneg %p135
      $region22: #{resnet_block_3d_forward.1} parent=11 // pred_check_branch
        %373 = sbr.rel (%p371) target = $region24
      $region23: #{resnet_block_3d_forward.1} parent=11 // pred_region
        _
      $region24: #{resnet_block_3d_forward.1} parent=11 // pred_fallthru
        _
      // Predicated region
      $region25: #{resnet_block_3d_forward.1} parent=11 // pred_check
        %p374 = pneg %p156
      $region26: #{resnet_block_3d_forward.1} parent=11 // pred_check_branch
        %376 = sbr.rel (%p374) target = $region28
      $region27: #{resnet_block_3d_forward.1} parent=11 // pred_region
        _
      $region28: #{resnet_block_3d_forward.1} parent=11 // pred_fallthru
        _
      // Predicated region
      $region29: #{resnet_block_3d_forward.1} parent=11 // pred_check
        %p377 = pneg %p177
      $region30: #{resnet_block_3d_forward.1} parent=11 // pred_check_branch
        %379 = sbr.rel (%p377) target = $region32
      $region31: #{resnet_block_3d_forward.1} parent=11 // pred_region
        _
      $region32: #{resnet_block_3d_forward.1} parent=11 // pred_fallthru
        _
      // Predicated region
      $region33: #{resnet_block_3d_forward.1} parent=11 // pred_check
        %p380 = pneg %p198
      $region34: #{resnet_block_3d_forward.1} parent=11 // pred_check_branch
        %382 = sbr.rel (%p380) target = $region36
      $region35: #{resnet_block_3d_forward.1} parent=11 // pred_region
        _
      $region36: #{resnet_block_3d_forward.1} parent=11 // pred_fallthru
        _
      // Predicated region
      $region37: #{resnet_block_3d_forward.1} parent=11 // pred_check
        %p383 = pneg %p219
      $region38: #{resnet_block_3d_forward.1} parent=11 // pred_check_branch
        %385 = sbr.rel (%p383) target = $region40
      $region39: #{resnet_block_3d_forward.1} parent=11 // pred_region
        _
      $region40: #{resnet_block_3d_forward.1} parent=11 // pred_fallthru
        _
      // Predicated region
      $region41: #{resnet_block_3d_forward.1} parent=11 // pred_check
        %p386 = pneg %p240
      $region42: #{resnet_block_3d_forward.1} parent=11 // pred_check_branch
        %388 = sbr.rel (%p386) target = $region44
      $region43: #{resnet_block_3d_forward.1} parent=11 // pred_region
        _
      $region44: #{resnet_block_3d_forward.1} parent=11 // pred_fallthru
        _
      // Predicated region
      $region45: #{resnet_block_3d_forward.1} parent=11 // pred_check
        %p389 = pneg %p261
      $region46: #{resnet_block_3d_forward.1} parent=11 // pred_check_branch
        %391 = sbr.rel (%p389) target = $region48
      $region47: #{resnet_block_3d_forward.1} parent=11 // pred_region
        _
      $region48: #{resnet_block_3d_forward.1} parent=11 // pred_fallthru
        _
      // Predicated region
      $region49: #{resnet_block_3d_forward.1} parent=11 // pred_check
        %p392 = pneg %p282
      $region50: #{resnet_block_3d_forward.1} parent=11 // pred_check_branch
        %394 = sbr.rel (%p392) target = $region52
      $region51: #{resnet_block_3d_forward.1} parent=11 // pred_region
        _
      $region52: #{resnet_block_3d_forward.1} parent=11 // pred_fallthru
        _
      // Predicated region
      $region53: #{resnet_block_3d_forward.1} parent=11 // pred_check
        %p395 = pneg %p303
      $region54: #{resnet_block_3d_forward.1} parent=11 // pred_check_branch
        %397 = sbr.rel (%p395) target = $region56
      $region55: #{resnet_block_3d_forward.1} parent=11 // pred_region
        _
      $region56: #{resnet_block_3d_forward.1} parent=11 // pred_fallthru
        _
      // Predicated region
      $region57: #{resnet_block_3d_forward.1} parent=11 // pred_check
        %p398 = pneg %p324
      $region58: #{resnet_block_3d_forward.1} parent=11 // pred_check_branch
        %400 = sbr.rel (%p398) target = $region60
      $region59: #{resnet_block_3d_forward.1} parent=11 // pred_region
        _
      $region60: #{resnet_block_3d_forward.1} parent=11 // pred_fallthru
        _
    $region12: #{resnet_block_3d_forward.1} parent=5 // pred_fallthru
      _
    %p401 = scmp.lt.s32.totalorder %s20, 2
    // Predicated region
    $region61: #{resnet_block_3d_forward.1} parent=5 // pred_check
      %p402 = pneg %p401
    $region62: #{resnet_block_3d_forward.1} parent=5 // pred_check_branch
      %404 = sbr.rel (%p402) target = $region64
    $region63: #{resnet_block_3d_forward.1} parent=5 // pred_region
      // Predicated region
      $region65: #{resnet_block_3d_forward.1} parent=63 // pred_check
        %p405 = pneg %p40
      $region66: #{resnet_block_3d_forward.1} parent=63 // pred_check_branch
        %407 = sbr.rel (%p405) target = $region68
      $region67: #{resnet_block_3d_forward.1} parent=63 // pred_region
        %p408 = scmp.lt.s32.totalorder %s20, 1
        %s409 = scalar_select %p408, %s20, 1
        %s410 = smul.addr %s409, 8
        %s411 = smul.addr %s410, 8
        %s412 = scalar_lea.vmem %s0, %s411
      $region68: #{resnet_block_3d_forward.1} parent=63 // pred_fallthru
        _
      // Predicated region
      $region69: #{resnet_block_3d_forward.1} parent=63 // pred_check
        %p413 = pneg %p66
      $region70: #{resnet_block_3d_forward.1} parent=63 // pred_check_branch
        %415 = sbr.rel (%p413) target = $region72
      $region71: #{resnet_block_3d_forward.1} parent=63 // pred_region
        %p416 = scmp.lt.s32.totalorder %s20, 1
        %s417 = scalar_select %p416, %s20, 1
        %s418 = smul.addr %s417, 2
        %s419 = scalar_lea.vmem %s1, %s418
      $region72: #{resnet_block_3d_forward.1} parent=63 // pred_fallthru
        _
    $region64: #{resnet_block_3d_forward.1} parent=5 // pred_fallthru
      _
    %p420 = scmp.le.s32.totalorder 1, %s20
    %p421 = scmp.lt.s32.totalorder %s20, 3
    %p422 = pnand %p420, %p421
    %p423 = pneg %p422
    // Predicated region
    $region73: #{resnet_block_3d_forward.1} parent=5 // pred_check
      _
    $region74: #{resnet_block_3d_forward.1} parent=5 // pred_check_branch
      %425 = sbr.rel (%p422) target = $region76
    $region75: #{resnet_block_3d_forward.1} parent=5 // pred_region
      %s426 = ssub.s32 %s20, 1
      %p427 = scmp.lt.s32.totalorder %s25, 1
      %s428 = scalar_select %p427, %s25, 1
      %s429 = smul.addr %s428, 8
      %s430 = smul.addr %s429, 8
      %s431 = scalar_lea.vmem %s0, %s430
      %p432 = pneg %p46
      %p433 = pneg %p43
      %p434 = scmp.lt.s32.totalorder %s25, 1
      %s435 = scalar_select %p434, %s25, 1
      %s436 = smul.addr %s435, 2
      %s437 = scalar_lea.vmem %s1, %s436
      %p438 = pneg %p72
      %p439 = pneg %p69
      %p440 = pneg %p93
      %p441 = pneg %p90
      %p442 = pneg %p114
      %p443 = pneg %p111
      %p444 = pneg %p135
      %p445 = pneg %p132
      %p446 = pneg %p156
      %p447 = pneg %p153
      %p448 = pneg %p177
      %p449 = pneg %p174
      %p450 = pneg %p198
      %p451 = pneg %p195
      %p452 = pneg %p219
      %p453 = pneg %p216
      %p454 = pneg %p240
      %p455 = pneg %p237
      %p456 = pneg %p261
      %p457 = pneg %p258
      %p458 = pneg %p282
      %p459 = pneg %p279
      %p460 = pneg %p303
      %p461 = pneg %p300
      %p462 = pneg %p324
      %p463 = pneg %p321
      %p464 = pneg %p350
      %p465 = pneg %p347
      %p466 = scmp.lt.s32.totalorder %s25, 1
      %s467 = scalar_select %p466, %s25, 1
      %s468 = smul.addr %s467, 16
      %s469 = smul.addr %s468, 8
      %s470 = scalar_lea.vmem %s14, %s469
      %p471 = scmp.lt.s32.totalorder %s25, 1
      %s472 = scalar_select %p471, %s25, 1
      %s473 = smul.addr %s472, 8
      %s474 = smul.addr %s473, 8
      %s475 = scalar_lea.vmem %s0, %s474
      %p476 = scmp.lt.s32.totalorder %s25, 1
      %s477 = scalar_select %p476, %s25, 1
      %s478 = smul.addr %s477, 2
      %s479 = scalar_lea.vmem %s1, %s478
      %p480 = scmp.lt.s32.totalorder %s25, 1
      %s481 = scalar_select %p480, %s25, 1
      %s482 = smul.addr %s481, 16
      %s483 = smul.addr %s482, 8
      %s484 = scalar_lea.vmem %s14, %s483
      %486 = vst [vmem:[#allocation2] sm:$0xff] 0.0
      %487 = vst [vmem:[#allocation2 + $0x8] sm:$0x3] 0.0
      %s488 = scalar_lea.vmem [#allocation2], 144
      %489 = vst [vmem:[%s488] sm:$0xff] 0.0
      %490 = vst [vmem:[%s488 + $0x8] sm:$0x3] 0.0
      %491 = vst [vmem:[#allocation2] sm:$0x1] 0.0
      %492 = vst [vmem:[#allocation2 + $0x10] sm:$0x1] 0.0
      %493 = vst [vmem:[#allocation2 + $0x20] sm:$0x1] 0.0
      %494 = vst [vmem:[#allocation2 + $0x30] sm:$0x1] 0.0
      %495 = vst [vmem:[#allocation2 + $0x40] sm:$0x1] 0.0
      %496 = vst [vmem:[#allocation2 + $0x50] sm:$0x1] 0.0
      %497 = vst [vmem:[#allocation2 + $0x60] sm:$0x1] 0.0
      %498 = vst [vmem:[#allocation2 + $0x70] sm:$0x1] 0.0
      %499 = vst [vmem:[#allocation2 + $0x80] sm:$0x1] 0.0
      %500 = vst [vmem:[#allocation2 + $0x90] sm:$0x1] 0.0
      %501 = vst [vmem:[#allocation2 + $0x9] sm:$0x1] 0.0
      %502 = vst [vmem:[#allocation2 + $0x19] sm:$0x1] 0.0
      %503 = vst [vmem:[#allocation2 + $0x29] sm:$0x1] 0.0
      %504 = vst [vmem:[#allocation2 + $0x39] sm:$0x1] 0.0
      %505 = vst [vmem:[#allocation2 + $0x49] sm:$0x1] 0.0
      %506 = vst [vmem:[#allocation2 + $0x59] sm:$0x1] 0.0
      %507 = vst [vmem:[#allocation2 + $0x69] sm:$0x1] 0.0
      %508 = vst [vmem:[#allocation2 + $0x79] sm:$0x1] 0.0
      %509 = vst [vmem:[#allocation2 + $0x89] sm:$0x1] 0.0
      %510 = vst [vmem:[#allocation2 + $0x99] sm:$0x1] 0.0
      %511 = vst [vmem:[#allocation3] sm:$0xff] 0.0
      %512 = vst [vmem:[#allocation3 + $0x8] sm:$0xff] 0.0
      %513 = vst [vmem:[#allocation3 + $0x10] sm:$0x3] 0.0
      %514 = vst [vmem:[#allocation3 + $0x18] sm:$0x3] 0.0
      %s515 = scalar_lea.vmem [#allocation3], 288
      %516 = vst [vmem:[%s515] sm:$0xff] 0.0
      %517 = vst [vmem:[%s515 + $0x8] sm:$0xff] 0.0
      %518 = vst [vmem:[%s515 + $0x10] sm:$0x3] 0.0
      %519 = vst [vmem:[%s515 + $0x18] sm:$0x3] 0.0
      %v520 = vlaneseq
      %vm521 = vcmp.ge.s32.totalorder %v520, 0
      %vm522 = vcmp.lt.s32.totalorder %v520, 256
      %vm523 = vmand %vm521, %vm522
      %524 = vst.msk [vmem:[#allocation3] ss:$8 sm:$0x3] %vm523, 0.0
      %525 = vst.msk [vmem:[#allocation3] ss:$8 sm:$0x0] %vm523, 0.0
      %s526 = scalar_lea.vmem [#allocation3], 32
      %527 = vst.msk [vmem:[%s526] ss:$8 sm:$0x3] %vm523, 0.0
      %528 = vst.msk [vmem:[%s526] ss:$8 sm:$0x0] %vm523, 0.0
      %s529 = scalar_lea.vmem [#allocation3], 64
      %530 = vst.msk [vmem:[%s529] ss:$8 sm:$0x3] %vm523, 0.0
      %531 = vst.msk [vmem:[%s529] ss:$8 sm:$0x0] %vm523, 0.0
      %s532 = scalar_lea.vmem [#allocation3], 96
      %533 = vst.msk [vmem:[%s532] ss:$8 sm:$0x3] %vm523, 0.0
      %534 = vst.msk [vmem:[%s532] ss:$8 sm:$0x0] %vm523, 0.0
      %s535 = scalar_lea.vmem [#allocation3], 128
      %536 = vst.msk [vmem:[%s535] ss:$8 sm:$0x3] %vm523, 0.0
      %537 = vst.msk [vmem:[%s535] ss:$8 sm:$0x0] %vm523, 0.0
      %s538 = scalar_lea.vmem [#allocation3], 160
      %539 = vst.msk [vmem:[%s538] ss:$8 sm:$0x3] %vm523, 0.0
      %540 = vst.msk [vmem:[%s538] ss:$8 sm:$0x0] %vm523, 0.0
      %s541 = scalar_lea.vmem [#allocation3], 192
      %542 = vst.msk [vmem:[%s541] ss:$8 sm:$0x3] %vm523, 0.0
      %543 = vst.msk [vmem:[%s541] ss:$8 sm:$0x0] %vm523, 0.0
      %s544 = scalar_lea.vmem [#allocation3], 224
      %545 = vst.msk [vmem:[%s544] ss:$8 sm:$0x3] %vm523, 0.0
      %546 = vst.msk [vmem:[%s544] ss:$8 sm:$0x0] %vm523, 0.0
      %s547 = scalar_lea.vmem [#allocation3], 256
      %548 = vst.msk [vmem:[%s547] ss:$8 sm:$0x3] %vm523, 0.0
      %549 = vst.msk [vmem:[%s547] ss:$8 sm:$0x0] %vm523, 0.0
      %s550 = scalar_lea.vmem [#allocation3], 288
      %551 = vst.msk [vmem:[%s550] ss:$8 sm:$0x3] %vm523, 0.0
      %552 = vst.msk [vmem:[%s550] ss:$8 sm:$0x0] %vm523, 0.0
      %s553 = scalar_lea.vmem [#allocation3], 17
      %554 = vst.msk [vmem:[%s553] ss:$8 sm:$0x3] %vm523, 0.0
      %555 = vst.msk [vmem:[%s553] ss:$8 sm:$0x0] %vm523, 0.0
      %s556 = scalar_lea.vmem [#allocation3], 49
      %557 = vst.msk [vmem:[%s556] ss:$8 sm:$0x3] %vm523, 0.0
      %558 = vst.msk [vmem:[%s556] ss:$8 sm:$0x0] %vm523, 0.0
      %s559 = scalar_lea.vmem [#allocation3], 81
      %560 = vst.msk [vmem:[%s559] ss:$8 sm:$0x3] %vm523, 0.0
      %561 = vst.msk [vmem:[%s559] ss:$8 sm:$0x0] %vm523, 0.0
      %s562 = scalar_lea.vmem [#allocation3], 113
      %563 = vst.msk [vmem:[%s562] ss:$8 sm:$0x3] %vm523, 0.0
      %564 = vst.msk [vmem:[%s562] ss:$8 sm:$0x0] %vm523, 0.0
      %s565 = scalar_lea.vmem [#allocation3], 145
      %566 = vst.msk [vmem:[%s565] ss:$8 sm:$0x3] %vm523, 0.0
      %567 = vst.msk [vmem:[%s565] ss:$8 sm:$0x0] %vm523, 0.0
      %s568 = scalar_lea.vmem [#allocation3], 177
      %569 = vst.msk [vmem:[%s568] ss:$8 sm:$0x3] %vm523, 0.0
      %570 = vst.msk [vmem:[%s568] ss:$8 sm:$0x0] %vm523, 0.0
      %s571 = scalar_lea.vmem [#allocation3], 209
      %572 = vst.msk [vmem:[%s571] ss:$8 sm:$0x3] %vm523, 0.0
      %573 = vst.msk [vmem:[%s571] ss:$8 sm:$0x0] %vm523, 0.0
      %s574 = scalar_lea.vmem [#allocation3], 241
      %575 = vst.msk [vmem:[%s574] ss:$8 sm:$0x3] %vm523, 0.0
      %576 = vst.msk [vmem:[%s574] ss:$8 sm:$0x0] %vm523, 0.0
      %s577 = scalar_lea.vmem [#allocation3], 273
      %578 = vst.msk [vmem:[%s577] ss:$8 sm:$0x3] %vm523, 0.0
      %579 = vst.msk [vmem:[%s577] ss:$8 sm:$0x0] %vm523, 0.0
      %s580 = scalar_lea.vmem [#allocation3], 305
      %581 = vst.msk [vmem:[%s580] ss:$8 sm:$0x3] %vm523, 0.0
      %582 = vst.msk [vmem:[%s580] ss:$8 sm:$0x0] %vm523, 0.0
      %v583 = vld [vmem:[%s475] sm:$0xff]
      %v584 = vld [vmem:[%s475 + $0x8] sm:$0xff]
      %v585 = vld [vmem:[%s475 + $0x10] sm:$0xff]
      %v586 = vld [vmem:[%s475 + $0x18] sm:$0xff]
      %v587 = vld [vmem:[%s475 + $0x20] sm:$0xff]
      %v588 = vld [vmem:[%s475 + $0x28] sm:$0xff]
      %v589 = vld [vmem:[%s475 + $0x30] sm:$0xff]
      %v590 = vld [vmem:[%s475 + $0x38] sm:$0xff]
      %v591 = vld [vmem:[%s2] sm:$0x1]
      %v592 = vld [vmem:[%s3] sm:$0x1]
      %v593 = vld [vmem:[%s4] sm:$0xff]
      %v594 = vld [vmem:[%s4 + $0x8] sm:$0xff]
      %v595 = vld [vmem:[%s4 + $0x10] sm:$0xff]
      %v596 = vld [vmem:[%s4 + $0x18] sm:$0xff]
      %v597 = vld [vmem:[%s4 + $0x20] sm:$0xff]
      %v598 = vld [vmem:[%s4 + $0x28] sm:$0xff]
      %v599 = vld [vmem:[%s4 + $0x30] sm:$0xff]
      %v600 = vld [vmem:[%s4 + $0x38] sm:$0xff]
      %v601 = vld [vmem:[%s4 + $0x40] sm:$0xff]
      %v602 = vld [vmem:[%s4 + $0x48] sm:$0xff]
      %v603 = vld [vmem:[%s4 + $0x50] sm:$0xff]
      %v604 = vld [vmem:[%s4 + $0x58] sm:$0xff]
      %v605 = vld [vmem:[%s4 + $0x60] sm:$0xff]
      %v606 = vld [vmem:[%s4 + $0x68] sm:$0xff]
      %v607 = vld [vmem:[%s4 + $0x70] sm:$0xff]
      %v608 = vld [vmem:[%s4 + $0x78] sm:$0xff]
      %v609 = vadd.f32 %v583, %v584
      %v610 = vadd.f32 %v609, %v585
      %v611 = vadd.f32 %v610, %v586
      %v612 = vadd.f32 %v611, %v587
      %v613 = vadd.f32 %v612, %v588
      %v614 = vadd.f32 %v613, %v589
      %v615 = vadd.f32 %v614, %v590
      %v616 = vrot.slane %v615, 4
      %v617 = vadd.f32 %v615, %v616
      %v618 = vrot.slane %v617, 2
      %v619 = vadd.f32 %v617, %v618
      %v620 = vrot.slane %v619, 1
      %v621 = vadd.f32 %v619, %v620
      %622 = vmatprep.subr.mxu0 0.0
      %623 = vmatpush1.msra.mxu0 %v593
      %624 = vmatprep.subr.mxu0 0.0
      %625 = vmatpush1.msra.mxu0 %v594
      %626 = vmatprep.subr.mxu0 0.0
      %627 = vmatpush1.msra.mxu0 %v595
      %628 = vmatprep.subr.mxu0 0.0
      %629 = vmatpush1.msra.mxu0 %v596
      %630 = vmatprep.subr.mxu0 0.0
      %631 = vmatpush1.msra.mxu0 %v597
      %632 = vmatprep.subr.mxu0 0.0
      %633 = vmatpush1.msra.mxu0 %v598
      %634 = vmatprep.subr.mxu0 0.0
      %635 = vmatpush1.msra.mxu0 %v599
      %636 = vmatprep.subr.mxu0 0.0
      %637 = vmatpush1.msra.mxu0 %v600
      %638 = vmatprep.subr.mxu0 0.0
      %639 = vmatpush1.msra.mxu0 %v601
      %640 = vmatprep.subr.mxu0 0.0
      %641 = vmatpush1.msra.mxu0 %v602
      %642 = vmatprep.subr.mxu0 0.0
      %643 = vmatpush1.msra.mxu0 %v603
      %644 = vmatprep.subr.mxu0 0.0
      %645 = vmatpush1.msra.mxu0 %v604
      %646 = vmatprep.subr.mxu0 0.0
      %647 = vmatpush1.msra.mxu0 %v605
      %648 = vmatprep.subr.mxu0 0.0
      %649 = vmatpush1.msra.mxu0 %v606
      %650 = vmatprep.subr.mxu0 0.0
      %651 = vmatpush1.msra.mxu0 %v607
      %652 = vmatprep.subr.mxu0 0.0
      %653 = vmatpush1.msra.mxu0 %v608
      %654 = vmatprep.subr.mxu0 0.0
      %655 = vmatpush1.msra.mxu0 0.0
      %656 = vmatprep.subr.mxu0 0.0
      %657 = vmatpush1.msra.mxu0 0.0
      %658 = vmatprep.subr.mxu0 0.0
      %659 = vmatpush1.msra.mxu0 0.0
      %660 = vmatprep.subr.mxu0 0.0
      %661 = vmatpush1.msra.mxu0 0.0
      %662 = vmatprep.subr.mxu0 0.0
      %663 = vmatpush1.msra.mxu0 0.0
      %664 = vmatprep.subr.mxu0 0.0
      %665 = vmatpush1.msra.mxu0 0.0
      %666 = vmatprep.subr.mxu0 0.0
      %667 = vmatpush1.msra.mxu0 0.0
      %668 = vmatprep.subr.mxu0 0.0
      %669 = vmatpush1.msra.mxu0 0.0
      %670 = vmatprep.subr.mxu0 0.0
      %671 = vmatpush1.msra.mxu0 0.0
      %672 = vmatprep.subr.mxu0 0.0
      %673 = vmatpush1.msra.mxu0 0.0
      %674 = vmatprep.subr.mxu0 0.0
      %675 = vmatpush1.msra.mxu0 0.0
      %676 = vmatprep.subr.mxu0 0.0
      %677 = vmatpush1.msra.mxu0 0.0
      %678 = vmatprep.subr.mxu0 0.0
      %679 = vmatpush1.msra.mxu0 0.0
      %680 = vmatprep.subr.mxu0 0.0
      %681 = vmatpush1.msra.mxu0 0.0
      %682 = vmatprep.subr.mxu0 0.0
      %683 = vmatpush1.msra.mxu0 0.0
      %684 = vmatprep.subr.mxu0 0.0
      %685 = vmatpush1.msra.mxu0 0.0
      %686 = vmatprep.mubr.f32.mxu0 0.0
      %687 = vmatmul.mubr.f32.gmra.mrb[0].mxu0 %v621
      %v688 = vpop.f32.mrb[0].mxu0
      %v689 = vadd.f32 0.0, %v688
      %v690 = vpop.f32.mrb[0].mxu0
      %691 = vdwg.mxu0
      %v692 = vlaneseq
      %v693 = vshrl.u32 %v692, 7
      %v694 = vsub.s32 0, %v693
      %v695 = vrot.slane %v689, %v694
      %v696 = vsub.f32 %v583, %v695
      %v697 = vsub.f32 %v584, %v695
      %v698 = vsub.f32 %v585, %v695
      %v699 = vsub.f32 %v586, %v695
      %v700 = vsub.f32 %v587, %v695
      %v701 = vsub.f32 %v588, %v695
      %v702 = vsub.f32 %v589, %v695
      %v703 = vsub.f32 %v590, %v695
      %v704 = vmul.f32 %v696, %v696
      %v705 = vmul.f32 %v697, %v697
      %v706 = vmul.f32 %v698, %v698
      %v707 = vmul.f32 %v699, %v699
      %v708 = vmul.f32 %v700, %v700
      %v709 = vmul.f32 %v701, %v701
      %v710 = vmul.f32 %v702, %v702
      %v711 = vmul.f32 %v703, %v703
      %v712 = vadd.f32 %v704, %v705
      %v713 = vadd.f32 %v712, %v706
      %v714 = vadd.f32 %v713, %v707
      %v715 = vadd.f32 %v714, %v708
      %v716 = vadd.f32 %v715, %v709
      %v717 = vadd.f32 %v716, %v710
      %v718 = vadd.f32 %v717, %v711
      %v719 = vrot.slane %v718, 4
      %v720 = vadd.f32 %v718, %v719
      %v721 = vrot.slane %v720, 2
      %v722 = vadd.f32 %v720, %v721
      %v723 = vrot.slane %v722, 1
      %v724 = vadd.f32 %v722, %v723
      %725 = vmatprep.subr.mxu0 0.0
      %726 = vmatpush1.msra.mxu0 %v593
      %727 = vmatprep.subr.mxu0 0.0
      %728 = vmatpush1.msra.mxu0 %v594
      %729 = vmatprep.subr.mxu0 0.0
      %730 = vmatpush1.msra.mxu0 %v595
      %731 = vmatprep.subr.mxu0 0.0
      %732 = vmatpush1.msra.mxu0 %v596
      %733 = vmatprep.subr.mxu0 0.0
      %734 = vmatpush1.msra.mxu0 %v597
      %735 = vmatprep.subr.mxu0 0.0
      %736 = vmatpush1.msra.mxu0 %v598
      %737 = vmatprep.subr.mxu0 0.0
      %738 = vmatpush1.msra.mxu0 %v599
      %739 = vmatprep.subr.mxu0 0.0
      %740 = vmatpush1.msra.mxu0 %v600
      %741 = vmatprep.subr.mxu0 0.0
      %742 = vmatpush1.msra.mxu0 %v601
      %743 = vmatprep.subr.mxu0 0.0
      %744 = vmatpush1.msra.mxu0 %v602
      %745 = vmatprep.subr.mxu0 0.0
      %746 = vmatpush1.msra.mxu0 %v603
      %747 = vmatprep.subr.mxu0 0.0
      %748 = vmatpush1.msra.mxu0 %v604
      %749 = vmatprep.subr.mxu0 0.0
      %750 = vmatpush1.msra.mxu0 %v605
      %751 = vmatprep.subr.mxu0 0.0
      %752 = vmatpush1.msra.mxu0 %v606
      %753 = vmatprep.subr.mxu0 0.0
      %754 = vmatpush1.msra.mxu0 %v607
      %755 = vmatprep.subr.mxu0 0.0
      %756 = vmatpush1.msra.mxu0 %v608
      %757 = vmatprep.subr.mxu0 0.0
      %758 = vmatpush1.msra.mxu0 0.0
      %759 = vmatprep.subr.mxu0 0.0
      %760 = vmatpush1.msra.mxu0 0.0
      %761 = vmatprep.subr.mxu0 0.0
      %762 = vmatpush1.msra.mxu0 0.0
      %763 = vmatprep.subr.mxu0 0.0
      %764 = vmatpush1.msra.mxu0 0.0
      %765 = vmatprep.subr.mxu0 0.0
      %766 = vmatpush1.msra.mxu0 0.0
      %767 = vmatprep.subr.mxu0 0.0
      %768 = vmatpush1.msra.mxu0 0.0
      %769 = vmatprep.subr.mxu0 0.0
      %770 = vmatpush1.msra.mxu0 0.0
      %771 = vmatprep.subr.mxu0 0.0
      %772 = vmatpush1.msra.mxu0 0.0
      %773 = vmatprep.subr.mxu0 0.0
      %774 = vmatpush1.msra.mxu0 0.0
      %775 = vmatprep.subr.mxu0 0.0
      %776 = vmatpush1.msra.mxu0 0.0
      %777 = vmatprep.subr.mxu0 0.0
      %778 = vmatpush1.msra.mxu0 0.0
      %779 = vmatprep.subr.mxu0 0.0
      %780 = vmatpush1.msra.mxu0 0.0
      %781 = vmatprep.subr.mxu0 0.0
      %782 = vmatpush1.msra.mxu0 0.0
      %783 = vmatprep.subr.mxu0 0.0
      %784 = vmatpush1.msra.mxu0 0.0
      %785 = vmatprep.subr.mxu0 0.0
      %786 = vmatpush1.msra.mxu0 0.0
      %787 = vmatprep.subr.mxu0 0.0
      %788 = vmatpush1.msra.mxu0 0.0
      %789 = vmatprep.mubr.f32.mxu0 0.0
      %790 = vmatmul.mubr.f32.gmra.mrb[0].mxu0 %v724
      %v791 = vpop.f32.mrb[0].mxu0
      %v792 = vadd.f32 1e-06, %v791
      %v793 = vpop.f32.mrb[0].mxu0
      %794 = vdwg.mxu0
      %v795 = vrsqrt.pop %v792
      %v796 = vlaneseq
      %v797 = vshrl.u32 %v796, 7
      %v798 = vsub.s32 0, %v797
      %v799 = vrot.slane %v795, %v798
      %v800 = vmul.f32 %v696, %v799
      %v801 = vmul.f32 %v697, %v799
      %v802 = vmul.f32 %v698, %v799
      %v803 = vmul.f32 %v699, %v799
      %v804 = vmul.f32 %v700, %v799
      %v805 = vmul.f32 %v701, %v799
      %v806 = vmul.f32 %v702, %v799
      %v807 = vmul.f32 %v703, %v799
      %v809 = vlaneseq
      %v810 = vshrl.u32 %v809, 7
      %v811 = vsub.s32 0, %v810
      %v812 = vrot.slane %v591, %v811
      %v814 = vmul.f32 %v800, %v812
      %v815 = vmul.f32 %v801, %v812
      %v816 = vmul.f32 %v802, %v812
      %v817 = vmul.f32 %v803, %v812
      %v818 = vmul.f32 %v804, %v812
      %v819 = vmul.f32 %v805, %v812
      %v820 = vmul.f32 %v806, %v812
      %v821 = vmul.f32 %v807, %v812
      %v823 = vlaneseq
      %v824 = vshrl.u32 %v823, 7
      %v825 = vsub.s32 0, %v824
      %v826 = vrot.slane %v592, %v825
      %v828 = vadd.f32 %v814, %v826
      %v829 = vadd.f32 %v815, %v826
      %v830 = vadd.f32 %v816, %v826
      %v831 = vadd.f32 %v817, %v826
      %v832 = vadd.f32 %v818, %v826
      %v833 = vadd.f32 %v819, %v826
      %v834 = vadd.f32 %v820, %v826
      %v835 = vadd.f32 %v821, %v826
      %v836 = vxor.u32 %v828, 2147483648
      %v837 = vxor.u32 %v829, 2147483648
      %v838 = vxor.u32 %v830, 2147483648
      %v839 = vxor.u32 %v831, 2147483648
      %v840 = vxor.u32 %v832, 2147483648
      %v841 = vxor.u32 %v833, 2147483648
      %v842 = vxor.u32 %v834, 2147483648
      %v843 = vxor.u32 %v835, 2147483648
      %v844 = vmul.f32 %v836, 1.442695
      %v845 = vpow.pop %v844
      %v846 = vmul.f32 %v837, 1.442695
      %v847 = vpow.pop %v846
      %v848 = vmul.f32 %v838, 1.442695
      %v849 = vpow.pop %v848
      %v850 = vmul.f32 %v839, 1.442695
      %v851 = vpow.pop %v850
      %v852 = vmul.f32 %v840, 1.442695
      %v853 = vpow.pop %v852
      %v854 = vmul.f32 %v841, 1.442695
      %v855 = vpow.pop %v854
      %v856 = vmul.f32 %v842, 1.442695
      %v857 = vpow.pop %v856
      %v858 = vmul.f32 %v843, 1.442695
      %v859 = vpow.pop %v858
      %v860 = vadd.f32 %v845, 1.0
      %v861 = vadd.f32 %v847, 1.0
      %v862 = vadd.f32 %v849, 1.0
      %v863 = vadd.f32 %v851, 1.0
      %v864 = vadd.f32 %v853, 1.0
      %v865 = vadd.f32 %v855, 1.0
      %v866 = vadd.f32 %v857, 1.0
      %v867 = vadd.f32 %v859, 1.0
      %v868 = vrcp.pop %v860
      %v869 = vmul.f32 1.0, %v868
      %v870 = vrcp.pop %v861
      %v871 = vmul.f32 1.0, %v870
      %v872 = vrcp.pop %v862
      %v873 = vmul.f32 1.0, %v872
      %v874 = vrcp.pop %v863
      %v875 = vmul.f32 1.0, %v874
      %v876 = vrcp.pop %v864
      %v877 = vmul.f32 1.0, %v876
      %v878 = vrcp.pop %v865
      %v879 = vmul.f32 1.0, %v878
      %v880 = vrcp.pop %v866
      %v881 = vmul.f32 1.0, %v880
      %v882 = vrcp.pop %v867
      %v883 = vmul.f32 1.0, %v882
      %v884 = vmul.f32 %v828, %v869
      %v885 = vmul.f32 %v829, %v871
      %v886 = vmul.f32 %v830, %v873
      %v887 = vmul.f32 %v831, %v875
      %v888 = vmul.f32 %v832, %v877
      %v889 = vmul.f32 %v833, %v879
      %v890 = vmul.f32 %v834, %v881
      %v891 = vmul.f32 %v835, %v883
      %s892 = scalar_lea.vmem [#allocation2], 16
      %893 = vst [vmem:[%s892 + $0x1] sm:$0xff] %v884
      %894 = vst [vmem:[%s892 + $0x11] sm:$0xff] %v885
      %895 = vst [vmem:[%s892 + $0x21] sm:$0xff] %v886
      %896 = vst [vmem:[%s892 + $0x31] sm:$0xff] %v887
      %897 = vst [vmem:[%s892 + $0x41] sm:$0xff] %v888
      %898 = vst [vmem:[%s892 + $0x51] sm:$0xff] %v889
      %899 = vst [vmem:[%s892 + $0x61] sm:$0xff] %v890
      %900 = vst [vmem:[%s892 + $0x71] sm:$0xff] %v891
      %v901 = vld [vmem:[%s6] sm:$0x3]
      %v902 = vld [vmem:[%s479] sm:$0x3]
      %v903 = vadd.f32 %v901, %v902
      %v904 = vld [vmem:[#allocation2] sm:$0xff]
      %v905 = vld [vmem:[#allocation2 + $0x10] sm:$0xff]
      %v906 = vld [vmem:[#allocation2 + $0x20] sm:$0xff]
      %v907 = vld [vmem:[#allocation2 + $0x30] sm:$0xff]
      %v908 = vld [vmem:[#allocation2 + $0x40] sm:$0xff]
      %v909 = vld [vmem:[#allocation2 + $0x50] sm:$0xff]
      %v910 = vld [vmem:[#allocation2 + $0x60] sm:$0xff]
      %v911 = vld [vmem:[#allocation2 + $0x70] sm:$0xff]
      %v912 = vpack.c.bf16 %v905, %v904
      %v913 = vpack.c.bf16 %v907, %v906
      %v914 = vpack.c.bf16 %v909, %v908
      %v915 = vpack.c.bf16 %v911, %v910
      %v916 = vld [vmem:[%s5] sm:$0xff]
      %v917 = vld [vmem:[%s5 + $0x8] sm:$0xff]
      %v918 = vld [vmem:[%s5 + $0x10] sm:$0xff]
      %v919 = vld [vmem:[%s5 + $0x18] sm:$0xff]
      %v920 = vld [vmem:[%s5 + $0x20] sm:$0xff]
      %v921 = vld [vmem:[%s5 + $0x28] sm:$0xff]
      %v922 = vld [vmem:[%s5 + $0x30] sm:$0xff]
      %v923 = vld [vmem:[%s5 + $0x38] sm:$0xff]
      %v924 = vld [vmem:[%s5 + $0x40] sm:$0xff]
      %v925 = vld [vmem:[%s5 + $0x48] sm:$0xff]
      %v926 = vld [vmem:[%s5 + $0x50] sm:$0xff]
      %v927 = vld [vmem:[%s5 + $0x58] sm:$0xff]
      %v928 = vld [vmem:[%s5 + $0x60] sm:$0xff]
      %v929 = vld [vmem:[%s5 + $0x68] sm:$0xff]
      %v930 = vld [vmem:[%s5 + $0x70] sm:$0xff]
      %v931 = vld [vmem:[%s5 + $0x78] sm:$0xff]
      %v948 = vunpack.c.l.b16 %v916
      %v949 = vunpack.c.h.b16 %v916
      %v950 = vunpack.c.l.b16 %v917
      %v951 = vunpack.c.h.b16 %v917
      %v952 = vunpack.c.l.b16 %v918
      %v953 = vunpack.c.h.b16 %v918
      %v954 = vunpack.c.l.b16 %v919
      %v955 = vunpack.c.h.b16 %v919
      %v956 = vunpack.c.l.b16 %v920
      %v957 = vunpack.c.h.b16 %v920
      %v958 = vunpack.c.l.b16 %v921
      %v959 = vunpack.c.h.b16 %v921
      %v960 = vunpack.c.l.b16 %v922
      %v961 = vunpack.c.h.b16 %v922
      %v962 = vunpack.c.l.b16 %v923
      %v963 = vunpack.c.h.b16 %v923
      %v964 = vunpack.c.l.b16 %v924
      %v965 = vunpack.c.h.b16 %v924
      %v966 = vunpack.c.l.b16 %v925
      %v967 = vunpack.c.h.b16 %v925
      %v968 = vunpack.c.l.b16 %v926
      %v969 = vunpack.c.h.b16 %v926
      %v970 = vunpack.c.l.b16 %v927
      %v971 = vunpack.c.h.b16 %v927
      %v972 = vunpack.c.l.b16 %v928
      %v973 = vunpack.c.h.b16 %v928
      %v974 = vunpack.c.l.b16 %v929
      %v975 = vunpack.c.h.b16 %v929
      %v976 = vunpack.c.l.b16 %v930
      %v977 = vunpack.c.h.b16 %v930
      %v978 = vunpack.c.l.b16 %v931
      %v979 = vunpack.c.h.b16 %v931
      %v980 = vpack.c.b16 %v950, %v948
      %v981 = vpack.c.b16 %v951, %v949
      %v982 = vpack.c.b16 %v954, %v952
      %v983 = vpack.c.b16 %v955, %v953
      %v984 = vpack.c.b16 %v958, %v956
      %v985 = vpack.c.b16 %v959, %v957
      %v986 = vpack.c.b16 %v962, %v960
      %v987 = vpack.c.b16 %v963, %v961
      %v988 = vpack.c.b16 %v966, %v964
      %v989 = vpack.c.b16 %v967, %v965
      %v990 = vpack.c.b16 %v970, %v968
      %v991 = vpack.c.b16 %v971, %v969
      %v992 = vpack.c.b16 %v974, %v972
      %v993 = vpack.c.b16 %v975, %v973
      %v994 = vpack.c.b16 %v978, %v976
      %v995 = vpack.c.b16 %v979, %v977
      %1012 = vmatprep.subr.bf16.mxu0 %v981
      %1013 = vmatpush1.bf16.msra.mxu0 %v980
      %1014 = vmatprep.subr.bf16.mxu0 %v983
      %1015 = vmatpush1.bf16.msra.mxu0 %v982
      %1016 = vmatprep.subr.bf16.mxu0 %v985
      %1017 = vmatpush1.bf16.msra.mxu0 %v984
      %1018 = vmatprep.subr.bf16.mxu0 %v987
      %1019 = vmatpush1.bf16.msra.mxu0 %v986
      %1020 = vmatprep.subr.bf16.mxu0 %v989
      %1021 = vmatpush1.bf16.msra.mxu0 %v988
      %1022 = vmatprep.subr.bf16.mxu0 %v991
      %1023 = vmatpush1.bf16.msra.mxu0 %v990
      %1024 = vmatprep.subr.bf16.mxu0 %v993
      %1025 = vmatpush1.bf16.msra.mxu0 %v992
      %1026 = vmatprep.subr.bf16.mxu0 %v995
      %1027 = vmatpush1.bf16.msra.mxu0 %v994
      %1028 = vmatprep.subr.bf16.mxu0 0
      %1029 = vmatpush1.bf16.msra.mxu0 0
      %1030 = vmatprep.subr.bf16.mxu0 0
      %1031 = vmatpush1.bf16.msra.mxu0 0
      %1032 = vmatprep.subr.bf16.mxu0 0
      %1033 = vmatpush1.bf16.msra.mxu0 0
      %1034 = vmatprep.subr.bf16.mxu0 0
      %1035 = vmatpush1.bf16.msra.mxu0 0
      %1036 = vmatprep.subr.bf16.mxu0 0
      %1037 = vmatpush1.bf16.msra.mxu0 0
      %1038 = vmatprep.subr.bf16.mxu0 0
      %1039 = vmatpush1.bf16.msra.mxu0 0
      %1040 = vmatprep.subr.bf16.mxu0 0
      %1041 = vmatpush1.bf16.msra.mxu0 0
      %1042 = vmatprep.subr.bf16.mxu0 0
      %1043 = vmatpush1.bf16.msra.mxu0 0
      %1044 = vmatprep.mubr.bf16.mxu0 0
      %1045 = vmatmul.mubr.bf16.gmra.mrb[0].mxu0 %v912
      %v1046 = vpop.f32.mrb[0].mxu0
      %v1047 = vadd.f32 0.0, %v1046
      %v1048 = vpop.f32.mrb[0].mxu0
      %v1049 = vadd.f32 0.0, %v1048
      %v1050 = vpop.f32.mrb[0].mxu0
      %v1051 = vadd.f32 0.0, %v1050
      %v1052 = vpop.f32.mrb[0].mxu0
      %v1053 = vadd.f32 0.0, %v1052
      %1054 = vmatprep.mubr.bf16.mxu0 0
      %1055 = vmatmul.mubr.bf16.gmra.mrb[0].mxu0 %v913
      %v1056 = vpop.f32.mrb[0].mxu0
      %v1057 = vadd.f32 0.0, %v1056
      %v1058 = vpop.f32.mrb[0].mxu0
      %v1059 = vadd.f32 0.0, %v1058
      %v1060 = vpop.f32.mrb[0].mxu0
      %v1061 = vadd.f32 0.0, %v1060
      %v1062 = vpop.f32.mrb[0].mxu0
      %v1063 = vadd.f32 0.0, %v1062
      %1064 = vmatprep.mubr.bf16.mxu0 0
      %1065 = vmatmul.mubr.bf16.gmra.mrb[0].mxu0 %v914
      %v1066 = vpop.f32.mrb[0].mxu0
      %v1067 = vadd.f32 0.0, %v1066
      %v1068 = vpop.f32.mrb[0].mxu0
      %v1069 = vadd.f32 0.0, %v1068
      %v1070 = vpop.f32.mrb[0].mxu0
      %v1071 = vadd.f32 0.0, %v1070
      %v1072 = vpop.f32.mrb[0].mxu0
      %v1073 = vadd.f32 0.0, %v1072
      %1074 = vmatprep.mubr.bf16.mxu0 0
      %1075 = vmatmul.mubr.bf16.gmra.mrb[0].mxu0 %v915
      %v1076 = vpop.f32.mrb[0].mxu0
      %v1077 = vadd.f32 0.0, %v1076
      %v1078 = vpop.f32.mrb[0].mxu0
      %v1079 = vadd.f32 0.0, %v1078
      %v1080 = vpop.f32.mrb[0].mxu0
      %v1081 = vadd.f32 0.0, %v1080
      %v1082 = vpop.f32.mrb[0].mxu0
      %v1083 = vadd.f32 0.0, %v1082
      %1084 = vdwg.mxu0
      %v1086 = vlaneseq
      %v1087 = vshrl.u32 %v1086, 7
      %v1088 = vsub.s32 0, %v1087
      %v1089 = vrot.slane %v903, %v1088
      %v1090 = vlaneseq
      %v1091 = vshrl.u32 %v1090, 7
      %v1092 = vsub.s32 1, %v1091
      %v1093 = vrot.slane %v903, %v1092
      %v1096 = vadd.f32 %v1089, %v1047
      %v1097 = vadd.f32 %v1093, %v1049
      %v1098 = vadd.f32 %v1089, %v1051
      %v1099 = vadd.f32 %v1093, %v1053
      %v1100 = vadd.f32 %v1089, %v1057
      %v1101 = vadd.f32 %v1093, %v1059
      %v1102 = vadd.f32 %v1089, %v1061
      %v1103 = vadd.f32 %v1093, %v1063
      %v1104 = vadd.f32 %v1089, %v1067
      %v1105 = vadd.f32 %v1093, %v1069
      %v1106 = vadd.f32 %v1089, %v1071
      %v1107 = vadd.f32 %v1093, %v1073
      %v1108 = vadd.f32 %v1089, %v1077
      %v1109 = vadd.f32 %v1093, %v1079
      %v1110 = vadd.f32 %v1089, %v1081
      %v1111 = vadd.f32 %v1093, %v1083
      %v1112 = vld [vmem:[#allocation2 + $0x1] sm:$0xff]
      %v1113 = vld [vmem:[#allocation2 + $0x11] sm:$0xff]
      %v1114 = vld [vmem:[#allocation2 + $0x21] sm:$0xff]
      %v1115 = vld [vmem:[#allocation2 + $0x31] sm:$0xff]
      %v1116 = vld [vmem:[#allocation2 + $0x41] sm:$0xff]
      %v1117 = vld [vmem:[#allocation2 + $0x51] sm:$0xff]
      %v1118 = vld [vmem:[#allocation2 + $0x61] sm:$0xff]
      %v1119 = vld [vmem:[#allocation2 + $0x71] sm:$0xff]
      %v1120 = vpack.c.bf16 %v1113, %v1112
      %v1121 = vpack.c.bf16 %v1115, %v1114
      %v1122 = vpack.c.bf16 %v1117, %v1116
      %v1123 = vpack.c.bf16 %v1119, %v1118
      %s1124 = scalar_lea.vmem %s5, 128
      %v1125 = vld [vmem:[%s1124] sm:$0xff]
      %v1126 = vld [vmem:[%s1124 + $0x8] sm:$0xff]
      %v1127 = vld [vmem:[%s1124 + $0x10] sm:$0xff]
      %v1128 = vld [vmem:[%s1124 + $0x18] sm:$0xff]
      %v1129 = vld [vmem:[%s1124 + $0x20] sm:$0xff]
      %v1130 = vld [vmem:[%s1124 + $0x28] sm:$0xff]
      %v1131 = vld [vmem:[%s1124 + $0x30] sm:$0xff]
      %v1132 = vld [vmem:[%s1124 + $0x38] sm:$0xff]
      %v1133 = vld [vmem:[%s1124 + $0x40] sm:$0xff]
      %v1134 = vld [vmem:[%s1124 + $0x48] sm:$0xff]
      %v1135 = vld [vmem:[%s1124 + $0x50] sm:$0xff]
      %v1136 = vld [vmem:[%s1124 + $0x58] sm:$0xff]
      %v1137 = vld [vmem:[%s1124 + $0x60] sm:$0xff]
      %v1138 = vld [vmem:[%s1124 + $0x68] sm:$0xff]
      %v1139 = vld [vmem:[%s1124 + $0x70] sm:$0xff]
      %v1140 = vld [vmem:[%s1124 + $0x78] sm:$0xff]
      %v1157 = vunpack.c.l.b16 %v1125
      %v1158 = vunpack.c.h.b16 %v1125
      %v1159 = vunpack.c.l.b16 %v1126
      %v1160 = vunpack.c.h.b16 %v1126
      %v1161 = vunpack.c.l.b16 %v1127
      %v1162 = vunpack.c.h.b16 %v1127
      %v1163 = vunpack.c.l.b16 %v1128
      %v1164 = vunpack.c.h.b16 %v1128
      %v1165 = vunpack.c.l.b16 %v1129
      %v1166 = vunpack.c.h.b16 %v1129
      %v1167 = vunpack.c.l.b16 %v1130
      %v1168 = vunpack.c.h.b16 %v1130
      %v1169 = vunpack.c.l.b16 %v1131
      %v1170 = vunpack.c.h.b16 %v1131
      %v1171 = vunpack.c.l.b16 %v1132
      %v1172 = vunpack.c.h.b16 %v1132
      %v1173 = vunpack.c.l.b16 %v1133
      %v1174 = vunpack.c.h.b16 %v1133
      %v1175 = vunpack.c.l.b16 %v1134
      %v1176 = vunpack.c.h.b16 %v1134
      %v1177 = vunpack.c.l.b16 %v1135
      %v1178 = vunpack.c.h.b16 %v1135
      %v1179 = vunpack.c.l.b16 %v1136
      %v1180 = vunpack.c.h.b16 %v1136
      %v1181 = vunpack.c.l.b16 %v1137
      %v1182 = vunpack.c.h.b16 %v1137
      %v1183 = vunpack.c.l.b16 %v1138
      %v1184 = vunpack.c.h.b16 %v1138
      %v1185 = vunpack.c.l.b16 %v1139
      %v1186 = vunpack.c.h.b16 %v1139
      %v1187 = vunpack.c.l.b16 %v1140
      %v1188 = vunpack.c.h.b16 %v1140
      %v1189 = vpack.c.b16 %v1159, %v1157
      %v1190 = vpack.c.b16 %v1160, %v1158
      %v1191 = vpack.c.b16 %v1163, %v1161
      %v1192 = vpack.c.b16 %v1164, %v1162
      %v1193 = vpack.c.b16 %v1167, %v1165
      %v1194 = vpack.c.b16 %v1168, %v1166
      %v1195 = vpack.c.b16 %v1171, %v1169
      %v1196 = vpack.c.b16 %v1172, %v1170
      %v1197 = vpack.c.b16 %v1175, %v1173
      %v1198 = vpack.c.b16 %v1176, %v1174
      %v1199 = vpack.c.b16 %v1179, %v1177
      %v1200 = vpack.c.b16 %v1180, %v1178
      %v1201 = vpack.c.b16 %v1183, %v1181
      %v1202 = vpack.c.b16 %v1184, %v1182
      %v1203 = vpack.c.b16 %v1187, %v1185
      %v1204 = vpack.c.b16 %v1188, %v1186
      %1221 = vmatprep.subr.bf16.mxu0 %v1190
      %1222 = vmatpush1.bf16.msra.mxu0 %v1189
      %1223 = vmatprep.subr.bf16.mxu0 %v1192
      %1224 = vmatpush1.bf16.msra.mxu0 %v1191
      %1225 = vmatprep.subr.bf16.mxu0 %v1194
      %1226 = vmatpush1.bf16.msra.mxu0 %v1193
      %1227 = vmatprep.subr.bf16.mxu0 %v1196
      %1228 = vmatpush1.bf16.msra.mxu0 %v1195
      %1229 = vmatprep.subr.bf16.mxu0 %v1198
      %1230 = vmatpush1.bf16.msra.mxu0 %v1197
      %1231 = vmatprep.subr.bf16.mxu0 %v1200
      %1232 = vmatpush1.bf16.msra.mxu0 %v1199
      %1233 = vmatprep.subr.bf16.mxu0 %v1202
      %1234 = vmatpush1.bf16.msra.mxu0 %v1201
      %1235 = vmatprep.subr.bf16.mxu0 %v1204
      %1236 = vmatpush1.bf16.msra.mxu0 %v1203
      %1237 = vmatprep.subr.bf16.mxu0 0
      %1238 = vmatpush1.bf16.msra.mxu0 0
      %1239 = vmatprep.subr.bf16.mxu0 0
      %1240 = vmatpush1.bf16.msra.mxu0 0
      %1241 = vmatprep.subr.bf16.mxu0 0
      %1242 = vmatpush1.bf16.msra.mxu0 0
      %1243 = vmatprep.subr.bf16.mxu0 0
      %1244 = vmatpush1.bf16.msra.mxu0 0
      %1245 = vmatprep.subr.bf16.mxu0 0
      %1246 = vmatpush1.bf16.msra.mxu0 0
      %1247 = vmatprep.subr.bf16.mxu0 0
      %1248 = vmatpush1.bf16.msra.mxu0 0
      %1249 = vmatprep.subr.bf16.mxu0 0
      %1250 = vmatpush1.bf16.msra.mxu0 0
      %1251 = vmatprep.subr.bf16.mxu0 0
      %1252 = vmatpush1.bf16.msra.mxu0 0
      %1253 = vmatprep.mubr.bf16.mxu0 0
      %1254 = vmatmul.mubr.bf16.gmra.mrb[0].mxu0 %v1120
      %v1255 = vpop.f32.mrb[0].mxu0
      %v1256 = vadd.f32 0.0, %v1255
      %v1257 = vpop.f32.mrb[0].mxu0
      %v1258 = vadd.f32 0.0, %v1257
      %v1259 = vpop.f32.mrb[0].mxu0
      %v1260 = vadd.f32 0.0, %v1259
      %v1261 = vpop.f32.mrb[0].mxu0
      %v1262 = vadd.f32 0.0, %v1261
      %1263 = vmatprep.mubr.bf16.mxu0 0
      %1264 = vmatmul.mubr.bf16.gmra.mrb[0].mxu0 %v1121
      %v1265 = vpop.f32.mrb[0].mxu0
      %v1266 = vadd.f32 0.0, %v1265
      %v1267 = vpop.f32.mrb[0].mxu0
      %v1268 = vadd.f32 0.0, %v1267
      %v1269 = vpop.f32.mrb[0].mxu0
      %v1270 = vadd.f32 0.0, %v1269
      %v1271 = vpop.f32.mrb[0].mxu0
      %v1272 = vadd.f32 0.0, %v1271
      %1273 = vmatprep.mubr.bf16.mxu0 0
      %1274 = vmatmul.mubr.bf16.gmra.mrb[0].mxu0 %v1122
      %v1275 = vpop.f32.mrb[0].mxu0
      %v1276 = vadd.f32 0.0, %v1275
      %v1277 = vpop.f32.mrb[0].mxu0
      %v1278 = vadd.f32 0.0, %v1277
      %v1279 = vpop.f32.mrb[0].mxu0
      %v1280 = vadd.f32 0.0, %v1279
      %v1281 = vpop.f32.mrb[0].mxu0
      %v1282 = vadd.f32 0.0, %v1281
      %1283 = vmatprep.mubr.bf16.mxu0 0
      %1284 = vmatmul.mubr.bf16.gmra.mrb[0].mxu0 %v1123
      %v1285 = vpop.f32.mrb[0].mxu0
      %v1286 = vadd.f32 0.0, %v1285
      %v1287 = vpop.f32.mrb[0].mxu0
      %v1288 = vadd.f32 0.0, %v1287
      %v1289 = vpop.f32.mrb[0].mxu0
      %v1290 = vadd.f32 0.0, %v1289
      %v1291 = vpop.f32.mrb[0].mxu0
      %v1292 = vadd.f32 0.0, %v1291
      %1293 = vdwg.mxu0
      %v1294 = vadd.f32 %v1096, %v1256
      %v1295 = vadd.f32 %v1097, %v1258
      %v1296 = vadd.f32 %v1098, %v1260
      %v1297 = vadd.f32 %v1099, %v1262
      %v1298 = vadd.f32 %v1100, %v1266
      %v1299 = vadd.f32 %v1101, %v1268
      %v1300 = vadd.f32 %v1102, %v1270
      %v1301 = vadd.f32 %v1103, %v1272
      %v1302 = vadd.f32 %v1104, %v1276
      %v1303 = vadd.f32 %v1105, %v1278
      %v1304 = vadd.f32 %v1106, %v1280
      %v1305 = vadd.f32 %v1107, %v1282
      %v1306 = vadd.f32 %v1108, %v1286
      %v1307 = vadd.f32 %v1109, %v1288
      %v1308 = vadd.f32 %v1110, %v1290
      %v1309 = vadd.f32 %v1111, %v1292
      %v1310 = vld [vmem:[#allocation2 + $0x2] sm:$0xff]
      %v1311 = vld [vmem:[#allocation2 + $0x12] sm:$0xff]
      %v1312 = vld [vmem:[#allocation2 + $0x22] sm:$0xff]
      %v1313 = vld [vmem:[#allocation2 + $0x32] sm:$0xff]
      %v1314 = vld [vmem:[#allocation2 + $0x42] sm:$0xff]
      %v1315 = vld [vmem:[#allocation2 + $0x52] sm:$0xff]
      %v1316 = vld [vmem:[#allocation2 + $0x62] sm:$0xff]
      %v1317 = vld [vmem:[#allocation2 + $0x72] sm:$0xff]
      %v1318 = vpack.c.bf16 %v1311, %v1310
      %v1319 = vpack.c.bf16 %v1313, %v1312
      %v1320 = vpack.c.bf16 %v1315, %v1314
      %v1321 = vpack.c.bf16 %v1317, %v1316
      %s1322 = scalar_lea.vmem %s5, 256
      %v1323 = vld [vmem:[%s1322] sm:$0xff]
      %v1324 = vld [vmem:[%s1322 + $0x8] sm:$0xff]
      %v1325 = vld [vmem:[%s1322 + $0x10] sm:$0xff]
      %v1326 = vld [vmem:[%s1322 + $0x18] sm:$0xff]
      %v1327 = vld [vmem:[%s1322 + $0x20] sm:$0xff]
      %v1328 = vld [vmem:[%s1322 + $0x28] sm:$0xff]
      %v1329 = vld [vmem:[%s1322 + $0x30] sm:$0xff]
      %v1330 = vld [vmem:[%s1322 + $0x38] sm:$0xff]
      %v1331 = vld [vmem:[%s1322 + $0x40] sm:$0xff]
      %v1332 = vld [vmem:[%s1322 + $0x48] sm:$0xff]
      %v1333 = vld [vmem:[%s1322 + $0x50] sm:$0xff]
      %v1334 = vld [vmem:[%s1322 + $0x58] sm:$0xff]
      %v1335 = vld [vmem:[%s1322 + $0x60] sm:$0xff]
      %v1336 = vld [vmem:[%s1322 + $0x68] sm:$0xff]
      %v1337 = vld [vmem:[%s1322 + $0x70] sm:$0xff]
      %v1338 = vld [vmem:[%s1322 + $0x78] sm:$0xff]
      %v1355 = vunpack.c.l.b16 %v1323
      %v1356 = vunpack.c.h.b16 %v1323
      %v1357 = vunpack.c.l.b16 %v1324
      %v1358 = vunpack.c.h.b16 %v1324
      %v1359 = vunpack.c.l.b16 %v1325
      %v1360 = vunpack.c.h.b16 %v1325
      %v1361 = vunpack.c.l.b16 %v1326
      %v1362 = vunpack.c.h.b16 %v1326
      %v1363 = vunpack.c.l.b16 %v1327
      %v1364 = vunpack.c.h.b16 %v1327
      %v1365 = vunpack.c.l.b16 %v1328
      %v1366 = vunpack.c.h.b16 %v1328
      %v1367 = vunpack.c.l.b16 %v1329
      %v1368 = vunpack.c.h.b16 %v1329
      %v1369 = vunpack.c.l.b16 %v1330
      %v1370 = vunpack.c.h.b16 %v1330
      %v1371 = vunpack.c.l.b16 %v1331
      %v1372 = vunpack.c.h.b16 %v1331
      %v1373 = vunpack.c.l.b16 %v1332
      %v1374 = vunpack.c.h.b16 %v1332
      %v1375 = vunpack.c.l.b16 %v1333
      %v1376 = vunpack.c.h.b16 %v1333
      %v1377 = vunpack.c.l.b16 %v1334
      %v1378 = vunpack.c.h.b16 %v1334
      %v1379 = vunpack.c.l.b16 %v1335
      %v1380 = vunpack.c.h.b16 %v1335
      %v1381 = vunpack.c.l.b16 %v1336
      %v1382 = vunpack.c.h.b16 %v1336
      %v1383 = vunpack.c.l.b16 %v1337
      %v1384 = vunpack.c.h.b16 %v1337
      %v1385 = vunpack.c.l.b16 %v1338
      %v1386 = vunpack.c.h.b16 %v1338
      %v1387 = vpack.c.b16 %v1357, %v1355
      %v1388 = vpack.c.b16 %v1358, %v1356
      %v1389 = vpack.c.b16 %v1361, %v1359
      %v1390 = vpack.c.b16 %v1362, %v1360
      %v1391 = vpack.c.b16 %v1365, %v1363
      %v1392 = vpack.c.b16 %v1366, %v1364
      %v1393 = vpack.c.b16 %v1369, %v1367
      %v1394 = vpack.c.b16 %v1370, %v1368
      %v1395 = vpack.c.b16 %v1373, %v1371
      %v1396 = vpack.c.b16 %v1374, %v1372
      %v1397 = vpack.c.b16 %v1377, %v1375
      %v1398 = vpack.c.b16 %v1378, %v1376
      %v1399 = vpack.c.b16 %v1381, %v1379
      %v1400 = vpack.c.b16 %v1382, %v1380
      %v1401 = vpack.c.b16 %v1385, %v1383
      %v1402 = vpack.c.b16 %v1386, %v1384
      %1419 = vmatprep.subr.bf16.mxu0 %v1388
      %1420 = vmatpush1.bf16.msra.mxu0 %v1387
      %1421 = vmatprep.subr.bf16.mxu0 %v1390
      %1422 = vmatpush1.bf16.msra.mxu0 %v1389
      %1423 = vmatprep.subr.bf16.mxu0 %v1392
      %1424 = vmatpush1.bf16.msra.mxu0 %v1391
      %1425 = vmatprep.subr.bf16.mxu0 %v1394
      %1426 = vmatpush1.bf16.msra.mxu0 %v1393
      %1427 = vmatprep.subr.bf16.mxu0 %v1396
      %1428 = vmatpush1.bf16.msra.mxu0 %v1395
      %1429 = vmatprep.subr.bf16.mxu0 %v1398
      %1430 = vmatpush1.bf16.msra.mxu0 %v1397
      %1431 = vmatprep.subr.bf16.mxu0 %v1400
      %1432 = vmatpush1.bf16.msra.mxu0 %v1399
      %1433 = vmatprep.subr.bf16.mxu0 %v1402
      %1434 = vmatpush1.bf16.msra.mxu0 %v1401
      %1435 = vmatprep.subr.bf16.mxu0 0
      %1436 = vmatpush1.bf16.msra.mxu0 0
      %1437 = vmatprep.subr.bf16.mxu0 0
      %1438 = vmatpush1.bf16.msra.mxu0 0
      %1439 = vmatprep.subr.bf16.mxu0 0
      %1440 = vmatpush1.bf16.msra.mxu0 0
      %1441 = vmatprep.subr.bf16.mxu0 0
      %1442 = vmatpush1.bf16.msra.mxu0 0
      %1443 = vmatprep.subr.bf16.mxu0 0
      %1444 = vmatpush1.bf16.msra.mxu0 0
      %1445 = vmatprep.subr.bf16.mxu0 0
      %1446 = vmatpush1.bf16.msra.mxu0 0
      %1447 = vmatprep.subr.bf16.mxu0 0
      %1448 = vmatpush1.bf16.msra.mxu0 0
      %1449 = vmatprep.subr.bf16.mxu0 0
      %1450 = vmatpush1.bf16.msra.mxu0 0
      %1451 = vmatprep.mubr.bf16.mxu0 0
      %1452 = vmatmul.mubr.bf16.gmra.mrb[0].mxu0 %v1318
      %v1453 = vpop.f32.mrb[0].mxu0
      %v1454 = vadd.f32 0.0, %v1453
      %v1455 = vpop.f32.mrb[0].mxu0
      %v1456 = vadd.f32 0.0, %v1455
      %v1457 = vpop.f32.mrb[0].mxu0
      %v1458 = vadd.f32 0.0, %v1457
      %v1459 = vpop.f32.mrb[0].mxu0
      %v1460 = vadd.f32 0.0, %v1459
      %1461 = vmatprep.mubr.bf16.mxu0 0
      %1462 = vmatmul.mubr.bf16.gmra.mrb[0].mxu0 %v1319
      %v1463 = vpop.f32.mrb[0].mxu0
      %v1464 = vadd.f32 0.0, %v1463
      %v1465 = vpop.f32.mrb[0].mxu0
      %v1466 = vadd.f32 0.0, %v1465
      %v1467 = vpop.f32.mrb[0].mxu0
      %v1468 = vadd.f32 0.0, %v1467
      %v1469 = vpop.f32.mrb[0].mxu0
      %v1470 = vadd.f32 0.0, %v1469
      %1471 = vmatprep.mubr.bf16.mxu0 0
      %1472 = vmatmul.mubr.bf16.gmra.mrb[0].mxu0 %v1320
      %v1473 = vpop.f32.mrb[0].mxu0
      %v1474 = vadd.f32 0.0, %v1473
      %v1475 = vpop.f32.mrb[0].mxu0
      %v1476 = vadd.f32 0.0, %v1475
      %v1477 = vpop.f32.mrb[0].mxu0
      %v1478 = vadd.f32 0.0, %v1477
      %v1479 = vpop.f32.mrb[0].mxu0
      %v1480 = vadd.f32 0.0, %v1479
      %1481 = vmatprep.mubr.bf16.mxu0 0
      %1482 = vmatmul.mubr.bf16.gmra.mrb[0].mxu0 %v1321
      %v1483 = vpop.f32.mrb[0].mxu0
      %v1484 = vadd.f32 0.0, %v1483
      %v1485 = vpop.f32.mrb[0].mxu0
      %v1486 = vadd.f32 0.0, %v1485
      %v1487 = vpop.f32.mrb[0].mxu0
      %v1488 = vadd.f32 0.0, %v1487
      %v1489 = vpop.f32.mrb[0].mxu0
      %v1490 = vadd.f32 0.0, %v1489
      %1491 = vdwg.mxu0
      %v1492 = vadd.f32 %v1294, %v1454
      %v1493 = vadd.f32 %v1295, %v1456
      %v1494 = vadd.f32 %v1296, %v1458
      %v1495 = vadd.f32 %v1297, %v1460
      %v1496 = vadd.f32 %v1298, %v1464
      %v1497 = vadd.f32 %v1299, %v1466
      %v1498 = vadd.f32 %v1300, %v1468
      %v1499 = vadd.f32 %v1301, %v1470
      %v1500 = vadd.f32 %v1302, %v1474
      %v1501 = vadd.f32 %v1303, %v1476
      %v1502 = vadd.f32 %v1304, %v1478
      %v1503 = vadd.f32 %v1305, %v1480
      %v1504 = vadd.f32 %v1306, %v1484
      %v1505 = vadd.f32 %v1307, %v1486
      %v1506 = vadd.f32 %v1308, %v1488
      %v1507 = vadd.f32 %v1309, %v1490
      %v1508 = vld [vmem:[%s892] sm:$0xff]
      %v1509 = vld [vmem:[%s892 + $0x10] sm:$0xff]
      %v1510 = vld [vmem:[%s892 + $0x20] sm:$0xff]
      %v1511 = vld [vmem:[%s892 + $0x30] sm:$0xff]
      %v1512 = vld [vmem:[%s892 + $0x40] sm:$0xff]
      %v1513 = vld [vmem:[%s892 + $0x50] sm:$0xff]
      %v1514 = vld [vmem:[%s892 + $0x60] sm:$0xff]
      %v1515 = vld [vmem:[%s892 + $0x70] sm:$0xff]
      %v1516 = vpack.c.bf16 %v1509, %v1508
      %v1517 = vpack.c.bf16 %v1511, %v1510
      %v1518 = vpack.c.bf16 %v1513, %v1512
      %v1519 = vpack.c.bf16 %v1515, %v1514
      %s1520 = scalar_lea.vmem %s5, 384
      %v1521 = vld [vmem:[%s1520] sm:$0xff]
      %v1522 = vld [vmem:[%s1520 + $0x8] sm:$0xff]
      %v1523 = vld [vmem:[%s1520 + $0x10] sm:$0xff]
      %v1524 = vld [vmem:[%s1520 + $0x18] sm:$0xff]
      %v1525 = vld [vmem:[%s1520 + $0x20] sm:$0xff]
      %v1526 = vld [vmem:[%s1520 + $0x28] sm:$0xff]
      %v1527 = vld [vmem:[%s1520 + $0x30] sm:$0xff]
      %v1528 = vld [vmem:[%s1520 + $0x38] sm:$0xff]
      %v1529 = vld [vmem:[%s1520 + $0x40] sm:$0xff]
      %v1530 = vld [vmem:[%s1520 + $0x48] sm:$0xff]
      %v1531 = vld [vmem:[%s1520 + $0x50] sm:$0xff]
      %v1532 = vld [vmem:[%s1520 + $0x58] sm:$0xff]
      %v1533 = vld [vmem:[%s1520 + $0x60] sm:$0xff]
      %v1534 = vld [vmem:[%s1520 + $0x68] sm:$0xff]
      %v1535 = vld [vmem:[%s1520 + $0x70] sm:$0xff]
      %v1536 = vld [vmem:[%s1520 + $0x78] sm:$0xff]
      %v1553 = vunpack.c.l.b16 %v1521
      %v1554 = vunpack.c.h.b16 %v1521
      %v1555 = vunpack.c.l.b16 %v1522
      %v1556 = vunpack.c.h.b16 %v1522
      %v1557 = vunpack.c.l.b16 %v1523
      %v1558 = vunpack.c.h.b16 %v1523
      %v1559 = vunpack.c.l.b16 %v1524
      %v1560 = vunpack.c.h.b16 %v1524
      %v1561 = vunpack.c.l.b16 %v1525
      %v1562 = vunpack.c.h.b16 %v1525
      %v1563 = vunpack.c.l.b16 %v1526
      %v1564 = vunpack.c.h.b16 %v1526
      %v1565 = vunpack.c.l.b16 %v1527
      %v1566 = vunpack.c.h.b16 %v1527
      %v1567 = vunpack.c.l.b16 %v1528
      %v1568 = vunpack.c.h.b16 %v1528
      %v1569 = vunpack.c.l.b16 %v1529
      %v1570 = vunpack.c.h.b16 %v1529
      %v1571 = vunpack.c.l.b16 %v1530
      %v1572 = vunpack.c.h.b16 %v1530
      %v1573 = vunpack.c.l.b16 %v1531
      %v1574 = vunpack.c.h.b16 %v1531
      %v1575 = vunpack.c.l.b16 %v1532
      %v1576 = vunpack.c.h.b16 %v1532
      %v1577 = vunpack.c.l.b16 %v1533
      %v1578 = vunpack.c.h.b16 %v1533
      %v1579 = vunpack.c.l.b16 %v1534
      %v1580 = vunpack.c.h.b16 %v1534
      %v1581 = vunpack.c.l.b16 %v1535
      %v1582 = vunpack.c.h.b16 %v1535
      %v1583 = vunpack.c.l.b16 %v1536
      %v1584 = vunpack.c.h.b16 %v1536
      %v1585 = vpack.c.b16 %v1555, %v1553
      %v1586 = vpack.c.b16 %v1556, %v1554
      %v1587 = vpack.c.b16 %v1559, %v1557
      %v1588 = vpack.c.b16 %v1560, %v1558
      %v1589 = vpack.c.b16 %v1563, %v1561
      %v1590 = vpack.c.b16 %v1564, %v1562
      %v1591 = vpack.c.b16 %v1567, %v1565
      %v1592 = vpack.c.b16 %v1568, %v1566
      %v1593 = vpack.c.b16 %v1571, %v1569
      %v1594 = vpack.c.b16 %v1572, %v1570
      %v1595 = vpack.c.b16 %v1575, %v1573
      %v1596 = vpack.c.b16 %v1576, %v1574
      %v1597 = vpack.c.b16 %v1579, %v1577
      %v1598 = vpack.c.b16 %v1580, %v1578
      %v1599 = vpack.c.b16 %v1583, %v1581
      %v1600 = vpack.c.b16 %v1584, %v1582
      %1617 = vmatprep.subr.bf16.mxu0 %v1586
      %1618 = vmatpush1.bf16.msra.mxu0 %v1585
      %1619 = vmatprep.subr.bf16.mxu0 %v1588
      %1620 = vmatpush1.bf16.msra.mxu0 %v1587
      %1621 = vmatprep.subr.bf16.mxu0 %v1590
      %1622 = vmatpush1.bf16.msra.mxu0 %v1589
      %1623 = vmatprep.subr.bf16.mxu0 %v1592
      %1624 = vmatpush1.bf16.msra.mxu0 %v1591
      %1625 = vmatprep.subr.bf16.mxu0 %v1594
      %1626 = vmatpush1.bf16.msra.mxu0 %v1593
      %1627 = vmatprep.subr.bf16.mxu0 %v1596
      %1628 = vmatpush1.bf16.msra.mxu0 %v1595
      %1629 = vmatprep.subr.bf16.mxu0 %v1598
      %1630 = vmatpush1.bf16.msra.mxu0 %v1597
      %1631 = vmatprep.subr.bf16.mxu0 %v1600
      %1632 = vmatpush1.bf16.msra.mxu0 %v1599
      %1633 = vmatprep.subr.bf16.mxu0 0
      %1634 = vmatpush1.bf16.msra.mxu0 0
      %1635 = vmatprep.subr.bf16.mxu0 0
      %1636 = vmatpush1.bf16.msra.mxu0 0
      %1637 = vmatprep.subr.bf16.mxu0 0
      %1638 = vmatpush1.bf16.msra.mxu0 0
      %1639 = vmatprep.subr.bf16.mxu0 0
      %1640 = vmatpush1.bf16.msra.mxu0 0
      %1641 = vmatprep.subr.bf16.mxu0 0
      %1642 = vmatpush1.bf16.msra.mxu0 0
      %1643 = vmatprep.subr.bf16.mxu0 0
      %1644 = vmatpush1.bf16.msra.mxu0 0
      %1645 = vmatprep.subr.bf16.mxu0 0
      %1646 = vmatpush1.bf16.msra.mxu0 0
      %1647 = vmatprep.subr.bf16.mxu0 0
      %1648 = vmatpush1.bf16.msra.mxu0 0
      %1649 = vmatprep.mubr.bf16.mxu0 0
      %1650 = vmatmul.mubr.bf16.gmra.mrb[0].mxu0 %v1516
      %v1651 = vpop.f32.mrb[0].mxu0
      %v1652 = vadd.f32 0.0, %v1651
      %v1653 = vpop.f32.mrb[0].mxu0
      %v1654 = vadd.f32 0.0, %v1653
      %v1655 = vpop.f32.mrb[0].mxu0
      %v1656 = vadd.f32 0.0, %v1655
      %v1657 = vpop.f32.mrb[0].mxu0
      %v1658 = vadd.f32 0.0, %v1657
      %1659 = vmatprep.mubr.bf16.mxu0 0
      %1660 = vmatmul.mubr.bf16.gmra.mrb[0].mxu0 %v1517
      %v1661 = vpop.f32.mrb[0].mxu0
      %v1662 = vadd.f32 0.0, %v1661
      %v1663 = vpop.f32.mrb[0].mxu0
      %v1664 = vadd.f32 0.0, %v1663
      %v1665 = vpop.f32.mrb[0].mxu0
      %v1666 = vadd.f32 0.0, %v1665
      %v1667 = vpop.f32.mrb[0].mxu0
      %v1668 = vadd.f32 0.0, %v1667
      %1669 = vmatprep.mubr.bf16.mxu0 0
      %1670 = vmatmul.mubr.bf16.gmra.mrb[0].mxu0 %v1518
      %v1671 = vpop.f32.mrb[0].mxu0
      %v1672 = vadd.f32 0.0, %v1671
      %v1673 = vpop.f32.mrb[0].mxu0
      %v1674 = vadd.f32 0.0, %v1673
      %v1675 = vpop.f32.mrb[0].mxu0
      %v1676 = vadd.f32 0.0, %v1675
      %v1677 = vpop.f32.mrb[0].mxu0
      %v1678 = vadd.f32 0.0, %v1677
      %1679 = vmatprep.mubr.bf16.mxu0 0
      %1680 = vmatmul.mubr.bf16.gmra.mrb[0].mxu0 %v1519
      %v1681 = vpop.f32.mrb[0].mxu0
      %v1682 = vadd.f32 0.0, %v1681
      %v1683 = vpop.f32.mrb[0].mxu0
      %v1684 = vadd.f32 0.0, %v1683
      %v1685 = vpop.f32.mrb[0].mxu0
      %v1686 = vadd.f32 0.0, %v1685
      %v1687 = vpop.f32.mrb[0].mxu0
      %v1688 = vadd.f32 0.0, %v1687
      %1689 = vdwg.mxu0
      %v1690 = vadd.f32 %v1492, %v1652
      %v1691 = vadd.f32 %v1493, %v1654
      %v1692 = vadd.f32 %v1494, %v1656
      %v1693 = vadd.f32 %v1495, %v1658
      %v1694 = vadd.f32 %v1496, %v1662
      %v1695 = vadd.f32 %v1497, %v1664
      %v1696 = vadd.f32 %v1498, %v1666
      %v1697 = vadd.f32 %v1499, %v1668
      %v1698 = vadd.f32 %v1500, %v1672
      %v1699 = vadd.f32 %v1501, %v1674
      %v1700 = vadd.f32 %v1502, %v1676
      %v1701 = vadd.f32 %v1503, %v1678
      %v1702 = vadd.f32 %v1504, %v1682
      %v1703 = vadd.f32 %v1505, %v1684
      %v1704 = vadd.f32 %v1506, %v1686
      %v1705 = vadd.f32 %v1507, %v1688
      %v1706 = vld [vmem:[%s892 + $0x1] sm:$0xff]
      %v1707 = vld [vmem:[%s892 + $0x11] sm:$0xff]
      %v1708 = vld [vmem:[%s892 + $0x21] sm:$0xff]
      %v1709 = vld [vmem:[%s892 + $0x31] sm:$0xff]
      %v1710 = vld [vmem:[%s892 + $0x41] sm:$0xff]
      %v1711 = vld [vmem:[%s892 + $0x51] sm:$0xff]
      %v1712 = vld [vmem:[%s892 + $0x61] sm:$0xff]
      %v1713 = vld [vmem:[%s892 + $0x71] sm:$0xff]
      %v1714 = vpack.c.bf16 %v1707, %v1706
      %v1715 = vpack.c.bf16 %v1709, %v1708
      %v1716 = vpack.c.bf16 %v1711, %v1710
      %v1717 = vpack.c.bf16 %v1713, %v1712
      %s1718 = scalar_lea.vmem %s5, 512
      %v1719 = vld [vmem:[%s1718] sm:$0xff]
      %v1720 = vld [vmem:[%s1718 + $0x8] sm:$0xff]
      %v1721 = vld [vmem:[%s1718 + $0x10] sm:$0xff]
      %v1722 = vld [vmem:[%s1718 + $0x18] sm:$0xff]
      %v1723 = vld [vmem:[%s1718 + $0x20] sm:$0xff]
      %v1724 = vld [vmem:[%s1718 + $0x28] sm:$0xff]
      %v1725 = vld [vmem:[%s1718 + $0x30] sm:$0xff]
      %v1726 = vld [vmem:[%s1718 + $0x38] sm:$0xff]
      %v1727 = vld [vmem:[%s1718 + $0x40] sm:$0xff]
      %v1728 = vld [vmem:[%s1718 + $0x48] sm:$0xff]
      %v1729 = vld [vmem:[%s1718 + $0x50] sm:$0xff]
      %v1730 = vld [vmem:[%s1718 + $0x58] sm:$0xff]
      %v1731 = vld [vmem:[%s1718 + $0x60] sm:$0xff]
      %v1732 = vld [vmem:[%s1718 + $0x68] sm:$0xff]
      %v1733 = vld [vmem:[%s1718 + $0x70] sm:$0xff]
      %v1734 = vld [vmem:[%s1718 + $0x78] sm:$0xff]
      %v1751 = vunpack.c.l.b16 %v1719
      %v1752 = vunpack.c.h.b16 %v1719
      %v1753 = vunpack.c.l.b16 %v1720
      %v1754 = vunpack.c.h.b16 %v1720
      %v1755 = vunpack.c.l.b16 %v1721
      %v1756 = vunpack.c.h.b16 %v1721
      %v1757 = vunpack.c.l.b16 %v1722
      %v1758 = vunpack.c.h.b16 %v1722
      %v1759 = vunpack.c.l.b16 %v1723
      %v1760 = vunpack.c.h.b16 %v1723
      %v1761 = vunpack.c.l.b16 %v1724
      %v1762 = vunpack.c.h.b16 %v1724
      %v1763 = vunpack.c.l.b16 %v1725
      %v1764 = vunpack.c.h.b16 %v1725
      %v1765 = vunpack.c.l.b16 %v1726
      %v1766 = vunpack.c.h.b16 %v1726
      %v1767 = vunpack.c.l.b16 %v1727
      %v1768 = vunpack.c.h.b16 %v1727
      %v1769 = vunpack.c.l.b16 %v1728
      %v1770 = vunpack.c.h.b16 %v1728
      %v1771 = vunpack.c.l.b16 %v1729
      %v1772 = vunpack.c.h.b16 %v1729
      %v1773 = vunpack.c.l.b16 %v1730
      %v1774 = vunpack.c.h.b16 %v1730
      %v1775 = vunpack.c.l.b16 %v1731
      %v1776 = vunpack.c.h.b16 %v1731
      %v1777 = vunpack.c.l.b16 %v1732
      %v1778 = vunpack.c.h.b16 %v1732
      %v1779 = vunpack.c.l.b16 %v1733
      %v1780 = vunpack.c.h.b16 %v1733
      %v1781 = vunpack.c.l.b16 %v1734
      %v1782 = vunpack.c.h.b16 %v1734
      %v1783 = vpack.c.b16 %v1753, %v1751
      %v1784 = vpack.c.b16 %v1754, %v1752
      %v1785 = vpack.c.b16 %v1757, %v1755
      %v1786 = vpack.c.b16 %v1758, %v1756
      %v1787 = vpack.c.b16 %v1761, %v1759
      %v1788 = vpack.c.b16 %v1762, %v1760
      %v1789 = vpack.c.b16 %v1765, %v1763
      %v1790 = vpack.c.b16 %v1766, %v1764
      %v1791 = vpack.c.b16 %v1769, %v1767
      %v1792 = vpack.c.b16 %v1770, %v1768
      %v1793 = vpack.c.b16 %v1773, %v1771
      %v1794 = vpack.c.b16 %v1774, %v1772
      %v1795 = vpack.c.b16 %v1777, %v1775
      %v1796 = vpack.c.b16 %v1778, %v1776
      %v1797 = vpack.c.b16 %v1781, %v1779
      %v1798 = vpack.c.b16 %v1782, %v1780
      %1815 = vmatprep.subr.bf16.mxu0 %v1784
      %1816 = vmatpush1.bf16.msra.mxu0 %v1783
      %1817 = vmatprep.subr.bf16.mxu0 %v1786
      %1818 = vmatpush1.bf16.msra.mxu0 %v1785
      %1819 = vmatprep.subr.bf16.mxu0 %v1788
      %1820 = vmatpush1.bf16.msra.mxu0 %v1787
      %1821 = vmatprep.subr.bf16.mxu0 %v1790
      %1822 = vmatpush1.bf16.msra.mxu0 %v1789
      %1823 = vmatprep.subr.bf16.mxu0 %v1792
      %1824 = vmatpush1.bf16.msra.mxu0 %v1791
      %1825 = vmatprep.subr.bf16.mxu0 %v1794
      %1826 = vmatpush1.bf16.msra.mxu0 %v1793
      %1827 = vmatprep.subr.bf16.mxu0 %v1796
      %1828 = vmatpush1.bf16.msra.mxu0 %v1795
      %1829 = vmatprep.subr.bf16.mxu0 %v1798
      %1830 = vmatpush1.bf16.msra.mxu0 %v1797
      %1831 = vmatprep.subr.bf16.mxu0 0
      %1832 = vmatpush1.bf16.msra.mxu0 0
      %1833 = vmatprep.subr.bf16.mxu0 0
      %1834 = vmatpush1.bf16.msra.mxu0 0
      %1835 = vmatprep.subr.bf16.mxu0 0
      %1836 = vmatpush1.bf16.msra.mxu0 0
      %1837 = vmatprep.subr.bf16.mxu0 0
      %1838 = vmatpush1.bf16.msra.mxu0 0
      %1839 = vmatprep.subr.bf16.mxu0 0
      %1840 = vmatpush1.bf16.msra.mxu0 0
      %1841 = vmatprep.subr.bf16.mxu0 0
      %1842 = vmatpush1.bf16.msra.mxu0 0
      %1843 = vmatprep.subr.bf16.mxu0 0
      %1844 = vmatpush1.bf16.msra.mxu0 0
      %1845 = vmatprep.subr.bf16.mxu0 0
      %1846 = vmatpush1.bf16.msra.mxu0 0
      %1847 = vmatprep.mubr.bf16.mxu0 0
      %1848 = vmatmul.mubr.bf16.gmra.mrb[0].mxu0 %v1714
      %v1849 = vpop.f32.mrb[0].mxu0
      %v1850 = vadd.f32 0.0, %v1849
      %v1851 = vpop.f32.mrb[0].mxu0
      %v1852 = vadd.f32 0.0, %v1851
      %v1853 = vpop.f32.mrb[0].mxu0
      %v1854 = vadd.f32 0.0, %v1853
      %v1855 = vpop.f32.mrb[0].mxu0
      %v1856 = vadd.f32 0.0, %v1855
      %1857 = vmatprep.mubr.bf16.mxu0 0
      %1858 = vmatmul.mubr.bf16.gmra.mrb[0].mxu0 %v1715
      %v1859 = vpop.f32.mrb[0].mxu0
      %v1860 = vadd.f32 0.0, %v1859
      %v1861 = vpop.f32.mrb[0].mxu0
      %v1862 = vadd.f32 0.0, %v1861
      %v1863 = vpop.f32.mrb[0].mxu0
      %v1864 = vadd.f32 0.0, %v1863
      %v1865 = vpop.f32.mrb[0].mxu0
      %v1866 = vadd.f32 0.0, %v1865
      %1867 = vmatprep.mubr.bf16.mxu0 0
      %1868 = vmatmul.mubr.bf16.gmra.mrb[0].mxu0 %v1716
      %v1869 = vpop.f32.mrb[0].mxu0
      %v1870 = vadd.f32 0.0, %v1869
      %v1871 = vpop.f32.mrb[0].mxu0
      %v1872 = vadd.f32 0.0, %v1871
      %v1873 = vpop.f32.mrb[0].mxu0
      %v1874 = vadd.f32 0.0, %v1873
      %v1875 = vpop.f32.mrb[0].mxu0
      %v1876 = vadd.f32 0.0, %v1875
      %1877 = vmatprep.mubr.bf16.mxu0 0
      %1878 = vmatmul.mubr.bf16.gmra.mrb[0].mxu0 %v1717
      %v1879 = vpop.f32.mrb[0].mxu0
      %v1880 = vadd.f32 0.0, %v1879
      %v1881 = vpop.f32.mrb[0].mxu0
      %v1882 = vadd.f32 0.0, %v1881
      %v1883 = vpop.f32.mrb[0].mxu0
      %v1884 = vadd.f32 0.0, %v1883
      %v1885 = vpop.f32.mrb[0].mxu0
      %v1886 = vadd.f32 0.0, %v1885
      %1887 = vdwg.mxu0
      %v1888 = vadd.f32 %v1690, %v1850
      %v1889 = vadd.f32 %v1691, %v1852
      %v1890 = vadd.f32 %v1692, %v1854
      %v1891 = vadd.f32 %v1693, %v1856
      %v1892 = vadd.f32 %v1694, %v1860
      %v1893 = vadd.f32 %v1695, %v1862
      %v1894 = vadd.f32 %v1696, %v1864
      %v1895 = vadd.f32 %v1697, %v1866
      %v1896 = vadd.f32 %v1698, %v1870
      %v1897 = vadd.f32 %v1699, %v1872
      %v1898 = vadd.f32 %v1700, %v1874
      %v1899 = vadd.f32 %v1701, %v1876
      %v1900 = vadd.f32 %v1702, %v1880
      %v1901 = vadd.f32 %v1703, %v1882
      %v1902 = vadd.f32 %v1704, %v1884
      %v1903 = vadd.f32 %v1705, %v1886
      %v1904 = vld [vmem:[%s892 + $0x2] sm:$0xff]
      %v1905 = vld [vmem:[%s892 + $0x12] sm:$0xff]
      %v1906 = vld [vmem:[%s892 + $0x22] sm:$0xff]
      %v1907 = vld [vmem:[%s892 + $0x32] sm:$0xff]
      %v1908 = vld [vmem:[%s892 + $0x42] sm:$0xff]
      %v1909 = vld [vmem:[%s892 + $0x52] sm:$0xff]
      %v1910 = vld [vmem:[%s892 + $0x62] sm:$0xff]
      %v1911 = vld [vmem:[%s892 + $0x72] sm:$0xff]
      %v1912 = vpack.c.bf16 %v1905, %v1904
      %v1913 = vpack.c.bf16 %v1907, %v1906
      %v1914 = vpack.c.bf16 %v1909, %v1908
      %v1915 = vpack.c.bf16 %v1911, %v1910
      %s1916 = scalar_lea.vmem %s5, 640
      %v1917 = vld [vmem:[%s1916] sm:$0xff]
      %v1918 = vld [vmem:[%s1916 + $0x8] sm:$0xff]
      %v1919 = vld [vmem:[%s1916 + $0x10] sm:$0xff]
      %v1920 = vld [vmem:[%s1916 + $0x18] sm:$0xff]
      %v1921 = vld [vmem:[%s1916 + $0x20] sm:$0xff]
      %v1922 = vld [vmem:[%s1916 + $0x28] sm:$0xff]
      %v1923 = vld [vmem:[%s1916 + $0x30] sm:$0xff]
      %v1924 = vld [vmem:[%s1916 + $0x38] sm:$0xff]
      %v1925 = vld [vmem:[%s1916 + $0x40] sm:$0xff]
      %v1926 = vld [vmem:[%s1916 + $0x48] sm:$0xff]
      %v1927 = vld [vmem:[%s1916 + $0x50] sm:$0xff]
      %v1928 = vld [vmem:[%s1916 + $0x58] sm:$0xff]
      %v1929 = vld [vmem:[%s1916 + $0x60] sm:$0xff]
      %v1930 = vld [vmem:[%s1916 + $0x68] sm:$0xff]
      %v1931 = vld [vmem:[%s1916 + $0x70] sm:$0xff]
      %v1932 = vld [vmem:[%s1916 + $0x78] sm:$0xff]
      %v1949 = vunpack.c.l.b16 %v1917
      %v1950 = vunpack.c.h.b16 %v1917
      %v1951 = vunpack.c.l.b16 %v1918
      %v1952 = vunpack.c.h.b16 %v1918
      %v1953 = vunpack.c.l.b16 %v1919
      %v1954 = vunpack.c.h.b16 %v1919
      %v1955 = vunpack.c.l.b16 %v1920
      %v1956 = vunpack.c.h.b16 %v1920
      %v1957 = vunpack.c.l.b16 %v1921
      %v1958 = vunpack.c.h.b16 %v1921
      %v1959 = vunpack.c.l.b16 %v1922
      %v1960 = vunpack.c.h.b16 %v1922
      %v1961 = vunpack.c.l.b16 %v1923
      %v1962 = vunpack.c.h.b16 %v1923
      %v1963 = vunpack.c.l.b16 %v1924
      %v1964 = vunpack.c.h.b16 %v1924
      %v1965 = vunpack.c.l.b16 %v1925
      %v1966 = vunpack.c.h.b16 %v1925
      %v1967 = vunpack.c.l.b16 %v1926
      %v1968 = vunpack.c.h.b16 %v1926
      %v1969 = vunpack.c.l.b16 %v1927
      %v1970 = vunpack.c.h.b16 %v1927
      %v1971 = vunpack.c.l.b16 %v1928
      %v1972 = vunpack.c.h.b16 %v1928
      %v1973 = vunpack.c.l.b16 %v1929
      %v1974 = vunpack.c.h.b16 %v1929
      %v1975 = vunpack.c.l.b16 %v1930
      %v1976 = vunpack.c.h.b16 %v1930
      %v1977 = vunpack.c.l.b16 %v1931
      %v1978 = vunpack.c.h.b16 %v1931
      %v1979 = vunpack.c.l.b16 %v1932
      %v1980 = vunpack.c.h.b16 %v1932
      %v1981 = vpack.c.b16 %v1951, %v1949
      %v1982 = vpack.c.b16 %v1952, %v1950
      %v1983 = vpack.c.b16 %v1955, %v1953
      %v1984 = vpack.c.b16 %v1956, %v1954
      %v1985 = vpack.c.b16 %v1959, %v1957
      %v1986 = vpack.c.b16 %v1960, %v1958
      %v1987 = vpack.c.b16 %v1963, %v1961
      %v1988 = vpack.c.b16 %v1964, %v1962
      %v1989 = vpack.c.b16 %v1967, %v1965
      %v1990 = vpack.c.b16 %v1968, %v1966
      %v1991 = vpack.c.b16 %v1971, %v1969
      %v1992 = vpack.c.b16 %v1972, %v1970
      %v1993 = vpack.c.b16 %v1975, %v1973
      %v1994 = vpack.c.b16 %v1976, %v1974
      %v1995 = vpack.c.b16 %v1979, %v1977
      %v1996 = vpack.c.b16 %v1980, %v1978
      %2013 = vmatprep.subr.bf16.mxu0 %v1982
      %2014 = vmatpush1.bf16.msra.mxu0 %v1981
      %2015 = vmatprep.subr.bf16.mxu0 %v1984
      %2016 = vmatpush1.bf16.msra.mxu0 %v1983
      %2017 = vmatprep.subr.bf16.mxu0 %v1986
      %2018 = vmatpush1.bf16.msra.mxu0 %v1985
      %2019 = vmatprep.subr.bf16.mxu0 %v1988
      %2020 = vmatpush1.bf16.msra.mxu0 %v1987
      %2021 = vmatprep.subr.bf16.mxu0 %v1990
      %2022 = vmatpush1.bf16.msra.mxu0 %v1989
      %2023 = vmatprep.subr.bf16.mxu0 %v1992
      %2024 = vmatpush1.bf16.msra.mxu0 %v1991
      %2025 = vmatprep.subr.bf16.mxu0 %v1994
      %2026 = vmatpush1.bf16.msra.mxu0 %v1993
      %2027 = vmatprep.subr.bf16.mxu0 %v1996
      %2028 = vmatpush1.bf16.msra.mxu0 %v1995
      %2029 = vmatprep.subr.bf16.mxu0 0
      %2030 = vmatpush1.bf16.msra.mxu0 0
      %2031 = vmatprep.subr.bf16.mxu0 0
      %2032 = vmatpush1.bf16.msra.mxu0 0
      %2033 = vmatprep.subr.bf16.mxu0 0
      %2034 = vmatpush1.bf16.msra.mxu0 0
      %2035 = vmatprep.subr.bf16.mxu0 0
      %2036 = vmatpush1.bf16.msra.mxu0 0
      %2037 = vmatprep.subr.bf16.mxu0 0
      %2038 = vmatpush1.bf16.msra.mxu0 0
      %2039 = vmatprep.subr.bf16.mxu0 0
      %2040 = vmatpush1.bf16.msra.mxu0 0
      %2041 = vmatprep.subr.bf16.mxu0 0
      %2042 = vmatpush1.bf16.msra.mxu0 0
      %2043 = vmatprep.subr.bf16.mxu0 0
      %2044 = vmatpush1.bf16.msra.mxu0 0
      %2045 = vmatprep.mubr.bf16.mxu0 0
      %2046 = vmatmul.mubr.bf16.gmra.mrb[0].mxu0 %v1912
      %v2047 = vpop.f32.mrb[0].mxu0
      %v2048 = vadd.f32 0.0, %v2047
      %v2049 = vpop.f32.mrb[0].mxu0
      %v2050 = vadd.f32 0.0, %v2049
      %v2051 = vpop.f32.mrb[0].mxu0
      %v2052 = vadd.f32 0.0, %v2051
      %v2053 = vpop.f32.mrb[0].mxu0
      %v2054 = vadd.f32 0.0, %v2053
      %2055 = vmatprep.mubr.bf16.mxu0 0
      %2056 = vmatmul.mubr.bf16.gmra.mrb[0].mxu0 %v1913
      %v2057 = vpop.f32.mrb[0].mxu0
      %v2058 = vadd.f32 0.0, %v2057
      %v2059 = vpop.f32.mrb[0].mxu0
      %v2060 = vadd.f32 0.0, %v2059
      %v2061 = vpop.f32.mrb[0].mxu0
      %v2062 = vadd.f32 0.0, %v2061
      %v2063 = vpop.f32.mrb[0].mxu0
      %v2064 = vadd.f32 0.0, %v2063
      %2065 = vmatprep.mubr.bf16.mxu0 0
      %2066 = vmatmul.mubr.bf16.gmra.mrb[0].mxu0 %v1914
      %v2067 = vpop.f32.mrb[0].mxu0
      %v2068 = vadd.f32 0.0, %v2067
      %v2069 = vpop.f32.mrb[0].mxu0
      %v2070 = vadd.f32 0.0, %v2069
      %v2071 = vpop.f32.mrb[0].mxu0
      %v2072 = vadd.f32 0.0, %v2071
      %v2073 = vpop.f32.mrb[0].mxu0
      %v2074 = vadd.f32 0.0, %v2073
      %2075 = vmatprep.mubr.bf16.mxu0 0
      %2076 = vmatmul.mubr.bf16.gmra.mrb[0].mxu0 %v1915
      %v2077 = vpop.f32.mrb[0].mxu0
      %v2078 = vadd.f32 0.0, %v2077
      %v2079 = vpop.f32.mrb[0].mxu0
      %v2080 = vadd.f32 0.0, %v2079
      %v2081 = vpop.f32.mrb[0].mxu0
      %v2082 = vadd.f32 0.0, %v2081
      %v2083 = vpop.f32.mrb[0].mxu0
      %v2084 = vadd.f32 0.0, %v2083
      %2085 = vdwg.mxu0
      %v2086 = vadd.f32 %v1888, %v2048
      %v2087 = vadd.f32 %v1889, %v2050
      %v2088 = vadd.f32 %v1890, %v2052
      %v2089 = vadd.f32 %v1891, %v2054
      %v2090 = vadd.f32 %v1892, %v2058
      %v2091 = vadd.f32 %v1893, %v2060
      %v2092 = vadd.f32 %v1894, %v2062
      %v2093 = vadd.f32 %v1895, %v2064
      %v2094 = vadd.f32 %v1896, %v2068
      %v2095 = vadd.f32 %v1897, %v2070
      %v2096 = vadd.f32 %v1898, %v2072
      %v2097 = vadd.f32 %v1899, %v2074
      %v2098 = vadd.f32 %v1900, %v2078
      %v2099 = vadd.f32 %v1901, %v2080
      %v2100 = vadd.f32 %v1902, %v2082
      %v2101 = vadd.f32 %v1903, %v2084
      %s2102 = scalar_lea.vmem [#allocation2], 32
      %v2103 = vld [vmem:[%s2102] sm:$0xff]
      %v2104 = vld [vmem:[%s2102 + $0x10] sm:$0xff]
      %v2105 = vld [vmem:[%s2102 + $0x20] sm:$0xff]
      %v2106 = vld [vmem:[%s2102 + $0x30] sm:$0xff]
      %v2107 = vld [vmem:[%s2102 + $0x40] sm:$0xff]
      %v2108 = vld [vmem:[%s2102 + $0x50] sm:$0xff]
      %v2109 = vld [vmem:[%s2102 + $0x60] sm:$0xff]
      %v2110 = vld [vmem:[%s2102 + $0x70] sm:$0xff]
      %v2111 = vpack.c.bf16 %v2104, %v2103
      %v2112 = vpack.c.bf16 %v2106, %v2105
      %v2113 = vpack.c.bf16 %v2108, %v2107
      %v2114 = vpack.c.bf16 %v2110, %v2109
      %s2115 = scalar_lea.vmem %s5, 768
      %v2116 = vld [vmem:[%s2115] sm:$0xff]
      %v2117 = vld [vmem:[%s2115 + $0x8] sm:$0xff]
      %v2118 = vld [vmem:[%s2115 + $0x10] sm:$0xff]
      %v2119 = vld [vmem:[%s2115 + $0x18] sm:$0xff]
      %v2120 = vld [vmem:[%s2115 + $0x20] sm:$0xff]
      %v2121 = vld [vmem:[%s2115 + $0x28] sm:$0xff]
      %v2122 = vld [vmem:[%s2115 + $0x30] sm:$0xff]
      %v2123 = vld [vmem:[%s2115 + $0x38] sm:$0xff]
      %v2124 = vld [vmem:[%s2115 + $0x40] sm:$0xff]
      %v2125 = vld [vmem:[%s2115 + $0x48] sm:$0xff]
      %v2126 = vld [vmem:[%s2115 + $0x50] sm:$0xff]
      %v2127 = vld [vmem:[%s2115 + $0x58] sm:$0xff]
      %v2128 = vld [vmem:[%s2115 + $0x60] sm:$0xff]
      %v2129 = vld [vmem:[%s2115 + $0x68] sm:$0xff]
      %v2130 = vld [vmem:[%s2115 + $0x70] sm:$0xff]
      %v2131 = vld [vmem:[%s2115 + $0x78] sm:$0xff]
      %v2148 = vunpack.c.l.b16 %v2116
      %v2149 = vunpack.c.h.b16 %v2116
      %v2150 = vunpack.c.l.b16 %v2117
      %v2151 = vunpack.c.h.b16 %v2117
      %v2152 = vunpack.c.l.b16 %v2118
      %v2153 = vunpack.c.h.b16 %v2118
      %v2154 = vunpack.c.l.b16 %v2119
      %v2155 = vunpack.c.h.b16 %v2119
      %v2156 = vunpack.c.l.b16 %v2120
      %v2157 = vunpack.c.h.b16 %v2120
      %v2158 = vunpack.c.l.b16 %v2121
      %v2159 = vunpack.c.h.b16 %v2121
      %v2160 = vunpack.c.l.b16 %v2122
      %v2161 = vunpack.c.h.b16 %v2122
      %v2162 = vunpack.c.l.b16 %v2123
      %v2163 = vunpack.c.h.b16 %v2123
      %v2164 = vunpack.c.l.b16 %v2124
      %v2165 = vunpack.c.h.b16 %v2124
      %v2166 = vunpack.c.l.b16 %v2125
      %v2167 = vunpack.c.h.b16 %v2125
      %v2168 = vunpack.c.l.b16 %v2126
      %v2169 = vunpack.c.h.b16 %v2126
      %v2170 = vunpack.c.l.b16 %v2127
      %v2171 = vunpack.c.h.b16 %v2127
      %v2172 = vunpack.c.l.b16 %v2128
      %v2173 = vunpack.c.h.b16 %v2128
      %v2174 = vunpack.c.l.b16 %v2129
      %v2175 = vunpack.c.h.b16 %v2129
      %v2176 = vunpack.c.l.b16 %v2130
      %v2177 = vunpack.c.h.b16 %v2130
      %v2178 = vunpack.c.l.b16 %v2131
      %v2179 = vunpack.c.h.b16 %v2131
      %v2180 = vpack.c.b16 %v2150, %v2148
      %v2181 = vpack.c.b16 %v2151, %v2149
      %v2182 = vpack.c.b16 %v2154, %v2152
      %v2183 = vpack.c.b16 %v2155, %v2153
      %v2184 = vpack.c.b16 %v2158, %v2156
      %v2185 = vpack.c.b16 %v2159, %v2157
      %v2186 = vpack.c.b16 %v2162, %v2160
      %v2187 = vpack.c.b16 %v2163, %v2161
      %v2188 = vpack.c.b16 %v2166, %v2164
      %v2189 = vpack.c.b16 %v2167, %v2165
      %v2190 = vpack.c.b16 %v2170, %v2168
      %v2191 = vpack.c.b16 %v2171, %v2169
      %v2192 = vpack.c.b16 %v2174, %v2172
      %v2193 = vpack.c.b16 %v2175, %v2173
      %v2194 = vpack.c.b16 %v2178, %v2176
      %v2195 = vpack.c.b16 %v2179, %v2177
      %2212 = vmatprep.subr.bf16.mxu0 %v2181
      %2213 = vmatpush1.bf16.msra.mxu0 %v2180
      %2214 = vmatprep.subr.bf16.mxu0 %v2183
      %2215 = vmatpush1.bf16.msra.mxu0 %v2182
      %2216 = vmatprep.subr.bf16.mxu0 %v2185
      %2217 = vmatpush1.bf16.msra.mxu0 %v2184
      %2218 = vmatprep.subr.bf16.mxu0 %v2187
      %2219 = vmatpush1.bf16.msra.mxu0 %v2186
      %2220 = vmatprep.subr.bf16.mxu0 %v2189
      %2221 = vmatpush1.bf16.msra.mxu0 %v2188
      %2222 = vmatprep.subr.bf16.mxu0 %v2191
      %2223 = vmatpush1.bf16.msra.mxu0 %v2190
      %2224 = vmatprep.subr.bf16.mxu0 %v2193
      %2225 = vmatpush1.bf16.msra.mxu0 %v2192
      %2226 = vmatprep.subr.bf16.mxu0 %v2195
      %2227 = vmatpush1.bf16.msra.mxu0 %v2194
      %2228 = vmatprep.subr.bf16.mxu0 0
      %2229 = vmatpush1.bf16.msra.mxu0 0
      %2230 = vmatprep.subr.bf16.mxu0 0
      %2231 = vmatpush1.bf16.msra.mxu0 0
      %2232 = vmatprep.subr.bf16.mxu0 0
      %2233 = vmatpush1.bf16.msra.mxu0 0
      %2234 = vmatprep.subr.bf16.mxu0 0
      %2235 = vmatpush1.bf16.msra.mxu0 0
      %2236 = vmatprep.subr.bf16.mxu0 0
      %2237 = vmatpush1.bf16.msra.mxu0 0
      %2238 = vmatprep.subr.bf16.mxu0 0
      %2239 = vmatpush1.bf16.msra.mxu0 0
      %2240 = vmatprep.subr.bf16.mxu0 0
      %2241 = vmatpush1.bf16.msra.mxu0 0
      %2242 = vmatprep.subr.bf16.mxu0 0
      %2243 = vmatpush1.bf16.msra.mxu0 0
      %2244 = vmatprep.mubr.bf16.mxu0 0
      %2245 = vmatmul.mubr.bf16.gmra.mrb[0].mxu0 %v2111
      %v2246 = vpop.f32.mrb[0].mxu0
      %v2247 = vadd.f32 0.0, %v2246
      %v2248 = vpop.f32.mrb[0].mxu0
      %v2249 = vadd.f32 0.0, %v2248
      %v2250 = vpop.f32.mrb[0].mxu0
      %v2251 = vadd.f32 0.0, %v2250
      %v2252 = vpop.f32.mrb[0].mxu0
      %v2253 = vadd.f32 0.0, %v2252
      %2254 = vmatprep.mubr.bf16.mxu0 0
      %2255 = vmatmul.mubr.bf16.gmra.mrb[0].mxu0 %v2112
      %v2256 = vpop.f32.mrb[0].mxu0
      %v2257 = vadd.f32 0.0, %v2256
      %v2258 = vpop.f32.mrb[0].mxu0
      %v2259 = vadd.f32 0.0, %v2258
      %v2260 = vpop.f32.mrb[0].mxu0
      %v2261 = vadd.f32 0.0, %v2260
      %v2262 = vpop.f32.mrb[0].mxu0
      %v2263 = vadd.f32 0.0, %v2262
      %2264 = vmatprep.mubr.bf16.mxu0 0
      %2265 = vmatmul.mubr.bf16.gmra.mrb[0].mxu0 %v2113
      %v2266 = vpop.f32.mrb[0].mxu0
      %v2267 = vadd.f32 0.0, %v2266
      %v2268 = vpop.f32.mrb[0].mxu0
      %v2269 = vadd.f32 0.0, %v2268
      %v2270 = vpop.f32.mrb[0].mxu0
      %v2271 = vadd.f32 0.0, %v2270
      %v2272 = vpop.f32.mrb[0].mxu0
      %v2273 = vadd.f32 0.0, %v2272
      %2274 = vmatprep.mubr.bf16.mxu0 0
      %2275 = vmatmul.mubr.bf16.gmra.mrb[0].mxu0 %v2114
      %v2276 = vpop.f32.mrb[0].mxu0
      %v2277 = vadd.f32 0.0, %v2276
      %v2278 = vpop.f32.mrb[0].mxu0
      %v2279 = vadd.f32 0.0, %v2278
      %v2280 = vpop.f32.mrb[0].mxu0
      %v2281 = vadd.f32 0.0, %v2280
      %v2282 = vpop.f32.mrb[0].mxu0
      %v2283 = vadd.f32 0.0, %v2282
      %2284 = vdwg.mxu0
      %v2285 = vadd.f32 %v2086, %v2247
      %v2286 = vadd.f32 %v2087, %v2249
      %v2287 = vadd.f32 %v2088, %v2251
      %v2288 = vadd.f32 %v2089, %v2253
      %v2289 = vadd.f32 %v2090, %v2257
      %v2290 = vadd.f32 %v2091, %v2259
      %v2291 = vadd.f32 %v2092, %v2261
      %v2292 = vadd.f32 %v2093, %v2263
      %v2293 = vadd.f32 %v2094, %v2267
      %v2294 = vadd.f32 %v2095, %v2269
      %v2295 = vadd.f32 %v2096, %v2271
      %v2296 = vadd.f32 %v2097, %v2273
      %v2297 = vadd.f32 %v2098, %v2277
      %v2298 = vadd.f32 %v2099, %v2279
      %v2299 = vadd.f32 %v2100, %v2281
      %v2300 = vadd.f32 %v2101, %v2283
      %v2301 = vld [vmem:[%s2102 + $0x1] sm:$0xff]
      %v2302 = vld [vmem:[%s2102 + $0x11] sm:$0xff]
      %v2303 = vld [vmem:[%s2102 + $0x21] sm:$0xff]
      %v2304 = vld [vmem:[%s2102 + $0x31] sm:$0xff]
      %v2305 = vld [vmem:[%s2102 + $0x41] sm:$0xff]
      %v2306 = vld [vmem:[%s2102 + $0x51] sm:$0xff]
      %v2307 = vld [vmem:[%s2102 + $0x61] sm:$0xff]
      %v2308 = vld [vmem:[%s2102 + $0x71] sm:$0xff]
      %v2309 = vpack.c.bf16 %v2302, %v2301
      %v2310 = vpack.c.bf16 %v2304, %v2303
      %v2311 = vpack.c.bf16 %v2306, %v2305
      %v2312 = vpack.c.bf16 %v2308, %v2307
      %s2313 = scalar_lea.vmem %s5, 896
      %v2314 = vld [vmem:[%s2313] sm:$0xff]
      %v2315 = vld [vmem:[%s2313 + $0x8] sm:$0xff]
      %v2316 = vld [vmem:[%s2313 + $0x10] sm:$0xff]
      %v2317 = vld [vmem:[%s2313 + $0x18] sm:$0xff]
      %v2318 = vld [vmem:[%s2313 + $0x20] sm:$0xff]
      %v2319 = vld [vmem:[%s2313 + $0x28] sm:$0xff]
      %v2320 = vld [vmem:[%s2313 + $0x30] sm:$0xff]
      %v2321 = vld [vmem:[%s2313 + $0x38] sm:$0xff]
      %v2322 = vld [vmem:[%s2313 + $0x40] sm:$0xff]
      %v2323 = vld [vmem:[%s2313 + $0x48] sm:$0xff]
      %v2324 = vld [vmem:[%s2313 + $0x50] sm:$0xff]
      %v2325 = vld [vmem:[%s2313 + $0x58] sm:$0xff]
      %v2326 = vld [vmem:[%s2313 + $0x60] sm:$0xff]
      %v2327 = vld [vmem:[%s2313 + $0x68] sm:$0xff]
      %v2328 = vld [vmem:[%s2313 + $0x70] sm:$0xff]
      %v2329 = vld [vmem:[%s2313 + $0x78] sm:$0xff]
      %v2346 = vunpack.c.l.b16 %v2314
      %v2347 = vunpack.c.h.b16 %v2314
      %v2348 = vunpack.c.l.b16 %v2315
      %v2349 = vunpack.c.h.b16 %v2315
      %v2350 = vunpack.c.l.b16 %v2316
      %v2351 = vunpack.c.h.b16 %v2316
      %v2352 = vunpack.c.l.b16 %v2317
      %v2353 = vunpack.c.h.b16 %v2317
      %v2354 = vunpack.c.l.b16 %v2318
      %v2355 = vunpack.c.h.b16 %v2318
      %v2356 = vunpack.c.l.b16 %v2319
      %v2357 = vunpack.c.h.b16 %v2319
      %v2358 = vunpack.c.l.b16 %v2320
      %v2359 = vunpack.c.h.b16 %v2320
      %v2360 = vunpack.c.l.b16 %v2321
      %v2361 = vunpack.c.h.b16 %v2321
      %v2362 = vunpack.c.l.b16 %v2322
      %v2363 = vunpack.c.h.b16 %v2322
      %v2364 = vunpack.c.l.b16 %v2323
      %v2365 = vunpack.c.h.b16 %v2323
      %v2366 = vunpack.c.l.b16 %v2324
      %v2367 = vunpack.c.h.b16 %v2324
      %v2368 = vunpack.c.l.b16 %v2325
      %v2369 = vunpack.c.h.b16 %v2325
      %v2370 = vunpack.c.l.b16 %v2326
      %v2371 = vunpack.c.h.b16 %v2326
      %v2372 = vunpack.c.l.b16 %v2327
      %v2373 = vunpack.c.h.b16 %v2327
      %v2374 = vunpack.c.l.b16 %v2328
      %v2375 = vunpack.c.h.b16 %v2328
      %v2376 = vunpack.c.l.b16 %v2329
      %v2377 = vunpack.c.h.b16 %v2329
      %v2378 = vpack.c.b16 %v2348, %v2346
      %v2379 = vpack.c.b16 %v2349, %v2347
      %v2380 = vpack.c.b16 %v2352, %v2350
      %v2381 = vpack.c.b16 %v2353, %v2351
      %v2382 = vpack.c.b16 %v2356, %v2354
      %v2383 = vpack.c.b16 %v2357, %v2355
      %v2384 = vpack.c.b16 %v2360, %v2358
      %v2385 = vpack.c.b16 %v2361, %v2359
      %v2386 = vpack.c.b16 %v2364, %v2362
      %v2387 = vpack.c.b16 %v2365, %v2363
      %v2388 = vpack.c.b16 %v2368, %v2366
      %v2389 = vpack.c.b16 %v2369, %v2367
      %v2390 = vpack.c.b16 %v2372, %v2370
      %v2391 = vpack.c.b16 %v2373, %v2371
      %v2392 = vpack.c.b16 %v2376, %v2374
      %v2393 = vpack.c.b16 %v2377, %v2375
      %2410 = vmatprep.subr.bf16.mxu0 %v2379
      %2411 = vmatpush1.bf16.msra.mxu0 %v2378
      %2412 = vmatprep.subr.bf16.mxu0 %v2381
      %2413 = vmatpush1.bf16.msra.mxu0 %v2380
      %2414 = vmatprep.subr.bf16.mxu0 %v2383
      %2415 = vmatpush1.bf16.msra.mxu0 %v2382
      %2416 = vmatprep.subr.bf16.mxu0 %v2385
      %2417 = vmatpush1.bf16.msra.mxu0 %v2384
      %2418 = vmatprep.subr.bf16.mxu0 %v2387
      %2419 = vmatpush1.bf16.msra.mxu0 %v2386
      %2420 = vmatprep.subr.bf16.mxu0 %v2389
      %2421 = vmatpush1.bf16.msra.mxu0 %v2388
      %2422 = vmatprep.subr.bf16.mxu0 %v2391
      %2423 = vmatpush1.bf16.msra.mxu0 %v2390
      %2424 = vmatprep.subr.bf16.mxu0 %v2393
      %2425 = vmatpush1.bf16.msra.mxu0 %v2392
      %2426 = vmatprep.subr.bf16.mxu0 0
      %2427 = vmatpush1.bf16.msra.mxu0 0
      %2428 = vmatprep.subr.bf16.mxu0 0
      %2429 = vmatpush1.bf16.msra.mxu0 0
      %2430 = vmatprep.subr.bf16.mxu0 0
      %2431 = vmatpush1.bf16.msra.mxu0 0
      %2432 = vmatprep.subr.bf16.mxu0 0
      %2433 = vmatpush1.bf16.msra.mxu0 0
      %2434 = vmatprep.subr.bf16.mxu0 0
      %2435 = vmatpush1.bf16.msra.mxu0 0
      %2436 = vmatprep.subr.bf16.mxu0 0
      %2437 = vmatpush1.bf16.msra.mxu0 0
      %2438 = vmatprep.subr.bf16.mxu0 0
      %2439 = vmatpush1.bf16.msra.mxu0 0
      %2440 = vmatprep.subr.bf16.mxu0 0
      %2441 = vmatpush1.bf16.msra.mxu0 0
      %2442 = vmatprep.mubr.bf16.mxu0 0
      %2443 = vmatmul.mubr.bf16.gmra.mrb[0].mxu0 %v2309
      %v2444 = vpop.f32.mrb[0].mxu0
      %v2445 = vadd.f32 0.0, %v2444
      %v2446 = vpop.f32.mrb[0].mxu0
      %v2447 = vadd.f32 0.0, %v2446
      %v2448 = vpop.f32.mrb[0].mxu0
      %v2449 = vadd.f32 0.0, %v2448
      %v2450 = vpop.f32.mrb[0].mxu0
      %v2451 = vadd.f32 0.0, %v2450
      %2452 = vmatprep.mubr.bf16.mxu0 0
      %2453 = vmatmul.mubr.bf16.gmra.mrb[0].mxu0 %v2310
      %v2454 = vpop.f32.mrb[0].mxu0
      %v2455 = vadd.f32 0.0, %v2454
      %v2456 = vpop.f32.mrb[0].mxu0
      %v2457 = vadd.f32 0.0, %v2456
      %v2458 = vpop.f32.mrb[0].mxu0
      %v2459 = vadd.f32 0.0, %v2458
      %v2460 = vpop.f32.mrb[0].mxu0
      %v2461 = vadd.f32 0.0, %v2460
      %2462 = vmatprep.mubr.bf16.mxu0 0
      %2463 = vmatmul.mubr.bf16.gmra.mrb[0].mxu0 %v2311
      %v2464 = vpop.f32.mrb[0].mxu0
      %v2465 = vadd.f32 0.0, %v2464
      %v2466 = vpop.f32.mrb[0].mxu0
      %v2467 = vadd.f32 0.0, %v2466
      %v2468 = vpop.f32.mrb[0].mxu0
      %v2469 = vadd.f32 0.0, %v2468
      %v2470 = vpop.f32.mrb[0].mxu0
      %v2471 = vadd.f32 0.0, %v2470
      %2472 = vmatprep.mubr.bf16.mxu0 0
      %2473 = vmatmul.mubr.bf16.gmra.mrb[0].mxu0 %v2312
      %v2474 = vpop.f32.mrb[0].mxu0
      %v2475 = vadd.f32 0.0, %v2474
      %v2476 = vpop.f32.mrb[0].mxu0
      %v2477 = vadd.f32 0.0, %v2476
      %v2478 = vpop.f32.mrb[0].mxu0
      %v2479 = vadd.f32 0.0, %v2478
      %v2480 = vpop.f32.mrb[0].mxu0
      %v2481 = vadd.f32 0.0, %v2480
      %2482 = vdwg.mxu0
      %v2483 = vadd.f32 %v2285, %v2445
      %v2484 = vadd.f32 %v2286, %v2447
      %v2485 = vadd.f32 %v2287, %v2449
      %v2486 = vadd.f32 %v2288, %v2451
      %v2487 = vadd.f32 %v2289, %v2455
      %v2488 = vadd.f32 %v2290, %v2457
      %v2489 = vadd.f32 %v2291, %v2459
      %v2490 = vadd.f32 %v2292, %v2461
      %v2491 = vadd.f32 %v2293, %v2465
      %v2492 = vadd.f32 %v2294, %v2467
      %v2493 = vadd.f32 %v2295, %v2469
      %v2494 = vadd.f32 %v2296, %v2471
      %v2495 = vadd.f32 %v2297, %v2475
      %v2496 = vadd.f32 %v2298, %v2477
      %v2497 = vadd.f32 %v2299, %v2479
      %v2498 = vadd.f32 %v2300, %v2481
      %v2499 = vld [vmem:[%s2102 + $0x2] sm:$0xff]
      %v2500 = vld [vmem:[%s2102 + $0x12] sm:$0xff]
      %v2501 = vld [vmem:[%s2102 + $0x22] sm:$0xff]
      %v2502 = vld [vmem:[%s2102 + $0x32] sm:$0xff]
      %v2503 = vld [vmem:[%s2102 + $0x42] sm:$0xff]
      %v2504 = vld [vmem:[%s2102 + $0x52] sm:$0xff]
      %v2505 = vld [vmem:[%s2102 + $0x62] sm:$0xff]
      %v2506 = vld [vmem:[%s2102 + $0x72] sm:$0xff]
      %v2507 = vpack.c.bf16 %v2500, %v2499
      %v2508 = vpack.c.bf16 %v2502, %v2501
      %v2509 = vpack.c.bf16 %v2504, %v2503
      %v2510 = vpack.c.bf16 %v2506, %v2505
      %s2511 = scalar_lea.vmem %s5, 1024
      %v2512 = vld [vmem:[%s2511] sm:$0xff]
      %v2513 = vld [vmem:[%s2511 + $0x8] sm:$0xff]
      %v2514 = vld [vmem:[%s2511 + $0x10] sm:$0xff]
      %v2515 = vld [vmem:[%s2511 + $0x18] sm:$0xff]
      %v2516 = vld [vmem:[%s2511 + $0x20] sm:$0xff]
      %v2517 = vld [vmem:[%s2511 + $0x28] sm:$0xff]
      %v2518 = vld [vmem:[%s2511 + $0x30] sm:$0xff]
      %v2519 = vld [vmem:[%s2511 + $0x38] sm:$0xff]
      %v2520 = vld [vmem:[%s2511 + $0x40] sm:$0xff]
      %v2521 = vld [vmem:[%s2511 + $0x48] sm:$0xff]
      %v2522 = vld [vmem:[%s2511 + $0x50] sm:$0xff]
      %v2523 = vld [vmem:[%s2511 + $0x58] sm:$0xff]
      %v2524 = vld [vmem:[%s2511 + $0x60] sm:$0xff]
      %v2525 = vld [vmem:[%s2511 + $0x68] sm:$0xff]
      %v2526 = vld [vmem:[%s2511 + $0x70] sm:$0xff]
      %v2527 = vld [vmem:[%s2511 + $0x78] sm:$0xff]
      %v2544 = vunpack.c.l.b16 %v2512
      %v2545 = vunpack.c.h.b16 %v2512
      %v2546 = vunpack.c.l.b16 %v2513
      %v2547 = vunpack.c.h.b16 %v2513
      %v2548 = vunpack.c.l.b16 %v2514
      %v2549 = vunpack.c.h.b16 %v2514
      %v2550 = vunpack.c.l.b16 %v2515
      %v2551 = vunpack.c.h.b16 %v2515
      %v2552 = vunpack.c.l.b16 %v2516
      %v2553 = vunpack.c.h.b16 %v2516
      %v2554 = vunpack.c.l.b16 %v2517
      %v2555 = vunpack.c.h.b16 %v2517
      %v2556 = vunpack.c.l.b16 %v2518
      %v2557 = vunpack.c.h.b16 %v2518
      %v2558 = vunpack.c.l.b16 %v2519
      %v2559 = vunpack.c.h.b16 %v2519
      %v2560 = vunpack.c.l.b16 %v2520
      %v2561 = vunpack.c.h.b16 %v2520
      %v2562 = vunpack.c.l.b16 %v2521
      %v2563 = vunpack.c.h.b16 %v2521
      %v2564 = vunpack.c.l.b16 %v2522
      %v2565 = vunpack.c.h.b16 %v2522
      %v2566 = vunpack.c.l.b16 %v2523
      %v2567 = vunpack.c.h.b16 %v2523
      %v2568 = vunpack.c.l.b16 %v2524
      %v2569 = vunpack.c.h.b16 %v2524
      %v2570 = vunpack.c.l.b16 %v2525
      %v2571 = vunpack.c.h.b16 %v2525
      %v2572 = vunpack.c.l.b16 %v2526
      %v2573 = vunpack.c.h.b16 %v2526
      %v2574 = vunpack.c.l.b16 %v2527
      %v2575 = vunpack.c.h.b16 %v2527
      %v2576 = vpack.c.b16 %v2546, %v2544
      %v2577 = vpack.c.b16 %v2547, %v2545
      %v2578 = vpack.c.b16 %v2550, %v2548
      %v2579 = vpack.c.b16 %v2551, %v2549
      %v2580 = vpack.c.b16 %v2554, %v2552
      %v2581 = vpack.c.b16 %v2555, %v2553
      %v2582 = vpack.c.b16 %v2558, %v2556
      %v2583 = vpack.c.b16 %v2559, %v2557
      %v2584 = vpack.c.b16 %v2562, %v2560
      %v2585 = vpack.c.b16 %v2563, %v2561
      %v2586 = vpack.c.b16 %v2566, %v2564
      %v2587 = vpack.c.b16 %v2567, %v2565
      %v2588 = vpack.c.b16 %v2570, %v2568
      %v2589 = vpack.c.b16 %v2571, %v2569
      %v2590 = vpack.c.b16 %v2574, %v2572
      %v2591 = vpack.c.b16 %v2575, %v2573
      %2608 = vmatprep.subr.bf16.mxu0 %v2577
      %2609 = vmatpush1.bf16.msra.mxu0 %v2576
      %2610 = vmatprep.subr.bf16.mxu0 %v2579
      %2611 = vmatpush1.bf16.msra.mxu0 %v2578
      %2612 = vmatprep.subr.bf16.mxu0 %v2581
      %2613 = vmatpush1.bf16.msra.mxu0 %v2580
      %2614 = vmatprep.subr.bf16.mxu0 %v2583
      %2615 = vmatpush1.bf16.msra.mxu0 %v2582
      %2616 = vmatprep.subr.bf16.mxu0 %v2585
      %2617 = vmatpush1.bf16.msra.mxu0 %v2584
      %2618 = vmatprep.subr.bf16.mxu0 %v2587
      %2619 = vmatpush1.bf16.msra.mxu0 %v2586
      %2620 = vmatprep.subr.bf16.mxu0 %v2589
      %2621 = vmatpush1.bf16.msra.mxu0 %v2588
      %2622 = vmatprep.subr.bf16.mxu0 %v2591
      %2623 = vmatpush1.bf16.msra.mxu0 %v2590
      %2624 = vmatprep.subr.bf16.mxu0 0
      %2625 = vmatpush1.bf16.msra.mxu0 0
      %2626 = vmatprep.subr.bf16.mxu0 0
      %2627 = vmatpush1.bf16.msra.mxu0 0
      %2628 = vmatprep.subr.bf16.mxu0 0
      %2629 = vmatpush1.bf16.msra.mxu0 0
      %2630 = vmatprep.subr.bf16.mxu0 0
      %2631 = vmatpush1.bf16.msra.mxu0 0
      %2632 = vmatprep.subr.bf16.mxu0 0
      %2633 = vmatpush1.bf16.msra.mxu0 0
      %2634 = vmatprep.subr.bf16.mxu0 0
      %2635 = vmatpush1.bf16.msra.mxu0 0
      %2636 = vmatprep.subr.bf16.mxu0 0
      %2637 = vmatpush1.bf16.msra.mxu0 0
      %2638 = vmatprep.subr.bf16.mxu0 0
      %2639 = vmatpush1.bf16.msra.mxu0 0
      %2640 = vmatprep.mubr.bf16.mxu0 0
      %2641 = vmatmul.mubr.bf16.gmra.mrb[0].mxu0 %v2507
      %v2642 = vpop.f32.mrb[0].mxu0
      %v2643 = vadd.f32 0.0, %v2642
      %v2644 = vpop.f32.mrb[0].mxu0
      %v2645 = vadd.f32 0.0, %v2644
      %v2646 = vpop.f32.mrb[0].mxu0
      %v2647 = vadd.f32 0.0, %v2646
      %v2648 = vpop.f32.mrb[0].mxu0
      %v2649 = vadd.f32 0.0, %v2648
      %2650 = vmatprep.mubr.bf16.mxu0 0
      %2651 = vmatmul.mubr.bf16.gmra.mrb[0].mxu0 %v2508
      %v2652 = vpop.f32.mrb[0].mxu0
      %v2653 = vadd.f32 0.0, %v2652
      %v2654 = vpop.f32.mrb[0].mxu0
      %v2655 = vadd.f32 0.0, %v2654
      %v2656 = vpop.f32.mrb[0].mxu0
      %v2657 = vadd.f32 0.0, %v2656
      %v2658 = vpop.f32.mrb[0].mxu0
      %v2659 = vadd.f32 0.0, %v2658
      %2660 = vmatprep.mubr.bf16.mxu0 0
      %2661 = vmatmul.mubr.bf16.gmra.mrb[0].mxu0 %v2509
      %v2662 = vpop.f32.mrb[0].mxu0
      %v2663 = vadd.f32 0.0, %v2662
      %v2664 = vpop.f32.mrb[0].mxu0
      %v2665 = vadd.f32 0.0, %v2664
      %v2666 = vpop.f32.mrb[0].mxu0
      %v2667 = vadd.f32 0.0, %v2666
      %v2668 = vpop.f32.mrb[0].mxu0
      %v2669 = vadd.f32 0.0, %v2668
      %2670 = vmatprep.mubr.bf16.mxu0 0
      %2671 = vmatmul.mubr.bf16.gmra.mrb[0].mxu0 %v2510
      %v2672 = vpop.f32.mrb[0].mxu0
      %v2673 = vadd.f32 0.0, %v2672
      %v2674 = vpop.f32.mrb[0].mxu0
      %v2675 = vadd.f32 0.0, %v2674
      %v2676 = vpop.f32.mrb[0].mxu0
      %v2677 = vadd.f32 0.0, %v2676
      %v2678 = vpop.f32.mrb[0].mxu0
      %v2679 = vadd.f32 0.0, %v2678
      %2680 = vdwg.mxu0
      %v2681 = vadd.f32 %v2483, %v2643
      %v2682 = vadd.f32 %v2484, %v2645
      %v2683 = vadd.f32 %v2485, %v2647
      %v2684 = vadd.f32 %v2486, %v2649
      %v2685 = vadd.f32 %v2487, %v2653
      %v2686 = vadd.f32 %v2488, %v2655
      %v2687 = vadd.f32 %v2489, %v2657
      %v2688 = vadd.f32 %v2490, %v2659
      %v2689 = vadd.f32 %v2491, %v2663
      %v2690 = vadd.f32 %v2492, %v2665
      %v2691 = vadd.f32 %v2493, %v2667
      %v2692 = vadd.f32 %v2494, %v2669
      %v2693 = vadd.f32 %v2495, %v2673
      %v2694 = vadd.f32 %v2496, %v2675
      %v2695 = vadd.f32 %v2497, %v2677
      %v2696 = vadd.f32 %v2498, %v2679
      %v2697 = vld [vmem:[%s7] sm:$0x3]
      %v2698 = vld [vmem:[%s8] sm:$0x3]
      %v2699 = vld [vmem:[%s9] sm:$0xff]
      %v2700 = vld [vmem:[%s9 + $0x8] sm:$0xff]
      %v2701 = vld [vmem:[%s9 + $0x10] sm:$0xff]
      %v2702 = vld [vmem:[%s9 + $0x18] sm:$0xff]
      %v2703 = vld [vmem:[%s9 + $0x20] sm:$0xff]
      %v2704 = vld [vmem:[%s9 + $0x28] sm:$0xff]
      %v2705 = vld [vmem:[%s9 + $0x30] sm:$0xff]
      %v2706 = vld [vmem:[%s9 + $0x38] sm:$0xff]
      %v2707 = vld [vmem:[%s9 + $0x40] sm:$0xff]
      %v2708 = vld [vmem:[%s9 + $0x48] sm:$0xff]
      %v2709 = vld [vmem:[%s9 + $0x50] sm:$0xff]
      %v2710 = vld [vmem:[%s9 + $0x58] sm:$0xff]
      %v2711 = vld [vmem:[%s9 + $0x60] sm:$0xff]
      %v2712 = vld [vmem:[%s9 + $0x68] sm:$0xff]
      %v2713 = vld [vmem:[%s9 + $0x70] sm:$0xff]
      %v2714 = vld [vmem:[%s9 + $0x78] sm:$0xff]
      %v2715 = vld [vmem:[%s9 + $0x80] sm:$0xff]
      %v2716 = vld [vmem:[%s9 + $0x88] sm:$0xff]
      %v2717 = vld [vmem:[%s9 + $0x90] sm:$0xff]
      %v2718 = vld [vmem:[%s9 + $0x98] sm:$0xff]
      %v2719 = vld [vmem:[%s9 + $0xa0] sm:$0xff]
      %v2720 = vld [vmem:[%s9 + $0xa8] sm:$0xff]
      %v2721 = vld [vmem:[%s9 + $0xb0] sm:$0xff]
      %v2722 = vld [vmem:[%s9 + $0xb8] sm:$0xff]
      %v2723 = vld [vmem:[%s9 + $0xc0] sm:$0xff]
      %v2724 = vld [vmem:[%s9 + $0xc8] sm:$0xff]
      %v2725 = vld [vmem:[%s9 + $0xd0] sm:$0xff]
      %v2726 = vld [vmem:[%s9 + $0xd8] sm:$0xff]
      %v2727 = vld [vmem:[%s9 + $0xe0] sm:$0xff]
      %v2728 = vld [vmem:[%s9 + $0xe8] sm:$0xff]
      %v2729 = vld [vmem:[%s9 + $0xf0] sm:$0xff]
      %v2730 = vld [vmem:[%s9 + $0xf8] sm:$0xff]
      %v2731 = vld [vmem:[%s9 + $0x100] sm:$0xff]
      %v2732 = vld [vmem:[%s9 + $0x108] sm:$0xff]
      %v2733 = vld [vmem:[%s9 + $0x110] sm:$0xff]
      %v2734 = vld [vmem:[%s9 + $0x118] sm:$0xff]
      %v2735 = vld [vmem:[%s9 + $0x120] sm:$0xff]
      %v2736 = vld [vmem:[%s9 + $0x128] sm:$0xff]
      %v2737 = vld [vmem:[%s9 + $0x130] sm:$0xff]
      %v2738 = vld [vmem:[%s9 + $0x138] sm:$0xff]
      %v2739 = vld [vmem:[%s9 + $0x140] sm:$0xff]
      %v2740 = vld [vmem:[%s9 + $0x148] sm:$0xff]
      %v2741 = vld [vmem:[%s9 + $0x150] sm:$0xff]
      %v2742 = vld [vmem:[%s9 + $0x158] sm:$0xff]
      %v2743 = vld [vmem:[%s9 + $0x160] sm:$0xff]
      %v2744 = vld [vmem:[%s9 + $0x168] sm:$0xff]
      %v2745 = vld [vmem:[%s9 + $0x170] sm:$0xff]
      %v2746 = vld [vmem:[%s9 + $0x178] sm:$0xff]
      %v2747 = vld [vmem:[%s9 + $0x180] sm:$0xff]
      %v2748 = vld [vmem:[%s9 + $0x188] sm:$0xff]
      %v2749 = vld [vmem:[%s9 + $0x190] sm:$0xff]
      %v2750 = vld [vmem:[%s9 + $0x198] sm:$0xff]
      %v2751 = vld [vmem:[%s9 + $0x1a0] sm:$0xff]
      %v2752 = vld [vmem:[%s9 + $0x1a8] sm:$0xff]
      %v2753 = vld [vmem:[%s9 + $0x1b0] sm:$0xff]
      %v2754 = vld [vmem:[%s9 + $0x1b8] sm:$0xff]
      %v2755 = vld [vmem:[%s9 + $0x1c0] sm:$0xff]
      %v2756 = vld [vmem:[%s9 + $0x1c8] sm:$0xff]
      %v2757 = vld [vmem:[%s9 + $0x1d0] sm:$0xff]
      %v2758 = vld [vmem:[%s9 + $0x1d8] sm:$0xff]
      %v2759 = vld [vmem:[%s9 + $0x1e0] sm:$0xff]
      %v2760 = vld [vmem:[%s9 + $0x1e8] sm:$0xff]
      %v2761 = vld [vmem:[%s9 + $0x1f0] sm:$0xff]
      %v2762 = vld [vmem:[%s9 + $0x1f8] sm:$0xff]
      %v2763 = vadd.f32 %v2681, %v2683
      %v2764 = vadd.f32 %v2763, %v2685
      %v2765 = vadd.f32 %v2764, %v2687
      %v2766 = vadd.f32 %v2765, %v2689
      %v2767 = vadd.f32 %v2766, %v2691
      %v2768 = vadd.f32 %v2767, %v2693
      %v2769 = vadd.f32 %v2768, %v2695
      %v2770 = vrot.slane %v2769, 4
      %v2771 = vadd.f32 %v2769, %v2770
      %v2772 = vrot.slane %v2771, 2
      %v2773 = vadd.f32 %v2771, %v2772
      %v2774 = vrot.slane %v2773, 1
      %v2775 = vadd.f32 %v2773, %v2774
      %v2776 = vadd.f32 %v2682, %v2684
      %v2777 = vadd.f32 %v2776, %v2686
      %v2778 = vadd.f32 %v2777, %v2688
      %v2779 = vadd.f32 %v2778, %v2690
      %v2780 = vadd.f32 %v2779, %v2692
      %v2781 = vadd.f32 %v2780, %v2694
      %v2782 = vadd.f32 %v2781, %v2696
      %v2783 = vrot.slane %v2782, 4
      %v2784 = vadd.f32 %v2782, %v2783
      %v2785 = vrot.slane %v2784, 2
      %v2786 = vadd.f32 %v2784, %v2785
      %v2787 = vrot.slane %v2786, 1
      %v2788 = vadd.f32 %v2786, %v2787
      %2789 = vmatprep.subr.mxu0 %v2700
      %2790 = vmatpush1.msra.mxu0 %v2699
      %2791 = vmatprep.subr.mxu0 %v2702
      %2792 = vmatpush1.msra.mxu0 %v2701
      %2793 = vmatprep.subr.mxu0 %v2704
      %2794 = vmatpush1.msra.mxu0 %v2703
      %2795 = vmatprep.subr.mxu0 %v2706
      %2796 = vmatpush1.msra.mxu0 %v2705
      %2797 = vmatprep.subr.mxu0 %v2708
      %2798 = vmatpush1.msra.mxu0 %v2707
      %2799 = vmatprep.subr.mxu0 %v2710
      %2800 = vmatpush1.msra.mxu0 %v2709
      %2801 = vmatprep.subr.mxu0 %v2712
      %2802 = vmatpush1.msra.mxu0 %v2711
      %2803 = vmatprep.subr.mxu0 %v2714
      %2804 = vmatpush1.msra.mxu0 %v2713
      %2805 = vmatprep.subr.mxu0 %v2716
      %2806 = vmatpush1.msra.mxu0 %v2715
      %2807 = vmatprep.subr.mxu0 %v2718
      %2808 = vmatpush1.msra.mxu0 %v2717
      %2809 = vmatprep.subr.mxu0 %v2720
      %2810 = vmatpush1.msra.mxu0 %v2719
      %2811 = vmatprep.subr.mxu0 %v2722
      %2812 = vmatpush1.msra.mxu0 %v2721
      %2813 = vmatprep.subr.mxu0 %v2724
      %2814 = vmatpush1.msra.mxu0 %v2723
      %2815 = vmatprep.subr.mxu0 %v2726
      %2816 = vmatpush1.msra.mxu0 %v2725
      %2817 = vmatprep.subr.mxu0 %v2728
      %2818 = vmatpush1.msra.mxu0 %v2727
      %2819 = vmatprep.subr.mxu0 %v2730
      %2820 = vmatpush1.msra.mxu0 %v2729
      %2821 = vmatprep.subr.mxu0 %v2732
      %2822 = vmatpush1.msra.mxu0 %v2731
      %2823 = vmatprep.subr.mxu0 %v2734
      %2824 = vmatpush1.msra.mxu0 %v2733
      %2825 = vmatprep.subr.mxu0 %v2736
      %2826 = vmatpush1.msra.mxu0 %v2735
      %2827 = vmatprep.subr.mxu0 %v2738
      %2828 = vmatpush1.msra.mxu0 %v2737
      %2829 = vmatprep.subr.mxu0 %v2740
      %2830 = vmatpush1.msra.mxu0 %v2739
      %2831 = vmatprep.subr.mxu0 %v2742
      %2832 = vmatpush1.msra.mxu0 %v2741
      %2833 = vmatprep.subr.mxu0 %v2744
      %2834 = vmatpush1.msra.mxu0 %v2743
      %2835 = vmatprep.subr.mxu0 %v2746
      %2836 = vmatpush1.msra.mxu0 %v2745
      %2837 = vmatprep.subr.mxu0 %v2748
      %2838 = vmatpush1.msra.mxu0 %v2747
      %2839 = vmatprep.subr.mxu0 %v2750
      %2840 = vmatpush1.msra.mxu0 %v2749
      %2841 = vmatprep.subr.mxu0 %v2752
      %2842 = vmatpush1.msra.mxu0 %v2751
      %2843 = vmatprep.subr.mxu0 %v2754
      %2844 = vmatpush1.msra.mxu0 %v2753
      %2845 = vmatprep.subr.mxu0 %v2756
      %2846 = vmatpush1.msra.mxu0 %v2755
      %2847 = vmatprep.subr.mxu0 %v2758
      %2848 = vmatpush1.msra.mxu0 %v2757
      %2849 = vmatprep.subr.mxu0 %v2760
      %2850 = vmatpush1.msra.mxu0 %v2759
      %2851 = vmatprep.subr.mxu0 %v2762
      %2852 = vmatpush1.msra.mxu0 %v2761
      %2853 = vmatprep.mubr.f32.mxu0 %v2788
      %2854 = vmatmul.mubr.f32.gmra.mrb[0].mxu0 %v2775
      %v2855 = vpop.f32.mrb[0].mxu0
      %v2856 = vadd.f32 0.0, %v2855
      %v2857 = vpop.f32.mrb[0].mxu0
      %v2858 = vadd.f32 0.0, %v2857
      %2859 = vdwg.mxu0
      %v2860 = vlaneseq
      %v2861 = vshrl.u32 %v2860, 7
      %v2862 = vsub.s32 0, %v2861
      %v2863 = vrot.slane %v2856, %v2862
      %v2864 = vlaneseq
      %v2865 = vshrl.u32 %v2864, 7
      %v2866 = vsub.s32 0, %v2865
      %v2867 = vrot.slane %v2858, %v2866
      %v2868 = vsub.f32 %v2681, %v2863
      %v2869 = vsub.f32 %v2682, %v2867
      %v2870 = vsub.f32 %v2683, %v2863
      %v2871 = vsub.f32 %v2684, %v2867
      %v2872 = vsub.f32 %v2685, %v2863
      %v2873 = vsub.f32 %v2686, %v2867
      %v2874 = vsub.f32 %v2687, %v2863
      %v2875 = vsub.f32 %v2688, %v2867
      %v2876 = vsub.f32 %v2689, %v2863
      %v2877 = vsub.f32 %v2690, %v2867
      %v2878 = vsub.f32 %v2691, %v2863
      %v2879 = vsub.f32 %v2692, %v2867
      %v2880 = vsub.f32 %v2693, %v2863
      %v2881 = vsub.f32 %v2694, %v2867
      %v2882 = vsub.f32 %v2695, %v2863
      %v2883 = vsub.f32 %v2696, %v2867
      %v2884 = vmul.f32 %v2868, %v2868
      %v2885 = vmul.f32 %v2869, %v2869
      %v2886 = vmul.f32 %v2870, %v2870
      %v2887 = vmul.f32 %v2871, %v2871
      %v2888 = vmul.f32 %v2872, %v2872
      %v2889 = vmul.f32 %v2873, %v2873
      %v2890 = vmul.f32 %v2874, %v2874
      %v2891 = vmul.f32 %v2875, %v2875
      %v2892 = vmul.f32 %v2876, %v2876
      %v2893 = vmul.f32 %v2877, %v2877
      %v2894 = vmul.f32 %v2878, %v2878
      %v2895 = vmul.f32 %v2879, %v2879
      %v2896 = vmul.f32 %v2880, %v2880
      %v2897 = vmul.f32 %v2881, %v2881
      %v2898 = vmul.f32 %v2882, %v2882
      %v2899 = vmul.f32 %v2883, %v2883
      %v2900 = vadd.f32 %v2884, %v2886
      %v2901 = vadd.f32 %v2900, %v2888
      %v2902 = vadd.f32 %v2901, %v2890
      %v2903 = vadd.f32 %v2902, %v2892
      %v2904 = vadd.f32 %v2903, %v2894
      %v2905 = vadd.f32 %v2904, %v2896
      %v2906 = vadd.f32 %v2905, %v2898
      %v2907 = vrot.slane %v2906, 4
      %v2908 = vadd.f32 %v2906, %v2907
      %v2909 = vrot.slane %v2908, 2
      %v2910 = vadd.f32 %v2908, %v2909
      %v2911 = vrot.slane %v2910, 1
      %v2912 = vadd.f32 %v2910, %v2911
      %v2913 = vadd.f32 %v2885, %v2887
      %v2914 = vadd.f32 %v2913, %v2889
      %v2915 = vadd.f32 %v2914, %v2891
      %v2916 = vadd.f32 %v2915, %v2893
      %v2917 = vadd.f32 %v2916, %v2895
      %v2918 = vadd.f32 %v2917, %v2897
      %v2919 = vadd.f32 %v2918, %v2899
      %v2920 = vrot.slane %v2919, 4
      %v2921 = vadd.f32 %v2919, %v2920
      %v2922 = vrot.slane %v2921, 2
      %v2923 = vadd.f32 %v2921, %v2922
      %v2924 = vrot.slane %v2923, 1
      %v2925 = vadd.f32 %v2923, %v2924
      %2926 = vmatprep.subr.mxu0 %v2700
      %2927 = vmatpush1.msra.mxu0 %v2699
      %2928 = vmatprep.subr.mxu0 %v2702
      %2929 = vmatpush1.msra.mxu0 %v2701
      %2930 = vmatprep.subr.mxu0 %v2704
      %2931 = vmatpush1.msra.mxu0 %v2703
      %2932 = vmatprep.subr.mxu0 %v2706
      %2933 = vmatpush1.msra.mxu0 %v2705
      %2934 = vmatprep.subr.mxu0 %v2708
      %2935 = vmatpush1.msra.mxu0 %v2707
      %2936 = vmatprep.subr.mxu0 %v2710
      %2937 = vmatpush1.msra.mxu0 %v2709
      %2938 = vmatprep.subr.mxu0 %v2712
      %2939 = vmatpush1.msra.mxu0 %v2711
      %2940 = vmatprep.subr.mxu0 %v2714
      %2941 = vmatpush1.msra.mxu0 %v2713
      %2942 = vmatprep.subr.mxu0 %v2716
      %2943 = vmatpush1.msra.mxu0 %v2715
      %2944 = vmatprep.subr.mxu0 %v2718
      %2945 = vmatpush1.msra.mxu0 %v2717
      %2946 = vmatprep.subr.mxu0 %v2720
      %2947 = vmatpush1.msra.mxu0 %v2719
      %2948 = vmatprep.subr.mxu0 %v2722
      %2949 = vmatpush1.msra.mxu0 %v2721
      %2950 = vmatprep.subr.mxu0 %v2724
      %2951 = vmatpush1.msra.mxu0 %v2723
      %2952 = vmatprep.subr.mxu0 %v2726
      %2953 = vmatpush1.msra.mxu0 %v2725
      %2954 = vmatprep.subr.mxu0 %v2728
      %2955 = vmatpush1.msra.mxu0 %v2727
      %2956 = vmatprep.subr.mxu0 %v2730
      %2957 = vmatpush1.msra.mxu0 %v2729
      %2958 = vmatprep.subr.mxu0 %v2732
      %2959 = vmatpush1.msra.mxu0 %v2731
      %2960 = vmatprep.subr.mxu0 %v2734
      %2961 = vmatpush1.msra.mxu0 %v2733
      %2962 = vmatprep.subr.mxu0 %v2736
      %2963 = vmatpush1.msra.mxu0 %v2735
      %2964 = vmatprep.subr.mxu0 %v2738
      %2965 = vmatpush1.msra.mxu0 %v2737
      %2966 = vmatprep.subr.mxu0 %v2740
      %2967 = vmatpush1.msra.mxu0 %v2739
      %2968 = vmatprep.subr.mxu0 %v2742
      %2969 = vmatpush1.msra.mxu0 %v2741
      %2970 = vmatprep.subr.mxu0 %v2744
      %2971 = vmatpush1.msra.mxu0 %v2743
      %2972 = vmatprep.subr.mxu0 %v2746
      %2973 = vmatpush1.msra.mxu0 %v2745
      %2974 = vmatprep.subr.mxu0 %v2748
      %2975 = vmatpush1.msra.mxu0 %v2747
      %2976 = vmatprep.subr.mxu0 %v2750
      %2977 = vmatpush1.msra.mxu0 %v2749
      %2978 = vmatprep.subr.mxu0 %v2752
      %2979 = vmatpush1.msra.mxu0 %v2751
      %2980 = vmatprep.subr.mxu0 %v2754
      %2981 = vmatpush1.msra.mxu0 %v2753
      %2982 = vmatprep.subr.mxu0 %v2756
      %2983 = vmatpush1.msra.mxu0 %v2755
      %2984 = vmatprep.subr.mxu0 %v2758
      %2985 = vmatpush1.msra.mxu0 %v2757
      %2986 = vmatprep.subr.mxu0 %v2760
      %2987 = vmatpush1.msra.mxu0 %v2759
      %2988 = vmatprep.subr.mxu0 %v2762
      %2989 = vmatpush1.msra.mxu0 %v2761
      %2990 = vmatprep.mubr.f32.mxu0 %v2925
      %2991 = vmatmul.mubr.f32.gmra.mrb[0].mxu0 %v2912
      %v2992 = vpop.f32.mrb[0].mxu0
      %v2993 = vadd.f32 1e-06, %v2992
      %v2994 = vpop.f32.mrb[0].mxu0
      %v2995 = vadd.f32 1e-06, %v2994
      %2996 = vdwg.mxu0
      %v2997 = vrsqrt.pop %v2993
      %v2998 = vrsqrt.pop %v2995
      %v2999 = vlaneseq
      %v3000 = vshrl.u32 %v2999, 7
      %v3001 = vsub.s32 0, %v3000
      %v3002 = vrot.slane %v2997, %v3001
      %v3003 = vlaneseq
      %v3004 = vshrl.u32 %v3003, 7
      %v3005 = vsub.s32 0, %v3004
      %v3006 = vrot.slane %v2998, %v3005
      %v3007 = vmul.f32 %v2868, %v3002
      %v3008 = vmul.f32 %v2869, %v3006
      %v3009 = vmul.f32 %v2870, %v3002
      %v3010 = vmul.f32 %v2871, %v3006
      %v3011 = vmul.f32 %v2872, %v3002
      %v3012 = vmul.f32 %v2873, %v3006
      %v3013 = vmul.f32 %v2874, %v3002
      %v3014 = vmul.f32 %v2875, %v3006
      %v3015 = vmul.f32 %v2876, %v3002
      %v3016 = vmul.f32 %v2877, %v3006
      %v3017 = vmul.f32 %v2878, %v3002
      %v3018 = vmul.f32 %v2879, %v3006
      %v3019 = vmul.f32 %v2880, %v3002
      %v3020 = vmul.f32 %v2881, %v3006
      %v3021 = vmul.f32 %v2882, %v3002
      %v3022 = vmul.f32 %v2883, %v3006
      %v3024 = vlaneseq
      %v3025 = vshrl.u32 %v3024, 7
      %v3026 = vsub.s32 0, %v3025
      %v3027 = vrot.slane %v2697, %v3026
      %v3028 = vlaneseq
      %v3029 = vshrl.u32 %v3028, 7
      %v3030 = vsub.s32 1, %v3029
      %v3031 = vrot.slane %v2697, %v3030
      %v3034 = vmul.f32 %v3007, %v3027
      %v3035 = vmul.f32 %v3008, %v3031
      %v3036 = vmul.f32 %v3009, %v3027
      %v3037 = vmul.f32 %v3010, %v3031
      %v3038 = vmul.f32 %v3011, %v3027
      %v3039 = vmul.f32 %v3012, %v3031
      %v3040 = vmul.f32 %v3013, %v3027
      %v3041 = vmul.f32 %v3014, %v3031
      %v3042 = vmul.f32 %v3015, %v3027
      %v3043 = vmul.f32 %v3016, %v3031
      %v3044 = vmul.f32 %v3017, %v3027
      %v3045 = vmul.f32 %v3018, %v3031
      %v3046 = vmul.f32 %v3019, %v3027
      %v3047 = vmul.f32 %v3020, %v3031
      %v3048 = vmul.f32 %v3021, %v3027
      %v3049 = vmul.f32 %v3022, %v3031
      %v3051 = vlaneseq
      %v3052 = vshrl.u32 %v3051, 7
      %v3053 = vsub.s32 0, %v3052
      %v3054 = vrot.slane %v2698, %v3053
      %v3055 = vlaneseq
      %v3056 = vshrl.u32 %v3055, 7
      %v3057 = vsub.s32 1, %v3056
      %v3058 = vrot.slane %v2698, %v3057
      %v3061 = vadd.f32 %v3034, %v3054
      %v3062 = vadd.f32 %v3035, %v3058
      %v3063 = vadd.f32 %v3036, %v3054
      %v3064 = vadd.f32 %v3037, %v3058
      %v3065 = vadd.f32 %v3038, %v3054
      %v3066 = vadd.f32 %v3039, %v3058
      %v3067 = vadd.f32 %v3040, %v3054
      %v3068 = vadd.f32 %v3041, %v3058
      %v3069 = vadd.f32 %v3042, %v3054
      %v3070 = vadd.f32 %v3043, %v3058
      %v3071 = vadd.f32 %v3044, %v3054
      %v3072 = vadd.f32 %v3045, %v3058
      %v3073 = vadd.f32 %v3046, %v3054
      %v3074 = vadd.f32 %v3047, %v3058
      %v3075 = vadd.f32 %v3048, %v3054
      %v3076 = vadd.f32 %v3049, %v3058
      %v3077 = vxor.u32 %v3061, 2147483648
      %v3078 = vxor.u32 %v3062, 2147483648
      %v3079 = vxor.u32 %v3063, 2147483648
      %v3080 = vxor.u32 %v3064, 2147483648
      %v3081 = vxor.u32 %v3065, 2147483648
      %v3082 = vxor.u32 %v3066, 2147483648
      %v3083 = vxor.u32 %v3067, 2147483648
      %v3084 = vxor.u32 %v3068, 2147483648
      %v3085 = vxor.u32 %v3069, 2147483648
      %v3086 = vxor.u32 %v3070, 2147483648
      %v3087 = vxor.u32 %v3071, 2147483648
      %v3088 = vxor.u32 %v3072, 2147483648
      %v3089 = vxor.u32 %v3073, 2147483648
      %v3090 = vxor.u32 %v3074, 2147483648
      %v3091 = vxor.u32 %v3075, 2147483648
      %v3092 = vxor.u32 %v3076, 2147483648
      %v3093 = vmul.f32 %v3077, 1.442695
      %v3094 = vpow.pop %v3093
      %v3095 = vmul.f32 %v3078, 1.442695
      %v3096 = vpow.pop %v3095
      %v3097 = vmul.f32 %v3079, 1.442695
      %v3098 = vpow.pop %v3097
      %v3099 = vmul.f32 %v3080, 1.442695
      %v3100 = vpow.pop %v3099
      %v3101 = vmul.f32 %v3081, 1.442695
      %v3102 = vpow.pop %v3101
      %v3103 = vmul.f32 %v3082, 1.442695
      %v3104 = vpow.pop %v3103
      %v3105 = vmul.f32 %v3083, 1.442695
      %v3106 = vpow.pop %v3105
      %v3107 = vmul.f32 %v3084, 1.442695
      %v3108 = vpow.pop %v3107
      %v3109 = vmul.f32 %v3085, 1.442695
      %v3110 = vpow.pop %v3109
      %v3111 = vmul.f32 %v3086, 1.442695
      %v3112 = vpow.pop %v3111
      %v3113 = vmul.f32 %v3087, 1.442695
      %v3114 = vpow.pop %v3113
      %v3115 = vmul.f32 %v3088, 1.442695
      %v3116 = vpow.pop %v3115
      %v3117 = vmul.f32 %v3089, 1.442695
      %v3118 = vpow.pop %v3117
      %v3119 = vmul.f32 %v3090, 1.442695
      %v3120 = vpow.pop %v3119
      %v3121 = vmul.f32 %v3091, 1.442695
      %v3122 = vpow.pop %v3121
      %v3123 = vmul.f32 %v3092, 1.442695
      %v3124 = vpow.pop %v3123
      %v3125 = vadd.f32 %v3094, 1.0
      %v3126 = vadd.f32 %v3096, 1.0
      %v3127 = vadd.f32 %v3098, 1.0
      %v3128 = vadd.f32 %v3100, 1.0
      %v3129 = vadd.f32 %v3102, 1.0
      %v3130 = vadd.f32 %v3104, 1.0
      %v3131 = vadd.f32 %v3106, 1.0
      %v3132 = vadd.f32 %v3108, 1.0
      %v3133 = vadd.f32 %v3110, 1.0
      %v3134 = vadd.f32 %v3112, 1.0
      %v3135 = vadd.f32 %v3114, 1.0
      %v3136 = vadd.f32 %v3116, 1.0
      %v3137 = vadd.f32 %v3118, 1.0
      %v3138 = vadd.f32 %v3120, 1.0
      %v3139 = vadd.f32 %v3122, 1.0
      %v3140 = vadd.f32 %v3124, 1.0
      %v3141 = vrcp.pop %v3125
      %v3142 = vmul.f32 1.0, %v3141
      %v3143 = vrcp.pop %v3126
      %v3144 = vmul.f32 1.0, %v3143
      %v3145 = vrcp.pop %v3127
      %v3146 = vmul.f32 1.0, %v3145
      %v3147 = vrcp.pop %v3128
      %v3148 = vmul.f32 1.0, %v3147
      %v3149 = vrcp.pop %v3129
      %v3150 = vmul.f32 1.0, %v3149
      %v3151 = vrcp.pop %v3130
      %v3152 = vmul.f32 1.0, %v3151
      %v3153 = vrcp.pop %v3131
      %v3154 = vmul.f32 1.0, %v3153
      %v3155 = vrcp.pop %v3132
      %v3156 = vmul.f32 1.0, %v3155
      %v3157 = vrcp.pop %v3133
      %v3158 = vmul.f32 1.0, %v3157
      %v3159 = vrcp.pop %v3134
      %v3160 = vmul.f32 1.0, %v3159
      %v3161 = vrcp.pop %v3135
      %v3162 = vmul.f32 1.0, %v3161
      %v3163 = vrcp.pop %v3136
      %v3164 = vmul.f32 1.0, %v3163
      %v3165 = vrcp.pop %v3137
      %v3166 = vmul.f32 1.0, %v3165
      %v3167 = vrcp.pop %v3138
      %v3168 = vmul.f32 1.0, %v3167
      %v3169 = vrcp.pop %v3139
      %v3170 = vmul.f32 1.0, %v3169
      %v3171 = vrcp.pop %v3140
      %v3172 = vmul.f32 1.0, %v3171
      %v3173 = vmul.f32 %v3061, %v3142
      %v3174 = vmul.f32 %v3062, %v3144
      %v3175 = vmul.f32 %v3063, %v3146
      %v3176 = vmul.f32 %v3064, %v3148
      %v3177 = vmul.f32 %v3065, %v3150
      %v3178 = vmul.f32 %v3066, %v3152
      %v3179 = vmul.f32 %v3067, %v3154
      %v3180 = vmul.f32 %v3068, %v3156
      %v3181 = vmul.f32 %v3069, %v3158
      %v3182 = vmul.f32 %v3070, %v3160
      %v3183 = vmul.f32 %v3071, %v3162
      %v3184 = vmul.f32 %v3072, %v3164
      %v3185 = vmul.f32 %v3073, %v3166
      %v3186 = vmul.f32 %v3074, %v3168
      %v3187 = vmul.f32 %v3075, %v3170
      %v3188 = vmul.f32 %v3076, %v3172
      %v3205 = vrot.slane %v3173, 7
      %v3206 = vrot.slane %v3174, 7
      %v3207 = vrot.slane %v3175, 7
      %v3208 = vrot.slane %v3176, 7
      %v3209 = vrot.slane %v3177, 7
      %v3210 = vrot.slane %v3178, 7
      %v3211 = vrot.slane %v3179, 7
      %v3212 = vrot.slane %v3180, 7
      %v3213 = vrot.slane %v3181, 7
      %v3214 = vrot.slane %v3182, 7
      %v3215 = vrot.slane %v3183, 7
      %v3216 = vrot.slane %v3184, 7
      %v3217 = vrot.slane %v3185, 7
      %v3218 = vrot.slane %v3186, 7
      %v3219 = vrot.slane %v3187, 7
      %v3220 = vrot.slane %v3188, 7
      %s3237 = scalar_lea.vmem [#allocation3], 32
      %3238 = vst [vmem:[%s3237] sm:$0xfe] %v3205
      %3239 = vst [vmem:[%s3237 + $0x8] sm:$0xfe] %v3206
      %3240 = vst [vmem:[%s3237 + $0x10] sm:$0x1] %v3205
      %3241 = vst [vmem:[%s3237 + $0x18] sm:$0x1] %v3206
      %3242 = vst [vmem:[%s3237 + $0x20] sm:$0xfe] %v3207
      %3243 = vst [vmem:[%s3237 + $0x28] sm:$0xfe] %v3208
      %3244 = vst [vmem:[%s3237 + $0x30] sm:$0x1] %v3207
      %3245 = vst [vmem:[%s3237 + $0x38] sm:$0x1] %v3208
      %3246 = vst [vmem:[%s3237 + $0x40] sm:$0xfe] %v3209
      %3247 = vst [vmem:[%s3237 + $0x48] sm:$0xfe] %v3210
      %3248 = vst [vmem:[%s3237 + $0x50] sm:$0x1] %v3209
      %3249 = vst [vmem:[%s3237 + $0x58] sm:$0x1] %v3210
      %3250 = vst [vmem:[%s3237 + $0x60] sm:$0xfe] %v3211
      %3251 = vst [vmem:[%s3237 + $0x68] sm:$0xfe] %v3212
      %3252 = vst [vmem:[%s3237 + $0x70] sm:$0x1] %v3211
      %3253 = vst [vmem:[%s3237 + $0x78] sm:$0x1] %v3212
      %3254 = vst [vmem:[%s3237 + $0x80] sm:$0xfe] %v3213
      %3255 = vst [vmem:[%s3237 + $0x88] sm:$0xfe] %v3214
      %3256 = vst [vmem:[%s3237 + $0x90] sm:$0x1] %v3213
      %3257 = vst [vmem:[%s3237 + $0x98] sm:$0x1] %v3214
      %3258 = vst [vmem:[%s3237 + $0xa0] sm:$0xfe] %v3215
      %3259 = vst [vmem:[%s3237 + $0xa8] sm:$0xfe] %v3216
      %3260 = vst [vmem:[%s3237 + $0xb0] sm:$0x1] %v3215
      %3261 = vst [vmem:[%s3237 + $0xb8] sm:$0x1] %v3216
      %3262 = vst [vmem:[%s3237 + $0xc0] sm:$0xfe] %v3217
      %3263 = vst [vmem:[%s3237 + $0xc8] sm:$0xfe] %v3218
      %3264 = vst [vmem:[%s3237 + $0xd0] sm:$0x1] %v3217
      %3265 = vst [vmem:[%s3237 + $0xd8] sm:$0x1] %v3218
      %3266 = vst [vmem:[%s3237 + $0xe0] sm:$0xfe] %v3219
      %3267 = vst [vmem:[%s3237 + $0xe8] sm:$0xfe] %v3220
      %3268 = vst [vmem:[%s3237 + $0xf0] sm:$0x1] %v3219
      %3269 = vst [vmem:[%s3237 + $0xf8] sm:$0x1] %v3220
      %v3270 = vpack.c.bf16 %v584, %v583
      %v3271 = vpack.c.bf16 %v586, %v585
      %v3272 = vpack.c.bf16 %v588, %v587
      %v3273 = vpack.c.bf16 %v590, %v589
      %v3274 = vld [vmem:[%s12] sm:$0xff]
      %v3275 = vld [vmem:[%s12 + $0x8] sm:$0xff]
      %v3276 = vld [vmem:[%s12 + $0x10] sm:$0xff]
      %v3277 = vld [vmem:[%s12 + $0x18] sm:$0xff]
      %v3278 = vld [vmem:[%s12 + $0x20] sm:$0xff]
      %v3279 = vld [vmem:[%s12 + $0x28] sm:$0xff]
      %v3280 = vld [vmem:[%s12 + $0x30] sm:$0xff]
      %v3281 = vld [vmem:[%s12 + $0x38] sm:$0xff]
      %v3282 = vld [vmem:[%s12 + $0x40] sm:$0xff]
      %v3283 = vld [vmem:[%s12 + $0x48] sm:$0xff]
      %v3284 = vld [vmem:[%s12 + $0x50] sm:$0xff]
      %v3285 = vld [vmem:[%s12 + $0x58] sm:$0xff]
      %v3286 = vld [vmem:[%s12 + $0x60] sm:$0xff]
      %v3287 = vld [vmem:[%s12 + $0x68] sm:$0xff]
      %v3288 = vld [vmem:[%s12 + $0x70] sm:$0xff]
      %v3289 = vld [vmem:[%s12 + $0x78] sm:$0xff]
      %v3290 = vld [vmem:[%s13] sm:$0x3]
      %v3292 = vlaneseq
      %v3293 = vshrl.u32 %v3292, 7
      %v3294 = vsub.s32 0, %v3293
      %v3295 = vrot.slane %v3290, %v3294
      %v3296 = vlaneseq
      %v3297 = vshrl.u32 %v3296, 7
      %v3298 = vsub.s32 1, %v3297
      %v3299 = vrot.slane %v3290, %v3298
      %v3318 = vunpack.c.l.b16 %v3274
      %v3319 = vunpack.c.h.b16 %v3274
      %v3320 = vunpack.c.l.b16 %v3275
      %v3321 = vunpack.c.h.b16 %v3275
      %v3322 = vunpack.c.l.b16 %v3276
      %v3323 = vunpack.c.h.b16 %v3276
      %v3324 = vunpack.c.l.b16 %v3277
      %v3325 = vunpack.c.h.b16 %v3277
      %v3326 = vunpack.c.l.b16 %v3278
      %v3327 = vunpack.c.h.b16 %v3278
      %v3328 = vunpack.c.l.b16 %v3279
      %v3329 = vunpack.c.h.b16 %v3279
      %v3330 = vunpack.c.l.b16 %v3280
      %v3331 = vunpack.c.h.b16 %v3280
      %v3332 = vunpack.c.l.b16 %v3281
      %v3333 = vunpack.c.h.b16 %v3281
      %v3334 = vunpack.c.l.b16 %v3282
      %v3335 = vunpack.c.h.b16 %v3282
      %v3336 = vunpack.c.l.b16 %v3283
      %v3337 = vunpack.c.h.b16 %v3283
      %v3338 = vunpack.c.l.b16 %v3284
      %v3339 = vunpack.c.h.b16 %v3284
      %v3340 = vunpack.c.l.b16 %v3285
      %v3341 = vunpack.c.h.b16 %v3285
      %v3342 = vunpack.c.l.b16 %v3286
      %v3343 = vunpack.c.h.b16 %v3286
      %v3344 = vunpack.c.l.b16 %v3287
      %v3345 = vunpack.c.h.b16 %v3287
      %v3346 = vunpack.c.l.b16 %v3288
      %v3347 = vunpack.c.h.b16 %v3288
      %v3348 = vunpack.c.l.b16 %v3289
      %v3349 = vunpack.c.h.b16 %v3289
      %v3350 = vpack.c.b16 %v3320, %v3318
      %v3351 = vpack.c.b16 %v3321, %v3319
      %v3352 = vpack.c.b16 %v3324, %v3322
      %v3353 = vpack.c.b16 %v3325, %v3323
      %v3354 = vpack.c.b16 %v3328, %v3326
      %v3355 = vpack.c.b16 %v3329, %v3327
      %v3356 = vpack.c.b16 %v3332, %v3330
      %v3357 = vpack.c.b16 %v3333, %v3331
      %v3358 = vpack.c.b16 %v3336, %v3334
      %v3359 = vpack.c.b16 %v3337, %v3335
      %v3360 = vpack.c.b16 %v3340, %v3338
      %v3361 = vpack.c.b16 %v3341, %v3339
      %v3362 = vpack.c.b16 %v3344, %v3342
      %v3363 = vpack.c.b16 %v3345, %v3343
      %v3364 = vpack.c.b16 %v3348, %v3346
      %v3365 = vpack.c.b16 %v3349, %v3347
      %3382 = vmatprep.subr.bf16.mxu0 %v3351
      %3383 = vmatpush1.bf16.msra.mxu0 %v3350
      %3384 = vmatprep.subr.bf16.mxu0 %v3353
      %3385 = vmatpush1.bf16.msra.mxu0 %v3352
      %3386 = vmatprep.subr.bf16.mxu0 %v3355
      %3387 = vmatpush1.bf16.msra.mxu0 %v3354
      %3388 = vmatprep.subr.bf16.mxu0 %v3357
      %3389 = vmatpush1.bf16.msra.mxu0 %v3356
      %3390 = vmatprep.subr.bf16.mxu0 %v3359
      %3391 = vmatpush1.bf16.msra.mxu0 %v3358
      %3392 = vmatprep.subr.bf16.mxu0 %v3361
      %3393 = vmatpush1.bf16.msra.mxu0 %v3360
      %3394 = vmatprep.subr.bf16.mxu0 %v3363
      %3395 = vmatpush1.bf16.msra.mxu0 %v3362
      %3396 = vmatprep.subr.bf16.mxu0 %v3365
      %3397 = vmatpush1.bf16.msra.mxu0 %v3364
      %3398 = vmatprep.subr.bf16.mxu0 0
      %3399 = vmatpush1.bf16.msra.mxu0 0
      %3400 = vmatprep.subr.bf16.mxu0 0
      %3401 = vmatpush1.bf16.msra.mxu0 0
      %3402 = vmatprep.subr.bf16.mxu0 0
      %3403 = vmatpush1.bf16.msra.mxu0 0
      %3404 = vmatprep.subr.bf16.mxu0 0
      %3405 = vmatpush1.bf16.msra.mxu0 0
      %3406 = vmatprep.subr.bf16.mxu0 0
      %3407 = vmatpush1.bf16.msra.mxu0 0
      %3408 = vmatprep.subr.bf16.mxu0 0
      %3409 = vmatpush1.bf16.msra.mxu0 0
      %3410 = vmatprep.subr.bf16.mxu0 0
      %3411 = vmatpush1.bf16.msra.mxu0 0
      %3412 = vmatprep.subr.bf16.mxu0 0
      %3413 = vmatpush1.bf16.msra.mxu0 0
      %3414 = vmatprep.mubr.bf16.mxu0 0
      %3415 = vmatmul.mubr.bf16.gmra.mrb[0].mxu0 %v3270
      %v3416 = vpop.f32.mrb[0].mxu0
      %v3417 = vadd.f32 %v3295, %v3416
      %v3418 = vpop.f32.mrb[0].mxu0
      %v3419 = vadd.f32 %v3299, %v3418
      %v3420 = vpop.f32.mrb[0].mxu0
      %v3421 = vadd.f32 %v3295, %v3420
      %v3422 = vpop.f32.mrb[0].mxu0
      %v3423 = vadd.f32 %v3299, %v3422
      %3424 = vmatprep.mubr.bf16.mxu0 0
      %3425 = vmatmul.mubr.bf16.gmra.mrb[0].mxu0 %v3271
      %v3426 = vpop.f32.mrb[0].mxu0
      %v3427 = vadd.f32 %v3295, %v3426
      %v3428 = vpop.f32.mrb[0].mxu0
      %v3429 = vadd.f32 %v3299, %v3428
      %v3430 = vpop.f32.mrb[0].mxu0
      %v3431 = vadd.f32 %v3295, %v3430
      %v3432 = vpop.f32.mrb[0].mxu0
      %v3433 = vadd.f32 %v3299, %v3432
      %3434 = vmatprep.mubr.bf16.mxu0 0
      %3435 = vmatmul.mubr.bf16.gmra.mrb[0].mxu0 %v3272
      %v3436 = vpop.f32.mrb[0].mxu0
      %v3437 = vadd.f32 %v3295, %v3436
      %v3438 = vpop.f32.mrb[0].mxu0
      %v3439 = vadd.f32 %v3299, %v3438
      %v3440 = vpop.f32.mrb[0].mxu0
      %v3441 = vadd.f32 %v3295, %v3440
      %v3442 = vpop.f32.mrb[0].mxu0
      %v3443 = vadd.f32 %v3299, %v3442
      %3444 = vmatprep.mubr.bf16.mxu0 0
      %3445 = vmatmul.mubr.bf16.gmra.mrb[0].mxu0 %v3273
      %v3446 = vpop.f32.mrb[0].mxu0
      %v3447 = vadd.f32 %v3295, %v3446
      %v3448 = vpop.f32.mrb[0].mxu0
      %v3449 = vadd.f32 %v3299, %v3448
      %v3450 = vpop.f32.mrb[0].mxu0
      %v3451 = vadd.f32 %v3295, %v3450
      %v3452 = vpop.f32.mrb[0].mxu0
      %v3453 = vadd.f32 %v3299, %v3452
      %3454 = vdwg.mxu0
      %v3455 = vld [vmem:[%s11] sm:$0x3]
      %v3457 = vlaneseq
      %v3458 = vshrl.u32 %v3457, 7
      %v3459 = vsub.s32 0, %v3458
      %v3460 = vrot.slane %v3455, %v3459
      %v3461 = vlaneseq
      %v3462 = vshrl.u32 %v3461, 7
      %v3463 = vsub.s32 1, %v3462
      %v3464 = vrot.slane %v3455, %v3463
      %v3467 = vadd.f32 %v3417, %v3460
      %v3468 = vadd.f32 %v3419, %v3464
      %v3469 = vadd.f32 %v3421, %v3460
      %v3470 = vadd.f32 %v3423, %v3464
      %v3471 = vadd.f32 %v3427, %v3460
      %v3472 = vadd.f32 %v3429, %v3464
      %v3473 = vadd.f32 %v3431, %v3460
      %v3474 = vadd.f32 %v3433, %v3464
      %v3475 = vadd.f32 %v3437, %v3460
      %v3476 = vadd.f32 %v3439, %v3464
      %v3477 = vadd.f32 %v3441, %v3460
      %v3478 = vadd.f32 %v3443, %v3464
      %v3479 = vadd.f32 %v3447, %v3460
      %v3480 = vadd.f32 %v3449, %v3464
      %v3481 = vadd.f32 %v3451, %v3460
      %v3482 = vadd.f32 %v3453, %v3464
      %v3483 = vld [vmem:[#allocation3] sm:$0xff]
      %v3484 = vld [vmem:[#allocation3 + $0x8] sm:$0xff]
      %v3485 = vld [vmem:[#allocation3 + $0x20] sm:$0xff]
      %v3486 = vld [vmem:[#allocation3 + $0x28] sm:$0xff]
      %v3487 = vld [vmem:[#allocation3 + $0x40] sm:$0xff]
      %v3488 = vld [vmem:[#allocation3 + $0x48] sm:$0xff]
      %v3489 = vld [vmem:[#allocation3 + $0x60] sm:$0xff]
      %v3490 = vld [vmem:[#allocation3 + $0x68] sm:$0xff]
      %v3491 = vld [vmem:[#allocation3 + $0x80] sm:$0xff]
      %v3492 = vld [vmem:[#allocation3 + $0x88] sm:$0xff]
      %v3493 = vld [vmem:[#allocation3 + $0xa0] sm:$0xff]
      %v3494 = vld [vmem:[#allocation3 + $0xa8] sm:$0xff]
      %v3495 = vld [vmem:[#allocation3 + $0xc0] sm:$0xff]
      %v3496 = vld [vmem:[#allocation3 + $0xc8] sm:$0xff]
      %v3497 = vld [vmem:[#allocation3 + $0xe0] sm:$0xff]
      %v3498 = vld [vmem:[#allocation3 + $0xe8] sm:$0xff]
      %v3499 = vpack.c.bf16 %v3485, %v3483
      %v3500 = vpack.c.bf16 %v3486, %v3484
      %v3501 = vpack.c.bf16 %v3489, %v3487
      %v3502 = vpack.c.bf16 %v3490, %v3488
      %v3503 = vpack.c.bf16 %v3493, %v3491
      %v3504 = vpack.c.bf16 %v3494, %v3492
      %v3505 = vpack.c.bf16 %v3497, %v3495
      %v3506 = vpack.c.bf16 %v3498, %v3496
      %v3507 = vld [vmem:[%s10] sm:$0xff]
      %v3508 = vld [vmem:[%s10 + $0x8] sm:$0xff]
      %v3509 = vld [vmem:[%s10 + $0x10] sm:$0xff]
      %v3510 = vld [vmem:[%s10 + $0x18] sm:$0xff]
      %v3511 = vld [vmem:[%s10 + $0x20] sm:$0xff]
      %v3512 = vld [vmem:[%s10 + $0x28] sm:$0xff]
      %v3513 = vld [vmem:[%s10 + $0x30] sm:$0xff]
      %v3514 = vld [vmem:[%s10 + $0x38] sm:$0xff]
      %v3515 = vld [vmem:[%s10 + $0x40] sm:$0xff]
      %v3516 = vld [vmem:[%s10 + $0x48] sm:$0xff]
      %v3517 = vld [vmem:[%s10 + $0x50] sm:$0xff]
      %v3518 = vld [vmem:[%s10 + $0x58] sm:$0xff]
      %v3519 = vld [vmem:[%s10 + $0x60] sm:$0xff]
      %v3520 = vld [vmem:[%s10 + $0x68] sm:$0xff]
      %v3521 = vld [vmem:[%s10 + $0x70] sm:$0xff]
      %v3522 = vld [vmem:[%s10 + $0x78] sm:$0xff]
      %v3523 = vld [vmem:[%s10 + $0x80] sm:$0xff]
      %v3524 = vld [vmem:[%s10 + $0x88] sm:$0xff]
      %v3525 = vld [vmem:[%s10 + $0x90] sm:$0xff]
      %v3526 = vld [vmem:[%s10 + $0x98] sm:$0xff]
      %v3527 = vld [vmem:[%s10 + $0xa0] sm:$0xff]
      %v3528 = vld [vmem:[%s10 + $0xa8] sm:$0xff]
      %v3529 = vld [vmem:[%s10 + $0xb0] sm:$0xff]
      %v3530 = vld [vmem:[%s10 + $0xb8] sm:$0xff]
      %v3531 = vld [vmem:[%s10 + $0xc0] sm:$0xff]
      %v3532 = vld [vmem:[%s10 + $0xc8] sm:$0xff]
      %v3533 = vld [vmem:[%s10 + $0xd0] sm:$0xff]
      %v3534 = vld [vmem:[%s10 + $0xd8] sm:$0xff]
      %v3535 = vld [vmem:[%s10 + $0xe0] sm:$0xff]
      %v3536 = vld [vmem:[%s10 + $0xe8] sm:$0xff]
      %v3537 = vld [vmem:[%s10 + $0xf0] sm:$0xff]
      %v3538 = vld [vmem:[%s10 + $0xf8] sm:$0xff]
      %v3571 = vunpack.c.l.b16 %v3507
      %v3572 = vunpack.c.h.b16 %v3507
      %v3573 = vunpack.c.l.b16 %v3508
      %v3574 = vunpack.c.h.b16 %v3508
      %v3575 = vunpack.c.l.b16 %v3509
      %v3576 = vunpack.c.h.b16 %v3509
      %v3577 = vunpack.c.l.b16 %v3510
      %v3578 = vunpack.c.h.b16 %v3510
      %v3579 = vunpack.c.l.b16 %v3511
      %v3580 = vunpack.c.h.b16 %v3511
      %v3581 = vunpack.c.l.b16 %v3512
      %v3582 = vunpack.c.h.b16 %v3512
      %v3583 = vunpack.c.l.b16 %v3513
      %v3584 = vunpack.c.h.b16 %v3513
      %v3585 = vunpack.c.l.b16 %v3514
      %v3586 = vunpack.c.h.b16 %v3514
      %v3587 = vunpack.c.l.b16 %v3515
      %v3588 = vunpack.c.h.b16 %v3515
      %v3589 = vunpack.c.l.b16 %v3516
      %v3590 = vunpack.c.h.b16 %v3516
      %v3591 = vunpack.c.l.b16 %v3517
      %v3592 = vunpack.c.h.b16 %v3517
      %v3593 = vunpack.c.l.b16 %v3518
      %v3594 = vunpack.c.h.b16 %v3518
      %v3595 = vunpack.c.l.b16 %v3519
      %v3596 = vunpack.c.h.b16 %v3519
      %v3597 = vunpack.c.l.b16 %v3520
      %v3598 = vunpack.c.h.b16 %v3520
      %v3599 = vunpack.c.l.b16 %v3521
      %v3600 = vunpack.c.h.b16 %v3521
      %v3601 = vunpack.c.l.b16 %v3522
      %v3602 = vunpack.c.h.b16 %v3522
      %v3603 = vunpack.c.l.b16 %v3523
      %v3604 = vunpack.c.h.b16 %v3523
      %v3605 = vunpack.c.l.b16 %v3524
      %v3606 = vunpack.c.h.b16 %v3524
      %v3607 = vunpack.c.l.b16 %v3525
      %v3608 = vunpack.c.h.b16 %v3525
      %v3609 = vunpack.c.l.b16 %v3526
      %v3610 = vunpack.c.h.b16 %v3526
      %v3611 = vunpack.c.l.b16 %v3527
      %v3612 = vunpack.c.h.b16 %v3527
      %v3613 = vunpack.c.l.b16 %v3528
      %v3614 = vunpack.c.h.b16 %v3528
      %v3615 = vunpack.c.l.b16 %v3529
      %v3616 = vunpack.c.h.b16 %v3529
      %v3617 = vunpack.c.l.b16 %v3530
      %v3618 = vunpack.c.h.b16 %v3530
      %v3619 = vunpack.c.l.b16 %v3531
      %v3620 = vunpack.c.h.b16 %v3531
      %v3621 = vunpack.c.l.b16 %v3532
      %v3622 = vunpack.c.h.b16 %v3532
      %v3623 = vunpack.c.l.b16 %v3533
      %v3624 = vunpack.c.h.b16 %v3533
      %v3625 = vunpack.c.l.b16 %v3534
      %v3626 = vunpack.c.h.b16 %v3534
      %v3627 = vunpack.c.l.b16 %v3535
      %v3628 = vunpack.c.h.b16 %v3535
      %v3629 = vunpack.c.l.b16 %v3536
      %v3630 = vunpack.c.h.b16 %v3536
      %v3631 = vunpack.c.l.b16 %v3537
      %v3632 = vunpack.c.h.b16 %v3537
      %v3633 = vunpack.c.l.b16 %v3538
      %v3634 = vunpack.c.h.b16 %v3538
      %v3635 = vpack.c.b16 %v3573, %v3571
      %v3636 = vpack.c.b16 %v3574, %v3572
      %v3637 = vpack.c.b16 %v3577, %v3575
      %v3638 = vpack.c.b16 %v3578, %v3576
      %v3639 = vpack.c.b16 %v3581, %v3579
      %v3640 = vpack.c.b16 %v3582, %v3580
      %v3641 = vpack.c.b16 %v3585, %v3583
      %v3642 = vpack.c.b16 %v3586, %v3584
      %v3643 = vpack.c.b16 %v3589, %v3587
      %v3644 = vpack.c.b16 %v3590, %v3588
      %v3645 = vpack.c.b16 %v3593, %v3591
      %v3646 = vpack.c.b16 %v3594, %v3592
      %v3647 = vpack.c.b16 %v3597, %v3595
      %v3648 = vpack.c.b16 %v3598, %v3596
      %v3649 = vpack.c.b16 %v3601, %v3599
      %v3650 = vpack.c.b16 %v3602, %v3600
      %v3651 = vpack.c.b16 %v3605, %v3603
      %v3652 = vpack.c.b16 %v3606, %v3604
      %v3653 = vpack.c.b16 %v3609, %v3607
      %v3654 = vpack.c.b16 %v3610, %v3608
      %v3655 = vpack.c.b16 %v3613, %v3611
      %v3656 = vpack.c.b16 %v3614, %v3612
      %v3657 = vpack.c.b16 %v3617, %v3615
      %v3658 = vpack.c.b16 %v3618, %v3616
      %v3659 = vpack.c.b16 %v3621, %v3619
      %v3660 = vpack.c.b16 %v3622, %v3620
      %v3661 = vpack.c.b16 %v3625, %v3623
      %v3662 = vpack.c.b16 %v3626, %v3624
      %v3663 = vpack.c.b16 %v3629, %v3627
      %v3664 = vpack.c.b16 %v3630, %v3628
      %v3665 = vpack.c.b16 %v3633, %v3631
      %v3666 = vpack.c.b16 %v3634, %v3632
      %3699 = vmatprep.subr.bf16.mxu0 %v3636
      %3700 = vmatpush1.bf16.msra.mxu0 %v3635
      %3701 = vmatprep.subr.bf16.mxu0 %v3638
      %3702 = vmatpush1.bf16.msra.mxu0 %v3637
      %3703 = vmatprep.subr.bf16.mxu0 %v3640
      %3704 = vmatpush1.bf16.msra.mxu0 %v3639
      %3705 = vmatprep.subr.bf16.mxu0 %v3642
      %3706 = vmatpush1.bf16.msra.mxu0 %v3641
      %3707 = vmatprep.subr.bf16.mxu0 %v3644
      %3708 = vmatpush1.bf16.msra.mxu0 %v3643
      %3709 = vmatprep.subr.bf16.mxu0 %v3646
      %3710 = vmatpush1.bf16.msra.mxu0 %v3645
      %3711 = vmatprep.subr.bf16.mxu0 %v3648
      %3712 = vmatpush1.bf16.msra.mxu0 %v3647
      %3713 = vmatprep.subr.bf16.mxu0 %v3650
      %3714 = vmatpush1.bf16.msra.mxu0 %v3649
      %3715 = vmatprep.subr.bf16.mxu0 %v3652
      %3716 = vmatpush1.bf16.msra.mxu0 %v3651
      %3717 = vmatprep.subr.bf16.mxu0 %v3654
      %3718 = vmatpush1.bf16.msra.mxu0 %v3653
      %3719 = vmatprep.subr.bf16.mxu0 %v3656
      %3720 = vmatpush1.bf16.msra.mxu0 %v3655
      %3721 = vmatprep.subr.bf16.mxu0 %v3658
      %3722 = vmatpush1.bf16.msra.mxu0 %v3657
      %3723 = vmatprep.subr.bf16.mxu0 %v3660
      %3724 = vmatpush1.bf16.msra.mxu0 %v3659
      %3725 = vmatprep.subr.bf16.mxu0 %v3662
      %3726 = vmatpush1.bf16.msra.mxu0 %v3661
      %3727 = vmatprep.subr.bf16.mxu0 %v3664
      %3728 = vmatpush1.bf16.msra.mxu0 %v3663
      %3729 = vmatprep.subr.bf16.mxu0 %v3666
      %3730 = vmatpush1.bf16.msra.mxu0 %v3665
      %3731 = vmatprep.mubr.bf16.mxu0 %v3500
      %3732 = vmatmul.mubr.bf16.gmra.mrb[0].mxu0 %v3499
      %v3733 = vpop.f32.mrb[0].mxu0
      %v3734 = vadd.f32 0.0, %v3733
      %v3735 = vpop.f32.mrb[0].mxu0
      %v3736 = vadd.f32 0.0, %v3735
      %v3737 = vpop.f32.mrb[0].mxu0
      %v3738 = vadd.f32 0.0, %v3737
      %v3739 = vpop.f32.mrb[0].mxu0
      %v3740 = vadd.f32 0.0, %v3739
      %3741 = vmatprep.mubr.bf16.mxu0 %v3502
      %3742 = vmatmul.mubr.bf16.gmra.mrb[0].mxu0 %v3501
      %v3743 = vpop.f32.mrb[0].mxu0
      %v3744 = vadd.f32 0.0, %v3743
      %v3745 = vpop.f32.mrb[0].mxu0
      %v3746 = vadd.f32 0.0, %v3745
      %v3747 = vpop.f32.mrb[0].mxu0
      %v3748 = vadd.f32 0.0, %v3747
      %v3749 = vpop.f32.mrb[0].mxu0
      %v3750 = vadd.f32 0.0, %v3749
      %3751 = vmatprep.mubr.bf16.mxu0 %v3504
      %3752 = vmatmul.mubr.bf16.gmra.mrb[0].mxu0 %v3503
      %v3753 = vpop.f32.mrb[0].mxu0
      %v3754 = vadd.f32 0.0, %v3753
      %v3755 = vpop.f32.mrb[0].mxu0
      %v3756 = vadd.f32 0.0, %v3755
      %v3757 = vpop.f32.mrb[0].mxu0
      %v3758 = vadd.f32 0.0, %v3757
      %v3759 = vpop.f32.mrb[0].mxu0
      %v3760 = vadd.f32 0.0, %v3759
      %3761 = vmatprep.mubr.bf16.mxu0 %v3506
      %3762 = vmatmul.mubr.bf16.gmra.mrb[0].mxu0 %v3505
      %v3763 = vpop.f32.mrb[0].mxu0
      %v3764 = vadd.f32 0.0, %v3763
      %v3765 = vpop.f32.mrb[0].mxu0
      %v3766 = vadd.f32 0.0, %v3765
      %v3767 = vpop.f32.mrb[0].mxu0
      %v3768 = vadd.f32 0.0, %v3767
      %v3769 = vpop.f32.mrb[0].mxu0
      %v3770 = vadd.f32 0.0, %v3769
      %3771 = vdwg.mxu0
      %v3772 = vadd.f32 %v3467, %v3734
      %v3773 = vadd.f32 %v3468, %v3736
      %v3774 = vadd.f32 %v3469, %v3738
      %v3775 = vadd.f32 %v3470, %v3740
      %v3776 = vadd.f32 %v3471, %v3744
      %v3777 = vadd.f32 %v3472, %v3746
      %v3778 = vadd.f32 %v3473, %v3748
      %v3779 = vadd.f32 %v3474, %v3750
      %v3780 = vadd.f32 %v3475, %v3754
      %v3781 = vadd.f32 %v3476, %v3756
      %v3782 = vadd.f32 %v3477, %v3758
      %v3783 = vadd.f32 %v3478, %v3760
      %v3784 = vadd.f32 %v3479, %v3764
      %v3785 = vadd.f32 %v3480, %v3766
      %v3786 = vadd.f32 %v3481, %v3768
      %v3787 = vadd.f32 %v3482, %v3770
      %v3788 = vld [vmem:[#allocation3] sm:$0xfe]
      %v3789 = vld [vmem:[#allocation3 + $0x8] sm:$0xfe]
      %v3790 = vld [vmem:[#allocation3 + $0x10] sm:$0x1]
      %v3791 = vld [vmem:[#allocation3 + $0x18] sm:$0x1]
      %v3792 = vld [vmem:[#allocation3 + $0x20] sm:$0xfe]
      %v3793 = vld [vmem:[#allocation3 + $0x28] sm:$0xfe]
      %v3794 = vld [vmem:[#allocation3 + $0x30] sm:$0x1]
      %v3795 = vld [vmem:[#allocation3 + $0x38] sm:$0x1]
      %v3796 = vld [vmem:[#allocation3 + $0x40] sm:$0xfe]
      %v3797 = vld [vmem:[#allocation3 + $0x48] sm:$0xfe]
      %v3798 = vld [vmem:[#allocation3 + $0x50] sm:$0x1]
      %v3799 = vld [vmem:[#allocation3 + $0x58] sm:$0x1]
      %v3800 = vld [vmem:[#allocation3 + $0x60] sm:$0xfe]
      %v3801 = vld [vmem:[#allocation3 + $0x68] sm:$0xfe]
      %v3802 = vld [vmem:[#allocation3 + $0x70] sm:$0x1]
      %v3803 = vld [vmem:[#allocation3 + $0x78] sm:$0x1]
      %v3804 = vld [vmem:[#allocation3 + $0x80] sm:$0xfe]
      %v3805 = vld [vmem:[#allocation3 + $0x88] sm:$0xfe]
      %v3806 = vld [vmem:[#allocation3 + $0x90] sm:$0x1]
      %v3807 = vld [vmem:[#allocation3 + $0x98] sm:$0x1]
      %v3808 = vld [vmem:[#allocation3 + $0xa0] sm:$0xfe]
      %v3809 = vld [vmem:[#allocation3 + $0xa8] sm:$0xfe]
      %v3810 = vld [vmem:[#allocation3 + $0xb0] sm:$0x1]
      %v3811 = vld [vmem:[#allocation3 + $0xb8] sm:$0x1]
      %v3812 = vld [vmem:[#allocation3 + $0xc0] sm:$0xfe]
      %v3813 = vld [vmem:[#allocation3 + $0xc8] sm:$0xfe]
      %v3814 = vld [vmem:[#allocation3 + $0xd0] sm:$0x1]
      %v3815 = vld [vmem:[#allocation3 + $0xd8] sm:$0x1]
      %v3816 = vld [vmem:[#allocation3 + $0xe0] sm:$0xfe]
      %v3817 = vld [vmem:[#allocation3 + $0xe8] sm:$0xfe]
      %v3818 = vld [vmem:[#allocation3 + $0xf0] sm:$0x1]
      %v3819 = vld [vmem:[#allocation3 + $0xf8] sm:$0x1]
      %vm3852 = vcmask 1046528
      %v3853 = vrot.slane %v3788, 1
      %v3854 = vrot.slane %v3790, 1
      %v3855 = vsel %vm3852, %v3853, %v3854
      %v3856 = vrot.slane %v3789, 1
      %v3857 = vrot.slane %v3791, 1
      %v3858 = vsel %vm3852, %v3856, %v3857
      %v3859 = vrot.slane %v3792, 1
      %v3860 = vrot.slane %v3794, 1
      %v3861 = vsel %vm3852, %v3859, %v3860
      %v3862 = vrot.slane %v3793, 1
      %v3863 = vrot.slane %v3795, 1
      %v3864 = vsel %vm3852, %v3862, %v3863
      %v3865 = vrot.slane %v3796, 1
      %v3866 = vrot.slane %v3798, 1
      %v3867 = vsel %vm3852, %v3865, %v3866
      %v3868 = vrot.slane %v3797, 1
      %v3869 = vrot.slane %v3799, 1
      %v3870 = vsel %vm3852, %v3868, %v3869
      %v3871 = vrot.slane %v3800, 1
      %v3872 = vrot.slane %v3802, 1
      %v3873 = vsel %vm3852, %v3871, %v3872
      %v3874 = vrot.slane %v3801, 1
      %v3875 = vrot.slane %v3803, 1
      %v3876 = vsel %vm3852, %v3874, %v3875
      %v3877 = vrot.slane %v3804, 1
      %v3878 = vrot.slane %v3806, 1
      %v3879 = vsel %vm3852, %v3877, %v3878
      %v3880 = vrot.slane %v3805, 1
      %v3881 = vrot.slane %v3807, 1
      %v3882 = vsel %vm3852, %v3880, %v3881
      %v3883 = vrot.slane %v3808, 1
      %v3884 = vrot.slane %v3810, 1
      %v3885 = vsel %vm3852, %v3883, %v3884
      %v3886 = vrot.slane %v3809, 1
      %v3887 = vrot.slane %v3811, 1
      %v3888 = vsel %vm3852, %v3886, %v3887
      %v3889 = vrot.slane %v3812, 1
      %v3890 = vrot.slane %v3814, 1
      %v3891 = vsel %vm3852, %v3889, %v3890
      %v3892 = vrot.slane %v3813, 1
      %v3893 = vrot.slane %v3815, 1
      %v3894 = vsel %vm3852, %v3892, %v3893
      %v3895 = vrot.slane %v3816, 1
      %v3896 = vrot.slane %v3818, 1
      %v3897 = vsel %vm3852, %v3895, %v3896
      %v3898 = vrot.slane %v3817, 1
      %v3899 = vrot.slane %v3819, 1
      %v3900 = vsel %vm3852, %v3898, %v3899
      %v3917 = vpack.c.bf16 %v3861, %v3855
      %v3918 = vpack.c.bf16 %v3864, %v3858
      %v3919 = vpack.c.bf16 %v3873, %v3867
      %v3920 = vpack.c.bf16 %v3876, %v3870
      %v3921 = vpack.c.bf16 %v3885, %v3879
      %v3922 = vpack.c.bf16 %v3888, %v3882
      %v3923 = vpack.c.bf16 %v3897, %v3891
      %v3924 = vpack.c.bf16 %v3900, %v3894
      %s3925 = scalar_lea.vmem %s10, 256
      %v3926 = vld [vmem:[%s3925] sm:$0xff]
      %v3927 = vld [vmem:[%s3925 + $0x8] sm:$0xff]
      %v3928 = vld [vmem:[%s3925 + $0x10] sm:$0xff]
      %v3929 = vld [vmem:[%s3925 + $0x18] sm:$0xff]
      %v3930 = vld [vmem:[%s3925 + $0x20] sm:$0xff]
      %v3931 = vld [vmem:[%s3925 + $0x28] sm:$0xff]
      %v3932 = vld [vmem:[%s3925 + $0x30] sm:$0xff]
      %v3933 = vld [vmem:[%s3925 + $0x38] sm:$0xff]
      %v3934 = vld [vmem:[%s3925 + $0x40] sm:$0xff]
      %v3935 = vld [vmem:[%s3925 + $0x48] sm:$0xff]
      %v3936 = vld [vmem:[%s3925 + $0x50] sm:$0xff]
      %v3937 = vld [vmem:[%s3925 + $0x58] sm:$0xff]
      %v3938 = vld [vmem:[%s3925 + $0x60] sm:$0xff]
      %v3939 = vld [vmem:[%s3925 + $0x68] sm:$0xff]
      %v3940 = vld [vmem:[%s3925 + $0x70] sm:$0xff]
      %v3941 = vld [vmem:[%s3925 + $0x78] sm:$0xff]
      %v3942 = vld [vmem:[%s3925 + $0x80] sm:$0xff]
      %v3943 = vld [vmem:[%s3925 + $0x88] sm:$0xff]
      %v3944 = vld [vmem:[%s3925 + $0x90] sm:$0xff]
      %v3945 = vld [vmem:[%s3925 + $0x98] sm:$0xff]
      %v3946 = vld [vmem:[%s3925 + $0xa0] sm:$0xff]
      %v3947 = vld [vmem:[%s3925 + $0xa8] sm:$0xff]
      %v3948 = vld [vmem:[%s3925 + $0xb0] sm:$0xff]
      %v3949 = vld [vmem:[%s3925 + $0xb8] sm:$0xff]
      %v3950 = vld [vmem:[%s3925 + $0xc0] sm:$0xff]
      %v3951 = vld [vmem:[%s3925 + $0xc8] sm:$0xff]
      %v3952 = vld [vmem:[%s3925 + $0xd0] sm:$0xff]
      %v3953 = vld [vmem:[%s3925 + $0xd8] sm:$0xff]
      %v3954 = vld [vmem:[%s3925 + $0xe0] sm:$0xff]
      %v3955 = vld [vmem:[%s3925 + $0xe8] sm:$0xff]
      %v3956 = vld [vmem:[%s3925 + $0xf0] sm:$0xff]
      %v3957 = vld [vmem:[%s3925 + $0xf8] sm:$0xff]
      %v3990 = vunpack.c.l.b16 %v3926
      %v3991 = vunpack.c.h.b16 %v3926
      %v3992 = vunpack.c.l.b16 %v3927
      %v3993 = vunpack.c.h.b16 %v3927
      %v3994 = vunpack.c.l.b16 %v3928
      %v3995 = vunpack.c.h.b16 %v3928
      %v3996 = vunpack.c.l.b16 %v3929
      %v3997 = vunpack.c.h.b16 %v3929
      %v3998 = vunpack.c.l.b16 %v3930
      %v3999 = vunpack.c.h.b16 %v3930
      %v4000 = vunpack.c.l.b16 %v3931
      %v4001 = vunpack.c.h.b16 %v3931
      %v4002 = vunpack.c.l.b16 %v3932
      %v4003 = vunpack.c.h.b16 %v3932
      %v4004 = vunpack.c.l.b16 %v3933
      %v4005 = vunpack.c.h.b16 %v3933
      %v4006 = vunpack.c.l.b16 %v3934
      %v4007 = vunpack.c.h.b16 %v3934
      %v4008 = vunpack.c.l.b16 %v3935
      %v4009 = vunpack.c.h.b16 %v3935
      %v4010 = vunpack.c.l.b16 %v3936
      %v4011 = vunpack.c.h.b16 %v3936
      %v4012 = vunpack.c.l.b16 %v3937
      %v4013 = vunpack.c.h.b16 %v3937
      %v4014 = vunpack.c.l.b16 %v3938
      %v4015 = vunpack.c.h.b16 %v3938
      %v4016 = vunpack.c.l.b16 %v3939
      %v4017 = vunpack.c.h.b16 %v3939
      %v4018 = vunpack.c.l.b16 %v3940
      %v4019 = vunpack.c.h.b16 %v3940
      %v4020 = vunpack.c.l.b16 %v3941
      %v4021 = vunpack.c.h.b16 %v3941
      %v4022 = vunpack.c.l.b16 %v3942
      %v4023 = vunpack.c.h.b16 %v3942
      %v4024 = vunpack.c.l.b16 %v3943
      %v4025 = vunpack.c.h.b16 %v3943
      %v4026 = vunpack.c.l.b16 %v3944
      %v4027 = vunpack.c.h.b16 %v3944
      %v4028 = vunpack.c.l.b16 %v3945
      %v4029 = vunpack.c.h.b16 %v3945
      %v4030 = vunpack.c.l.b16 %v3946
      %v4031 = vunpack.c.h.b16 %v3946
      %v4032 = vunpack.c.l.b16 %v3947
      %v4033 = vunpack.c.h.b16 %v3947
      %v4034 = vunpack.c.l.b16 %v3948
      %v4035 = vunpack.c.h.b16 %v3948
      %v4036 = vunpack.c.l.b16 %v3949
      %v4037 = vunpack.c.h.b16 %v3949
      %v4038 = vunpack.c.l.b16 %v3950
      %v4039 = vunpack.c.h.b16 %v3950
      %v4040 = vunpack.c.l.b16 %v3951
      %v4041 = vunpack.c.h.b16 %v3951
      %v4042 = vunpack.c.l.b16 %v3952
      %v4043 = vunpack.c.h.b16 %v3952
      %v4044 = vunpack.c.l.b16 %v3953
      %v4045 = vunpack.c.h.b16 %v3953
      %v4046 = vunpack.c.l.b16 %v3954
      %v4047 = vunpack.c.h.b16 %v3954
      %v4048 = vunpack.c.l.b16 %v3955
      %v4049 = vunpack.c.h.b16 %v3955
      %v4050 = vunpack.c.l.b16 %v3956
      %v4051 = vunpack.c.h.b16 %v3956
      %v4052 = vunpack.c.l.b16 %v3957
      %v4053 = vunpack.c.h.b16 %v3957
      %v4054 = vpack.c.b16 %v3992, %v3990
      %v4055 = vpack.c.b16 %v3993, %v3991
      %v4056 = vpack.c.b16 %v3996, %v3994
      %v4057 = vpack.c.b16 %v3997, %v3995
      %v4058 = vpack.c.b16 %v4000, %v3998
      %v4059 = vpack.c.b16 %v4001, %v3999
      %v4060 = vpack.c.b16 %v4004, %v4002
      %v4061 = vpack.c.b16 %v4005, %v4003
      %v4062 = vpack.c.b16 %v4008, %v4006
      %v4063 = vpack.c.b16 %v4009, %v4007
      %v4064 = vpack.c.b16 %v4012, %v4010
      %v4065 = vpack.c.b16 %v4013, %v4011
      %v4066 = vpack.c.b16 %v4016, %v4014
      %v4067 = vpack.c.b16 %v4017, %v4015
      %v4068 = vpack.c.b16 %v4020, %v4018
      %v4069 = vpack.c.b16 %v4021, %v4019
      %v4070 = vpack.c.b16 %v4024, %v4022
      %v4071 = vpack.c.b16 %v4025, %v4023
      %v4072 = vpack.c.b16 %v4028, %v4026
      %v4073 = vpack.c.b16 %v4029, %v4027
      %v4074 = vpack.c.b16 %v4032, %v4030
      %v4075 = vpack.c.b16 %v4033, %v4031
      %v4076 = vpack.c.b16 %v4036, %v4034
      %v4077 = vpack.c.b16 %v4037, %v4035
      %v4078 = vpack.c.b16 %v4040, %v4038
      %v4079 = vpack.c.b16 %v4041, %v4039
      %v4080 = vpack.c.b16 %v4044, %v4042
      %v4081 = vpack.c.b16 %v4045, %v4043
      %v4082 = vpack.c.b16 %v4048, %v4046
      %v4083 = vpack.c.b16 %v4049, %v4047
      %v4084 = vpack.c.b16 %v4052, %v4050
      %v4085 = vpack.c.b16 %v4053, %v4051
      %4118 = vmatprep.subr.bf16.mxu0 %v4055
      %4119 = vmatpush1.bf16.msra.mxu0 %v4054
      %4120 = vmatprep.subr.bf16.mxu0 %v4057
      %4121 = vmatpush1.bf16.msra.mxu0 %v4056
      %4122 = vmatprep.subr.bf16.mxu0 %v4059
      %4123 = vmatpush1.bf16.msra.mxu0 %v4058
      %4124 = vmatprep.subr.bf16.mxu0 %v4061
      %4125 = vmatpush1.bf16.msra.mxu0 %v4060
      %4126 = vmatprep.subr.bf16.mxu0 %v4063
      %4127 = vmatpush1.bf16.msra.mxu0 %v4062
      %4128 = vmatprep.subr.bf16.mxu0 %v4065
      %4129 = vmatpush1.bf16.msra.mxu0 %v4064
      %4130 = vmatprep.subr.bf16.mxu0 %v4067
      %4131 = vmatpush1.bf16.msra.mxu0 %v4066
      %4132 = vmatprep.subr.bf16.mxu0 %v4069
      %4133 = vmatpush1.bf16.msra.mxu0 %v4068
      %4134 = vmatprep.subr.bf16.mxu0 %v4071
      %4135 = vmatpush1.bf16.msra.mxu0 %v4070
      %4136 = vmatprep.subr.bf16.mxu0 %v4073
      %4137 = vmatpush1.bf16.msra.mxu0 %v4072
      %4138 = vmatprep.subr.bf16.mxu0 %v4075
      %4139 = vmatpush1.bf16.msra.mxu0 %v4074
      %4140 = vmatprep.subr.bf16.mxu0 %v4077
      %4141 = vmatpush1.bf16.msra.mxu0 %v4076
      %4142 = vmatprep.subr.bf16.mxu0 %v4079
      %4143 = vmatpush1.bf16.msra.mxu0 %v4078
      %4144 = vmatprep.subr.bf16.mxu0 %v4081
      %4145 = vmatpush1.bf16.msra.mxu0 %v4080
      %4146 = vmatprep.subr.bf16.mxu0 %v4083
      %4147 = vmatpush1.bf16.msra.mxu0 %v4082
      %4148 = vmatprep.subr.bf16.mxu0 %v4085
      %4149 = vmatpush1.bf16.msra.mxu0 %v4084
      %4150 = vmatprep.mubr.bf16.mxu0 %v3918
      %4151 = vmatmul.mubr.bf16.gmra.mrb[0].mxu0 %v3917
      %v4152 = vpop.f32.mrb[0].mxu0
      %v4153 = vadd.f32 0.0, %v4152
      %v4154 = vpop.f32.mrb[0].mxu0
      %v4155 = vadd.f32 0.0, %v4154
      %v4156 = vpop.f32.mrb[0].mxu0
      %v4157 = vadd.f32 0.0, %v4156
      %v4158 = vpop.f32.mrb[0].mxu0
      %v4159 = vadd.f32 0.0, %v4158
      %4160 = vmatprep.mubr.bf16.mxu0 %v3920
      %4161 = vmatmul.mubr.bf16.gmra.mrb[0].mxu0 %v3919
      %v4162 = vpop.f32.mrb[0].mxu0
      %v4163 = vadd.f32 0.0, %v4162
      %v4164 = vpop.f32.mrb[0].mxu0
      %v4165 = vadd.f32 0.0, %v4164
      %v4166 = vpop.f32.mrb[0].mxu0
      %v4167 = vadd.f32 0.0, %v4166
      %v4168 = vpop.f32.mrb[0].mxu0
      %v4169 = vadd.f32 0.0, %v4168
      %4170 = vmatprep.mubr.bf16.mxu0 %v3922
      %4171 = vmatmul.mubr.bf16.gmra.mrb[0].mxu0 %v3921
      %v4172 = vpop.f32.mrb[0].mxu0
      %v4173 = vadd.f32 0.0, %v4172
      %v4174 = vpop.f32.mrb[0].mxu0
      %v4175 = vadd.f32 0.0, %v4174
      %v4176 = vpop.f32.mrb[0].mxu0
      %v4177 = vadd.f32 0.0, %v4176
      %v4178 = vpop.f32.mrb[0].mxu0
      %v4179 = vadd.f32 0.0, %v4178
      %4180 = vmatprep.mubr.bf16.mxu0 %v3924
      %4181 = vmatmul.mubr.bf16.gmra.mrb[0].mxu0 %v3923
      %v4182 = vpop.f32.mrb[0].mxu0
      %v4183 = vadd.f32 0.0, %v4182
      %v4184 = vpop.f32.mrb[0].mxu0
      %v4185 = vadd.f32 0.0, %v4184
      %v4186 = vpop.f32.mrb[0].mxu0
      %v4187 = vadd.f32 0.0, %v4186
      %v4188 = vpop.f32.mrb[0].mxu0
      %v4189 = vadd.f32 0.0, %v4188
      %4190 = vdwg.mxu0
      %v4191 = vadd.f32 %v3772, %v4153
      %v4192 = vadd.f32 %v3773, %v4155
      %v4193 = vadd.f32 %v3774, %v4157
      %v4194 = vadd.f32 %v3775, %v4159
      %v4195 = vadd.f32 %v3776, %v4163
      %v4196 = vadd.f32 %v3777, %v4165
      %v4197 = vadd.f32 %v3778, %v4167
      %v4198 = vadd.f32 %v3779, %v4169
      %v4199 = vadd.f32 %v3780, %v4173
      %v4200 = vadd.f32 %v3781, %v4175
      %v4201 = vadd.f32 %v3782, %v4177
      %v4202 = vadd.f32 %v3783, %v4179
      %v4203 = vadd.f32 %v3784, %v4183
      %v4204 = vadd.f32 %v3785, %v4185
      %v4205 = vadd.f32 %v3786, %v4187
      %v4206 = vadd.f32 %v3787, %v4189
      %v4207 = vld [vmem:[#allocation3] sm:$0xfc]
      %v4208 = vld [vmem:[#allocation3 + $0x8] sm:$0xfc]
      %v4209 = vld [vmem:[#allocation3 + $0x10] sm:$0x3]
      %v4210 = vld [vmem:[#allocation3 + $0x18] sm:$0x3]
      %v4211 = vld [vmem:[#allocation3 + $0x20] sm:$0xfc]
      %v4212 = vld [vmem:[#allocation3 + $0x28] sm:$0xfc]
      %v4213 = vld [vmem:[#allocation3 + $0x30] sm:$0x3]
      %v4214 = vld [vmem:[#allocation3 + $0x38] sm:$0x3]
      %v4215 = vld [vmem:[#allocation3 + $0x40] sm:$0xfc]
      %v4216 = vld [vmem:[#allocation3 + $0x48] sm:$0xfc]
      %v4217 = vld [vmem:[#allocation3 + $0x50] sm:$0x3]
      %v4218 = vld [vmem:[#allocation3 + $0x58] sm:$0x3]
      %v4219 = vld [vmem:[#allocation3 + $0x60] sm:$0xfc]
      %v4220 = vld [vmem:[#allocation3 + $0x68] sm:$0xfc]
      %v4221 = vld [vmem:[#allocation3 + $0x70] sm:$0x3]
      %v4222 = vld [vmem:[#allocation3 + $0x78] sm:$0x3]
      %v4223 = vld [vmem:[#allocation3 + $0x80] sm:$0xfc]
      %v4224 = vld [vmem:[#allocation3 + $0x88] sm:$0xfc]
      %v4225 = vld [vmem:[#allocation3 + $0x90] sm:$0x3]
      %v4226 = vld [vmem:[#allocation3 + $0x98] sm:$0x3]
      %v4227 = vld [vmem:[#allocation3 + $0xa0] sm:$0xfc]
      %v4228 = vld [vmem:[#allocation3 + $0xa8] sm:$0xfc]
      %v4229 = vld [vmem:[#allocation3 + $0xb0] sm:$0x3]
      %v4230 = vld [vmem:[#allocation3 + $0xb8] sm:$0x3]
      %v4231 = vld [vmem:[#allocation3 + $0xc0] sm:$0xfc]
      %v4232 = vld [vmem:[#allocation3 + $0xc8] sm:$0xfc]
      %v4233 = vld [vmem:[#allocation3 + $0xd0] sm:$0x3]
      %v4234 = vld [vmem:[#allocation3 + $0xd8] sm:$0x3]
      %v4235 = vld [vmem:[#allocation3 + $0xe0] sm:$0xfc]
      %v4236 = vld [vmem:[#allocation3 + $0xe8] sm:$0xfc]
      %v4237 = vld [vmem:[#allocation3 + $0xf0] sm:$0x3]
      %v4238 = vld [vmem:[#allocation3 + $0xf8] sm:$0x3]
      %vm4271 = vcmask 1045504
      %v4272 = vrot.slane %v4207, 2
      %v4273 = vrot.slane %v4209, 2
      %v4274 = vsel %vm4271, %v4272, %v4273
      %v4275 = vrot.slane %v4208, 2
      %v4276 = vrot.slane %v4210, 2
      %v4277 = vsel %vm4271, %v4275, %v4276
      %v4278 = vrot.slane %v4211, 2
      %v4279 = vrot.slane %v4213, 2
      %v4280 = vsel %vm4271, %v4278, %v4279
      %v4281 = vrot.slane %v4212, 2
      %v4282 = vrot.slane %v4214, 2
      %v4283 = vsel %vm4271, %v4281, %v4282
      %v4284 = vrot.slane %v4215, 2
      %v4285 = vrot.slane %v4217, 2
      %v4286 = vsel %vm4271, %v4284, %v4285
      %v4287 = vrot.slane %v4216, 2
      %v4288 = vrot.slane %v4218, 2
      %v4289 = vsel %vm4271, %v4287, %v4288
      %v4290 = vrot.slane %v4219, 2
      %v4291 = vrot.slane %v4221, 2
      %v4292 = vsel %vm4271, %v4290, %v4291
      %v4293 = vrot.slane %v4220, 2
      %v4294 = vrot.slane %v4222, 2
      %v4295 = vsel %vm4271, %v4293, %v4294
      %v4296 = vrot.slane %v4223, 2
      %v4297 = vrot.slane %v4225, 2
      %v4298 = vsel %vm4271, %v4296, %v4297
      %v4299 = vrot.slane %v4224, 2
      %v4300 = vrot.slane %v4226, 2
      %v4301 = vsel %vm4271, %v4299, %v4300
      %v4302 = vrot.slane %v4227, 2
      %v4303 = vrot.slane %v4229, 2
      %v4304 = vsel %vm4271, %v4302, %v4303
      %v4305 = vrot.slane %v4228, 2
      %v4306 = vrot.slane %v4230, 2
      %v4307 = vsel %vm4271, %v4305, %v4306
      %v4308 = vrot.slane %v4231, 2
      %v4309 = vrot.slane %v4233, 2
      %v4310 = vsel %vm4271, %v4308, %v4309
      %v4311 = vrot.slane %v4232, 2
      %v4312 = vrot.slane %v4234, 2
      %v4313 = vsel %vm4271, %v4311, %v4312
      %v4314 = vrot.slane %v4235, 2
      %v4315 = vrot.slane %v4237, 2
      %v4316 = vsel %vm4271, %v4314, %v4315
      %v4317 = vrot.slane %v4236, 2
      %v4318 = vrot.slane %v4238, 2
      %v4319 = vsel %vm4271, %v4317, %v4318
      %v4336 = vpack.c.bf16 %v4280, %v4274
      %v4337 = vpack.c.bf16 %v4283, %v4277
      %v4338 = vpack.c.bf16 %v4292, %v4286
      %v4339 = vpack.c.bf16 %v4295, %v4289
      %v4340 = vpack.c.bf16 %v4304, %v4298
      %v4341 = vpack.c.bf16 %v4307, %v4301
      %v4342 = vpack.c.bf16 %v4316, %v4310
      %v4343 = vpack.c.bf16 %v4319, %v4313
      %s4344 = scalar_lea.vmem %s10, 512
      %v4345 = vld [vmem:[%s4344] sm:$0xff]
      %v4346 = vld [vmem:[%s4344 + $0x8] sm:$0xff]
      %v4347 = vld [vmem:[%s4344 + $0x10] sm:$0xff]
      %v4348 = vld [vmem:[%s4344 + $0x18] sm:$0xff]
      %v4349 = vld [vmem:[%s4344 + $0x20] sm:$0xff]
      %v4350 = vld [vmem:[%s4344 + $0x28] sm:$0xff]
      %v4351 = vld [vmem:[%s4344 + $0x30] sm:$0xff]
      %v4352 = vld [vmem:[%s4344 + $0x38] sm:$0xff]
      %v4353 = vld [vmem:[%s4344 + $0x40] sm:$0xff]
      %v4354 = vld [vmem:[%s4344 + $0x48] sm:$0xff]
      %v4355 = vld [vmem:[%s4344 + $0x50] sm:$0xff]
      %v4356 = vld [vmem:[%s4344 + $0x58] sm:$0xff]
      %v4357 = vld [vmem:[%s4344 + $0x60] sm:$0xff]
      %v4358 = vld [vmem:[%s4344 + $0x68] sm:$0xff]
      %v4359 = vld [vmem:[%s4344 + $0x70] sm:$0xff]
      %v4360 = vld [vmem:[%s4344 + $0x78] sm:$0xff]
      %v4361 = vld [vmem:[%s4344 + $0x80] sm:$0xff]
      %v4362 = vld [vmem:[%s4344 + $0x88] sm:$0xff]
      %v4363 = vld [vmem:[%s4344 + $0x90] sm:$0xff]
      %v4364 = vld [vmem:[%s4344 + $0x98] sm:$0xff]
      %v4365 = vld [vmem:[%s4344 + $0xa0] sm:$0xff]
      %v4366 = vld [vmem:[%s4344 + $0xa8] sm:$0xff]
      %v4367 = vld [vmem:[%s4344 + $0xb0] sm:$0xff]
      %v4368 = vld [vmem:[%s4344 + $0xb8] sm:$0xff]
      %v4369 = vld [vmem:[%s4344 + $0xc0] sm:$0xff]
      %v4370 = vld [vmem:[%s4344 + $0xc8] sm:$0xff]
      %v4371 = vld [vmem:[%s4344 + $0xd0] sm:$0xff]
      %v4372 = vld [vmem:[%s4344 + $0xd8] sm:$0xff]
      %v4373 = vld [vmem:[%s4344 + $0xe0] sm:$0xff]
      %v4374 = vld [vmem:[%s4344 + $0xe8] sm:$0xff]
      %v4375 = vld [vmem:[%s4344 + $0xf0] sm:$0xff]
      %v4376 = vld [vmem:[%s4344 + $0xf8] sm:$0xff]
      %v4409 = vunpack.c.l.b16 %v4345
      %v4410 = vunpack.c.h.b16 %v4345
      %v4411 = vunpack.c.l.b16 %v4346
      %v4412 = vunpack.c.h.b16 %v4346
      %v4413 = vunpack.c.l.b16 %v4347
      %v4414 = vunpack.c.h.b16 %v4347
      %v4415 = vunpack.c.l.b16 %v4348
      %v4416 = vunpack.c.h.b16 %v4348
      %v4417 = vunpack.c.l.b16 %v4349
      %v4418 = vunpack.c.h.b16 %v4349
      %v4419 = vunpack.c.l.b16 %v4350
      %v4420 = vunpack.c.h.b16 %v4350
      %v4421 = vunpack.c.l.b16 %v4351
      %v4422 = vunpack.c.h.b16 %v4351
      %v4423 = vunpack.c.l.b16 %v4352
      %v4424 = vunpack.c.h.b16 %v4352
      %v4425 = vunpack.c.l.b16 %v4353
      %v4426 = vunpack.c.h.b16 %v4353
      %v4427 = vunpack.c.l.b16 %v4354
      %v4428 = vunpack.c.h.b16 %v4354
      %v4429 = vunpack.c.l.b16 %v4355
      %v4430 = vunpack.c.h.b16 %v4355
      %v4431 = vunpack.c.l.b16 %v4356
      %v4432 = vunpack.c.h.b16 %v4356
      %v4433 = vunpack.c.l.b16 %v4357
      %v4434 = vunpack.c.h.b16 %v4357
      %v4435 = vunpack.c.l.b16 %v4358
      %v4436 = vunpack.c.h.b16 %v4358
      %v4437 = vunpack.c.l.b16 %v4359
      %v4438 = vunpack.c.h.b16 %v4359
      %v4439 = vunpack.c.l.b16 %v4360
      %v4440 = vunpack.c.h.b16 %v4360
      %v4441 = vunpack.c.l.b16 %v4361
      %v4442 = vunpack.c.h.b16 %v4361
      %v4443 = vunpack.c.l.b16 %v4362
      %v4444 = vunpack.c.h.b16 %v4362
      %v4445 = vunpack.c.l.b16 %v4363
      %v4446 = vunpack.c.h.b16 %v4363
      %v4447 = vunpack.c.l.b16 %v4364
      %v4448 = vunpack.c.h.b16 %v4364
      %v4449 = vunpack.c.l.b16 %v4365
      %v4450 = vunpack.c.h.b16 %v4365
      %v4451 = vunpack.c.l.b16 %v4366
      %v4452 = vunpack.c.h.b16 %v4366
      %v4453 = vunpack.c.l.b16 %v4367
      %v4454 = vunpack.c.h.b16 %v4367
      %v4455 = vunpack.c.l.b16 %v4368
      %v4456 = vunpack.c.h.b16 %v4368
      %v4457 = vunpack.c.l.b16 %v4369
      %v4458 = vunpack.c.h.b16 %v4369
      %v4459 = vunpack.c.l.b16 %v4370
      %v4460 = vunpack.c.h.b16 %v4370
      %v4461 = vunpack.c.l.b16 %v4371
      %v4462 = vunpack.c.h.b16 %v4371
      %v4463 = vunpack.c.l.b16 %v4372
      %v4464 = vunpack.c.h.b16 %v4372
      %v4465 = vunpack.c.l.b16 %v4373
      %v4466 = vunpack.c.h.b16 %v4373
      %v4467 = vunpack.c.l.b16 %v4374
      %v4468 = vunpack.c.h.b16 %v4374
      %v4469 = vunpack.c.l.b16 %v4375
      %v4470 = vunpack.c.h.b16 %v4375
      %v4471 = vunpack.c.l.b16 %v4376
      %v4472 = vunpack.c.h.b16 %v4376
      %v4473 = vpack.c.b16 %v4411, %v4409
      %v4474 = vpack.c.b16 %v4412, %v4410
      %v4475 = vpack.c.b16 %v4415, %v4413
      %v4476 = vpack.c.b16 %v4416, %v4414
      %v4477 = vpack.c.b16 %v4419, %v4417
      %v4478 = vpack.c.b16 %v4420, %v4418
      %v4479 = vpack.c.b16 %v4423, %v4421
      %v4480 = vpack.c.b16 %v4424, %v4422
      %v4481 = vpack.c.b16 %v4427, %v4425
      %v4482 = vpack.c.b16 %v4428, %v4426
      %v4483 = vpack.c.b16 %v4431, %v4429
      %v4484 = vpack.c.b16 %v4432, %v4430
      %v4485 = vpack.c.b16 %v4435, %v4433
      %v4486 = vpack.c.b16 %v4436, %v4434
      %v4487 = vpack.c.b16 %v4439, %v4437
      %v4488 = vpack.c.b16 %v4440, %v4438
      %v4489 = vpack.c.b16 %v4443, %v4441
      %v4490 = vpack.c.b16 %v4444, %v4442
      %v4491 = vpack.c.b16 %v4447, %v4445
      %v4492 = vpack.c.b16 %v4448, %v4446
      %v4493 = vpack.c.b16 %v4451, %v4449
      %v4494 = vpack.c.b16 %v4452, %v4450
      %v4495 = vpack.c.b16 %v4455, %v4453
      %v4496 = vpack.c.b16 %v4456, %v4454
      %v4497 = vpack.c.b16 %v4459, %v4457
      %v4498 = vpack.c.b16 %v4460, %v4458
      %v4499 = vpack.c.b16 %v4463, %v4461
      %v4500 = vpack.c.b16 %v4464, %v4462
      %v4501 = vpack.c.b16 %v4467, %v4465
      %v4502 = vpack.c.b16 %v4468, %v4466
      %v4503 = vpack.c.b16 %v4471, %v4469
      %v4504 = vpack.c.b16 %v4472, %v4470
      %4537 = vmatprep.subr.bf16.mxu0 %v4474
      %4538 = vmatpush1.bf16.msra.mxu0 %v4473
      %4539 = vmatprep.subr.bf16.mxu0 %v4476
      %4540 = vmatpush1.bf16.msra.mxu0 %v4475
      %4541 = vmatprep.subr.bf16.mxu0 %v4478
      %4542 = vmatpush1.bf16.msra.mxu0 %v4477
      %4543 = vmatprep.subr.bf16.mxu0 %v4480
      %4544 = vmatpush1.bf16.msra.mxu0 %v4479
      %4545 = vmatprep.subr.bf16.mxu0 %v4482
      %4546 = vmatpush1.bf16.msra.mxu0 %v4481
      %4547 = vmatprep.subr.bf16.mxu0 %v4484
      %4548 = vmatpush1.bf16.msra.mxu0 %v4483
      %4549 = vmatprep.subr.bf16.mxu0 %v4486
      %4550 = vmatpush1.bf16.msra.mxu0 %v4485
      %4551 = vmatprep.subr.bf16.mxu0 %v4488
      %4552 = vmatpush1.bf16.msra.mxu0 %v4487
      %4553 = vmatprep.subr.bf16.mxu0 %v4490
      %4554 = vmatpush1.bf16.msra.mxu0 %v4489
      %4555 = vmatprep.subr.bf16.mxu0 %v4492
      %4556 = vmatpush1.bf16.msra.mxu0 %v4491
      %4557 = vmatprep.subr.bf16.mxu0 %v4494
      %4558 = vmatpush1.bf16.msra.mxu0 %v4493
      %4559 = vmatprep.subr.bf16.mxu0 %v4496
      %4560 = vmatpush1.bf16.msra.mxu0 %v4495
      %4561 = vmatprep.subr.bf16.mxu0 %v4498
      %4562 = vmatpush1.bf16.msra.mxu0 %v4497
      %4563 = vmatprep.subr.bf16.mxu0 %v4500
      %4564 = vmatpush1.bf16.msra.mxu0 %v4499
      %4565 = vmatprep.subr.bf16.mxu0 %v4502
      %4566 = vmatpush1.bf16.msra.mxu0 %v4501
      %4567 = vmatprep.subr.bf16.mxu0 %v4504
      %4568 = vmatpush1.bf16.msra.mxu0 %v4503
      %4569 = vmatprep.mubr.bf16.mxu0 %v4337
      %4570 = vmatmul.mubr.bf16.gmra.mrb[0].mxu0 %v4336
      %v4571 = vpop.f32.mrb[0].mxu0
      %v4572 = vadd.f32 0.0, %v4571
      %v4573 = vpop.f32.mrb[0].mxu0
      %v4574 = vadd.f32 0.0, %v4573
      %v4575 = vpop.f32.mrb[0].mxu0
      %v4576 = vadd.f32 0.0, %v4575
      %v4577 = vpop.f32.mrb[0].mxu0
      %v4578 = vadd.f32 0.0, %v4577
      %4579 = vmatprep.mubr.bf16.mxu0 %v4339
      %4580 = vmatmul.mubr.bf16.gmra.mrb[0].mxu0 %v4338
      %v4581 = vpop.f32.mrb[0].mxu0
      %v4582 = vadd.f32 0.0, %v4581
      %v4583 = vpop.f32.mrb[0].mxu0
      %v4584 = vadd.f32 0.0, %v4583
      %v4585 = vpop.f32.mrb[0].mxu0
      %v4586 = vadd.f32 0.0, %v4585
      %v4587 = vpop.f32.mrb[0].mxu0
      %v4588 = vadd.f32 0.0, %v4587
      %4589 = vmatprep.mubr.bf16.mxu0 %v4341
      %4590 = vmatmul.mubr.bf16.gmra.mrb[0].mxu0 %v4340
      %v4591 = vpop.f32.mrb[0].mxu0
      %v4592 = vadd.f32 0.0, %v4591
      %v4593 = vpop.f32.mrb[0].mxu0
      %v4594 = vadd.f32 0.0, %v4593
      %v4595 = vpop.f32.mrb[0].mxu0
      %v4596 = vadd.f32 0.0, %v4595
      %v4597 = vpop.f32.mrb[0].mxu0
      %v4598 = vadd.f32 0.0, %v4597
      %4599 = vmatprep.mubr.bf16.mxu0 %v4343
      %4600 = vmatmul.mubr.bf16.gmra.mrb[0].mxu0 %v4342
      %v4601 = vpop.f32.mrb[0].mxu0
      %v4602 = vadd.f32 0.0, %v4601
      %v4603 = vpop.f32.mrb[0].mxu0
      %v4604 = vadd.f32 0.0, %v4603
      %v4605 = vpop.f32.mrb[0].mxu0
      %v4606 = vadd.f32 0.0, %v4605
      %v4607 = vpop.f32.mrb[0].mxu0
      %v4608 = vadd.f32 0.0, %v4607
      %4609 = vdwg.mxu0
      %v4610 = vadd.f32 %v4191, %v4572
      %v4611 = vadd.f32 %v4192, %v4574
      %v4612 = vadd.f32 %v4193, %v4576
      %v4613 = vadd.f32 %v4194, %v4578
      %v4614 = vadd.f32 %v4195, %v4582
      %v4615 = vadd.f32 %v4196, %v4584
      %v4616 = vadd.f32 %v4197, %v4586
      %v4617 = vadd.f32 %v4198, %v4588
      %v4618 = vadd.f32 %v4199, %v4592
      %v4619 = vadd.f32 %v4200, %v4594
      %v4620 = vadd.f32 %v4201, %v4596
      %v4621 = vadd.f32 %v4202, %v4598
      %v4622 = vadd.f32 %v4203, %v4602
      %v4623 = vadd.f32 %v4204, %v4604
      %v4624 = vadd.f32 %v4205, %v4606
      %v4625 = vadd.f32 %v4206, %v4608
      %v4626 = vld [vmem:[%s3237] sm:$0xff]
      %v4627 = vld [vmem:[%s3237 + $0x8] sm:$0xff]
      %v4628 = vld [vmem:[%s3237 + $0x20] sm:$0xff]
      %v4629 = vld [vmem:[%s3237 + $0x28] sm:$0xff]
      %v4630 = vld [vmem:[%s3237 + $0x40] sm:$0xff]
      %v4631 = vld [vmem:[%s3237 + $0x48] sm:$0xff]
      %v4632 = vld [vmem:[%s3237 + $0x60] sm:$0xff]
      %v4633 = vld [vmem:[%s3237 + $0x68] sm:$0xff]
      %v4634 = vld [vmem:[%s3237 + $0x80] sm:$0xff]
      %v4635 = vld [vmem:[%s3237 + $0x88] sm:$0xff]
      %v4636 = vld [vmem:[%s3237 + $0xa0] sm:$0xff]
      %v4637 = vld [vmem:[%s3237 + $0xa8] sm:$0xff]
      %v4638 = vld [vmem:[%s3237 + $0xc0] sm:$0xff]
      %v4639 = vld [vmem:[%s3237 + $0xc8] sm:$0xff]
      %v4640 = vld [vmem:[%s3237 + $0xe0] sm:$0xff]
      %v4641 = vld [vmem:[%s3237 + $0xe8] sm:$0xff]
      %v4642 = vpack.c.bf16 %v4628, %v4626
      %v4643 = vpack.c.bf16 %v4629, %v4627
      %v4644 = vpack.c.bf16 %v4632, %v4630
      %v4645 = vpack.c.bf16 %v4633, %v4631
      %v4646 = vpack.c.bf16 %v4636, %v4634
      %v4647 = vpack.c.bf16 %v4637, %v4635
      %v4648 = vpack.c.bf16 %v4640, %v4638
      %v4649 = vpack.c.bf16 %v4641, %v4639
      %s4650 = scalar_lea.vmem %s10, 768
      %v4651 = vld [vmem:[%s4650] sm:$0xff]
      %v4652 = vld [vmem:[%s4650 + $0x8] sm:$0xff]
      %v4653 = vld [vmem:[%s4650 + $0x10] sm:$0xff]
      %v4654 = vld [vmem:[%s4650 + $0x18] sm:$0xff]
      %v4655 = vld [vmem:[%s4650 + $0x20] sm:$0xff]
      %v4656 = vld [vmem:[%s4650 + $0x28] sm:$0xff]
      %v4657 = vld [vmem:[%s4650 + $0x30] sm:$0xff]
      %v4658 = vld [vmem:[%s4650 + $0x38] sm:$0xff]
      %v4659 = vld [vmem:[%s4650 + $0x40] sm:$0xff]
      %v4660 = vld [vmem:[%s4650 + $0x48] sm:$0xff]
      %v4661 = vld [vmem:[%s4650 + $0x50] sm:$0xff]
      %v4662 = vld [vmem:[%s4650 + $0x58] sm:$0xff]
      %v4663 = vld [vmem:[%s4650 + $0x60] sm:$0xff]
      %v4664 = vld [vmem:[%s4650 + $0x68] sm:$0xff]
      %v4665 = vld [vmem:[%s4650 + $0x70] sm:$0xff]
      %v4666 = vld [vmem:[%s4650 + $0x78] sm:$0xff]
      %v4667 = vld [vmem:[%s4650 + $0x80] sm:$0xff]
      %v4668 = vld [vmem:[%s4650 + $0x88] sm:$0xff]
      %v4669 = vld [vmem:[%s4650 + $0x90] sm:$0xff]
      %v4670 = vld [vmem:[%s4650 + $0x98] sm:$0xff]
      %v4671 = vld [vmem:[%s4650 + $0xa0] sm:$0xff]
      %v4672 = vld [vmem:[%s4650 + $0xa8] sm:$0xff]
      %v4673 = vld [vmem:[%s4650 + $0xb0] sm:$0xff]
      %v4674 = vld [vmem:[%s4650 + $0xb8] sm:$0xff]
      %v4675 = vld [vmem:[%s4650 + $0xc0] sm:$0xff]
      %v4676 = vld [vmem:[%s4650 + $0xc8] sm:$0xff]
      %v4677 = vld [vmem:[%s4650 + $0xd0] sm:$0xff]
      %v4678 = vld [vmem:[%s4650 + $0xd8] sm:$0xff]
      %v4679 = vld [vmem:[%s4650 + $0xe0] sm:$0xff]
      %v4680 = vld [vmem:[%s4650 + $0xe8] sm:$0xff]
      %v4681 = vld [vmem:[%s4650 + $0xf0] sm:$0xff]
      %v4682 = vld [vmem:[%s4650 + $0xf8] sm:$0xff]
      %v4715 = vunpack.c.l.b16 %v4651
      %v4716 = vunpack.c.h.b16 %v4651
      %v4717 = vunpack.c.l.b16 %v4652
      %v4718 = vunpack.c.h.b16 %v4652
      %v4719 = vunpack.c.l.b16 %v4653
      %v4720 = vunpack.c.h.b16 %v4653
      %v4721 = vunpack.c.l.b16 %v4654
      %v4722 = vunpack.c.h.b16 %v4654
      %v4723 = vunpack.c.l.b16 %v4655
      %v4724 = vunpack.c.h.b16 %v4655
      %v4725 = vunpack.c.l.b16 %v4656
      %v4726 = vunpack.c.h.b16 %v4656
      %v4727 = vunpack.c.l.b16 %v4657
      %v4728 = vunpack.c.h.b16 %v4657
      %v4729 = vunpack.c.l.b16 %v4658
      %v4730 = vunpack.c.h.b16 %v4658
      %v4731 = vunpack.c.l.b16 %v4659
      %v4732 = vunpack.c.h.b16 %v4659
      %v4733 = vunpack.c.l.b16 %v4660
      %v4734 = vunpack.c.h.b16 %v4660
      %v4735 = vunpack.c.l.b16 %v4661
      %v4736 = vunpack.c.h.b16 %v4661
      %v4737 = vunpack.c.l.b16 %v4662
      %v4738 = vunpack.c.h.b16 %v4662
      %v4739 = vunpack.c.l.b16 %v4663
      %v4740 = vunpack.c.h.b16 %v4663
      %v4741 = vunpack.c.l.b16 %v4664
      %v4742 = vunpack.c.h.b16 %v4664
      %v4743 = vunpack.c.l.b16 %v4665
      %v4744 = vunpack.c.h.b16 %v4665
      %v4745 = vunpack.c.l.b16 %v4666
      %v4746 = vunpack.c.h.b16 %v4666
      %v4747 = vunpack.c.l.b16 %v4667
      %v4748 = vunpack.c.h.b16 %v4667
      %v4749 = vunpack.c.l.b16 %v4668
      %v4750 = vunpack.c.h.b16 %v4668
      %v4751 = vunpack.c.l.b16 %v4669
      %v4752 = vunpack.c.h.b16 %v4669
      %v4753 = vunpack.c.l.b16 %v4670
      %v4754 = vunpack.c.h.b16 %v4670
      %v4755 = vunpack.c.l.b16 %v4671
      %v4756 = vunpack.c.h.b16 %v4671
      %v4757 = vunpack.c.l.b16 %v4672
      %v4758 = vunpack.c.h.b16 %v4672
      %v4759 = vunpack.c.l.b16 %v4673
      %v4760 = vunpack.c.h.b16 %v4673
      %v4761 = vunpack.c.l.b16 %v4674
      %v4762 = vunpack.c.h.b16 %v4674
      %v4763 = vunpack.c.l.b16 %v4675
      %v4764 = vunpack.c.h.b16 %v4675
      %v4765 = vunpack.c.l.b16 %v4676
      %v4766 = vunpack.c.h.b16 %v4676
      %v4767 = vunpack.c.l.b16 %v4677
      %v4768 = vunpack.c.h.b16 %v4677
      %v4769 = vunpack.c.l.b16 %v4678
      %v4770 = vunpack.c.h.b16 %v4678
      %v4771 = vunpack.c.l.b16 %v4679
      %v4772 = vunpack.c.h.b16 %v4679
      %v4773 = vunpack.c.l.b16 %v4680
      %v4774 = vunpack.c.h.b16 %v4680
      %v4775 = vunpack.c.l.b16 %v4681
      %v4776 = vunpack.c.h.b16 %v4681
      %v4777 = vunpack.c.l.b16 %v4682
      %v4778 = vunpack.c.h.b16 %v4682
      %v4779 = vpack.c.b16 %v4717, %v4715
      %v4780 = vpack.c.b16 %v4718, %v4716
      %v4781 = vpack.c.b16 %v4721, %v4719
      %v4782 = vpack.c.b16 %v4722, %v4720
      %v4783 = vpack.c.b16 %v4725, %v4723
      %v4784 = vpack.c.b16 %v4726, %v4724
      %v4785 = vpack.c.b16 %v4729, %v4727
      %v4786 = vpack.c.b16 %v4730, %v4728
      %v4787 = vpack.c.b16 %v4733, %v4731
      %v4788 = vpack.c.b16 %v4734, %v4732
      %v4789 = vpack.c.b16 %v4737, %v4735
      %v4790 = vpack.c.b16 %v4738, %v4736
      %v4791 = vpack.c.b16 %v4741, %v4739
      %v4792 = vpack.c.b16 %v4742, %v4740
      %v4793 = vpack.c.b16 %v4745, %v4743
      %v4794 = vpack.c.b16 %v4746, %v4744
      %v4795 = vpack.c.b16 %v4749, %v4747
      %v4796 = vpack.c.b16 %v4750, %v4748
      %v4797 = vpack.c.b16 %v4753, %v4751
      %v4798 = vpack.c.b16 %v4754, %v4752
      %v4799 = vpack.c.b16 %v4757, %v4755
      %v4800 = vpack.c.b16 %v4758, %v4756
      %v4801 = vpack.c.b16 %v4761, %v4759
      %v4802 = vpack.c.b16 %v4762, %v4760
      %v4803 = vpack.c.b16 %v4765, %v4763
      %v4804 = vpack.c.b16 %v4766, %v4764
      %v4805 = vpack.c.b16 %v4769, %v4767
      %v4806 = vpack.c.b16 %v4770, %v4768
      %v4807 = vpack.c.b16 %v4773, %v4771
      %v4808 = vpack.c.b16 %v4774, %v4772
      %v4809 = vpack.c.b16 %v4777, %v4775
      %v4810 = vpack.c.b16 %v4778, %v4776
      %4843 = vmatprep.subr.bf16.mxu0 %v4780
      %4844 = vmatpush1.bf16.msra.mxu0 %v4779
      %4845 = vmatprep.subr.bf16.mxu0 %v4782
      %4846 = vmatpush1.bf16.msra.mxu0 %v4781
      %4847 = vmatprep.subr.bf16.mxu0 %v4784
      %4848 = vmatpush1.bf16.msra.mxu0 %v4783
      %4849 = vmatprep.subr.bf16.mxu0 %v4786
      %4850 = vmatpush1.bf16.msra.mxu0 %v4785
      %4851 = vmatprep.subr.bf16.mxu0 %v4788
      %4852 = vmatpush1.bf16.msra.mxu0 %v4787
      %4853 = vmatprep.subr.bf16.mxu0 %v4790
      %4854 = vmatpush1.bf16.msra.mxu0 %v4789
      %4855 = vmatprep.subr.bf16.mxu0 %v4792
      %4856 = vmatpush1.bf16.msra.mxu0 %v4791
      %4857 = vmatprep.subr.bf16.mxu0 %v4794
      %4858 = vmatpush1.bf16.msra.mxu0 %v4793
      %4859 = vmatprep.subr.bf16.mxu0 %v4796
      %4860 = vmatpush1.bf16.msra.mxu0 %v4795
      %4861 = vmatprep.subr.bf16.mxu0 %v4798
      %4862 = vmatpush1.bf16.msra.mxu0 %v4797
      %4863 = vmatprep.subr.bf16.mxu0 %v4800
      %4864 = vmatpush1.bf16.msra.mxu0 %v4799
      %4865 = vmatprep.subr.bf16.mxu0 %v4802
      %4866 = vmatpush1.bf16.msra.mxu0 %v4801
      %4867 = vmatprep.subr.bf16.mxu0 %v4804
      %4868 = vmatpush1.bf16.msra.mxu0 %v4803
      %4869 = vmatprep.subr.bf16.mxu0 %v4806
      %4870 = vmatpush1.bf16.msra.mxu0 %v4805
      %4871 = vmatprep.subr.bf16.mxu0 %v4808
      %4872 = vmatpush1.bf16.msra.mxu0 %v4807
      %4873 = vmatprep.subr.bf16.mxu0 %v4810
      %4874 = vmatpush1.bf16.msra.mxu0 %v4809
      %4875 = vmatprep.mubr.bf16.mxu0 %v4643
      %4876 = vmatmul.mubr.bf16.gmra.mrb[0].mxu0 %v4642
      %v4877 = vpop.f32.mrb[0].mxu0
      %v4878 = vadd.f32 0.0, %v4877
      %v4879 = vpop.f32.mrb[0].mxu0
      %v4880 = vadd.f32 0.0, %v4879
      %v4881 = vpop.f32.mrb[0].mxu0
      %v4882 = vadd.f32 0.0, %v4881
      %v4883 = vpop.f32.mrb[0].mxu0
      %v4884 = vadd.f32 0.0, %v4883
      %4885 = vmatprep.mubr.bf16.mxu0 %v4645
      %4886 = vmatmul.mubr.bf16.gmra.mrb[0].mxu0 %v4644
      %v4887 = vpop.f32.mrb[0].mxu0
      %v4888 = vadd.f32 0.0, %v4887
      %v4889 = vpop.f32.mrb[0].mxu0
      %v4890 = vadd.f32 0.0, %v4889
      %v4891 = vpop.f32.mrb[0].mxu0
      %v4892 = vadd.f32 0.0, %v4891
      %v4893 = vpop.f32.mrb[0].mxu0
      %v4894 = vadd.f32 0.0, %v4893
      %4895 = vmatprep.mubr.bf16.mxu0 %v4647
      %4896 = vmatmul.mubr.bf16.gmra.mrb[0].mxu0 %v4646
      %v4897 = vpop.f32.mrb[0].mxu0
      %v4898 = vadd.f32 0.0, %v4897
      %v4899 = vpop.f32.mrb[0].mxu0
      %v4900 = vadd.f32 0.0, %v4899
      %v4901 = vpop.f32.mrb[0].mxu0
      %v4902 = vadd.f32 0.0, %v4901
      %v4903 = vpop.f32.mrb[0].mxu0
      %v4904 = vadd.f32 0.0, %v4903
      %4905 = vmatprep.mubr.bf16.mxu0 %v4649
      %4906 = vmatmul.mubr.bf16.gmra.mrb[0].mxu0 %v4648
      %v4907 = vpop.f32.mrb[0].mxu0
      %v4908 = vadd.f32 0.0, %v4907
      %v4909 = vpop.f32.mrb[0].mxu0
      %v4910 = vadd.f32 0.0, %v4909
      %v4911 = vpop.f32.mrb[0].mxu0
      %v4912 = vadd.f32 0.0, %v4911
      %v4913 = vpop.f32.mrb[0].mxu0
      %v4914 = vadd.f32 0.0, %v4913
      %4915 = vdwg.mxu0
      %v4916 = vadd.f32 %v4610, %v4878
      %v4917 = vadd.f32 %v4611, %v4880
      %v4918 = vadd.f32 %v4612, %v4882
      %v4919 = vadd.f32 %v4613, %v4884
      %v4920 = vadd.f32 %v4614, %v4888
      %v4921 = vadd.f32 %v4615, %v4890
      %v4922 = vadd.f32 %v4616, %v4892
      %v4923 = vadd.f32 %v4617, %v4894
      %v4924 = vadd.f32 %v4618, %v4898
      %v4925 = vadd.f32 %v4619, %v4900
      %v4926 = vadd.f32 %v4620, %v4902
      %v4927 = vadd.f32 %v4621, %v4904
      %v4928 = vadd.f32 %v4622, %v4908
      %v4929 = vadd.f32 %v4623, %v4910
      %v4930 = vadd.f32 %v4624, %v4912
      %v4931 = vadd.f32 %v4625, %v4914
      %v4932 = vld [vmem:[%s3237] sm:$0xfe]
      %v4933 = vld [vmem:[%s3237 + $0x8] sm:$0xfe]
      %v4934 = vld [vmem:[%s3237 + $0x10] sm:$0x1]
      %v4935 = vld [vmem:[%s3237 + $0x18] sm:$0x1]
      %v4936 = vld [vmem:[%s3237 + $0x20] sm:$0xfe]
      %v4937 = vld [vmem:[%s3237 + $0x28] sm:$0xfe]
      %v4938 = vld [vmem:[%s3237 + $0x30] sm:$0x1]
      %v4939 = vld [vmem:[%s3237 + $0x38] sm:$0x1]
      %v4940 = vld [vmem:[%s3237 + $0x40] sm:$0xfe]
      %v4941 = vld [vmem:[%s3237 + $0x48] sm:$0xfe]
      %v4942 = vld [vmem:[%s3237 + $0x50] sm:$0x1]
      %v4943 = vld [vmem:[%s3237 + $0x58] sm:$0x1]
      %v4944 = vld [vmem:[%s3237 + $0x60] sm:$0xfe]
      %v4945 = vld [vmem:[%s3237 + $0x68] sm:$0xfe]
      %v4946 = vld [vmem:[%s3237 + $0x70] sm:$0x1]
      %v4947 = vld [vmem:[%s3237 + $0x78] sm:$0x1]
      %v4948 = vld [vmem:[%s3237 + $0x80] sm:$0xfe]
      %v4949 = vld [vmem:[%s3237 + $0x88] sm:$0xfe]
      %v4950 = vld [vmem:[%s3237 + $0x90] sm:$0x1]
      %v4951 = vld [vmem:[%s3237 + $0x98] sm:$0x1]
      %v4952 = vld [vmem:[%s3237 + $0xa0] sm:$0xfe]
      %v4953 = vld [vmem:[%s3237 + $0xa8] sm:$0xfe]
      %v4954 = vld [vmem:[%s3237 + $0xb0] sm:$0x1]
      %v4955 = vld [vmem:[%s3237 + $0xb8] sm:$0x1]
      %v4956 = vld [vmem:[%s3237 + $0xc0] sm:$0xfe]
      %v4957 = vld [vmem:[%s3237 + $0xc8] sm:$0xfe]
      %v4958 = vld [vmem:[%s3237 + $0xd0] sm:$0x1]
      %v4959 = vld [vmem:[%s3237 + $0xd8] sm:$0x1]
      %v4960 = vld [vmem:[%s3237 + $0xe0] sm:$0xfe]
      %v4961 = vld [vmem:[%s3237 + $0xe8] sm:$0xfe]
      %v4962 = vld [vmem:[%s3237 + $0xf0] sm:$0x1]
      %v4963 = vld [vmem:[%s3237 + $0xf8] sm:$0x1]
      %v4996 = vrot.slane %v4932, 1
      %v4997 = vrot.slane %v4934, 1
      %v4998 = vsel %vm3852, %v4996, %v4997
      %v4999 = vrot.slane %v4933, 1
      %v5000 = vrot.slane %v4935, 1
      %v5001 = vsel %vm3852, %v4999, %v5000
      %v5002 = vrot.slane %v4936, 1
      %v5003 = vrot.slane %v4938, 1
      %v5004 = vsel %vm3852, %v5002, %v5003
      %v5005 = vrot.slane %v4937, 1
      %v5006 = vrot.slane %v4939, 1
      %v5007 = vsel %vm3852, %v5005, %v5006
      %v5008 = vrot.slane %v4940, 1
      %v5009 = vrot.slane %v4942, 1
      %v5010 = vsel %vm3852, %v5008, %v5009
      %v5011 = vrot.slane %v4941, 1
      %v5012 = vrot.slane %v4943, 1
      %v5013 = vsel %vm3852, %v5011, %v5012
      %v5014 = vrot.slane %v4944, 1
      %v5015 = vrot.slane %v4946, 1
      %v5016 = vsel %vm3852, %v5014, %v5015
      %v5017 = vrot.slane %v4945, 1
      %v5018 = vrot.slane %v4947, 1
      %v5019 = vsel %vm3852, %v5017, %v5018
      %v5020 = vrot.slane %v4948, 1
      %v5021 = vrot.slane %v4950, 1
      %v5022 = vsel %vm3852, %v5020, %v5021
      %v5023 = vrot.slane %v4949, 1
      %v5024 = vrot.slane %v4951, 1
      %v5025 = vsel %vm3852, %v5023, %v5024
      %v5026 = vrot.slane %v4952, 1
      %v5027 = vrot.slane %v4954, 1
      %v5028 = vsel %vm3852, %v5026, %v5027
      %v5029 = vrot.slane %v4953, 1
      %v5030 = vrot.slane %v4955, 1
      %v5031 = vsel %vm3852, %v5029, %v5030
      %v5032 = vrot.slane %v4956, 1
      %v5033 = vrot.slane %v4958, 1
      %v5034 = vsel %vm3852, %v5032, %v5033
      %v5035 = vrot.slane %v4957, 1
      %v5036 = vrot.slane %v4959, 1
      %v5037 = vsel %vm3852, %v5035, %v5036
      %v5038 = vrot.slane %v4960, 1
      %v5039 = vrot.slane %v4962, 1
      %v5040 = vsel %vm3852, %v5038, %v5039
      %v5041 = vrot.slane %v4961, 1
      %v5042 = vrot.slane %v4963, 1
      %v5043 = vsel %vm3852, %v5041, %v5042
      %v5060 = vpack.c.bf16 %v5004, %v4998
      %v5061 = vpack.c.bf16 %v5007, %v5001
      %v5062 = vpack.c.bf16 %v5016, %v5010
      %v5063 = vpack.c.bf16 %v5019, %v5013
      %v5064 = vpack.c.bf16 %v5028, %v5022
      %v5065 = vpack.c.bf16 %v5031, %v5025
      %v5066 = vpack.c.bf16 %v5040, %v5034
      %v5067 = vpack.c.bf16 %v5043, %v5037
      %s5068 = scalar_lea.vmem %s10, 1024
      %v5069 = vld [vmem:[%s5068] sm:$0xff]
      %v5070 = vld [vmem:[%s5068 + $0x8] sm:$0xff]
      %v5071 = vld [vmem:[%s5068 + $0x10] sm:$0xff]
      %v5072 = vld [vmem:[%s5068 + $0x18] sm:$0xff]
      %v5073 = vld [vmem:[%s5068 + $0x20] sm:$0xff]
      %v5074 = vld [vmem:[%s5068 + $0x28] sm:$0xff]
      %v5075 = vld [vmem:[%s5068 + $0x30] sm:$0xff]
      %v5076 = vld [vmem:[%s5068 + $0x38] sm:$0xff]
      %v5077 = vld [vmem:[%s5068 + $0x40] sm:$0xff]
      %v5078 = vld [vmem:[%s5068 + $0x48] sm:$0xff]
      %v5079 = vld [vmem:[%s5068 + $0x50] sm:$0xff]
      %v5080 = vld [vmem:[%s5068 + $0x58] sm:$0xff]
      %v5081 = vld [vmem:[%s5068 + $0x60] sm:$0xff]
      %v5082 = vld [vmem:[%s5068 + $0x68] sm:$0xff]
      %v5083 = vld [vmem:[%s5068 + $0x70] sm:$0xff]
      %v5084 = vld [vmem:[%s5068 + $0x78] sm:$0xff]
      %v5085 = vld [vmem:[%s5068 + $0x80] sm:$0xff]
      %v5086 = vld [vmem:[%s5068 + $0x88] sm:$0xff]
      %v5087 = vld [vmem:[%s5068 + $0x90] sm:$0xff]
      %v5088 = vld [vmem:[%s5068 + $0x98] sm:$0xff]
      %v5089 = vld [vmem:[%s5068 + $0xa0] sm:$0xff]
      %v5090 = vld [vmem:[%s5068 + $0xa8] sm:$0xff]
      %v5091 = vld [vmem:[%s5068 + $0xb0] sm:$0xff]
      %v5092 = vld [vmem:[%s5068 + $0xb8] sm:$0xff]
      %v5093 = vld [vmem:[%s5068 + $0xc0] sm:$0xff]
      %v5094 = vld [vmem:[%s5068 + $0xc8] sm:$0xff]
      %v5095 = vld [vmem:[%s5068 + $0xd0] sm:$0xff]
      %v5096 = vld [vmem:[%s5068 + $0xd8] sm:$0xff]
      %v5097 = vld [vmem:[%s5068 + $0xe0] sm:$0xff]
      %v5098 = vld [vmem:[%s5068 + $0xe8] sm:$0xff]
      %v5099 = vld [vmem:[%s5068 + $0xf0] sm:$0xff]
      %v5100 = vld [vmem:[%s5068 + $0xf8] sm:$0xff]
      %v5133 = vunpack.c.l.b16 %v5069
      %v5134 = vunpack.c.h.b16 %v5069
      %v5135 = vunpack.c.l.b16 %v5070
      %v5136 = vunpack.c.h.b16 %v5070
      %v5137 = vunpack.c.l.b16 %v5071
      %v5138 = vunpack.c.h.b16 %v5071
      %v5139 = vunpack.c.l.b16 %v5072
      %v5140 = vunpack.c.h.b16 %v5072
      %v5141 = vunpack.c.l.b16 %v5073
      %v5142 = vunpack.c.h.b16 %v5073
      %v5143 = vunpack.c.l.b16 %v5074
      %v5144 = vunpack.c.h.b16 %v5074
      %v5145 = vunpack.c.l.b16 %v5075
      %v5146 = vunpack.c.h.b16 %v5075
      %v5147 = vunpack.c.l.b16 %v5076
      %v5148 = vunpack.c.h.b16 %v5076
      %v5149 = vunpack.c.l.b16 %v5077
      %v5150 = vunpack.c.h.b16 %v5077
      %v5151 = vunpack.c.l.b16 %v5078
      %v5152 = vunpack.c.h.b16 %v5078
      %v5153 = vunpack.c.l.b16 %v5079
      %v5154 = vunpack.c.h.b16 %v5079
      %v5155 = vunpack.c.l.b16 %v5080
      %v5156 = vunpack.c.h.b16 %v5080
      %v5157 = vunpack.c.l.b16 %v5081
      %v5158 = vunpack.c.h.b16 %v5081
      %v5159 = vunpack.c.l.b16 %v5082
      %v5160 = vunpack.c.h.b16 %v5082
      %v5161 = vunpack.c.l.b16 %v5083
      %v5162 = vunpack.c.h.b16 %v5083
      %v5163 = vunpack.c.l.b16 %v5084
      %v5164 = vunpack.c.h.b16 %v5084
      %v5165 = vunpack.c.l.b16 %v5085
      %v5166 = vunpack.c.h.b16 %v5085
      %v5167 = vunpack.c.l.b16 %v5086
      %v5168 = vunpack.c.h.b16 %v5086
      %v5169 = vunpack.c.l.b16 %v5087
      %v5170 = vunpack.c.h.b16 %v5087
      %v5171 = vunpack.c.l.b16 %v5088
      %v5172 = vunpack.c.h.b16 %v5088
      %v5173 = vunpack.c.l.b16 %v5089
      %v5174 = vunpack.c.h.b16 %v5089
      %v5175 = vunpack.c.l.b16 %v5090
      %v5176 = vunpack.c.h.b16 %v5090
      %v5177 = vunpack.c.l.b16 %v5091
      %v5178 = vunpack.c.h.b16 %v5091
      %v5179 = vunpack.c.l.b16 %v5092
      %v5180 = vunpack.c.h.b16 %v5092
      %v5181 = vunpack.c.l.b16 %v5093
      %v5182 = vunpack.c.h.b16 %v5093
      %v5183 = vunpack.c.l.b16 %v5094
      %v5184 = vunpack.c.h.b16 %v5094
      %v5185 = vunpack.c.l.b16 %v5095
      %v5186 = vunpack.c.h.b16 %v5095
      %v5187 = vunpack.c.l.b16 %v5096
      %v5188 = vunpack.c.h.b16 %v5096
      %v5189 = vunpack.c.l.b16 %v5097
      %v5190 = vunpack.c.h.b16 %v5097
      %v5191 = vunpack.c.l.b16 %v5098
      %v5192 = vunpack.c.h.b16 %v5098
      %v5193 = vunpack.c.l.b16 %v5099
      %v5194 = vunpack.c.h.b16 %v5099
      %v5195 = vunpack.c.l.b16 %v5100
      %v5196 = vunpack.c.h.b16 %v5100
      %v5197 = vpack.c.b16 %v5135, %v5133
      %v5198 = vpack.c.b16 %v5136, %v5134
      %v5199 = vpack.c.b16 %v5139, %v5137
      %v5200 = vpack.c.b16 %v5140, %v5138
      %v5201 = vpack.c.b16 %v5143, %v5141
      %v5202 = vpack.c.b16 %v5144, %v5142
      %v5203 = vpack.c.b16 %v5147, %v5145
      %v5204 = vpack.c.b16 %v5148, %v5146
      %v5205 = vpack.c.b16 %v5151, %v5149
      %v5206 = vpack.c.b16 %v5152, %v5150
      %v5207 = vpack.c.b16 %v5155, %v5153
      %v5208 = vpack.c.b16 %v5156, %v5154
      %v5209 = vpack.c.b16 %v5159, %v5157
      %v5210 = vpack.c.b16 %v5160, %v5158
      %v5211 = vpack.c.b16 %v5163, %v5161
      %v5212 = vpack.c.b16 %v5164, %v5162
      %v5213 = vpack.c.b16 %v5167, %v5165
      %v5214 = vpack.c.b16 %v5168, %v5166
      %v5215 = vpack.c.b16 %v5171, %v5169
      %v5216 = vpack.c.b16 %v5172, %v5170
      %v5217 = vpack.c.b16 %v5175, %v5173
      %v5218 = vpack.c.b16 %v5176, %v5174
      %v5219 = vpack.c.b16 %v5179, %v5177
      %v5220 = vpack.c.b16 %v5180, %v5178
      %v5221 = vpack.c.b16 %v5183, %v5181
      %v5222 = vpack.c.b16 %v5184, %v5182
      %v5223 = vpack.c.b16 %v5187, %v5185
      %v5224 = vpack.c.b16 %v5188, %v5186
      %v5225 = vpack.c.b16 %v5191, %v5189
      %v5226 = vpack.c.b16 %v5192, %v5190
      %v5227 = vpack.c.b16 %v5195, %v5193
      %v5228 = vpack.c.b16 %v5196, %v5194
      %5261 = vmatprep.subr.bf16.mxu0 %v5198
      %5262 = vmatpush1.bf16.msra.mxu0 %v5197
      %5263 = vmatprep.subr.bf16.mxu0 %v5200
      %5264 = vmatpush1.bf16.msra.mxu0 %v5199
      %5265 = vmatprep.subr.bf16.mxu0 %v5202
      %5266 = vmatpush1.bf16.msra.mxu0 %v5201
      %5267 = vmatprep.subr.bf16.mxu0 %v5204
      %5268 = vmatpush1.bf16.msra.mxu0 %v5203
      %5269 = vmatprep.subr.bf16.mxu0 %v5206
      %5270 = vmatpush1.bf16.msra.mxu0 %v5205
      %5271 = vmatprep.subr.bf16.mxu0 %v5208
      %5272 = vmatpush1.bf16.msra.mxu0 %v5207
      %5273 = vmatprep.subr.bf16.mxu0 %v5210
      %5274 = vmatpush1.bf16.msra.mxu0 %v5209
      %5275 = vmatprep.subr.bf16.mxu0 %v5212
      %5276 = vmatpush1.bf16.msra.mxu0 %v5211
      %5277 = vmatprep.subr.bf16.mxu0 %v5214
      %5278 = vmatpush1.bf16.msra.mxu0 %v5213
      %5279 = vmatprep.subr.bf16.mxu0 %v5216
      %5280 = vmatpush1.bf16.msra.mxu0 %v5215
      %5281 = vmatprep.subr.bf16.mxu0 %v5218
      %5282 = vmatpush1.bf16.msra.mxu0 %v5217
      %5283 = vmatprep.subr.bf16.mxu0 %v5220
      %5284 = vmatpush1.bf16.msra.mxu0 %v5219
      %5285 = vmatprep.subr.bf16.mxu0 %v5222
      %5286 = vmatpush1.bf16.msra.mxu0 %v5221
      %5287 = vmatprep.subr.bf16.mxu0 %v5224
      %5288 = vmatpush1.bf16.msra.mxu0 %v5223
      %5289 = vmatprep.subr.bf16.mxu0 %v5226
      %5290 = vmatpush1.bf16.msra.mxu0 %v5225
      %5291 = vmatprep.subr.bf16.mxu0 %v5228
      %5292 = vmatpush1.bf16.msra.mxu0 %v5227
      %5293 = vmatprep.mubr.bf16.mxu0 %v5061
      %5294 = vmatmul.mubr.bf16.gmra.mrb[0].mxu0 %v5060
      %v5295 = vpop.f32.mrb[0].mxu0
      %v5296 = vadd.f32 0.0, %v5295
      %v5297 = vpop.f32.mrb[0].mxu0
      %v5298 = vadd.f32 0.0, %v5297
      %v5299 = vpop.f32.mrb[0].mxu0
      %v5300 = vadd.f32 0.0, %v5299
      %v5301 = vpop.f32.mrb[0].mxu0
      %v5302 = vadd.f32 0.0, %v5301
      %5303 = vmatprep.mubr.bf16.mxu0 %v5063
      %5304 = vmatmul.mubr.bf16.gmra.mrb[0].mxu0 %v5062
      %v5305 = vpop.f32.mrb[0].mxu0
      %v5306 = vadd.f32 0.0, %v5305
      %v5307 = vpop.f32.mrb[0].mxu0
      %v5308 = vadd.f32 0.0, %v5307
      %v5309 = vpop.f32.mrb[0].mxu0
      %v5310 = vadd.f32 0.0, %v5309
      %v5311 = vpop.f32.mrb[0].mxu0
      %v5312 = vadd.f32 0.0, %v5311
      %5313 = vmatprep.mubr.bf16.mxu0 %v5065
      %5314 = vmatmul.mubr.bf16.gmra.mrb[0].mxu0 %v5064
      %v5315 = vpop.f32.mrb[0].mxu0
      %v5316 = vadd.f32 0.0, %v5315
      %v5317 = vpop.f32.mrb[0].mxu0
      %v5318 = vadd.f32 0.0, %v5317
      %v5319 = vpop.f32.mrb[0].mxu0
      %v5320 = vadd.f32 0.0, %v5319
      %v5321 = vpop.f32.mrb[0].mxu0
      %v5322 = vadd.f32 0.0, %v5321
      %5323 = vmatprep.mubr.bf16.mxu0 %v5067
      %5324 = vmatmul.mubr.bf16.gmra.mrb[0].mxu0 %v5066
      %v5325 = vpop.f32.mrb[0].mxu0
      %v5326 = vadd.f32 0.0, %v5325
      %v5327 = vpop.f32.mrb[0].mxu0
      %v5328 = vadd.f32 0.0, %v5327
      %v5329 = vpop.f32.mrb[0].mxu0
      %v5330 = vadd.f32 0.0, %v5329
      %v5331 = vpop.f32.mrb[0].mxu0
      %v5332 = vadd.f32 0.0, %v5331
      %5333 = vdwg.mxu0
      %v5334 = vadd.f32 %v4916, %v5296
      %v5335 = vadd.f32 %v4917, %v5298
      %v5336 = vadd.f32 %v4918, %v5300
      %v5337 = vadd.f32 %v4919, %v5302
      %v5338 = vadd.f32 %v4920, %v5306
      %v5339 = vadd.f32 %v4921, %v5308
      %v5340 = vadd.f32 %v4922, %v5310
      %v5341 = vadd.f32 %v4923, %v5312
      %v5342 = vadd.f32 %v4924, %v5316
      %v5343 = vadd.f32 %v4925, %v5318
      %v5344 = vadd.f32 %v4926, %v5320
      %v5345 = vadd.f32 %v4927, %v5322
      %v5346 = vadd.f32 %v4928, %v5326
      %v5347 = vadd.f32 %v4929, %v5328
      %v5348 = vadd.f32 %v4930, %v5330
      %v5349 = vadd.f32 %v4931, %v5332
      %v5350 = vld [vmem:[%s3237] sm:$0xfc]
      %v5351 = vld [vmem:[%s3237 + $0x8] sm:$0xfc]
      %v5352 = vld [vmem:[%s3237 + $0x10] sm:$0x3]
      %v5353 = vld [vmem:[%s3237 + $0x18] sm:$0x3]
      %v5354 = vld [vmem:[%s3237 + $0x20] sm:$0xfc]
      %v5355 = vld [vmem:[%s3237 + $0x28] sm:$0xfc]
      %v5356 = vld [vmem:[%s3237 + $0x30] sm:$0x3]
      %v5357 = vld [vmem:[%s3237 + $0x38] sm:$0x3]
      %v5358 = vld [vmem:[%s3237 + $0x40] sm:$0xfc]
      %v5359 = vld [vmem:[%s3237 + $0x48] sm:$0xfc]
      %v5360 = vld [vmem:[%s3237 + $0x50] sm:$0x3]
      %v5361 = vld [vmem:[%s3237 + $0x58] sm:$0x3]
      %v5362 = vld [vmem:[%s3237 + $0x60] sm:$0xfc]
      %v5363 = vld [vmem:[%s3237 + $0x68] sm:$0xfc]
      %v5364 = vld [vmem:[%s3237 + $0x70] sm:$0x3]
      %v5365 = vld [vmem:[%s3237 + $0x78] sm:$0x3]
      %v5366 = vld [vmem:[%s3237 + $0x80] sm:$0xfc]
      %v5367 = vld [vmem:[%s3237 + $0x88] sm:$0xfc]
      %v5368 = vld [vmem:[%s3237 + $0x90] sm:$0x3]
      %v5369 = vld [vmem:[%s3237 + $0x98] sm:$0x3]
      %v5370 = vld [vmem:[%s3237 + $0xa0] sm:$0xfc]
      %v5371 = vld [vmem:[%s3237 + $0xa8] sm:$0xfc]
      %v5372 = vld [vmem:[%s3237 + $0xb0] sm:$0x3]
      %v5373 = vld [vmem:[%s3237 + $0xb8] sm:$0x3]
      %v5374 = vld [vmem:[%s3237 + $0xc0] sm:$0xfc]
      %v5375 = vld [vmem:[%s3237 + $0xc8] sm:$0xfc]
      %v5376 = vld [vmem:[%s3237 + $0xd0] sm:$0x3]
      %v5377 = vld [vmem:[%s3237 + $0xd8] sm:$0x3]
      %v5378 = vld [vmem:[%s3237 + $0xe0] sm:$0xfc]
      %v5379 = vld [vmem:[%s3237 + $0xe8] sm:$0xfc]
      %v5380 = vld [vmem:[%s3237 + $0xf0] sm:$0x3]
      %v5381 = vld [vmem:[%s3237 + $0xf8] sm:$0x3]
      %v5414 = vrot.slane %v5350, 2
      %v5415 = vrot.slane %v5352, 2
      %v5416 = vsel %vm4271, %v5414, %v5415
      %v5417 = vrot.slane %v5351, 2
      %v5418 = vrot.slane %v5353, 2
      %v5419 = vsel %vm4271, %v5417, %v5418
      %v5420 = vrot.slane %v5354, 2
      %v5421 = vrot.slane %v5356, 2
      %v5422 = vsel %vm4271, %v5420, %v5421
      %v5423 = vrot.slane %v5355, 2
      %v5424 = vrot.slane %v5357, 2
      %v5425 = vsel %vm4271, %v5423, %v5424
      %v5426 = vrot.slane %v5358, 2
      %v5427 = vrot.slane %v5360, 2
      %v5428 = vsel %vm4271, %v5426, %v5427
      %v5429 = vrot.slane %v5359, 2
      %v5430 = vrot.slane %v5361, 2
      %v5431 = vsel %vm4271, %v5429, %v5430
      %v5432 = vrot.slane %v5362, 2
      %v5433 = vrot.slane %v5364, 2
      %v5434 = vsel %vm4271, %v5432, %v5433
      %v5435 = vrot.slane %v5363, 2
      %v5436 = vrot.slane %v5365, 2
      %v5437 = vsel %vm4271, %v5435, %v5436
      %v5438 = vrot.slane %v5366, 2
      %v5439 = vrot.slane %v5368, 2
      %v5440 = vsel %vm4271, %v5438, %v5439
      %v5441 = vrot.slane %v5367, 2
      %v5442 = vrot.slane %v5369, 2
      %v5443 = vsel %vm4271, %v5441, %v5442
      %v5444 = vrot.slane %v5370, 2
      %v5445 = vrot.slane %v5372, 2
      %v5446 = vsel %vm4271, %v5444, %v5445
      %v5447 = vrot.slane %v5371, 2
      %v5448 = vrot.slane %v5373, 2
      %v5449 = vsel %vm4271, %v5447, %v5448
      %v5450 = vrot.slane %v5374, 2
      %v5451 = vrot.slane %v5376, 2
      %v5452 = vsel %vm4271, %v5450, %v5451
      %v5453 = vrot.slane %v5375, 2
      %v5454 = vrot.slane %v5377, 2
      %v5455 = vsel %vm4271, %v5453, %v5454
      %v5456 = vrot.slane %v5378, 2
      %v5457 = vrot.slane %v5380, 2
      %v5458 = vsel %vm4271, %v5456, %v5457
      %v5459 = vrot.slane %v5379, 2
      %v5460 = vrot.slane %v5381, 2
      %v5461 = vsel %vm4271, %v5459, %v5460
      %v5478 = vpack.c.bf16 %v5422, %v5416
      %v5479 = vpack.c.bf16 %v5425, %v5419
      %v5480 = vpack.c.bf16 %v5434, %v5428
      %v5481 = vpack.c.bf16 %v5437, %v5431
      %v5482 = vpack.c.bf16 %v5446, %v5440
      %v5483 = vpack.c.bf16 %v5449, %v5443
      %v5484 = vpack.c.bf16 %v5458, %v5452
      %v5485 = vpack.c.bf16 %v5461, %v5455
      %s5486 = scalar_lea.vmem %s10, 1280
      %v5487 = vld [vmem:[%s5486] sm:$0xff]
      %v5488 = vld [vmem:[%s5486 + $0x8] sm:$0xff]
      %v5489 = vld [vmem:[%s5486 + $0x10] sm:$0xff]
      %v5490 = vld [vmem:[%s5486 + $0x18] sm:$0xff]
      %v5491 = vld [vmem:[%s5486 + $0x20] sm:$0xff]
      %v5492 = vld [vmem:[%s5486 + $0x28] sm:$0xff]
      %v5493 = vld [vmem:[%s5486 + $0x30] sm:$0xff]
      %v5494 = vld [vmem:[%s5486 + $0x38] sm:$0xff]
      %v5495 = vld [vmem:[%s5486 + $0x40] sm:$0xff]
      %v5496 = vld [vmem:[%s5486 + $0x48] sm:$0xff]
      %v5497 = vld [vmem:[%s5486 + $0x50] sm:$0xff]
      %v5498 = vld [vmem:[%s5486 + $0x58] sm:$0xff]
      %v5499 = vld [vmem:[%s5486 + $0x60] sm:$0xff]
      %v5500 = vld [vmem:[%s5486 + $0x68] sm:$0xff]
      %v5501 = vld [vmem:[%s5486 + $0x70] sm:$0xff]
      %v5502 = vld [vmem:[%s5486 + $0x78] sm:$0xff]
      %v5503 = vld [vmem:[%s5486 + $0x80] sm:$0xff]
      %v5504 = vld [vmem:[%s5486 + $0x88] sm:$0xff]
      %v5505 = vld [vmem:[%s5486 + $0x90] sm:$0xff]
      %v5506 = vld [vmem:[%s5486 + $0x98] sm:$0xff]
      %v5507 = vld [vmem:[%s5486 + $0xa0] sm:$0xff]
      %v5508 = vld [vmem:[%s5486 + $0xa8] sm:$0xff]
      %v5509 = vld [vmem:[%s5486 + $0xb0] sm:$0xff]
      %v5510 = vld [vmem:[%s5486 + $0xb8] sm:$0xff]
      %v5511 = vld [vmem:[%s5486 + $0xc0] sm:$0xff]
      %v5512 = vld [vmem:[%s5486 + $0xc8] sm:$0xff]
      %v5513 = vld [vmem:[%s5486 + $0xd0] sm:$0xff]
      %v5514 = vld [vmem:[%s5486 + $0xd8] sm:$0xff]
      %v5515 = vld [vmem:[%s5486 + $0xe0] sm:$0xff]
      %v5516 = vld [vmem:[%s5486 + $0xe8] sm:$0xff]
      %v5517 = vld [vmem:[%s5486 + $0xf0] sm:$0xff]
      %v5518 = vld [vmem:[%s5486 + $0xf8] sm:$0xff]
      %v5551 = vunpack.c.l.b16 %v5487
      %v5552 = vunpack.c.h.b16 %v5487
      %v5553 = vunpack.c.l.b16 %v5488
      %v5554 = vunpack.c.h.b16 %v5488
      %v5555 = vunpack.c.l.b16 %v5489
      %v5556 = vunpack.c.h.b16 %v5489
      %v5557 = vunpack.c.l.b16 %v5490
      %v5558 = vunpack.c.h.b16 %v5490
      %v5559 = vunpack.c.l.b16 %v5491
      %v5560 = vunpack.c.h.b16 %v5491
      %v5561 = vunpack.c.l.b16 %v5492
      %v5562 = vunpack.c.h.b16 %v5492
      %v5563 = vunpack.c.l.b16 %v5493
      %v5564 = vunpack.c.h.b16 %v5493
      %v5565 = vunpack.c.l.b16 %v5494
      %v5566 = vunpack.c.h.b16 %v5494
      %v5567 = vunpack.c.l.b16 %v5495
      %v5568 = vunpack.c.h.b16 %v5495
      %v5569 = vunpack.c.l.b16 %v5496
      %v5570 = vunpack.c.h.b16 %v5496
      %v5571 = vunpack.c.l.b16 %v5497
      %v5572 = vunpack.c.h.b16 %v5497
      %v5573 = vunpack.c.l.b16 %v5498
      %v5574 = vunpack.c.h.b16 %v5498
      %v5575 = vunpack.c.l.b16 %v5499
      %v5576 = vunpack.c.h.b16 %v5499
      %v5577 = vunpack.c.l.b16 %v5500
      %v5578 = vunpack.c.h.b16 %v5500
      %v5579 = vunpack.c.l.b16 %v5501
      %v5580 = vunpack.c.h.b16 %v5501
      %v5581 = vunpack.c.l.b16 %v5502
      %v5582 = vunpack.c.h.b16 %v5502
      %v5583 = vunpack.c.l.b16 %v5503
      %v5584 = vunpack.c.h.b16 %v5503
      %v5585 = vunpack.c.l.b16 %v5504
      %v5586 = vunpack.c.h.b16 %v5504
      %v5587 = vunpack.c.l.b16 %v5505
      %v5588 = vunpack.c.h.b16 %v5505
      %v5589 = vunpack.c.l.b16 %v5506
      %v5590 = vunpack.c.h.b16 %v5506
      %v5591 = vunpack.c.l.b16 %v5507
      %v5592 = vunpack.c.h.b16 %v5507
      %v5593 = vunpack.c.l.b16 %v5508
      %v5594 = vunpack.c.h.b16 %v5508
      %v5595 = vunpack.c.l.b16 %v5509
      %v5596 = vunpack.c.h.b16 %v5509
      %v5597 = vunpack.c.l.b16 %v5510
      %v5598 = vunpack.c.h.b16 %v5510
      %v5599 = vunpack.c.l.b16 %v5511
      %v5600 = vunpack.c.h.b16 %v5511
      %v5601 = vunpack.c.l.b16 %v5512
      %v5602 = vunpack.c.h.b16 %v5512
      %v5603 = vunpack.c.l.b16 %v5513
      %v5604 = vunpack.c.h.b16 %v5513
      %v5605 = vunpack.c.l.b16 %v5514
      %v5606 = vunpack.c.h.b16 %v5514
      %v5607 = vunpack.c.l.b16 %v5515
      %v5608 = vunpack.c.h.b16 %v5515
      %v5609 = vunpack.c.l.b16 %v5516
      %v5610 = vunpack.c.h.b16 %v5516
      %v5611 = vunpack.c.l.b16 %v5517
      %v5612 = vunpack.c.h.b16 %v5517
      %v5613 = vunpack.c.l.b16 %v5518
      %v5614 = vunpack.c.h.b16 %v5518
      %v5615 = vpack.c.b16 %v5553, %v5551
      %v5616 = vpack.c.b16 %v5554, %v5552
      %v5617 = vpack.c.b16 %v5557, %v5555
      %v5618 = vpack.c.b16 %v5558, %v5556
      %v5619 = vpack.c.b16 %v5561, %v5559
      %v5620 = vpack.c.b16 %v5562, %v5560
      %v5621 = vpack.c.b16 %v5565, %v5563
      %v5622 = vpack.c.b16 %v5566, %v5564
      %v5623 = vpack.c.b16 %v5569, %v5567
      %v5624 = vpack.c.b16 %v5570, %v5568
      %v5625 = vpack.c.b16 %v5573, %v5571
      %v5626 = vpack.c.b16 %v5574, %v5572
      %v5627 = vpack.c.b16 %v5577, %v5575
      %v5628 = vpack.c.b16 %v5578, %v5576
      %v5629 = vpack.c.b16 %v5581, %v5579
      %v5630 = vpack.c.b16 %v5582, %v5580
      %v5631 = vpack.c.b16 %v5585, %v5583
      %v5632 = vpack.c.b16 %v5586, %v5584
      %v5633 = vpack.c.b16 %v5589, %v5587
      %v5634 = vpack.c.b16 %v5590, %v5588
      %v5635 = vpack.c.b16 %v5593, %v5591
      %v5636 = vpack.c.b16 %v5594, %v5592
      %v5637 = vpack.c.b16 %v5597, %v5595
      %v5638 = vpack.c.b16 %v5598, %v5596
      %v5639 = vpack.c.b16 %v5601, %v5599
      %v5640 = vpack.c.b16 %v5602, %v5600
      %v5641 = vpack.c.b16 %v5605, %v5603
      %v5642 = vpack.c.b16 %v5606, %v5604
      %v5643 = vpack.c.b16 %v5609, %v5607
      %v5644 = vpack.c.b16 %v5610, %v5608
      %v5645 = vpack.c.b16 %v5613, %v5611
      %v5646 = vpack.c.b16 %v5614, %v5612
      %5679 = vmatprep.subr.bf16.mxu0 %v5616
      %5680 = vmatpush1.bf16.msra.mxu0 %v5615
      %5681 = vmatprep.subr.bf16.mxu0 %v5618
      %5682 = vmatpush1.bf16.msra.mxu0 %v5617
      %5683 = vmatprep.subr.bf16.mxu0 %v5620
      %5684 = vmatpush1.bf16.msra.mxu0 %v5619
      %5685 = vmatprep.subr.bf16.mxu0 %v5622
      %5686 = vmatpush1.bf16.msra.mxu0 %v5621
      %5687 = vmatprep.subr.bf16.mxu0 %v5624
      %5688 = vmatpush1.bf16.msra.mxu0 %v5623
      %5689 = vmatprep.subr.bf16.mxu0 %v5626
      %5690 = vmatpush1.bf16.msra.mxu0 %v5625
      %5691 = vmatprep.subr.bf16.mxu0 %v5628
      %5692 = vmatpush1.bf16.msra.mxu0 %v5627
      %5693 = vmatprep.subr.bf16.mxu0 %v5630
      %5694 = vmatpush1.bf16.msra.mxu0 %v5629
      %5695 = vmatprep.subr.bf16.mxu0 %v5632
      %5696 = vmatpush1.bf16.msra.mxu0 %v5631
      %5697 = vmatprep.subr.bf16.mxu0 %v5634
      %5698 = vmatpush1.bf16.msra.mxu0 %v5633
      %5699 = vmatprep.subr.bf16.mxu0 %v5636
      %5700 = vmatpush1.bf16.msra.mxu0 %v5635
      %5701 = vmatprep.subr.bf16.mxu0 %v5638
      %5702 = vmatpush1.bf16.msra.mxu0 %v5637
      %5703 = vmatprep.subr.bf16.mxu0 %v5640
      %5704 = vmatpush1.bf16.msra.mxu0 %v5639
      %5705 = vmatprep.subr.bf16.mxu0 %v5642
      %5706 = vmatpush1.bf16.msra.mxu0 %v5641
      %5707 = vmatprep.subr.bf16.mxu0 %v5644
      %5708 = vmatpush1.bf16.msra.mxu0 %v5643
      %5709 = vmatprep.subr.bf16.mxu0 %v5646
      %5710 = vmatpush1.bf16.msra.mxu0 %v5645
      %5711 = vmatprep.mubr.bf16.mxu0 %v5479
      %5712 = vmatmul.mubr.bf16.gmra.mrb[0].mxu0 %v5478
      %v5713 = vpop.f32.mrb[0].mxu0
      %v5714 = vadd.f32 0.0, %v5713
      %v5715 = vpop.f32.mrb[0].mxu0
      %v5716 = vadd.f32 0.0, %v5715
      %v5717 = vpop.f32.mrb[0].mxu0
      %v5718 = vadd.f32 0.0, %v5717
      %v5719 = vpop.f32.mrb[0].mxu0
      %v5720 = vadd.f32 0.0, %v5719
      %5721 = vmatprep.mubr.bf16.mxu0 %v5481
      %5722 = vmatmul.mubr.bf16.gmra.mrb[0].mxu0 %v5480
      %v5723 = vpop.f32.mrb[0].mxu0
      %v5724 = vadd.f32 0.0, %v5723
      %v5725 = vpop.f32.mrb[0].mxu0
      %v5726 = vadd.f32 0.0, %v5725
      %v5727 = vpop.f32.mrb[0].mxu0
      %v5728 = vadd.f32 0.0, %v5727
      %v5729 = vpop.f32.mrb[0].mxu0
      %v5730 = vadd.f32 0.0, %v5729
      %5731 = vmatprep.mubr.bf16.mxu0 %v5483
      %5732 = vmatmul.mubr.bf16.gmra.mrb[0].mxu0 %v5482
      %v5733 = vpop.f32.mrb[0].mxu0
      %v5734 = vadd.f32 0.0, %v5733
      %v5735 = vpop.f32.mrb[0].mxu0
      %v5736 = vadd.f32 0.0, %v5735
      %v5737 = vpop.f32.mrb[0].mxu0
      %v5738 = vadd.f32 0.0, %v5737
      %v5739 = vpop.f32.mrb[0].mxu0
      %v5740 = vadd.f32 0.0, %v5739
      %5741 = vmatprep.mubr.bf16.mxu0 %v5485
      %5742 = vmatmul.mubr.bf16.gmra.mrb[0].mxu0 %v5484
      %v5743 = vpop.f32.mrb[0].mxu0
      %v5744 = vadd.f32 0.0, %v5743
      %v5745 = vpop.f32.mrb[0].mxu0
      %v5746 = vadd.f32 0.0, %v5745
      %v5747 = vpop.f32.mrb[0].mxu0
      %v5748 = vadd.f32 0.0, %v5747
      %v5749 = vpop.f32.mrb[0].mxu0
      %v5750 = vadd.f32 0.0, %v5749
      %5751 = vdwg.mxu0
      %v5752 = vadd.f32 %v5334, %v5714
      %v5753 = vadd.f32 %v5335, %v5716
      %v5754 = vadd.f32 %v5336, %v5718
      %v5755 = vadd.f32 %v5337, %v5720
      %v5756 = vadd.f32 %v5338, %v5724
      %v5757 = vadd.f32 %v5339, %v5726
      %v5758 = vadd.f32 %v5340, %v5728
      %v5759 = vadd.f32 %v5341, %v5730
      %v5760 = vadd.f32 %v5342, %v5734
      %v5761 = vadd.f32 %v5343, %v5736
      %v5762 = vadd.f32 %v5344, %v5738
      %v5763 = vadd.f32 %v5345, %v5740
      %v5764 = vadd.f32 %v5346, %v5744
      %v5765 = vadd.f32 %v5347, %v5746
      %v5766 = vadd.f32 %v5348, %v5748
      %v5767 = vadd.f32 %v5349, %v5750
      %s5768 = scalar_lea.vmem [#allocation3], 64
      %v5769 = vld [vmem:[%s5768] sm:$0xff]
      %v5770 = vld [vmem:[%s5768 + $0x8] sm:$0xff]
      %v5771 = vld [vmem:[%s5768 + $0x20] sm:$0xff]
      %v5772 = vld [vmem:[%s5768 + $0x28] sm:$0xff]
      %v5773 = vld [vmem:[%s5768 + $0x40] sm:$0xff]
      %v5774 = vld [vmem:[%s5768 + $0x48] sm:$0xff]
      %v5775 = vld [vmem:[%s5768 + $0x60] sm:$0xff]
      %v5776 = vld [vmem:[%s5768 + $0x68] sm:$0xff]
      %v5777 = vld [vmem:[%s5768 + $0x80] sm:$0xff]
      %v5778 = vld [vmem:[%s5768 + $0x88] sm:$0xff]
      %v5779 = vld [vmem:[%s5768 + $0xa0] sm:$0xff]
      %v5780 = vld [vmem:[%s5768 + $0xa8] sm:$0xff]
      %v5781 = vld [vmem:[%s5768 + $0xc0] sm:$0xff]
      %v5782 = vld [vmem:[%s5768 + $0xc8] sm:$0xff]
      %v5783 = vld [vmem:[%s5768 + $0xe0] sm:$0xff]
      %v5784 = vld [vmem:[%s5768 + $0xe8] sm:$0xff]
      %v5785 = vpack.c.bf16 %v5771, %v5769
      %v5786 = vpack.c.bf16 %v5772, %v5770
      %v5787 = vpack.c.bf16 %v5775, %v5773
      %v5788 = vpack.c.bf16 %v5776, %v5774
      %v5789 = vpack.c.bf16 %v5779, %v5777
      %v5790 = vpack.c.bf16 %v5780, %v5778
      %v5791 = vpack.c.bf16 %v5783, %v5781
      %v5792 = vpack.c.bf16 %v5784, %v5782
      %s5793 = scalar_lea.vmem %s10, 1536
      %v5794 = vld [vmem:[%s5793] sm:$0xff]
      %v5795 = vld [vmem:[%s5793 + $0x8] sm:$0xff]
      %v5796 = vld [vmem:[%s5793 + $0x10] sm:$0xff]
      %v5797 = vld [vmem:[%s5793 + $0x18] sm:$0xff]
      %v5798 = vld [vmem:[%s5793 + $0x20] sm:$0xff]
      %v5799 = vld [vmem:[%s5793 + $0x28] sm:$0xff]
      %v5800 = vld [vmem:[%s5793 + $0x30] sm:$0xff]
      %v5801 = vld [vmem:[%s5793 + $0x38] sm:$0xff]
      %v5802 = vld [vmem:[%s5793 + $0x40] sm:$0xff]
      %v5803 = vld [vmem:[%s5793 + $0x48] sm:$0xff]
      %v5804 = vld [vmem:[%s5793 + $0x50] sm:$0xff]
      %v5805 = vld [vmem:[%s5793 + $0x58] sm:$0xff]
      %v5806 = vld [vmem:[%s5793 + $0x60] sm:$0xff]
      %v5807 = vld [vmem:[%s5793 + $0x68] sm:$0xff]
      %v5808 = vld [vmem:[%s5793 + $0x70] sm:$0xff]
      %v5809 = vld [vmem:[%s5793 + $0x78] sm:$0xff]
      %v5810 = vld [vmem:[%s5793 + $0x80] sm:$0xff]
      %v5811 = vld [vmem:[%s5793 + $0x88] sm:$0xff]
      %v5812 = vld [vmem:[%s5793 + $0x90] sm:$0xff]
      %v5813 = vld [vmem:[%s5793 + $0x98] sm:$0xff]
      %v5814 = vld [vmem:[%s5793 + $0xa0] sm:$0xff]
      %v5815 = vld [vmem:[%s5793 + $0xa8] sm:$0xff]
      %v5816 = vld [vmem:[%s5793 + $0xb0] sm:$0xff]
      %v5817 = vld [vmem:[%s5793 + $0xb8] sm:$0xff]
      %v5818 = vld [vmem:[%s5793 + $0xc0] sm:$0xff]
      %v5819 = vld [vmem:[%s5793 + $0xc8] sm:$0xff]
      %v5820 = vld [vmem:[%s5793 + $0xd0] sm:$0xff]
      %v5821 = vld [vmem:[%s5793 + $0xd8] sm:$0xff]
      %v5822 = vld [vmem:[%s5793 + $0xe0] sm:$0xff]
      %v5823 = vld [vmem:[%s5793 + $0xe8] sm:$0xff]
      %v5824 = vld [vmem:[%s5793 + $0xf0] sm:$0xff]
      %v5825 = vld [vmem:[%s5793 + $0xf8] sm:$0xff]
      %v5858 = vunpack.c.l.b16 %v5794
      %v5859 = vunpack.c.h.b16 %v5794
      %v5860 = vunpack.c.l.b16 %v5795
      %v5861 = vunpack.c.h.b16 %v5795
      %v5862 = vunpack.c.l.b16 %v5796
      %v5863 = vunpack.c.h.b16 %v5796
      %v5864 = vunpack.c.l.b16 %v5797
      %v5865 = vunpack.c.h.b16 %v5797
      %v5866 = vunpack.c.l.b16 %v5798
      %v5867 = vunpack.c.h.b16 %v5798
      %v5868 = vunpack.c.l.b16 %v5799
      %v5869 = vunpack.c.h.b16 %v5799
      %v5870 = vunpack.c.l.b16 %v5800
      %v5871 = vunpack.c.h.b16 %v5800
      %v5872 = vunpack.c.l.b16 %v5801
      %v5873 = vunpack.c.h.b16 %v5801
      %v5874 = vunpack.c.l.b16 %v5802
      %v5875 = vunpack.c.h.b16 %v5802
      %v5876 = vunpack.c.l.b16 %v5803
      %v5877 = vunpack.c.h.b16 %v5803
      %v5878 = vunpack.c.l.b16 %v5804
      %v5879 = vunpack.c.h.b16 %v5804
      %v5880 = vunpack.c.l.b16 %v5805
      %v5881 = vunpack.c.h.b16 %v5805
      %v5882 = vunpack.c.l.b16 %v5806
      %v5883 = vunpack.c.h.b16 %v5806
      %v5884 = vunpack.c.l.b16 %v5807
      %v5885 = vunpack.c.h.b16 %v5807
      %v5886 = vunpack.c.l.b16 %v5808
      %v5887 = vunpack.c.h.b16 %v5808
      %v5888 = vunpack.c.l.b16 %v5809
      %v5889 = vunpack.c.h.b16 %v5809
      %v5890 = vunpack.c.l.b16 %v5810
      %v5891 = vunpack.c.h.b16 %v5810
      %v5892 = vunpack.c.l.b16 %v5811
      %v5893 = vunpack.c.h.b16 %v5811
      %v5894 = vunpack.c.l.b16 %v5812
      %v5895 = vunpack.c.h.b16 %v5812
      %v5896 = vunpack.c.l.b16 %v5813
      %v5897 = vunpack.c.h.b16 %v5813
      %v5898 = vunpack.c.l.b16 %v5814
      %v5899 = vunpack.c.h.b16 %v5814
      %v5900 = vunpack.c.l.b16 %v5815
      %v5901 = vunpack.c.h.b16 %v5815
      %v5902 = vunpack.c.l.b16 %v5816
      %v5903 = vunpack.c.h.b16 %v5816
      %v5904 = vunpack.c.l.b16 %v5817
      %v5905 = vunpack.c.h.b16 %v5817
      %v5906 = vunpack.c.l.b16 %v5818
      %v5907 = vunpack.c.h.b16 %v5818
      %v5908 = vunpack.c.l.b16 %v5819
      %v5909 = vunpack.c.h.b16 %v5819
      %v5910 = vunpack.c.l.b16 %v5820
      %v5911 = vunpack.c.h.b16 %v5820
      %v5912 = vunpack.c.l.b16 %v5821
      %v5913 = vunpack.c.h.b16 %v5821
      %v5914 = vunpack.c.l.b16 %v5822
      %v5915 = vunpack.c.h.b16 %v5822
      %v5916 = vunpack.c.l.b16 %v5823
      %v5917 = vunpack.c.h.b16 %v5823
      %v5918 = vunpack.c.l.b16 %v5824
      %v5919 = vunpack.c.h.b16 %v5824
      %v5920 = vunpack.c.l.b16 %v5825
      %v5921 = vunpack.c.h.b16 %v5825
      %v5922 = vpack.c.b16 %v5860, %v5858
      %v5923 = vpack.c.b16 %v5861, %v5859
      %v5924 = vpack.c.b16 %v5864, %v5862
      %v5925 = vpack.c.b16 %v5865, %v5863
      %v5926 = vpack.c.b16 %v5868, %v5866
      %v5927 = vpack.c.b16 %v5869, %v5867
      %v5928 = vpack.c.b16 %v5872, %v5870
      %v5929 = vpack.c.b16 %v5873, %v5871
      %v5930 = vpack.c.b16 %v5876, %v5874
      %v5931 = vpack.c.b16 %v5877, %v5875
      %v5932 = vpack.c.b16 %v5880, %v5878
      %v5933 = vpack.c.b16 %v5881, %v5879
      %v5934 = vpack.c.b16 %v5884, %v5882
      %v5935 = vpack.c.b16 %v5885, %v5883
      %v5936 = vpack.c.b16 %v5888, %v5886
      %v5937 = vpack.c.b16 %v5889, %v5887
      %v5938 = vpack.c.b16 %v5892, %v5890
      %v5939 = vpack.c.b16 %v5893, %v5891
      %v5940 = vpack.c.b16 %v5896, %v5894
      %v5941 = vpack.c.b16 %v5897, %v5895
      %v5942 = vpack.c.b16 %v5900, %v5898
      %v5943 = vpack.c.b16 %v5901, %v5899
      %v5944 = vpack.c.b16 %v5904, %v5902
      %v5945 = vpack.c.b16 %v5905, %v5903
      %v5946 = vpack.c.b16 %v5908, %v5906
      %v5947 = vpack.c.b16 %v5909, %v5907
      %v5948 = vpack.c.b16 %v5912, %v5910
      %v5949 = vpack.c.b16 %v5913, %v5911
      %v5950 = vpack.c.b16 %v5916, %v5914
      %v5951 = vpack.c.b16 %v5917, %v5915
      %v5952 = vpack.c.b16 %v5920, %v5918
      %v5953 = vpack.c.b16 %v5921, %v5919
      %5986 = vmatprep.subr.bf16.mxu0 %v5923
      %5987 = vmatpush1.bf16.msra.mxu0 %v5922
      %5988 = vmatprep.subr.bf16.mxu0 %v5925
      %5989 = vmatpush1.bf16.msra.mxu0 %v5924
      %5990 = vmatprep.subr.bf16.mxu0 %v5927
      %5991 = vmatpush1.bf16.msra.mxu0 %v5926
      %5992 = vmatprep.subr.bf16.mxu0 %v5929
      %5993 = vmatpush1.bf16.msra.mxu0 %v5928
      %5994 = vmatprep.subr.bf16.mxu0 %v5931
      %5995 = vmatpush1.bf16.msra.mxu0 %v5930
      %5996 = vmatprep.subr.bf16.mxu0 %v5933
      %5997 = vmatpush1.bf16.msra.mxu0 %v5932
      %5998 = vmatprep.subr.bf16.mxu0 %v5935
      %5999 = vmatpush1.bf16.msra.mxu0 %v5934
      %6000 = vmatprep.subr.bf16.mxu0 %v5937
      %6001 = vmatpush1.bf16.msra.mxu0 %v5936
      %6002 = vmatprep.subr.bf16.mxu0 %v5939
      %6003 = vmatpush1.bf16.msra.mxu0 %v5938
      %6004 = vmatprep.subr.bf16.mxu0 %v5941
      %6005 = vmatpush1.bf16.msra.mxu0 %v5940
      %6006 = vmatprep.subr.bf16.mxu0 %v5943
      %6007 = vmatpush1.bf16.msra.mxu0 %v5942
      %6008 = vmatprep.subr.bf16.mxu0 %v5945
      %6009 = vmatpush1.bf16.msra.mxu0 %v5944
      %6010 = vmatprep.subr.bf16.mxu0 %v5947
      %6011 = vmatpush1.bf16.msra.mxu0 %v5946
      %6012 = vmatprep.subr.bf16.mxu0 %v5949
      %6013 = vmatpush1.bf16.msra.mxu0 %v5948
      %6014 = vmatprep.subr.bf16.mxu0 %v5951
      %6015 = vmatpush1.bf16.msra.mxu0 %v5950
      %6016 = vmatprep.subr.bf16.mxu0 %v5953
      %6017 = vmatpush1.bf16.msra.mxu0 %v5952
      %6018 = vmatprep.mubr.bf16.mxu0 %v5786
      %6019 = vmatmul.mubr.bf16.gmra.mrb[0].mxu0 %v5785
      %v6020 = vpop.f32.mrb[0].mxu0
      %v6021 = vadd.f32 0.0, %v6020
      %v6022 = vpop.f32.mrb[0].mxu0
      %v6023 = vadd.f32 0.0, %v6022
      %v6024 = vpop.f32.mrb[0].mxu0
      %v6025 = vadd.f32 0.0, %v6024
      %v6026 = vpop.f32.mrb[0].mxu0
      %v6027 = vadd.f32 0.0, %v6026
      %6028 = vmatprep.mubr.bf16.mxu0 %v5788
      %6029 = vmatmul.mubr.bf16.gmra.mrb[0].mxu0 %v5787
      %v6030 = vpop.f32.mrb[0].mxu0
      %v6031 = vadd.f32 0.0, %v6030
      %v6032 = vpop.f32.mrb[0].mxu0
      %v6033 = vadd.f32 0.0, %v6032
      %v6034 = vpop.f32.mrb[0].mxu0
      %v6035 = vadd.f32 0.0, %v6034
      %v6036 = vpop.f32.mrb[0].mxu0
      %v6037 = vadd.f32 0.0, %v6036
      %6038 = vmatprep.mubr.bf16.mxu0 %v5790
      %6039 = vmatmul.mubr.bf16.gmra.mrb[0].mxu0 %v5789
      %v6040 = vpop.f32.mrb[0].mxu0
      %v6041 = vadd.f32 0.0, %v6040
      %v6042 = vpop.f32.mrb[0].mxu0
      %v6043 = vadd.f32 0.0, %v6042
      %v6044 = vpop.f32.mrb[0].mxu0
      %v6045 = vadd.f32 0.0, %v6044
      %v6046 = vpop.f32.mrb[0].mxu0
      %v6047 = vadd.f32 0.0, %v6046
      %6048 = vmatprep.mubr.bf16.mxu0 %v5792
      %6049 = vmatmul.mubr.bf16.gmra.mrb[0].mxu0 %v5791
      %v6050 = vpop.f32.mrb[0].mxu0
      %v6051 = vadd.f32 0.0, %v6050
      %v6052 = vpop.f32.mrb[0].mxu0
      %v6053 = vadd.f32 0.0, %v6052
      %v6054 = vpop.f32.mrb[0].mxu0
      %v6055 = vadd.f32 0.0, %v6054
      %v6056 = vpop.f32.mrb[0].mxu0
      %v6057 = vadd.f32 0.0, %v6056
      %6058 = vdwg.mxu0
      %v6059 = vadd.f32 %v5752, %v6021
      %v6060 = vadd.f32 %v5753, %v6023
      %v6061 = vadd.f32 %v5754, %v6025
      %v6062 = vadd.f32 %v5755, %v6027
      %v6063 = vadd.f32 %v5756, %v6031
      %v6064 = vadd.f32 %v5757, %v6033
      %v6065 = vadd.f32 %v5758, %v6035
      %v6066 = vadd.f32 %v5759, %v6037
      %v6067 = vadd.f32 %v5760, %v6041
      %v6068 = vadd.f32 %v5761, %v6043
      %v6069 = vadd.f32 %v5762, %v6045
      %v6070 = vadd.f32 %v5763, %v6047
      %v6071 = vadd.f32 %v5764, %v6051
      %v6072 = vadd.f32 %v5765, %v6053
      %v6073 = vadd.f32 %v5766, %v6055
      %v6074 = vadd.f32 %v5767, %v6057
      %v6075 = vld [vmem:[%s5768] sm:$0xfe]
      %v6076 = vld [vmem:[%s5768 + $0x8] sm:$0xfe]
      %v6077 = vld [vmem:[%s5768 + $0x10] sm:$0x1]
      %v6078 = vld [vmem:[%s5768 + $0x18] sm:$0x1]
      %v6079 = vld [vmem:[%s5768 + $0x20] sm:$0xfe]
      %v6080 = vld [vmem:[%s5768 + $0x28] sm:$0xfe]
      %v6081 = vld [vmem:[%s5768 + $0x30] sm:$0x1]
      %v6082 = vld [vmem:[%s5768 + $0x38] sm:$0x1]
      %v6083 = vld [vmem:[%s5768 + $0x40] sm:$0xfe]
      %v6084 = vld [vmem:[%s5768 + $0x48] sm:$0xfe]
      %v6085 = vld [vmem:[%s5768 + $0x50] sm:$0x1]
      %v6086 = vld [vmem:[%s5768 + $0x58] sm:$0x1]
      %v6087 = vld [vmem:[%s5768 + $0x60] sm:$0xfe]
      %v6088 = vld [vmem:[%s5768 + $0x68] sm:$0xfe]
      %v6089 = vld [vmem:[%s5768 + $0x70] sm:$0x1]
      %v6090 = vld [vmem:[%s5768 + $0x78] sm:$0x1]
      %v6091 = vld [vmem:[%s5768 + $0x80] sm:$0xfe]
      %v6092 = vld [vmem:[%s5768 + $0x88] sm:$0xfe]
      %v6093 = vld [vmem:[%s5768 + $0x90] sm:$0x1]
      %v6094 = vld [vmem:[%s5768 + $0x98] sm:$0x1]
      %v6095 = vld [vmem:[%s5768 + $0xa0] sm:$0xfe]
      %v6096 = vld [vmem:[%s5768 + $0xa8] sm:$0xfe]
      %v6097 = vld [vmem:[%s5768 + $0xb0] sm:$0x1]
      %v6098 = vld [vmem:[%s5768 + $0xb8] sm:$0x1]
      %v6099 = vld [vmem:[%s5768 + $0xc0] sm:$0xfe]
      %v6100 = vld [vmem:[%s5768 + $0xc8] sm:$0xfe]
      %v6101 = vld [vmem:[%s5768 + $0xd0] sm:$0x1]
      %v6102 = vld [vmem:[%s5768 + $0xd8] sm:$0x1]
      %v6103 = vld [vmem:[%s5768 + $0xe0] sm:$0xfe]
      %v6104 = vld [vmem:[%s5768 + $0xe8] sm:$0xfe]
      %v6105 = vld [vmem:[%s5768 + $0xf0] sm:$0x1]
      %v6106 = vld [vmem:[%s5768 + $0xf8] sm:$0x1]
      %v6139 = vrot.slane %v6075, 1
      %v6140 = vrot.slane %v6077, 1
      %v6141 = vsel %vm3852, %v6139, %v6140
      %v6142 = vrot.slane %v6076, 1
      %v6143 = vrot.slane %v6078, 1
      %v6144 = vsel %vm3852, %v6142, %v6143
      %v6145 = vrot.slane %v6079, 1
      %v6146 = vrot.slane %v6081, 1
      %v6147 = vsel %vm3852, %v6145, %v6146
      %v6148 = vrot.slane %v6080, 1
      %v6149 = vrot.slane %v6082, 1
      %v6150 = vsel %vm3852, %v6148, %v6149
      %v6151 = vrot.slane %v6083, 1
      %v6152 = vrot.slane %v6085, 1
      %v6153 = vsel %vm3852, %v6151, %v6152
      %v6154 = vrot.slane %v6084, 1
      %v6155 = vrot.slane %v6086, 1
      %v6156 = vsel %vm3852, %v6154, %v6155
      %v6157 = vrot.slane %v6087, 1
      %v6158 = vrot.slane %v6089, 1
      %v6159 = vsel %vm3852, %v6157, %v6158
      %v6160 = vrot.slane %v6088, 1
      %v6161 = vrot.slane %v6090, 1
      %v6162 = vsel %vm3852, %v6160, %v6161
      %v6163 = vrot.slane %v6091, 1
      %v6164 = vrot.slane %v6093, 1
      %v6165 = vsel %vm3852, %v6163, %v6164
      %v6166 = vrot.slane %v6092, 1
      %v6167 = vrot.slane %v6094, 1
      %v6168 = vsel %vm3852, %v6166, %v6167
      %v6169 = vrot.slane %v6095, 1
      %v6170 = vrot.slane %v6097, 1
      %v6171 = vsel %vm3852, %v6169, %v6170
      %v6172 = vrot.slane %v6096, 1
      %v6173 = vrot.slane %v6098, 1
      %v6174 = vsel %vm3852, %v6172, %v6173
      %v6175 = vrot.slane %v6099, 1
      %v6176 = vrot.slane %v6101, 1
      %v6177 = vsel %vm3852, %v6175, %v6176
      %v6178 = vrot.slane %v6100, 1
      %v6179 = vrot.slane %v6102, 1
      %v6180 = vsel %vm3852, %v6178, %v6179
      %v6181 = vrot.slane %v6103, 1
      %v6182 = vrot.slane %v6105, 1
      %v6183 = vsel %vm3852, %v6181, %v6182
      %v6184 = vrot.slane %v6104, 1
      %v6185 = vrot.slane %v6106, 1
      %v6186 = vsel %vm3852, %v6184, %v6185
      %v6203 = vpack.c.bf16 %v6147, %v6141
      %v6204 = vpack.c.bf16 %v6150, %v6144
      %v6205 = vpack.c.bf16 %v6159, %v6153
      %v6206 = vpack.c.bf16 %v6162, %v6156
      %v6207 = vpack.c.bf16 %v6171, %v6165
      %v6208 = vpack.c.bf16 %v6174, %v6168
      %v6209 = vpack.c.bf16 %v6183, %v6177
      %v6210 = vpack.c.bf16 %v6186, %v6180
      %s6211 = scalar_lea.vmem %s10, 1792
      %v6212 = vld [vmem:[%s6211] sm:$0xff]
      %v6213 = vld [vmem:[%s6211 + $0x8] sm:$0xff]
      %v6214 = vld [vmem:[%s6211 + $0x10] sm:$0xff]
      %v6215 = vld [vmem:[%s6211 + $0x18] sm:$0xff]
      %v6216 = vld [vmem:[%s6211 + $0x20] sm:$0xff]
      %v6217 = vld [vmem:[%s6211 + $0x28] sm:$0xff]
      %v6218 = vld [vmem:[%s6211 + $0x30] sm:$0xff]
      %v6219 = vld [vmem:[%s6211 + $0x38] sm:$0xff]
      %v6220 = vld [vmem:[%s6211 + $0x40] sm:$0xff]
      %v6221 = vld [vmem:[%s6211 + $0x48] sm:$0xff]
      %v6222 = vld [vmem:[%s6211 + $0x50] sm:$0xff]
      %v6223 = vld [vmem:[%s6211 + $0x58] sm:$0xff]
      %v6224 = vld [vmem:[%s6211 + $0x60] sm:$0xff]
      %v6225 = vld [vmem:[%s6211 + $0x68] sm:$0xff]
      %v6226 = vld [vmem:[%s6211 + $0x70] sm:$0xff]
      %v6227 = vld [vmem:[%s6211 + $0x78] sm:$0xff]
      %v6228 = vld [vmem:[%s6211 + $0x80] sm:$0xff]
      %v6229 = vld [vmem:[%s6211 + $0x88] sm:$0xff]
      %v6230 = vld [vmem:[%s6211 + $0x90] sm:$0xff]
      %v6231 = vld [vmem:[%s6211 + $0x98] sm:$0xff]
      %v6232 = vld [vmem:[%s6211 + $0xa0] sm:$0xff]
      %v6233 = vld [vmem:[%s6211 + $0xa8] sm:$0xff]
      %v6234 = vld [vmem:[%s6211 + $0xb0] sm:$0xff]
      %v6235 = vld [vmem:[%s6211 + $0xb8] sm:$0xff]
      %v6236 = vld [vmem:[%s6211 + $0xc0] sm:$0xff]
      %v6237 = vld [vmem:[%s6211 + $0xc8] sm:$0xff]
      %v6238 = vld [vmem:[%s6211 + $0xd0] sm:$0xff]
      %v6239 = vld [vmem:[%s6211 + $0xd8] sm:$0xff]
      %v6240 = vld [vmem:[%s6211 + $0xe0] sm:$0xff]
      %v6241 = vld [vmem:[%s6211 + $0xe8] sm:$0xff]
      %v6242 = vld [vmem:[%s6211 + $0xf0] sm:$0xff]
      %v6243 = vld [vmem:[%s6211 + $0xf8] sm:$0xff]
      %v6276 = vunpack.c.l.b16 %v6212
      %v6277 = vunpack.c.h.b16 %v6212
      %v6278 = vunpack.c.l.b16 %v6213
      %v6279 = vunpack.c.h.b16 %v6213
      %v6280 = vunpack.c.l.b16 %v6214
      %v6281 = vunpack.c.h.b16 %v6214
      %v6282 = vunpack.c.l.b16 %v6215
      %v6283 = vunpack.c.h.b16 %v6215
      %v6284 = vunpack.c.l.b16 %v6216
      %v6285 = vunpack.c.h.b16 %v6216
      %v6286 = vunpack.c.l.b16 %v6217
      %v6287 = vunpack.c.h.b16 %v6217
      %v6288 = vunpack.c.l.b16 %v6218
      %v6289 = vunpack.c.h.b16 %v6218
      %v6290 = vunpack.c.l.b16 %v6219
      %v6291 = vunpack.c.h.b16 %v6219
      %v6292 = vunpack.c.l.b16 %v6220
      %v6293 = vunpack.c.h.b16 %v6220
      %v6294 = vunpack.c.l.b16 %v6221
      %v6295 = vunpack.c.h.b16 %v6221
      %v6296 = vunpack.c.l.b16 %v6222
      %v6297 = vunpack.c.h.b16 %v6222
      %v6298 = vunpack.c.l.b16 %v6223
      %v6299 = vunpack.c.h.b16 %v6223
      %v6300 = vunpack.c.l.b16 %v6224
      %v6301 = vunpack.c.h.b16 %v6224
      %v6302 = vunpack.c.l.b16 %v6225
      %v6303 = vunpack.c.h.b16 %v6225
      %v6304 = vunpack.c.l.b16 %v6226
      %v6305 = vunpack.c.h.b16 %v6226
      %v6306 = vunpack.c.l.b16 %v6227
      %v6307 = vunpack.c.h.b16 %v6227
      %v6308 = vunpack.c.l.b16 %v6228
      %v6309 = vunpack.c.h.b16 %v6228
      %v6310 = vunpack.c.l.b16 %v6229
      %v6311 = vunpack.c.h.b16 %v6229
      %v6312 = vunpack.c.l.b16 %v6230
      %v6313 = vunpack.c.h.b16 %v6230
      %v6314 = vunpack.c.l.b16 %v6231
      %v6315 = vunpack.c.h.b16 %v6231
      %v6316 = vunpack.c.l.b16 %v6232
      %v6317 = vunpack.c.h.b16 %v6232
      %v6318 = vunpack.c.l.b16 %v6233
      %v6319 = vunpack.c.h.b16 %v6233
      %v6320 = vunpack.c.l.b16 %v6234
      %v6321 = vunpack.c.h.b16 %v6234
      %v6322 = vunpack.c.l.b16 %v6235
      %v6323 = vunpack.c.h.b16 %v6235
      %v6324 = vunpack.c.l.b16 %v6236
      %v6325 = vunpack.c.h.b16 %v6236
      %v6326 = vunpack.c.l.b16 %v6237
      %v6327 = vunpack.c.h.b16 %v6237
      %v6328 = vunpack.c.l.b16 %v6238
      %v6329 = vunpack.c.h.b16 %v6238
      %v6330 = vunpack.c.l.b16 %v6239
      %v6331 = vunpack.c.h.b16 %v6239
      %v6332 = vunpack.c.l.b16 %v6240
      %v6333 = vunpack.c.h.b16 %v6240
      %v6334 = vunpack.c.l.b16 %v6241
      %v6335 = vunpack.c.h.b16 %v6241
      %v6336 = vunpack.c.l.b16 %v6242
      %v6337 = vunpack.c.h.b16 %v6242
      %v6338 = vunpack.c.l.b16 %v6243
      %v6339 = vunpack.c.h.b16 %v6243
      %v6340 = vpack.c.b16 %v6278, %v6276
      %v6341 = vpack.c.b16 %v6279, %v6277
      %v6342 = vpack.c.b16 %v6282, %v6280
      %v6343 = vpack.c.b16 %v6283, %v6281
      %v6344 = vpack.c.b16 %v6286, %v6284
      %v6345 = vpack.c.b16 %v6287, %v6285
      %v6346 = vpack.c.b16 %v6290, %v6288
      %v6347 = vpack.c.b16 %v6291, %v6289
      %v6348 = vpack.c.b16 %v6294, %v6292
      %v6349 = vpack.c.b16 %v6295, %v6293
      %v6350 = vpack.c.b16 %v6298, %v6296
      %v6351 = vpack.c.b16 %v6299, %v6297
      %v6352 = vpack.c.b16 %v6302, %v6300
      %v6353 = vpack.c.b16 %v6303, %v6301
      %v6354 = vpack.c.b16 %v6306, %v6304
      %v6355 = vpack.c.b16 %v6307, %v6305
      %v6356 = vpack.c.b16 %v6310, %v6308
      %v6357 = vpack.c.b16 %v6311, %v6309
      %v6358 = vpack.c.b16 %v6314, %v6312
      %v6359 = vpack.c.b16 %v6315, %v6313
      %v6360 = vpack.c.b16 %v6318, %v6316
      %v6361 = vpack.c.b16 %v6319, %v6317
      %v6362 = vpack.c.b16 %v6322, %v6320
      %v6363 = vpack.c.b16 %v6323, %v6321
      %v6364 = vpack.c.b16 %v6326, %v6324
      %v6365 = vpack.c.b16 %v6327, %v6325
      %v6366 = vpack.c.b16 %v6330, %v6328
      %v6367 = vpack.c.b16 %v6331, %v6329
      %v6368 = vpack.c.b16 %v6334, %v6332
      %v6369 = vpack.c.b16 %v6335, %v6333
      %v6370 = vpack.c.b16 %v6338, %v6336
      %v6371 = vpack.c.b16 %v6339, %v6337
      %6404 = vmatprep.subr.bf16.mxu0 %v6341
      %6405 = vmatpush1.bf16.msra.mxu0 %v6340
      %6406 = vmatprep.subr.bf16.mxu0 %v6343
      %6407 = vmatpush1.bf16.msra.mxu0 %v6342
      %6408 = vmatprep.subr.bf16.mxu0 %v6345
      %6409 = vmatpush1.bf16.msra.mxu0 %v6344
      %6410 = vmatprep.subr.bf16.mxu0 %v6347
      %6411 = vmatpush1.bf16.msra.mxu0 %v6346
      %6412 = vmatprep.subr.bf16.mxu0 %v6349
      %6413 = vmatpush1.bf16.msra.mxu0 %v6348
      %6414 = vmatprep.subr.bf16.mxu0 %v6351
      %6415 = vmatpush1.bf16.msra.mxu0 %v6350
      %6416 = vmatprep.subr.bf16.mxu0 %v6353
      %6417 = vmatpush1.bf16.msra.mxu0 %v6352
      %6418 = vmatprep.subr.bf16.mxu0 %v6355
      %6419 = vmatpush1.bf16.msra.mxu0 %v6354
      %6420 = vmatprep.subr.bf16.mxu0 %v6357
      %6421 = vmatpush1.bf16.msra.mxu0 %v6356
      %6422 = vmatprep.subr.bf16.mxu0 %v6359
      %6423 = vmatpush1.bf16.msra.mxu0 %v6358
      %6424 = vmatprep.subr.bf16.mxu0 %v6361
      %6425 = vmatpush1.bf16.msra.mxu0 %v6360
      %6426 = vmatprep.subr.bf16.mxu0 %v6363
      %6427 = vmatpush1.bf16.msra.mxu0 %v6362
      %6428 = vmatprep.subr.bf16.mxu0 %v6365
      %6429 = vmatpush1.bf16.msra.mxu0 %v6364
      %6430 = vmatprep.subr.bf16.mxu0 %v6367
      %6431 = vmatpush1.bf16.msra.mxu0 %v6366
      %6432 = vmatprep.subr.bf16.mxu0 %v6369
      %6433 = vmatpush1.bf16.msra.mxu0 %v6368
      %6434 = vmatprep.subr.bf16.mxu0 %v6371
      %6435 = vmatpush1.bf16.msra.mxu0 %v6370
      %6436 = vmatprep.mubr.bf16.mxu0 %v6204
      %6437 = vmatmul.mubr.bf16.gmra.mrb[0].mxu0 %v6203
      %v6438 = vpop.f32.mrb[0].mxu0
      %v6439 = vadd.f32 0.0, %v6438
      %v6440 = vpop.f32.mrb[0].mxu0
      %v6441 = vadd.f32 0.0, %v6440
      %v6442 = vpop.f32.mrb[0].mxu0
      %v6443 = vadd.f32 0.0, %v6442
      %v6444 = vpop.f32.mrb[0].mxu0
      %v6445 = vadd.f32 0.0, %v6444
      %6446 = vmatprep.mubr.bf16.mxu0 %v6206
      %6447 = vmatmul.mubr.bf16.gmra.mrb[0].mxu0 %v6205
      %v6448 = vpop.f32.mrb[0].mxu0
      %v6449 = vadd.f32 0.0, %v6448
      %v6450 = vpop.f32.mrb[0].mxu0
      %v6451 = vadd.f32 0.0, %v6450
      %v6452 = vpop.f32.mrb[0].mxu0
      %v6453 = vadd.f32 0.0, %v6452
      %v6454 = vpop.f32.mrb[0].mxu0
      %v6455 = vadd.f32 0.0, %v6454
      %6456 = vmatprep.mubr.bf16.mxu0 %v6208
      %6457 = vmatmul.mubr.bf16.gmra.mrb[0].mxu0 %v6207
      %v6458 = vpop.f32.mrb[0].mxu0
      %v6459 = vadd.f32 0.0, %v6458
      %v6460 = vpop.f32.mrb[0].mxu0
      %v6461 = vadd.f32 0.0, %v6460
      %v6462 = vpop.f32.mrb[0].mxu0
      %v6463 = vadd.f32 0.0, %v6462
      %v6464 = vpop.f32.mrb[0].mxu0
      %v6465 = vadd.f32 0.0, %v6464
      %6466 = vmatprep.mubr.bf16.mxu0 %v6210
      %6467 = vmatmul.mubr.bf16.gmra.mrb[0].mxu0 %v6209
      %v6468 = vpop.f32.mrb[0].mxu0
      %v6469 = vadd.f32 0.0, %v6468
      %v6470 = vpop.f32.mrb[0].mxu0
      %v6471 = vadd.f32 0.0, %v6470
      %v6472 = vpop.f32.mrb[0].mxu0
      %v6473 = vadd.f32 0.0, %v6472
      %v6474 = vpop.f32.mrb[0].mxu0
      %v6475 = vadd.f32 0.0, %v6474
      %6476 = vdwg.mxu0
      %v6477 = vadd.f32 %v6059, %v6439
      %v6478 = vadd.f32 %v6060, %v6441
      %v6479 = vadd.f32 %v6061, %v6443
      %v6480 = vadd.f32 %v6062, %v6445
      %v6481 = vadd.f32 %v6063, %v6449
      %v6482 = vadd.f32 %v6064, %v6451
      %v6483 = vadd.f32 %v6065, %v6453
      %v6484 = vadd.f32 %v6066, %v6455
      %v6485 = vadd.f32 %v6067, %v6459
      %v6486 = vadd.f32 %v6068, %v6461
      %v6487 = vadd.f32 %v6069, %v6463
      %v6488 = vadd.f32 %v6070, %v6465
      %v6489 = vadd.f32 %v6071, %v6469
      %v6490 = vadd.f32 %v6072, %v6471
      %v6491 = vadd.f32 %v6073, %v6473
      %v6492 = vadd.f32 %v6074, %v6475
      %v6493 = vld [vmem:[%s5768] sm:$0xfc]
      %v6494 = vld [vmem:[%s5768 + $0x8] sm:$0xfc]
      %v6495 = vld [vmem:[%s5768 + $0x10] sm:$0x3]
      %v6496 = vld [vmem:[%s5768 + $0x18] sm:$0x3]
      %v6497 = vld [vmem:[%s5768 + $0x20] sm:$0xfc]
      %v6498 = vld [vmem:[%s5768 + $0x28] sm:$0xfc]
      %v6499 = vld [vmem:[%s5768 + $0x30] sm:$0x3]
      %v6500 = vld [vmem:[%s5768 + $0x38] sm:$0x3]
      %v6501 = vld [vmem:[%s5768 + $0x40] sm:$0xfc]
      %v6502 = vld [vmem:[%s5768 + $0x48] sm:$0xfc]
      %v6503 = vld [vmem:[%s5768 + $0x50] sm:$0x3]
      %v6504 = vld [vmem:[%s5768 + $0x58] sm:$0x3]
      %v6505 = vld [vmem:[%s5768 + $0x60] sm:$0xfc]
      %v6506 = vld [vmem:[%s5768 + $0x68] sm:$0xfc]
      %v6507 = vld [vmem:[%s5768 + $0x70] sm:$0x3]
      %v6508 = vld [vmem:[%s5768 + $0x78] sm:$0x3]
      %v6509 = vld [vmem:[%s5768 + $0x80] sm:$0xfc]
      %v6510 = vld [vmem:[%s5768 + $0x88] sm:$0xfc]
      %v6511 = vld [vmem:[%s5768 + $0x90] sm:$0x3]
      %v6512 = vld [vmem:[%s5768 + $0x98] sm:$0x3]
      %v6513 = vld [vmem:[%s5768 + $0xa0] sm:$0xfc]
      %v6514 = vld [vmem:[%s5768 + $0xa8] sm:$0xfc]
      %v6515 = vld [vmem:[%s5768 + $0xb0] sm:$0x3]
      %v6516 = vld [vmem:[%s5768 + $0xb8] sm:$0x3]
      %v6517 = vld [vmem:[%s5768 + $0xc0] sm:$0xfc]
      %v6518 = vld [vmem:[%s5768 + $0xc8] sm:$0xfc]
      %v6519 = vld [vmem:[%s5768 + $0xd0] sm:$0x3]
      %v6520 = vld [vmem:[%s5768 + $0xd8] sm:$0x3]
      %v6521 = vld [vmem:[%s5768 + $0xe0] sm:$0xfc]
      %v6522 = vld [vmem:[%s5768 + $0xe8] sm:$0xfc]
      %v6523 = vld [vmem:[%s5768 + $0xf0] sm:$0x3]
      %v6524 = vld [vmem:[%s5768 + $0xf8] sm:$0x3]
      %v6557 = vrot.slane %v6493, 2
      %v6558 = vrot.slane %v6495, 2
      %v6559 = vsel %vm4271, %v6557, %v6558
      %v6560 = vrot.slane %v6494, 2
      %v6561 = vrot.slane %v6496, 2
      %v6562 = vsel %vm4271, %v6560, %v6561
      %v6563 = vrot.slane %v6497, 2
      %v6564 = vrot.slane %v6499, 2
      %v6565 = vsel %vm4271, %v6563, %v6564
      %v6566 = vrot.slane %v6498, 2
      %v6567 = vrot.slane %v6500, 2
      %v6568 = vsel %vm4271, %v6566, %v6567
      %v6569 = vrot.slane %v6501, 2
      %v6570 = vrot.slane %v6503, 2
      %v6571 = vsel %vm4271, %v6569, %v6570
      %v6572 = vrot.slane %v6502, 2
      %v6573 = vrot.slane %v6504, 2
      %v6574 = vsel %vm4271, %v6572, %v6573
      %v6575 = vrot.slane %v6505, 2
      %v6576 = vrot.slane %v6507, 2
      %v6577 = vsel %vm4271, %v6575, %v6576
      %v6578 = vrot.slane %v6506, 2
      %v6579 = vrot.slane %v6508, 2
      %v6580 = vsel %vm4271, %v6578, %v6579
      %v6581 = vrot.slane %v6509, 2
      %v6582 = vrot.slane %v6511, 2
      %v6583 = vsel %vm4271, %v6581, %v6582
      %v6584 = vrot.slane %v6510, 2
      %v6585 = vrot.slane %v6512, 2
      %v6586 = vsel %vm4271, %v6584, %v6585
      %v6587 = vrot.slane %v6513, 2
      %v6588 = vrot.slane %v6515, 2
      %v6589 = vsel %vm4271, %v6587, %v6588
      %v6590 = vrot.slane %v6514, 2
      %v6591 = vrot.slane %v6516, 2
      %v6592 = vsel %vm4271, %v6590, %v6591
      %v6593 = vrot.slane %v6517, 2
      %v6594 = vrot.slane %v6519, 2
      %v6595 = vsel %vm4271, %v6593, %v6594
      %v6596 = vrot.slane %v6518, 2
      %v6597 = vrot.slane %v6520, 2
      %v6598 = vsel %vm4271, %v6596, %v6597
      %v6599 = vrot.slane %v6521, 2
      %v6600 = vrot.slane %v6523, 2
      %v6601 = vsel %vm4271, %v6599, %v6600
      %v6602 = vrot.slane %v6522, 2
      %v6603 = vrot.slane %v6524, 2
      %v6604 = vsel %vm4271, %v6602, %v6603
      %v6621 = vpack.c.bf16 %v6565, %v6559
      %v6622 = vpack.c.bf16 %v6568, %v6562
      %v6623 = vpack.c.bf16 %v6577, %v6571
      %v6624 = vpack.c.bf16 %v6580, %v6574
      %v6625 = vpack.c.bf16 %v6589, %v6583
      %v6626 = vpack.c.bf16 %v6592, %v6586
      %v6627 = vpack.c.bf16 %v6601, %v6595
      %v6628 = vpack.c.bf16 %v6604, %v6598
      %s6629 = scalar_lea.vmem %s10, 2048
      %v6630 = vld [vmem:[%s6629] sm:$0xff]
      %v6631 = vld [vmem:[%s6629 + $0x8] sm:$0xff]
      %v6632 = vld [vmem:[%s6629 + $0x10] sm:$0xff]
      %v6633 = vld [vmem:[%s6629 + $0x18] sm:$0xff]
      %v6634 = vld [vmem:[%s6629 + $0x20] sm:$0xff]
      %v6635 = vld [vmem:[%s6629 + $0x28] sm:$0xff]
      %v6636 = vld [vmem:[%s6629 + $0x30] sm:$0xff]
      %v6637 = vld [vmem:[%s6629 + $0x38] sm:$0xff]
      %v6638 = vld [vmem:[%s6629 + $0x40] sm:$0xff]
      %v6639 = vld [vmem:[%s6629 + $0x48] sm:$0xff]
      %v6640 = vld [vmem:[%s6629 + $0x50] sm:$0xff]
      %v6641 = vld [vmem:[%s6629 + $0x58] sm:$0xff]
      %v6642 = vld [vmem:[%s6629 + $0x60] sm:$0xff]
      %v6643 = vld [vmem:[%s6629 + $0x68] sm:$0xff]
      %v6644 = vld [vmem:[%s6629 + $0x70] sm:$0xff]
      %v6645 = vld [vmem:[%s6629 + $0x78] sm:$0xff]
      %v6646 = vld [vmem:[%s6629 + $0x80] sm:$0xff]
      %v6647 = vld [vmem:[%s6629 + $0x88] sm:$0xff]
      %v6648 = vld [vmem:[%s6629 + $0x90] sm:$0xff]
      %v6649 = vld [vmem:[%s6629 + $0x98] sm:$0xff]
      %v6650 = vld [vmem:[%s6629 + $0xa0] sm:$0xff]
      %v6651 = vld [vmem:[%s6629 + $0xa8] sm:$0xff]
      %v6652 = vld [vmem:[%s6629 + $0xb0] sm:$0xff]
      %v6653 = vld [vmem:[%s6629 + $0xb8] sm:$0xff]
      %v6654 = vld [vmem:[%s6629 + $0xc0] sm:$0xff]
      %v6655 = vld [vmem:[%s6629 + $0xc8] sm:$0xff]
      %v6656 = vld [vmem:[%s6629 + $0xd0] sm:$0xff]
      %v6657 = vld [vmem:[%s6629 + $0xd8] sm:$0xff]
      %v6658 = vld [vmem:[%s6629 + $0xe0] sm:$0xff]
      %v6659 = vld [vmem:[%s6629 + $0xe8] sm:$0xff]
      %v6660 = vld [vmem:[%s6629 + $0xf0] sm:$0xff]
      %v6661 = vld [vmem:[%s6629 + $0xf8] sm:$0xff]
      %v6694 = vunpack.c.l.b16 %v6630
      %v6695 = vunpack.c.h.b16 %v6630
      %v6696 = vunpack.c.l.b16 %v6631
      %v6697 = vunpack.c.h.b16 %v6631
      %v6698 = vunpack.c.l.b16 %v6632
      %v6699 = vunpack.c.h.b16 %v6632
      %v6700 = vunpack.c.l.b16 %v6633
      %v6701 = vunpack.c.h.b16 %v6633
      %v6702 = vunpack.c.l.b16 %v6634
      %v6703 = vunpack.c.h.b16 %v6634
      %v6704 = vunpack.c.l.b16 %v6635
      %v6705 = vunpack.c.h.b16 %v6635
      %v6706 = vunpack.c.l.b16 %v6636
      %v6707 = vunpack.c.h.b16 %v6636
      %v6708 = vunpack.c.l.b16 %v6637
      %v6709 = vunpack.c.h.b16 %v6637
      %v6710 = vunpack.c.l.b16 %v6638
      %v6711 = vunpack.c.h.b16 %v6638
      %v6712 = vunpack.c.l.b16 %v6639
      %v6713 = vunpack.c.h.b16 %v6639
      %v6714 = vunpack.c.l.b16 %v6640
      %v6715 = vunpack.c.h.b16 %v6640
      %v6716 = vunpack.c.l.b16 %v6641
      %v6717 = vunpack.c.h.b16 %v6641
      %v6718 = vunpack.c.l.b16 %v6642
      %v6719 = vunpack.c.h.b16 %v6642
      %v6720 = vunpack.c.l.b16 %v6643
      %v6721 = vunpack.c.h.b16 %v6643
      %v6722 = vunpack.c.l.b16 %v6644
      %v6723 = vunpack.c.h.b16 %v6644
      %v6724 = vunpack.c.l.b16 %v6645
      %v6725 = vunpack.c.h.b16 %v6645
      %v6726 = vunpack.c.l.b16 %v6646
      %v6727 = vunpack.c.h.b16 %v6646
      %v6728 = vunpack.c.l.b16 %v6647
      %v6729 = vunpack.c.h.b16 %v6647
      %v6730 = vunpack.c.l.b16 %v6648
      %v6731 = vunpack.c.h.b16 %v6648
      %v6732 = vunpack.c.l.b16 %v6649
      %v6733 = vunpack.c.h.b16 %v6649
      %v6734 = vunpack.c.l.b16 %v6650
      %v6735 = vunpack.c.h.b16 %v6650
      %v6736 = vunpack.c.l.b16 %v6651
      %v6737 = vunpack.c.h.b16 %v6651
      %v6738 = vunpack.c.l.b16 %v6652
      %v6739 = vunpack.c.h.b16 %v6652
      %v6740 = vunpack.c.l.b16 %v6653
      %v6741 = vunpack.c.h.b16 %v6653
      %v6742 = vunpack.c.l.b16 %v6654
      %v6743 = vunpack.c.h.b16 %v6654
      %v6744 = vunpack.c.l.b16 %v6655
      %v6745 = vunpack.c.h.b16 %v6655
      %v6746 = vunpack.c.l.b16 %v6656
      %v6747 = vunpack.c.h.b16 %v6656
      %v6748 = vunpack.c.l.b16 %v6657
      %v6749 = vunpack.c.h.b16 %v6657
      %v6750 = vunpack.c.l.b16 %v6658
      %v6751 = vunpack.c.h.b16 %v6658
      %v6752 = vunpack.c.l.b16 %v6659
      %v6753 = vunpack.c.h.b16 %v6659
      %v6754 = vunpack.c.l.b16 %v6660
      %v6755 = vunpack.c.h.b16 %v6660
      %v6756 = vunpack.c.l.b16 %v6661
      %v6757 = vunpack.c.h.b16 %v6661
      %v6758 = vpack.c.b16 %v6696, %v6694
      %v6759 = vpack.c.b16 %v6697, %v6695
      %v6760 = vpack.c.b16 %v6700, %v6698
      %v6761 = vpack.c.b16 %v6701, %v6699
      %v6762 = vpack.c.b16 %v6704, %v6702
      %v6763 = vpack.c.b16 %v6705, %v6703
      %v6764 = vpack.c.b16 %v6708, %v6706
      %v6765 = vpack.c.b16 %v6709, %v6707
      %v6766 = vpack.c.b16 %v6712, %v6710
      %v6767 = vpack.c.b16 %v6713, %v6711
      %v6768 = vpack.c.b16 %v6716, %v6714
      %v6769 = vpack.c.b16 %v6717, %v6715
      %v6770 = vpack.c.b16 %v6720, %v6718
      %v6771 = vpack.c.b16 %v6721, %v6719
      %v6772 = vpack.c.b16 %v6724, %v6722
      %v6773 = vpack.c.b16 %v6725, %v6723
      %v6774 = vpack.c.b16 %v6728, %v6726
      %v6775 = vpack.c.b16 %v6729, %v6727
      %v6776 = vpack.c.b16 %v6732, %v6730
      %v6777 = vpack.c.b16 %v6733, %v6731
      %v6778 = vpack.c.b16 %v6736, %v6734
      %v6779 = vpack.c.b16 %v6737, %v6735
      %v6780 = vpack.c.b16 %v6740, %v6738
      %v6781 = vpack.c.b16 %v6741, %v6739
      %v6782 = vpack.c.b16 %v6744, %v6742
      %v6783 = vpack.c.b16 %v6745, %v6743
      %v6784 = vpack.c.b16 %v6748, %v6746
      %v6785 = vpack.c.b16 %v6749, %v6747
      %v6786 = vpack.c.b16 %v6752, %v6750
      %v6787 = vpack.c.b16 %v6753, %v6751
      %v6788 = vpack.c.b16 %v6756, %v6754
      %v6789 = vpack.c.b16 %v6757, %v6755
      %6822 = vmatprep.subr.bf16.mxu0 %v6759
      %6823 = vmatpush1.bf16.msra.mxu0 %v6758
      %6824 = vmatprep.subr.bf16.mxu0 %v6761
      %6825 = vmatpush1.bf16.msra.mxu0 %v6760
      %6826 = vmatprep.subr.bf16.mxu0 %v6763
      %6827 = vmatpush1.bf16.msra.mxu0 %v6762
      %6828 = vmatprep.subr.bf16.mxu0 %v6765
      %6829 = vmatpush1.bf16.msra.mxu0 %v6764
      %6830 = vmatprep.subr.bf16.mxu0 %v6767
      %6831 = vmatpush1.bf16.msra.mxu0 %v6766
      %6832 = vmatprep.subr.bf16.mxu0 %v6769
      %6833 = vmatpush1.bf16.msra.mxu0 %v6768
      %6834 = vmatprep.subr.bf16.mxu0 %v6771
      %6835 = vmatpush1.bf16.msra.mxu0 %v6770
      %6836 = vmatprep.subr.bf16.mxu0 %v6773
      %6837 = vmatpush1.bf16.msra.mxu0 %v6772
      %6838 = vmatprep.subr.bf16.mxu0 %v6775
      %6839 = vmatpush1.bf16.msra.mxu0 %v6774
      %6840 = vmatprep.subr.bf16.mxu0 %v6777
      %6841 = vmatpush1.bf16.msra.mxu0 %v6776
      %6842 = vmatprep.subr.bf16.mxu0 %v6779
      %6843 = vmatpush1.bf16.msra.mxu0 %v6778
      %6844 = vmatprep.subr.bf16.mxu0 %v6781
      %6845 = vmatpush1.bf16.msra.mxu0 %v6780
      %6846 = vmatprep.subr.bf16.mxu0 %v6783
      %6847 = vmatpush1.bf16.msra.mxu0 %v6782
      %6848 = vmatprep.subr.bf16.mxu0 %v6785
      %6849 = vmatpush1.bf16.msra.mxu0 %v6784
      %6850 = vmatprep.subr.bf16.mxu0 %v6787
      %6851 = vmatpush1.bf16.msra.mxu0 %v6786
      %6852 = vmatprep.subr.bf16.mxu0 %v6789
      %6853 = vmatpush1.bf16.msra.mxu0 %v6788
      %6854 = vmatprep.mubr.bf16.mxu0 %v6622
      %6855 = vmatmul.mubr.bf16.gmra.mrb[0].mxu0 %v6621
      %v6856 = vpop.f32.mrb[0].mxu0
      %v6857 = vadd.f32 0.0, %v6856
      %v6858 = vpop.f32.mrb[0].mxu0
      %v6859 = vadd.f32 0.0, %v6858
      %v6860 = vpop.f32.mrb[0].mxu0
      %v6861 = vadd.f32 0.0, %v6860
      %v6862 = vpop.f32.mrb[0].mxu0
      %v6863 = vadd.f32 0.0, %v6862
      %6864 = vmatprep.mubr.bf16.mxu0 %v6624
      %6865 = vmatmul.mubr.bf16.gmra.mrb[0].mxu0 %v6623
      %v6866 = vpop.f32.mrb[0].mxu0
      %v6867 = vadd.f32 0.0, %v6866
      %v6868 = vpop.f32.mrb[0].mxu0
      %v6869 = vadd.f32 0.0, %v6868
      %v6870 = vpop.f32.mrb[0].mxu0
      %v6871 = vadd.f32 0.0, %v6870
      %v6872 = vpop.f32.mrb[0].mxu0
      %v6873 = vadd.f32 0.0, %v6872
      %6874 = vmatprep.mubr.bf16.mxu0 %v6626
      %6875 = vmatmul.mubr.bf16.gmra.mrb[0].mxu0 %v6625
      %v6876 = vpop.f32.mrb[0].mxu0
      %v6877 = vadd.f32 0.0, %v6876
      %v6878 = vpop.f32.mrb[0].mxu0
      %v6879 = vadd.f32 0.0, %v6878
      %v6880 = vpop.f32.mrb[0].mxu0
      %v6881 = vadd.f32 0.0, %v6880
      %v6882 = vpop.f32.mrb[0].mxu0
      %v6883 = vadd.f32 0.0, %v6882
      %6884 = vmatprep.mubr.bf16.mxu0 %v6628
      %6885 = vmatmul.mubr.bf16.gmra.mrb[0].mxu0 %v6627
      %v6886 = vpop.f32.mrb[0].mxu0
      %v6887 = vadd.f32 0.0, %v6886
      %v6888 = vpop.f32.mrb[0].mxu0
      %v6889 = vadd.f32 0.0, %v6888
      %v6890 = vpop.f32.mrb[0].mxu0
      %v6891 = vadd.f32 0.0, %v6890
      %v6892 = vpop.f32.mrb[0].mxu0
      %v6893 = vadd.f32 0.0, %v6892
      %6894 = vdwg.mxu0
      %v6895 = vadd.f32 %v6477, %v6857
      %v6896 = vadd.f32 %v6478, %v6859
      %v6897 = vadd.f32 %v6479, %v6861
      %v6898 = vadd.f32 %v6480, %v6863
      %v6899 = vadd.f32 %v6481, %v6867
      %v6900 = vadd.f32 %v6482, %v6869
      %v6901 = vadd.f32 %v6483, %v6871
      %v6902 = vadd.f32 %v6484, %v6873
      %v6903 = vadd.f32 %v6485, %v6877
      %v6904 = vadd.f32 %v6486, %v6879
      %v6905 = vadd.f32 %v6487, %v6881
      %v6906 = vadd.f32 %v6488, %v6883
      %v6907 = vadd.f32 %v6489, %v6887
      %v6908 = vadd.f32 %v6490, %v6889
      %v6909 = vadd.f32 %v6491, %v6891
      %v6910 = vadd.f32 %v6492, %v6893
      %6911 = vst [vmem:[%s484] sm:$0xff] %v6895
      %6912 = vst [vmem:[%s484 + $0x8] sm:$0xff] %v6896
      %6913 = vst [vmem:[%s484 + $0x10] sm:$0xff] %v6897
      %6914 = vst [vmem:[%s484 + $0x18] sm:$0xff] %v6898
      %6915 = vst [vmem:[%s484 + $0x20] sm:$0xff] %v6899
      %6916 = vst [vmem:[%s484 + $0x28] sm:$0xff] %v6900
      %6917 = vst [vmem:[%s484 + $0x30] sm:$0xff] %v6901
      %6918 = vst [vmem:[%s484 + $0x38] sm:$0xff] %v6902
      %6919 = vst [vmem:[%s484 + $0x40] sm:$0xff] %v6903
      %6920 = vst [vmem:[%s484 + $0x48] sm:$0xff] %v6904
      %6921 = vst [vmem:[%s484 + $0x50] sm:$0xff] %v6905
      %6922 = vst [vmem:[%s484 + $0x58] sm:$0xff] %v6906
      %6923 = vst [vmem:[%s484 + $0x60] sm:$0xff] %v6907
      %6924 = vst [vmem:[%s484 + $0x68] sm:$0xff] %v6908
      %6925 = vst [vmem:[%s484 + $0x70] sm:$0xff] %v6909
      %6926 = vst [vmem:[%s484 + $0x78] sm:$0xff] %v6910
      %p6927 = scmp.lt.s32.totalorder %s25, 1
      %s6928 = scalar_select %p6927, %s25, 1
      %s6929 = smul.addr %s6928, 16
      %s6930 = smul.addr %s6929, 8
      %s6931 = scalar_lea.vmem %s14, %s6930
      // Predicated region
      $region77: #{resnet_block_3d_forward.1} parent=75 // pred_check
        %p6932 = pneg %p347
      $region78: #{resnet_block_3d_forward.1} parent=75 // pred_check_branch
        %6934 = sbr.rel (%p6932) target = $region80
      $region79: #{resnet_block_3d_forward.1} parent=75 // pred_region
        _
      $region80: #{resnet_block_3d_forward.1} parent=75 // pred_fallthru
        _
    $region76: #{resnet_block_3d_forward.1} parent=5 // pred_fallthru
      _
    %p6935 = scmp.le.s32.totalorder 2, %s20
    // Predicated region
    $region81: #{resnet_block_3d_forward.1} parent=5 // pred_check
      %p6936 = pneg %p6935
    $region82: #{resnet_block_3d_forward.1} parent=5 // pred_check_branch
      %6938 = sbr.rel (%p6936) target = $region84
    $region83: #{resnet_block_3d_forward.1} parent=5 // pred_region
      %s6939 = ssub.s32 %s20, 2
      // Predicated region
      $region85: #{resnet_block_3d_forward.1} parent=83 // pred_check
        %p6940 = pneg %p353
      $region86: #{resnet_block_3d_forward.1} parent=83 // pred_check_branch
        %6942 = sbr.rel (%p6940) target = $region88
      $region87: #{resnet_block_3d_forward.1} parent=83 // pred_region
        %p6943 = scmp.lt.s32.totalorder %s26, 1
        %s6944 = scalar_select %p6943, %s26, 1
        %s6945 = smul.addr %s6944, 16
        %s6946 = smul.addr %s6945, 8
        %s6947 = scalar_lea.vmem %s14, %s6946
      $region88: #{resnet_block_3d_forward.1} parent=83 // pred_fallthru
        _
    $region84: #{resnet_block_3d_forward.1} parent=5 // pred_fallthru
      _
  $region6: #{resnet_block_3d_forward.1} parent=0 // loop_footer
    %s24 = sadd.s32 1, %s20
  $region7: #{resnet_block_3d_forward.1} parent=0 // loop_footer_branch
    %19 = sbr.rel target = $region3
  $region8: #{resnet_block_3d_forward.1} parent=0 // loop_exit
    _

</llo_original>
